<compile_context>
chip_gen: v6e
topology: v6e:2x2x1
jax: 0.10.0
libtpu: 0.0.40
codegen_flags: <defaults>
</compile_context>

<pallas_src>
import math

import jax
import jax.numpy as jnp
from jax.experimental import pallas as pl
from jax.experimental.pallas import tpu as pltpu

# ---- module hyper-parameters (from the PyTorch source) ----
D_K = D_V = 64
D_MODEL = 32
N_HEADS = 8
D_FF = 2048
LN_EPS = 1e-5

_INV_SQRT_DK = 1.0 / math.sqrt(D_K)


def _layer_norm(y):
    """LayerNorm over the last dim, identity affine (fresh nn.LayerNorm each call).
    Single-pass statistics: var = E[x^2] - E[x]^2."""
    mean = jnp.mean(y, axis=-1, keepdims=True)
    mean_sq = jnp.mean(y * y, axis=-1, keepdims=True)
    var = mean_sq - mean * mean
    return (y - mean) * jax.lax.rsqrt(var + LN_EPS)


def _attention_block(x_q, x_kv, wq, wk, wv, wo):
    """MultiHeadAttention + add&norm for a single batch element.

    x_q:  [Lq, D_MODEL] f32     x_kv: [Lk, D_MODEL] f32
    wq/wk/wv: [H*dk, D_MODEL] bf16  (nn.Linear [out, in] layout)
    wo:       [H*dv, D_MODEL] bf16  ([in, out] layout)
    returns (layer_norm(attn_out + x_q) [Lq, D] f32, attn [H, Lq, Lk] f32)
    """
    lq = x_q.shape[0]
    lk = x_kv.shape[0]

    # Head-major projections: (H*dk, L) = W @ x^T -- one MXU matmul each; the head
    # axis lands on the leading (sub-lane-major) dim so no head loop / lane slicing
    # is needed afterwards (the reshape only regroups whole sub-lane tiles).
    xq_t = x_q.T.astype(jnp.bfloat16)        # [D, Lq]
    xkv_t = x_kv.T.astype(jnp.bfloat16)      # [D, Lk]
    q3 = jnp.dot(wq, xq_t, preferred_element_type=jnp.float32).reshape(N_HEADS, D_K, lq)
    k3 = jnp.dot(wk, xkv_t, preferred_element_type=jnp.float32).reshape(N_HEADS, D_K, lk)
    v3 = jnp.dot(wv, xkv_t, preferred_element_type=jnp.float32).reshape(N_HEADS, D_V, lk)

    # Batched minor-dim transpose (last two dims) to get [H, Lq, dk] for the scores.
    qh = jnp.swapaxes(q3, 1, 2).astype(jnp.bfloat16)

    # Scores for all heads in one batched contraction (head = batch dim).
    scores = jnp.einsum("hqd,hdk->hqk", qh, k3.astype(jnp.bfloat16),
                        preferred_element_type=jnp.float32) * _INV_SQRT_DK  # [H, Lq, Lk]
    scores = scores - jnp.max(scores, axis=-1, keepdims=True)
    e = jnp.exp(scores)
    attn = e * pl.reciprocal(jnp.sum(e, axis=-1, keepdims=True), approx=True)  # [H, Lq, Lk]

    # Context for all heads (contract the key dim of both operands).
    ctx = jnp.einsum("hqk,hdk->hqd", attn.astype(jnp.bfloat16), v3.astype(jnp.bfloat16),
                     preferred_element_type=jnp.float32)                       # [H, Lq, dv]

    # Output projection: batched per-head matmul + head-sum == concat(ctx) @ W_O.
    wo3 = wo.reshape(N_HEADS, D_V, D_MODEL)
    proj = jnp.einsum("hqd,hdm->hqm", ctx.astype(jnp.bfloat16), wo3,
                      preferred_element_type=jnp.float32)                      # [H, Lq, D]
    out = jnp.sum(proj, axis=0)                                                # [Lq, D]

    return _layer_norm(out + x_q), attn


def _decoder_layer_kernel(dec_ref, enc_ref,
                          sa_wq_ref, sa_wk_ref, sa_wv_ref, sa_wo_ref,
                          ca_wq_ref, ca_wk_ref, ca_wv_ref, ca_wo_ref,
                          ff_w1_ref, ff_w2_ref,
                          out_ref, self_attn_ref, enc_attn_ref):
    x_dec = dec_ref[0]     # [Lq, D] f32
    x_enc = enc_ref[0]     # [Lk, D] f32

    # ---- masked self-attention + add&norm (mask ignored, as in the reference) ----
    y1, self_attn = _attention_block(
        x_dec, x_dec,
        sa_wq_ref[...], sa_wk_ref[...], sa_wv_ref[...], sa_wo_ref[...])
    self_attn_ref[0] = self_attn            # single store for all heads

    # ---- encoder-decoder attention + add&norm ----
    y2, enc_attn = _attention_block(
        y1, x_enc,
        ca_wq_ref[...], ca_wk_ref[...], ca_wv_ref[...], ca_wo_ref[...])
    enc_attn_ref[0] = enc_attn

    # ---- position-wise feed-forward + add&norm ----
    h = jnp.dot(y2.astype(jnp.bfloat16), ff_w1_ref[...],
                preferred_element_type=jnp.float32)              # [Lq, D_FF]
    h = jnp.maximum(h, 0.0).astype(jnp.bfloat16)                 # ReLU
    y = jnp.dot(h, ff_w2_ref[...],
                preferred_element_type=jnp.float32)              # [Lq, D]
    out_ref[0] = _layer_norm(y + y2)


def decoder_layer_pallas(params, dec_inputs, enc_outputs,
                         dec_self_attn_mask, dec_enc_attn_mask):
    """dec_inputs [B, tgt_len, D], enc_outputs [B, src_len, D].
    Masks are accepted for API parity but ignored — exactly like the reference
    ScaledDotProductAttention (it never applies attn_mask)."""
    del dec_self_attn_mask, dec_enc_attn_mask
    B, lq, _ = dec_inputs.shape
    lk = enc_outputs.shape[1]

    bf16 = lambda w: w.astype(jnp.bfloat16)
    weights = (bf16(params["sa_wq"]), bf16(params["sa_wk"]),
               bf16(params["sa_wv"]), bf16(params["sa_wo"]),
               bf16(params["ca_wq"]), bf16(params["ca_wk"]),
               bf16(params["ca_wv"]), bf16(params["ca_wo"]),
               bf16(params["ff_w1"]), bf16(params["ff_w2"]))

    def full2d(shape):
        return pl.BlockSpec(shape, lambda b: (0, 0))

    in_specs = [
        pl.BlockSpec((1, lq, D_MODEL), lambda b: (b, 0, 0)),
        pl.BlockSpec((1, lk, D_MODEL), lambda b: (b, 0, 0)),
        full2d((N_HEADS * D_K, D_MODEL)), full2d((N_HEADS * D_K, D_MODEL)),
        full2d((N_HEADS * D_V, D_MODEL)), full2d((N_HEADS * D_V, D_MODEL)),
        full2d((N_HEADS * D_K, D_MODEL)), full2d((N_HEADS * D_K, D_MODEL)),
        full2d((N_HEADS * D_V, D_MODEL)), full2d((N_HEADS * D_V, D_MODEL)),
        full2d((D_MODEL, D_FF)), full2d((D_FF, D_MODEL)),
    ]
    out_specs = [
        pl.BlockSpec((1, lq, D_MODEL), lambda b: (b, 0, 0)),
        pl.BlockSpec((1, N_HEADS, lq, lq), lambda b: (b, 0, 0, 0)),
        pl.BlockSpec((1, N_HEADS, lq, lk), lambda b: (b, 0, 0, 0)),
    ]
    out_shape = (
        jax.ShapeDtypeStruct((B, lq, D_MODEL), jnp.float32),
        jax.ShapeDtypeStruct((B, N_HEADS, lq, lq), jnp.float32),
        jax.ShapeDtypeStruct((B, N_HEADS, lq, lk), jnp.float32),
    )

    return pl.pallas_call(
        _decoder_layer_kernel,
        out_shape=out_shape,
        grid_spec=pltpu.PrefetchScalarGridSpec(
            num_scalar_prefetch=0,
            grid=(B,),
            in_specs=in_specs,
            out_specs=out_specs,
        ),
        compiler_params=pltpu.CompilerParams(
            dimension_semantics=("parallel",)),
    )(dec_inputs, enc_outputs, *weights)


decoder_layer = jax.jit(decoder_layer_pallas)


def init_params(key):
    """Deterministic parameter init (shapes mirror the PyTorch __init__)."""
    ks = jax.random.split(key, 10)
    s = 0.05
    n = lambda k, shape: jax.random.normal(k, shape, jnp.float32) * s
    return {
        # dec_self_attn: W_Q/W_K/W_V in nn.Linear [out, in] layout, fc in [in, out]
        "sa_wq": n(ks[0], (N_HEADS * D_K, D_MODEL)),
        "sa_wk": n(ks[1], (N_HEADS * D_K, D_MODEL)),
        "sa_wv": n(ks[2], (N_HEADS * D_V, D_MODEL)),
        "sa_wo": n(ks[3], (N_HEADS * D_V, D_MODEL)),
        # dec_enc_attn
        "ca_wq": n(ks[4], (N_HEADS * D_K, D_MODEL)),
        "ca_wk": n(ks[5], (N_HEADS * D_K, D_MODEL)),
        "ca_wv": n(ks[6], (N_HEADS * D_V, D_MODEL)),
        "ca_wo": n(ks[7], (N_HEADS * D_V, D_MODEL)),
        # pos_ffn ([in, out] layout)
        "ff_w1": n(ks[8], (D_MODEL, D_FF)),
        "ff_w2": n(ks[9], (D_FF, D_MODEL)),
    }


def decoder_layer_reference(params, dec_inputs, enc_outputs):
    """Pure-JAX f32 re-implementation of the PyTorch DecoderLayer (sanity check)."""
    def layer_norm(y):
        mean = jnp.mean(y, axis=-1, keepdims=True)
        var = jnp.mean((y - mean) ** 2, axis=-1, keepdims=True)
        return (y - mean) * jax.lax.rsqrt(var + LN_EPS)

    def mha(x_q, x_kv, wq, wk, wv, wo):
        b, lq, _ = x_q.shape
        lk = x_kv.shape[1]
        q = (x_q @ wq.T).reshape(b, lq, N_HEADS, D_K).transpose(0, 2, 1, 3)
        k = (x_kv @ wk.T).reshape(b, lk, N_HEADS, D_K).transpose(0, 2, 1, 3)
        v = (x_kv @ wv.T).reshape(b, lk, N_HEADS, D_V).transpose(0, 2, 1, 3)
        scores = q @ jnp.swapaxes(k, -1, -2) * _INV_SQRT_DK
        attn = jax.nn.softmax(scores, axis=-1)
        ctx = (attn @ v).transpose(0, 2, 1, 3).reshape(b, lq, N_HEADS * D_V)
        return layer_norm(ctx @ wo + x_q), attn

    y1, sa = mha(dec_inputs, dec_inputs,
                 params["sa_wq"], params["sa_wk"], params["sa_wv"], params["sa_wo"])
    y2, ca = mha(y1, enc_outputs,
                 params["ca_wq"], params["ca_wk"], params["ca_wv"], params["ca_wo"])
    h = jnp.maximum(y2 @ params["ff_w1"], 0.0)
    y3 = layer_norm(h @ params["ff_w2"] + y2)
    return y3, sa, ca


if __name__ == "__main__":
    key = jax.random.PRNGKey(0)
    k_par, k_dec, k_enc = jax.random.split(key, 3)

    B, TGT_LEN, SRC_LEN = 2, 8, 8

    params = init_params(k_par)
    dec_inputs = jax.random.normal(k_dec, (B, TGT_LEN, D_MODEL), jnp.float32)
    enc_outputs = jax.random.normal(k_enc, (B, SRC_LEN, D_MODEL), jnp.float32)
    dec_self_attn_mask = jnp.zeros((B, TGT_LEN, TGT_LEN), jnp.float32)
    dec_enc_attn_mask = jnp.zeros((B, TGT_LEN, SRC_LEN), jnp.float32)

    out, self_attn, enc_attn = decoder_layer(
        params, dec_inputs, enc_outputs, dec_self_attn_mask, dec_enc_attn_mask)
    jax.block_until_ready((out, self_attn, enc_attn))

    assert out.shape == (B, TGT_LEN, D_MODEL)
    assert self_attn.shape == (B, N_HEADS, TGT_LEN, TGT_LEN)
    assert enc_attn.shape == (B, N_HEADS, TGT_LEN, SRC_LEN)

    # Sanity check vs. an f32 pure-JAX reference (bf16 matmul operands => loose tol).
    ref_out, ref_sa, ref_ca = decoder_layer_reference(params, dec_inputs, enc_outputs)
    assert float(jnp.max(jnp.abs(out - ref_out))) < 1e-1
    assert float(jnp.max(jnp.abs(self_attn - ref_sa))) < 5e-2
    assert float(jnp.max(jnp.abs(enc_attn - ref_ca))) < 5e-2

    print("KERNEL_OK")
</pallas_src>

<mosaic_0001>
module attributes {stable_mosaic.version = 11 : i64} {
  func.func @_decoder_layer_kernel(%arg0: i32, %arg1: memref<1x8x32xf32, #tpu.memory_space<vmem>>, %arg2: memref<1x8x32xf32, #tpu.memory_space<vmem>>, %arg3: memref<512x32xbf16, #tpu.memory_space<vmem>>, %arg4: memref<512x32xbf16, #tpu.memory_space<vmem>>, %arg5: memref<512x32xbf16, #tpu.memory_space<vmem>>, %arg6: memref<512x32xbf16, #tpu.memory_space<vmem>>, %arg7: memref<512x32xbf16, #tpu.memory_space<vmem>>, %arg8: memref<512x32xbf16, #tpu.memory_space<vmem>>, %arg9: memref<512x32xbf16, #tpu.memory_space<vmem>>, %arg10: memref<512x32xbf16, #tpu.memory_space<vmem>>, %arg11: memref<32x2048xbf16, #tpu.memory_space<vmem>>, %arg12: memref<2048x32xbf16, #tpu.memory_space<vmem>>, %arg13: memref<1x8x32xf32, #tpu.memory_space<vmem>>, %arg14: memref<1x8x8x8xf32, #tpu.memory_space<vmem>>, %arg15: memref<1x8x8x8xf32, #tpu.memory_space<vmem>>) attributes {dimension_semantics = [#tpu.dimension_semantics<parallel>], iteration_bounds = array<i64: 2>, scalar_prefetch = 0 : i64, scratch_operands = 0 : i64, tpu.core_type = #tpu.core_type<tc>, window_params = [{transform_indices = @transform_0, window_bounds = array<i64: 1, 8, 32>}, {transform_indices = @transform_1, window_bounds = array<i64: 1, 8, 32>}, {pipeline_mode = #tpu.pipeline_mode<synchronous>, transform_indices = @transform_2, window_bounds = array<i64: 512, 32>}, {pipeline_mode = #tpu.pipeline_mode<synchronous>, transform_indices = @transform_3, window_bounds = array<i64: 512, 32>}, {pipeline_mode = #tpu.pipeline_mode<synchronous>, transform_indices = @transform_4, window_bounds = array<i64: 512, 32>}, {pipeline_mode = #tpu.pipeline_mode<synchronous>, transform_indices = @transform_5, window_bounds = array<i64: 512, 32>}, {pipeline_mode = #tpu.pipeline_mode<synchronous>, transform_indices = @transform_6, window_bounds = array<i64: 512, 32>}, {pipeline_mode = #tpu.pipeline_mode<synchronous>, transform_indices = @transform_7, window_bounds = array<i64: 512, 32>}, {pipeline_mode = #tpu.pipeline_mode<synchronous>, transform_indices = @transform_8, window_bounds = array<i64: 512, 32>}, {pipeline_mode = #tpu.pipeline_mode<synchronous>, transform_indices = @transform_9, window_bounds = array<i64: 512, 32>}, {pipeline_mode = #tpu.pipeline_mode<synchronous>, transform_indices = @transform_10, window_bounds = array<i64: 32, 2048>}, {pipeline_mode = #tpu.pipeline_mode<synchronous>, transform_indices = @transform_11, window_bounds = array<i64: 2048, 32>}, {transform_indices = @transform_12, window_bounds = array<i64: 1, 8, 32>}, {transform_indices = @transform_13, window_bounds = array<i64: 1, 8, 8, 8>}, {transform_indices = @transform_14, window_bounds = array<i64: 1, 8, 8, 8>}]} {
    %c0 = arith.constant 0 : index
    %c0_0 = arith.constant 0 : index
    %c0_1 = arith.constant 0 : index
    %0 = vector.load %arg1[%c0, %c0_0, %c0_1] : memref<1x8x32xf32, #tpu.memory_space<vmem>>, vector<1x8x32xf32>
    %1 = vector.shape_cast %0 : vector<1x8x32xf32> to vector<8x32xf32>
    %c0_2 = arith.constant 0 : index
    %c0_3 = arith.constant 0 : index
    %c0_4 = arith.constant 0 : index
    %2 = vector.load %arg2[%c0_2, %c0_3, %c0_4] : memref<1x8x32xf32, #tpu.memory_space<vmem>>, vector<1x8x32xf32>
    %3 = vector.shape_cast %2 : vector<1x8x32xf32> to vector<8x32xf32>
    %c0_5 = arith.constant 0 : index
    %c0_6 = arith.constant 0 : index
    %4 = vector.load %arg3[%c0_5, %c0_6] : memref<512x32xbf16, #tpu.memory_space<vmem>>, vector<512x32xbf16>
    %c0_7 = arith.constant 0 : index
    %c0_8 = arith.constant 0 : index
    %5 = vector.load %arg4[%c0_7, %c0_8] : memref<512x32xbf16, #tpu.memory_space<vmem>>, vector<512x32xbf16>
    %c0_9 = arith.constant 0 : index
    %c0_10 = arith.constant 0 : index
    %6 = vector.load %arg5[%c0_9, %c0_10] : memref<512x32xbf16, #tpu.memory_space<vmem>>, vector<512x32xbf16>
    %c0_11 = arith.constant 0 : index
    %c0_12 = arith.constant 0 : index
    %7 = vector.load %arg6[%c0_11, %c0_12] : memref<512x32xbf16, #tpu.memory_space<vmem>>, vector<512x32xbf16>
    %8 = tpu.transpose %1, [1, 0] : vector<8x32xf32> -> vector<32x8xf32>
    %9 = arith.truncf %8 : vector<32x8xf32> to vector<32x8xbf16>
    %10 = tpu.transpose %1, [1, 0] : vector<8x32xf32> -> vector<32x8xf32>
    %11 = arith.truncf %10 : vector<32x8xf32> to vector<32x8xbf16>
    %cst = arith.constant dense<0.000000e+00> : vector<512x8xf32>
    %12 = tpu.matmul %4, %9, %cst {dimension_numbers = #tpu.dot_dimension_numbers<[1], [0], [0], [1], [0, 0, 1, 1], [], []>} : vector<512x32xbf16>, vector<32x8xbf16>, vector<512x8xf32> -> vector<512x8xf32>
    %13 = vector.shape_cast %12 : vector<512x8xf32> to vector<8x64x8xf32>
    %cst_13 = arith.constant dense<0.000000e+00> : vector<512x8xf32>
    %14 = tpu.matmul %5, %11, %cst_13 {dimension_numbers = #tpu.dot_dimension_numbers<[1], [0], [0], [1], [0, 0, 1, 1], [], []>} : vector<512x32xbf16>, vector<32x8xbf16>, vector<512x8xf32> -> vector<512x8xf32>
    %15 = vector.shape_cast %14 : vector<512x8xf32> to vector<8x64x8xf32>
    %cst_14 = arith.constant dense<0.000000e+00> : vector<512x8xf32>
    %16 = tpu.matmul %6, %11, %cst_14 {dimension_numbers = #tpu.dot_dimension_numbers<[1], [0], [0], [1], [0, 0, 1, 1], [], []>} : vector<512x32xbf16>, vector<32x8xbf16>, vector<512x8xf32> -> vector<512x8xf32>
    %17 = vector.shape_cast %16 : vector<512x8xf32> to vector<8x64x8xf32>
    %18 = tpu.transpose %13, [0, 2, 1] : vector<8x64x8xf32> -> vector<8x8x64xf32>
    %19 = arith.truncf %18 : vector<8x8x64xf32> to vector<8x8x64xbf16>
    %20 = arith.truncf %15 : vector<8x64x8xf32> to vector<8x64x8xbf16>
    "tpu.trace_start"() <{level = 10 : i32, message = "hqd,hdk->hqk"}> : () -> ()
    %cst_15 = arith.constant dense<0.000000e+00> : vector<8x8x8xf32>
    %21 = tpu.matmul %19, %20, %cst_15 {dimension_numbers = #tpu.dot_dimension_numbers<[2], [1], [1], [2], [0, 0, 0, 1, 1, 2], [0], [0]>} : vector<8x8x64xbf16>, vector<8x64x8xbf16>, vector<8x8x8xf32> -> vector<8x8x8xf32>
    "tpu.trace_stop"() : () -> ()
    %cst_16 = arith.constant 1.250000e-01 : f32
    %22 = vector.broadcast %cst_16 : f32 to vector<8x8x8xf32>
    %23 = arith.mulf %21, %22 : vector<8x8x8xf32>
    %cst_17 = arith.constant dense<0xFF800000> : vector<8x8xf32>
    %24 = vector.multi_reduction <maximumf>, %23, %cst_17 [2] : vector<8x8x8xf32> to vector<8x8xf32>
    %25 = vector.shape_cast %24 : vector<8x8xf32> to vector<8x8x1xf32>
    %26 = vector.broadcast %25 : vector<8x8x1xf32> to vector<8x8x8xf32>
    %27 = arith.subf %23, %26 : vector<8x8x8xf32>
    %28 = math.exp %27 : vector<8x8x8xf32>
    %cst_18 = arith.constant dense<0.000000e+00> : vector<8x8xf32>
    %29 = vector.multi_reduction <add>, %28, %cst_18 [2] : vector<8x8x8xf32> to vector<8x8xf32>
    %30 = vector.shape_cast %29 : vector<8x8xf32> to vector<8x8x1xf32>
    %31 = tpu.reciprocal %30 {approx = true} : vector<8x8x1xf32> -> vector<8x8x1xf32>
    %32 = vector.broadcast %31 : vector<8x8x1xf32> to vector<8x8x8xf32>
    %33 = arith.mulf %28, %32 : vector<8x8x8xf32>
    %34 = arith.truncf %33 : vector<8x8x8xf32> to vector<8x8x8xbf16>
    %35 = arith.truncf %17 : vector<8x64x8xf32> to vector<8x64x8xbf16>
    "tpu.trace_start"() <{level = 10 : i32, message = "hqk,hdk->hqd"}> : () -> ()
    %cst_19 = arith.constant dense<0.000000e+00> : vector<8x8x64xf32>
    %36 = tpu.matmul %34, %35, %cst_19 {dimension_numbers = #tpu.dot_dimension_numbers<[2], [2], [1], [1], [0, 0, 0, 1, 1, 1], [0], [0]>} : vector<8x8x8xbf16>, vector<8x64x8xbf16>, vector<8x8x64xf32> -> vector<8x8x64xf32>
    "tpu.trace_stop"() : () -> ()
    %37 = vector.shape_cast %7 : vector<512x32xbf16> to vector<8x64x32xbf16>
    %38 = arith.truncf %36 : vector<8x8x64xf32> to vector<8x8x64xbf16>
    "tpu.trace_start"() <{level = 10 : i32, message = "hqd,hdm->hqm"}> : () -> ()
    %cst_20 = arith.constant dense<0.000000e+00> : vector<8x8x32xf32>
    %39 = tpu.matmul %38, %37, %cst_20 {dimension_numbers = #tpu.dot_dimension_numbers<[2], [1], [1], [2], [0, 0, 0, 1, 1, 2], [0], [0]>} : vector<8x8x64xbf16>, vector<8x64x32xbf16>, vector<8x8x32xf32> -> vector<8x8x32xf32>
    "tpu.trace_stop"() : () -> ()
    %cst_21 = arith.constant dense<0.000000e+00> : vector<8x32xf32>
    %40 = vector.multi_reduction <add>, %39, %cst_21 [0] : vector<8x8x32xf32> to vector<8x32xf32>
    %41 = arith.addf %40, %1 : vector<8x32xf32>
    %cst_22 = arith.constant dense<0.000000e+00> : vector<8xf32>
    %42 = vector.multi_reduction <add>, %41, %cst_22 [1] : vector<8x32xf32> to vector<8xf32>
    %43 = vector.shape_cast %42 : vector<8xf32> to vector<8x1xf32>
    %cst_23 = arith.constant 3.200000e+01 : f32
    %44 = vector.broadcast %cst_23 : f32 to vector<8x1xf32>
    %45 = arith.divf %43, %44 : vector<8x1xf32>
    %46 = arith.mulf %41, %41 : vector<8x32xf32>
    %cst_24 = arith.constant dense<0.000000e+00> : vector<8xf32>
    %47 = vector.multi_reduction <add>, %46, %cst_24 [1] : vector<8x32xf32> to vector<8xf32>
    %48 = vector.shape_cast %47 : vector<8xf32> to vector<8x1xf32>
    %cst_25 = arith.constant 3.200000e+01 : f32
    %49 = vector.broadcast %cst_25 : f32 to vector<8x1xf32>
    %50 = arith.divf %48, %49 : vector<8x1xf32>
    %51 = arith.mulf %45, %45 : vector<8x1xf32>
    %52 = arith.subf %50, %51 : vector<8x1xf32>
    %53 = vector.broadcast %45 : vector<8x1xf32> to vector<8x32xf32>
    %54 = arith.subf %41, %53 : vector<8x32xf32>
    %cst_26 = arith.constant 9.99999974E-6 : f32
    %55 = vector.broadcast %cst_26 : f32 to vector<8x1xf32>
    %56 = arith.addf %52, %55 : vector<8x1xf32>
    %57 = math.rsqrt %56 : vector<8x1xf32>
    %58 = vector.broadcast %57 : vector<8x1xf32> to vector<8x32xf32>
    %59 = arith.mulf %54, %58 : vector<8x32xf32>
    %c0_27 = arith.constant 0 : index
    %c0_28 = arith.constant 0 : index
    %c0_29 = arith.constant 0 : index
    %c0_30 = arith.constant 0 : index
    %60 = vector.load %arg14[%c0_27, %c0_28, %c0_29, %c0_30] : memref<1x8x8x8xf32, #tpu.memory_space<vmem>>, vector<1x8x8x8xf32>
    %61 = vector.shape_cast %60 : vector<1x8x8x8xf32> to vector<8x8x8xf32>
    %62 = vector.shape_cast %33 : vector<8x8x8xf32> to vector<1x8x8x8xf32>
    tpu.vector_store %arg14[%c0_27, %c0_28, %c0_29, %c0_30], %62 {strides = array<i32>} : memref<1x8x8x8xf32, #tpu.memory_space<vmem>>, vector<1x8x8x8xf32>,
    %c0_31 = arith.constant 0 : index
    %c0_32 = arith.constant 0 : index
    %63 = vector.load %arg7[%c0_31, %c0_32] : memref<512x32xbf16, #tpu.memory_space<vmem>>, vector<512x32xbf16>
    %c0_33 = arith.constant 0 : index
    %c0_34 = arith.constant 0 : index
    %64 = vector.load %arg8[%c0_33, %c0_34] : memref<512x32xbf16, #tpu.memory_space<vmem>>, vector<512x32xbf16>
    %c0_35 = arith.constant 0 : index
    %c0_36 = arith.constant 0 : index
    %65 = vector.load %arg9[%c0_35, %c0_36] : memref<512x32xbf16, #tpu.memory_space<vmem>>, vector<512x32xbf16>
    %c0_37 = arith.constant 0 : index
    %c0_38 = arith.constant 0 : index
    %66 = vector.load %arg10[%c0_37, %c0_38] : memref<512x32xbf16, #tpu.memory_space<vmem>>, vector<512x32xbf16>
    %67 = tpu.transpose %59, [1, 0] : vector<8x32xf32> -> vector<32x8xf32>
    %68 = arith.truncf %67 : vector<32x8xf32> to vector<32x8xbf16>
    %69 = tpu.transpose %3, [1, 0] : vector<8x32xf32> -> vector<32x8xf32>
    %70 = arith.truncf %69 : vector<32x8xf32> to vector<32x8xbf16>
    %cst_39 = arith.constant dense<0.000000e+00> : vector<512x8xf32>
    %71 = tpu.matmul %63, %68, %cst_39 {dimension_numbers = #tpu.dot_dimension_numbers<[1], [0], [0], [1], [0, 0, 1, 1], [], []>} : vector<512x32xbf16>, vector<32x8xbf16>, vector<512x8xf32> -> vector<512x8xf32>
    %72 = vector.shape_cast %71 : vector<512x8xf32> to vector<8x64x8xf32>
    %cst_40 = arith.constant dense<0.000000e+00> : vector<512x8xf32>
    %73 = tpu.matmul %64, %70, %cst_40 {dimension_numbers = #tpu.dot_dimension_numbers<[1], [0], [0], [1], [0, 0, 1, 1], [], []>} : vector<512x32xbf16>, vector<32x8xbf16>, vector<512x8xf32> -> vector<512x8xf32>
    %74 = vector.shape_cast %73 : vector<512x8xf32> to vector<8x64x8xf32>
    %cst_41 = arith.constant dense<0.000000e+00> : vector<512x8xf32>
    %75 = tpu.matmul %65, %70, %cst_41 {dimension_numbers = #tpu.dot_dimension_numbers<[1], [0], [0], [1], [0, 0, 1, 1], [], []>} : vector<512x32xbf16>, vector<32x8xbf16>, vector<512x8xf32> -> vector<512x8xf32>
    %76 = vector.shape_cast %75 : vector<512x8xf32> to vector<8x64x8xf32>
    %77 = tpu.transpose %72, [0, 2, 1] : vector<8x64x8xf32> -> vector<8x8x64xf32>
    %78 = arith.truncf %77 : vector<8x8x64xf32> to vector<8x8x64xbf16>
    %79 = arith.truncf %74 : vector<8x64x8xf32> to vector<8x64x8xbf16>
    "tpu.trace_start"() <{level = 10 : i32, message = "hqd,hdk->hqk"}> : () -> ()
    %cst_42 = arith.constant dense<0.000000e+00> : vector<8x8x8xf32>
    %80 = tpu.matmul %78, %79, %cst_42 {dimension_numbers = #tpu.dot_dimension_numbers<[2], [1], [1], [2], [0, 0, 0, 1, 1, 2], [0], [0]>} : vector<8x8x64xbf16>, vector<8x64x8xbf16>, vector<8x8x8xf32> -> vector<8x8x8xf32>
    "tpu.trace_stop"() : () -> ()
    %cst_43 = arith.constant 1.250000e-01 : f32
    %81 = vector.broadcast %cst_43 : f32 to vector<8x8x8xf32>
    %82 = arith.mulf %80, %81 : vector<8x8x8xf32>
    %cst_44 = arith.constant dense<0xFF800000> : vector<8x8xf32>
    %83 = vector.multi_reduction <maximumf>, %82, %cst_44 [2] : vector<8x8x8xf32> to vector<8x8xf32>
    %84 = vector.shape_cast %83 : vector<8x8xf32> to vector<8x8x1xf32>
    %85 = vector.broadcast %84 : vector<8x8x1xf32> to vector<8x8x8xf32>
    %86 = arith.subf %82, %85 : vector<8x8x8xf32>
    %87 = math.exp %86 : vector<8x8x8xf32>
    %cst_45 = arith.constant dense<0.000000e+00> : vector<8x8xf32>
    %88 = vector.multi_reduction <add>, %87, %cst_45 [2] : vector<8x8x8xf32> to vector<8x8xf32>
    %89 = vector.shape_cast %88 : vector<8x8xf32> to vector<8x8x1xf32>
    %90 = tpu.reciprocal %89 {approx = true} : vector<8x8x1xf32> -> vector<8x8x1xf32>
    %91 = vector.broadcast %90 : vector<8x8x1xf32> to vector<8x8x8xf32>
    %92 = arith.mulf %87, %91 : vector<8x8x8xf32>
    %93 = arith.truncf %92 : vector<8x8x8xf32> to vector<8x8x8xbf16>
    %94 = arith.truncf %76 : vector<8x64x8xf32> to vector<8x64x8xbf16>
    "tpu.trace_start"() <{level = 10 : i32, message = "hqk,hdk->hqd"}> : () -> ()
    %cst_46 = arith.constant dense<0.000000e+00> : vector<8x8x64xf32>
    %95 = tpu.matmul %93, %94, %cst_46 {dimension_numbers = #tpu.dot_dimension_numbers<[2], [2], [1], [1], [0, 0, 0, 1, 1, 1], [0], [0]>} : vector<8x8x8xbf16>, vector<8x64x8xbf16>, vector<8x8x64xf32> -> vector<8x8x64xf32>
    "tpu.trace_stop"() : () -> ()
    %96 = vector.shape_cast %66 : vector<512x32xbf16> to vector<8x64x32xbf16>
    %97 = arith.truncf %95 : vector<8x8x64xf32> to vector<8x8x64xbf16>
    "tpu.trace_start"() <{level = 10 : i32, message = "hqd,hdm->hqm"}> : () -> ()
    %cst_47 = arith.constant dense<0.000000e+00> : vector<8x8x32xf32>
    %98 = tpu.matmul %97, %96, %cst_47 {dimension_numbers = #tpu.dot_dimension_numbers<[2], [1], [1], [2], [0, 0, 0, 1, 1, 2], [0], [0]>} : vector<8x8x64xbf16>, vector<8x64x32xbf16>, vector<8x8x32xf32> -> vector<8x8x32xf32>
    "tpu.trace_stop"() : () -> ()
    %cst_48 = arith.constant dense<0.000000e+00> : vector<8x32xf32>
    %99 = vector.multi_reduction <add>, %98, %cst_48 [0] : vector<8x8x32xf32> to vector<8x32xf32>
    %100 = arith.addf %99, %59 : vector<8x32xf32>
    %cst_49 = arith.constant dense<0.000000e+00> : vector<8xf32>
    %101 = vector.multi_reduction <add>, %100, %cst_49 [1] : vector<8x32xf32> to vector<8xf32>
    %102 = vector.shape_cast %101 : vector<8xf32> to vector<8x1xf32>
    %cst_50 = arith.constant 3.200000e+01 : f32
    %103 = vector.broadcast %cst_50 : f32 to vector<8x1xf32>
    %104 = arith.divf %102, %103 : vector<8x1xf32>
    %105 = arith.mulf %100, %100 : vector<8x32xf32>
    %cst_51 = arith.constant dense<0.000000e+00> : vector<8xf32>
    %106 = vector.multi_reduction <add>, %105, %cst_51 [1] : vector<8x32xf32> to vector<8xf32>
    %107 = vector.shape_cast %106 : vector<8xf32> to vector<8x1xf32>
    %cst_52 = arith.constant 3.200000e+01 : f32
    %108 = vector.broadcast %cst_52 : f32 to vector<8x1xf32>
    %109 = arith.divf %107, %108 : vector<8x1xf32>
    %110 = arith.mulf %104, %104 : vector<8x1xf32>
    %111 = arith.subf %109, %110 : vector<8x1xf32>
    %112 = vector.broadcast %104 : vector<8x1xf32> to vector<8x32xf32>
    %113 = arith.subf %100, %112 : vector<8x32xf32>
    %cst_53 = arith.constant 9.99999974E-6 : f32
    %114 = vector.broadcast %cst_53 : f32 to vector<8x1xf32>
    %115 = arith.addf %111, %114 : vector<8x1xf32>
    %116 = math.rsqrt %115 : vector<8x1xf32>
    %117 = vector.broadcast %116 : vector<8x1xf32> to vector<8x32xf32>
    %118 = arith.mulf %113, %117 : vector<8x32xf32>
    %c0_54 = arith.constant 0 : index
    %c0_55 = arith.constant 0 : index
    %c0_56 = arith.constant 0 : index
    %c0_57 = arith.constant 0 : index
    %119 = vector.load %arg15[%c0_54, %c0_55, %c0_56, %c0_57] : memref<1x8x8x8xf32, #tpu.memory_space<vmem>>, vector<1x8x8x8xf32>
    %120 = vector.shape_cast %119 : vector<1x8x8x8xf32> to vector<8x8x8xf32>
    %121 = vector.shape_cast %92 : vector<8x8x8xf32> to vector<1x8x8x8xf32>
    tpu.vector_store %arg15[%c0_54, %c0_55, %c0_56, %c0_57], %121 {strides = array<i32>} : memref<1x8x8x8xf32, #tpu.memory_space<vmem>>, vector<1x8x8x8xf32>,
    %122 = arith.truncf %118 : vector<8x32xf32> to vector<8x32xbf16>
    %c0_58 = arith.constant 0 : index
    %c0_59 = arith.constant 0 : index
    %123 = vector.load %arg11[%c0_58, %c0_59] : memref<32x2048xbf16, #tpu.memory_space<vmem>>, vector<32x2048xbf16>
    %cst_60 = arith.constant dense<0.000000e+00> : vector<8x2048xf32>
    %124 = tpu.matmul %122, %123, %cst_60 {dimension_numbers = #tpu.dot_dimension_numbers<[1], [0], [0], [1], [0, 0, 1, 1], [], []>} : vector<8x32xbf16>, vector<32x2048xbf16>, vector<8x2048xf32> -> vector<8x2048xf32>
    %cst_61 = arith.constant 0.000000e+00 : f32
    %125 = vector.broadcast %cst_61 : f32 to vector<8x2048xf32>
    %126 = arith.maximumf %124, %125 : vector<8x2048xf32>
    %127 = arith.truncf %126 : vector<8x2048xf32> to vector<8x2048xbf16>
    %c0_62 = arith.constant 0 : index
    %c0_63 = arith.constant 0 : index
    %128 = vector.load %arg12[%c0_62, %c0_63] : memref<2048x32xbf16, #tpu.memory_space<vmem>>, vector<2048x32xbf16>
    %cst_64 = arith.constant dense<0.000000e+00> : vector<8x32xf32>
    %129 = tpu.matmul %127, %128, %cst_64 {dimension_numbers = #tpu.dot_dimension_numbers<[1], [0], [0], [1], [0, 0, 1, 1], [], []>} : vector<8x2048xbf16>, vector<2048x32xbf16>, vector<8x32xf32> -> vector<8x32xf32>
    %130 = arith.addf %129, %118 : vector<8x32xf32>
    %cst_65 = arith.constant dense<0.000000e+00> : vector<8xf32>
    %131 = vector.multi_reduction <add>, %130, %cst_65 [1] : vector<8x32xf32> to vector<8xf32>
    %132 = vector.shape_cast %131 : vector<8xf32> to vector<8x1xf32>
    %cst_66 = arith.constant 3.200000e+01 : f32
    %133 = vector.broadcast %cst_66 : f32 to vector<8x1xf32>
    %134 = arith.divf %132, %133 : vector<8x1xf32>
    %135 = arith.mulf %130, %130 : vector<8x32xf32>
    %cst_67 = arith.constant dense<0.000000e+00> : vector<8xf32>
    %136 = vector.multi_reduction <add>, %135, %cst_67 [1] : vector<8x32xf32> to vector<8xf32>
    %137 = vector.shape_cast %136 : vector<8xf32> to vector<8x1xf32>
    %cst_68 = arith.constant 3.200000e+01 : f32
    %138 = vector.broadcast %cst_68 : f32 to vector<8x1xf32>
    %139 = arith.divf %137, %138 : vector<8x1xf32>
    %140 = arith.mulf %134, %134 : vector<8x1xf32>
    %141 = arith.subf %139, %140 : vector<8x1xf32>
    %142 = vector.broadcast %134 : vector<8x1xf32> to vector<8x32xf32>
    %143 = arith.subf %130, %142 : vector<8x32xf32>
    %cst_69 = arith.constant 9.99999974E-6 : f32
    %144 = vector.broadcast %cst_69 : f32 to vector<8x1xf32>
    %145 = arith.addf %141, %144 : vector<8x1xf32>
    %146 = math.rsqrt %145 : vector<8x1xf32>
    %147 = vector.broadcast %146 : vector<8x1xf32> to vector<8x32xf32>
    %148 = arith.mulf %143, %147 : vector<8x32xf32>
    %c0_70 = arith.constant 0 : index
    %c0_71 = arith.constant 0 : index
    %c0_72 = arith.constant 0 : index
    %149 = vector.load %arg13[%c0_70, %c0_71, %c0_72] : memref<1x8x32xf32, #tpu.memory_space<vmem>>, vector<1x8x32xf32>
    %150 = vector.shape_cast %149 : vector<1x8x32xf32> to vector<8x32xf32>
    %151 = vector.shape_cast %148 : vector<8x32xf32> to vector<1x8x32xf32>
    tpu.vector_store %arg13[%c0_70, %c0_71, %c0_72], %151 {strides = array<i32>} : memref<1x8x32xf32, #tpu.memory_space<vmem>>, vector<1x8x32xf32>,
    return
  }
  func.func @transform_0(%arg0: i32) -> (i32, i32, i32) {
    %c0_i32 = arith.constant 0 : i32
    %c0_i32_0 = arith.constant 0 : i32
    %c0_i32_1 = arith.constant 0 : i32
    return %arg0, %c0_i32, %c0_i32_0 : i32, i32, i32
  }
  func.func @transform_1(%arg0: i32) -> (i32, i32, i32) {
    %c0_i32 = arith.constant 0 : i32
    %c0_i32_0 = arith.constant 0 : i32
    %c0_i32_1 = arith.constant 0 : i32
    return %arg0, %c0_i32, %c0_i32_0 : i32, i32, i32
  }
  func.func @transform_2(%arg0: i32) -> (i32, i32) {
    %c0_i32 = arith.constant 0 : i32
    %c0_i32_0 = arith.constant 0 : i32
    %c0_i32_1 = arith.constant 0 : i32
    return %c0_i32, %c0_i32_0 : i32, i32
  }
  func.func @transform_3(%arg0: i32) -> (i32, i32) {
    %c0_i32 = arith.constant 0 : i32
    %c0_i32_0 = arith.constant 0 : i32
    %c0_i32_1 = arith.constant 0 : i32
    return %c0_i32, %c0_i32_0 : i32, i32
  }
  func.func @transform_4(%arg0: i32) -> (i32, i32) {
    %c0_i32 = arith.constant 0 : i32
    %c0_i32_0 = arith.constant 0 : i32
    %c0_i32_1 = arith.constant 0 : i32
    return %c0_i32, %c0_i32_0 : i32, i32
  }
  func.func @transform_5(%arg0: i32) -> (i32, i32) {
    %c0_i32 = arith.constant 0 : i32
    %c0_i32_0 = arith.constant 0 : i32
    %c0_i32_1 = arith.constant 0 : i32
    return %c0_i32, %c0_i32_0 : i32, i32
  }
  func.func @transform_6(%arg0: i32) -> (i32, i32) {
    %c0_i32 = arith.constant 0 : i32
    %c0_i32_0 = arith.constant 0 : i32
    %c0_i32_1 = arith.constant 0 : i32
    return %c0_i32, %c0_i32_0 : i32, i32
  }
  func.func @transform_7(%arg0: i32) -> (i32, i32) {
    %c0_i32 = arith.constant 0 : i32
    %c0_i32_0 = arith.constant 0 : i32
    %c0_i32_1 = arith.constant 0 : i32
    return %c0_i32, %c0_i32_0 : i32, i32
  }
  func.func @transform_8(%arg0: i32) -> (i32, i32) {
    %c0_i32 = arith.constant 0 : i32
    %c0_i32_0 = arith.constant 0 : i32
    %c0_i32_1 = arith.constant 0 : i32
    return %c0_i32, %c0_i32_0 : i32, i32
  }
  func.func @transform_9(%arg0: i32) -> (i32, i32) {
    %c0_i32 = arith.constant 0 : i32
    %c0_i32_0 = arith.constant 0 : i32
    %c0_i32_1 = arith.constant 0 : i32
    return %c0_i32, %c0_i32_0 : i32, i32
  }
  func.func @transform_10(%arg0: i32) -> (i32, i32) {
    %c0_i32 = arith.constant 0 : i32
    %c0_i32_0 = arith.constant 0 : i32
    %c0_i32_1 = arith.constant 0 : i32
    return %c0_i32, %c0_i32_0 : i32, i32
  }
  func.func @transform_11(%arg0: i32) -> (i32, i32) {
    %c0_i32 = arith.constant 0 : i32
    %c0_i32_0 = arith.constant 0 : i32
    %c0_i32_1 = arith.constant 0 : i32
    return %c0_i32, %c0_i32_0 : i32, i32
  }
  func.func @transform_12(%arg0: i32) -> (i32, i32, i32) {
    %c0_i32 = arith.constant 0 : i32
    %c0_i32_0 = arith.constant 0 : i32
    %c0_i32_1 = arith.constant 0 : i32
    return %arg0, %c0_i32, %c0_i32_0 : i32, i32, i32
  }
  func.func @transform_13(%arg0: i32) -> (i32, i32, i32, i32) {
    %c0_i32 = arith.constant 0 : i32
    %c0_i32_0 = arith.constant 0 : i32
    %c0_i32_1 = arith.constant 0 : i32
    %c0_i32_2 = arith.constant 0 : i32
    return %arg0, %c0_i32, %c0_i32_0, %c0_i32_1 : i32, i32, i32, i32
  }
  func.func @transform_14(%arg0: i32) -> (i32, i32, i32, i32) {
    %c0_i32 = arith.constant 0 : i32
    %c0_i32_0 = arith.constant 0 : i32
    %c0_i32_1 = arith.constant 0 : i32
    %c0_i32_2 = arith.constant 0 : i32
    return %arg0, %c0_i32, %c0_i32_0, %c0_i32_1 : i32, i32, i32, i32
  }
}

</mosaic_0001>

<llo_original>
// kernel: decoder_layer_pallas.1
$region0: #{decoder_layer_pallas.1}
  #allocation0 [shape = 'u32[]', space=smem, size = 0x4, offset = 0x4, fixed_abs, tag = 'smem constant byte address 0x4 - core index']
  #allocation1 [shape = 'u32[144,128]{1,0:T(1,128)}', space=vmem, size = 0x12000, scoped, tag = 'internal scratch']
  %s0 = inlined_call_operand.vmem [shape: f32[2,8,32], index: 0, kind: input, shape index: {}]
  %s1 = inlined_call_operand.vmem [shape: f32[2,8,32], index: 1, kind: input, shape index: {}]
  %s2 = inlined_call_operand.vmem [shape: bf16[512,32], index: 2, kind: input, shape index: {}]
  %s3 = inlined_call_operand.vmem [shape: bf16[512,32], index: 3, kind: input, shape index: {}]
  %s4 = inlined_call_operand.vmem [shape: bf16[512,32], index: 4, kind: input, shape index: {}]
  %s5 = inlined_call_operand.vmem [shape: bf16[512,32], index: 5, kind: input, shape index: {}]
  %s6 = inlined_call_operand.vmem [shape: bf16[512,32], index: 6, kind: input, shape index: {}]
  %s7 = inlined_call_operand.vmem [shape: bf16[512,32], index: 7, kind: input, shape index: {}]
  %s8 = inlined_call_operand.vmem [shape: bf16[512,32], index: 8, kind: input, shape index: {}]
  %s9 = inlined_call_operand.vmem [shape: bf16[512,32], index: 9, kind: input, shape index: {}]
  %s10 = inlined_call_operand.vmem [shape: bf16[32,2048], index: 10, kind: input, shape index: {}]
  %s11 = inlined_call_operand.vmem [shape: bf16[2048,32], index: 11, kind: input, shape index: {}]
  %s12 = inlined_call_operand.hbm [shape: f32[2,8,32], index: 12, kind: output, shape index: {0}]
  %s13 = inlined_call_operand.hbm [shape: f32[2,8,8,8], index: 13, kind: output, shape index: {1}]
  %s14 = inlined_call_operand.hbm [shape: f32[2,8,8,8], index: 14, kind: output, shape index: {2}]
  %15 = xla_tuple %s12, %s13, %s14
  %s16 = sld [smem:[#allocation0]]
  $region97: #{decoder_layer_pallas.1} parent=0
    _
  %s18 = ssub.s32 1, %s16
  %s19 = scalar_select 0, %s18, %s16
  $region1: #{decoder_layer_pallas.1} parent=0
    #allocation2 [shape = 'u8[8192]{0}', space=vmem, size = 0x2000, scoped, tag = 'output window, operand 0']
    #allocation3 [shape = 's32[2]{0}', space=sflag, size = 0x8, scoped, tag = 'scoped memory for decoder_layer_pallas.1']
    #allocation4 [shape = 'u8[65536]{0}', space=vmem, size = 0x10000, scoped, tag = 'output window, operand 1']
    #allocation5 [shape = 's32[2]{0}', space=sflag, size = 0x8, scoped, tag = 'scoped memory for decoder_layer_pallas.1']
    #allocation6 [shape = 'u8[65536]{0}', space=vmem, size = 0x10000, scoped, tag = 'output window, operand 2']
    %20 = vsyncpa [#allocation3], 0
    %s21 = scalar_lea.sflag [#allocation3], 1
    %22 = vsyncpa %s21, 0
    %23 = vsyncpa [#allocation5], 0
    %s24 = scalar_lea.sflag [#allocation5], 1
    %25 = vsyncpa %s24, 0
    loop: start=0, step=1, limit=4
    $region2: #{decoder_layer_pallas.1} parent=1 // loop_pre_header
      _
    $region3: #{decoder_layer_pallas.1} parent=1 // loop_header
      %s27 = sphi 0, %s31
      %p28 = scmp.ge.s32.totalorder %s27, 4
      %s37 = sphi 0, %s39
      %s40 = sphi 0, %s37
      %s41 = sphi 0, %s40
      %s57 = sphi 0, %s41
      %s63 = sphi 0, %s65
      %s66 = sphi 0, %s63
      %s67 = sphi 0, %s66
      %s83 = sphi 0, %s67
      %s87 = sphi 0, %s87
      %s89 = sphi 0, %s87
      %s90 = sphi 0, %s89
      %s104 = sphi 0, %s90
      %s108 = sphi 0, %s108
      %s110 = sphi 0, %s108
      %s111 = sphi 0, %s110
      %s125 = sphi 0, %s111
      %s129 = sphi 0, %s129
      %s131 = sphi 0, %s129
      %s132 = sphi 0, %s131
      %s146 = sphi 0, %s132
      %s150 = sphi 0, %s150
      %s152 = sphi 0, %s150
      %s153 = sphi 0, %s152
      %s167 = sphi 0, %s153
      %s171 = sphi 0, %s171
      %s173 = sphi 0, %s171
      %s174 = sphi 0, %s173
      %s188 = sphi 0, %s174
      %s192 = sphi 0, %s192
      %s194 = sphi 0, %s192
      %s195 = sphi 0, %s194
      %s209 = sphi 0, %s195
      %s213 = sphi 0, %s213
      %s215 = sphi 0, %s213
      %s216 = sphi 0, %s215
      %s230 = sphi 0, %s216
      %s234 = sphi 0, %s234
      %s236 = sphi 0, %s234
      %s237 = sphi 0, %s236
      %s251 = sphi 0, %s237
      %s255 = sphi 0, %s255
      %s257 = sphi 0, %s255
      %s258 = sphi 0, %s257
      %s272 = sphi 0, %s258
      %s276 = sphi 0, %s276
      %s278 = sphi 0, %s276
      %s279 = sphi 0, %s278
      %s293 = sphi 0, %s279
      %s299 = sphi 0, %s301
      %s302 = sphi 0, %s299
      %s303 = sphi 0, %s302
      %s319 = sphi 0, %s303
      %s325 = sphi 0, %s327
      %s328 = sphi 0, %s325
      %s329 = sphi 0, %s328
      %s345 = sphi 0, %s329
      %s351 = sphi 0, %s353
      %s354 = sphi 0, %s351
      %s355 = sphi 0, %s354
      %s371 = sphi 0, %s355
    $region4: #{decoder_layer_pallas.1} parent=1 // loop_header_branch
      %30 = sbr.rel (%p28) target = $region8
    $region5: #{decoder_layer_pallas.1} parent=1 // loop_body
      %s32 = ssub.s32 %s27, 1
      %s33 = ssub.s32 %s27, 2
      %s34 = sadd.s32 %s27, 1
      %s35 = ssub.s32 %s27, %s34
      %p36 = scmp.eq.s32.totalorder %s35, 0
      %s38 = sadd.s32 %s37, 1
      %s39 = scalar_select %p36, %s37, %s38
      %p42 = pneg %p36
      %p43 = scmp.eq.s32.totalorder %s27, 1
      %p44 = por %p42, %p43
      %p45 = scmp.ne.s32.totalorder %s37, %s40
      %p46 = scmp.eq.s32.totalorder %s27, 0
      %p47 = por %p45, %p46
      %p48 = scmp.ne.s32.totalorder %s37, %s40
      %p49 = scmp.eq.s32.totalorder %s32, 1
      %p50 = por %p48, %p49
      %p51 = scmp.ne.s32.totalorder %s40, %s41
      %p52 = scmp.eq.s32.totalorder %s32, 0
      %p53 = por %p51, %p52
      %p54 = scmp.ne.s32.totalorder %s40, %s41
      %p55 = scmp.eq.s32.totalorder %s33, 1
      %p56 = por %p54, %p55
      %p58 = scmp.ne.s32.totalorder %s41, %s57
      %p59 = scmp.eq.s32.totalorder %s33, 0
      %p60 = por %p58, %p59
      %s61 = ssub.s32 %s27, %s34
      %p62 = scmp.eq.s32.totalorder %s61, 0
      %s64 = sadd.s32 %s63, 1
      %s65 = scalar_select %p62, %s63, %s64
      %p68 = pneg %p62
      %p69 = scmp.eq.s32.totalorder %s27, 1
      %p70 = por %p68, %p69
      %p71 = scmp.ne.s32.totalorder %s63, %s66
      %p72 = scmp.eq.s32.totalorder %s27, 0
      %p73 = por %p71, %p72
      %p74 = scmp.ne.s32.totalorder %s63, %s66
      %p75 = scmp.eq.s32.totalorder %s32, 1
      %p76 = por %p74, %p75
      %p77 = scmp.ne.s32.totalorder %s66, %s67
      %p78 = scmp.eq.s32.totalorder %s32, 0
      %p79 = por %p77, %p78
      %p80 = scmp.ne.s32.totalorder %s66, %s67
      %p81 = scmp.eq.s32.totalorder %s33, 1
      %p82 = por %p80, %p81
      %p84 = scmp.ne.s32.totalorder %s67, %s83
      %p85 = scmp.eq.s32.totalorder %s33, 0
      %p86 = por %p84, %p85
      %s88 = sadd.s32 %s87, 1
      %p91 = scmp.eq.s32.totalorder %s27, 1
      %p92 = scmp.ne.s32.totalorder %s87, %s89
      %p93 = scmp.eq.s32.totalorder %s27, 0
      %p94 = por %p92, %p93
      %p95 = scmp.ne.s32.totalorder %s87, %s89
      %p96 = scmp.eq.s32.totalorder %s32, 1
      %p97 = por %p95, %p96
      %p98 = scmp.ne.s32.totalorder %s89, %s90
      %p99 = scmp.eq.s32.totalorder %s32, 0
      %p100 = por %p98, %p99
      %p101 = scmp.ne.s32.totalorder %s89, %s90
      %p102 = scmp.eq.s32.totalorder %s33, 1
      %p103 = por %p101, %p102
      %p105 = scmp.ne.s32.totalorder %s90, %s104
      %p106 = scmp.eq.s32.totalorder %s33, 0
      %p107 = por %p105, %p106
      %s109 = sadd.s32 %s108, 1
      %p112 = scmp.eq.s32.totalorder %s27, 1
      %p113 = scmp.ne.s32.totalorder %s108, %s110
      %p114 = scmp.eq.s32.totalorder %s27, 0
      %p115 = por %p113, %p114
      %p116 = scmp.ne.s32.totalorder %s108, %s110
      %p117 = scmp.eq.s32.totalorder %s32, 1
      %p118 = por %p116, %p117
      %p119 = scmp.ne.s32.totalorder %s110, %s111
      %p120 = scmp.eq.s32.totalorder %s32, 0
      %p121 = por %p119, %p120
      %p122 = scmp.ne.s32.totalorder %s110, %s111
      %p123 = scmp.eq.s32.totalorder %s33, 1
      %p124 = por %p122, %p123
      %p126 = scmp.ne.s32.totalorder %s111, %s125
      %p127 = scmp.eq.s32.totalorder %s33, 0
      %p128 = por %p126, %p127
      %s130 = sadd.s32 %s129, 1
      %p133 = scmp.eq.s32.totalorder %s27, 1
      %p134 = scmp.ne.s32.totalorder %s129, %s131
      %p135 = scmp.eq.s32.totalorder %s27, 0
      %p136 = por %p134, %p135
      %p137 = scmp.ne.s32.totalorder %s129, %s131
      %p138 = scmp.eq.s32.totalorder %s32, 1
      %p139 = por %p137, %p138
      %p140 = scmp.ne.s32.totalorder %s131, %s132
      %p141 = scmp.eq.s32.totalorder %s32, 0
      %p142 = por %p140, %p141
      %p143 = scmp.ne.s32.totalorder %s131, %s132
      %p144 = scmp.eq.s32.totalorder %s33, 1
      %p145 = por %p143, %p144
      %p147 = scmp.ne.s32.totalorder %s132, %s146
      %p148 = scmp.eq.s32.totalorder %s33, 0
      %p149 = por %p147, %p148
      %s151 = sadd.s32 %s150, 1
      %p154 = scmp.eq.s32.totalorder %s27, 1
      %p155 = scmp.ne.s32.totalorder %s150, %s152
      %p156 = scmp.eq.s32.totalorder %s27, 0
      %p157 = por %p155, %p156
      %p158 = scmp.ne.s32.totalorder %s150, %s152
      %p159 = scmp.eq.s32.totalorder %s32, 1
      %p160 = por %p158, %p159
      %p161 = scmp.ne.s32.totalorder %s152, %s153
      %p162 = scmp.eq.s32.totalorder %s32, 0
      %p163 = por %p161, %p162
      %p164 = scmp.ne.s32.totalorder %s152, %s153
      %p165 = scmp.eq.s32.totalorder %s33, 1
      %p166 = por %p164, %p165
      %p168 = scmp.ne.s32.totalorder %s153, %s167
      %p169 = scmp.eq.s32.totalorder %s33, 0
      %p170 = por %p168, %p169
      %s172 = sadd.s32 %s171, 1
      %p175 = scmp.eq.s32.totalorder %s27, 1
      %p176 = scmp.ne.s32.totalorder %s171, %s173
      %p177 = scmp.eq.s32.totalorder %s27, 0
      %p178 = por %p176, %p177
      %p179 = scmp.ne.s32.totalorder %s171, %s173
      %p180 = scmp.eq.s32.totalorder %s32, 1
      %p181 = por %p179, %p180
      %p182 = scmp.ne.s32.totalorder %s173, %s174
      %p183 = scmp.eq.s32.totalorder %s32, 0
      %p184 = por %p182, %p183
      %p185 = scmp.ne.s32.totalorder %s173, %s174
      %p186 = scmp.eq.s32.totalorder %s33, 1
      %p187 = por %p185, %p186
      %p189 = scmp.ne.s32.totalorder %s174, %s188
      %p190 = scmp.eq.s32.totalorder %s33, 0
      %p191 = por %p189, %p190
      %s193 = sadd.s32 %s192, 1
      %p196 = scmp.eq.s32.totalorder %s27, 1
      %p197 = scmp.ne.s32.totalorder %s192, %s194
      %p198 = scmp.eq.s32.totalorder %s27, 0
      %p199 = por %p197, %p198
      %p200 = scmp.ne.s32.totalorder %s192, %s194
      %p201 = scmp.eq.s32.totalorder %s32, 1
      %p202 = por %p200, %p201
      %p203 = scmp.ne.s32.totalorder %s194, %s195
      %p204 = scmp.eq.s32.totalorder %s32, 0
      %p205 = por %p203, %p204
      %p206 = scmp.ne.s32.totalorder %s194, %s195
      %p207 = scmp.eq.s32.totalorder %s33, 1
      %p208 = por %p206, %p207
      %p210 = scmp.ne.s32.totalorder %s195, %s209
      %p211 = scmp.eq.s32.totalorder %s33, 0
      %p212 = por %p210, %p211
      %s214 = sadd.s32 %s213, 1
      %p217 = scmp.eq.s32.totalorder %s27, 1
      %p218 = scmp.ne.s32.totalorder %s213, %s215
      %p219 = scmp.eq.s32.totalorder %s27, 0
      %p220 = por %p218, %p219
      %p221 = scmp.ne.s32.totalorder %s213, %s215
      %p222 = scmp.eq.s32.totalorder %s32, 1
      %p223 = por %p221, %p222
      %p224 = scmp.ne.s32.totalorder %s215, %s216
      %p225 = scmp.eq.s32.totalorder %s32, 0
      %p226 = por %p224, %p225
      %p227 = scmp.ne.s32.totalorder %s215, %s216
      %p228 = scmp.eq.s32.totalorder %s33, 1
      %p229 = por %p227, %p228
      %p231 = scmp.ne.s32.totalorder %s216, %s230
      %p232 = scmp.eq.s32.totalorder %s33, 0
      %p233 = por %p231, %p232
      %s235 = sadd.s32 %s234, 1
      %p238 = scmp.eq.s32.totalorder %s27, 1
      %p239 = scmp.ne.s32.totalorder %s234, %s236
      %p240 = scmp.eq.s32.totalorder %s27, 0
      %p241 = por %p239, %p240
      %p242 = scmp.ne.s32.totalorder %s234, %s236
      %p243 = scmp.eq.s32.totalorder %s32, 1
      %p244 = por %p242, %p243
      %p245 = scmp.ne.s32.totalorder %s236, %s237
      %p246 = scmp.eq.s32.totalorder %s32, 0
      %p247 = por %p245, %p246
      %p248 = scmp.ne.s32.totalorder %s236, %s237
      %p249 = scmp.eq.s32.totalorder %s33, 1
      %p250 = por %p248, %p249
      %p252 = scmp.ne.s32.totalorder %s237, %s251
      %p253 = scmp.eq.s32.totalorder %s33, 0
      %p254 = por %p252, %p253
      %s256 = sadd.s32 %s255, 1
      %p259 = scmp.eq.s32.totalorder %s27, 1
      %p260 = scmp.ne.s32.totalorder %s255, %s257
      %p261 = scmp.eq.s32.totalorder %s27, 0
      %p262 = por %p260, %p261
      %p263 = scmp.ne.s32.totalorder %s255, %s257
      %p264 = scmp.eq.s32.totalorder %s32, 1
      %p265 = por %p263, %p264
      %p266 = scmp.ne.s32.totalorder %s257, %s258
      %p267 = scmp.eq.s32.totalorder %s32, 0
      %p268 = por %p266, %p267
      %p269 = scmp.ne.s32.totalorder %s257, %s258
      %p270 = scmp.eq.s32.totalorder %s33, 1
      %p271 = por %p269, %p270
      %p273 = scmp.ne.s32.totalorder %s258, %s272
      %p274 = scmp.eq.s32.totalorder %s33, 0
      %p275 = por %p273, %p274
      %s277 = sadd.s32 %s276, 1
      %p280 = scmp.eq.s32.totalorder %s27, 1
      %p281 = scmp.ne.s32.totalorder %s276, %s278
      %p282 = scmp.eq.s32.totalorder %s27, 0
      %p283 = por %p281, %p282
      %p284 = scmp.ne.s32.totalorder %s276, %s278
      %p285 = scmp.eq.s32.totalorder %s32, 1
      %p286 = por %p284, %p285
      %p287 = scmp.ne.s32.totalorder %s278, %s279
      %p288 = scmp.eq.s32.totalorder %s32, 0
      %p289 = por %p287, %p288
      %p290 = scmp.ne.s32.totalorder %s278, %s279
      %p291 = scmp.eq.s32.totalorder %s33, 1
      %p292 = por %p290, %p291
      %p294 = scmp.ne.s32.totalorder %s279, %s293
      %p295 = scmp.eq.s32.totalorder %s33, 0
      %p296 = por %p294, %p295
      %s297 = ssub.s32 %s27, %s34
      %p298 = scmp.eq.s32.totalorder %s297, 0
      %s300 = sadd.s32 %s299, 1
      %s301 = scalar_select %p298, %s299, %s300
      %p304 = pneg %p298
      %p305 = scmp.eq.s32.totalorder %s27, 1
      %p306 = por %p304, %p305
      %p307 = scmp.ne.s32.totalorder %s299, %s302
      %p308 = scmp.eq.s32.totalorder %s27, 0
      %p309 = por %p307, %p308
      %p310 = scmp.ne.s32.totalorder %s299, %s302
      %p311 = scmp.eq.s32.totalorder %s32, 1
      %p312 = por %p310, %p311
      %p313 = scmp.ne.s32.totalorder %s302, %s303
      %p314 = scmp.eq.s32.totalorder %s32, 0
      %p315 = por %p313, %p314
      %p316 = scmp.ne.s32.totalorder %s302, %s303
      %p317 = scmp.eq.s32.totalorder %s33, 1
      %p318 = por %p316, %p317
      %p320 = scmp.ne.s32.totalorder %s303, %s319
      %p321 = scmp.eq.s32.totalorder %s33, 0
      %p322 = por %p320, %p321
      %s323 = ssub.s32 %s27, %s34
      %p324 = scmp.eq.s32.totalorder %s323, 0
      %s326 = sadd.s32 %s325, 1
      %s327 = scalar_select %p324, %s325, %s326
      %p330 = pneg %p324
      %p331 = scmp.eq.s32.totalorder %s27, 1
      %p332 = por %p330, %p331
      %p333 = scmp.ne.s32.totalorder %s325, %s328
      %p334 = scmp.eq.s32.totalorder %s27, 0
      %p335 = por %p333, %p334
      %p336 = scmp.ne.s32.totalorder %s325, %s328
      %p337 = scmp.eq.s32.totalorder %s32, 1
      %p338 = por %p336, %p337
      %p339 = scmp.ne.s32.totalorder %s328, %s329
      %p340 = scmp.eq.s32.totalorder %s32, 0
      %p341 = por %p339, %p340
      %p342 = scmp.ne.s32.totalorder %s328, %s329
      %p343 = scmp.eq.s32.totalorder %s33, 1
      %p344 = por %p342, %p343
      %p346 = scmp.ne.s32.totalorder %s329, %s345
      %p347 = scmp.eq.s32.totalorder %s33, 0
      %p348 = por %p346, %p347
      %s349 = ssub.s32 %s27, %s34
      %p350 = scmp.eq.s32.totalorder %s349, 0
      %s352 = sadd.s32 %s351, 1
      %s353 = scalar_select %p350, %s351, %s352
      %p356 = pneg %p350
      %p357 = scmp.eq.s32.totalorder %s27, 1
      %p358 = por %p356, %p357
      %p359 = scmp.ne.s32.totalorder %s351, %s354
      %p360 = scmp.eq.s32.totalorder %s27, 0
      %p361 = por %p359, %p360
      %p362 = scmp.ne.s32.totalorder %s351, %s354
      %p363 = scmp.eq.s32.totalorder %s32, 1
      %p364 = por %p362, %p363
      %p365 = scmp.ne.s32.totalorder %s354, %s355
      %p366 = scmp.eq.s32.totalorder %s32, 0
      %p367 = por %p365, %p366
      %p368 = scmp.ne.s32.totalorder %s354, %s355
      %p369 = scmp.eq.s32.totalorder %s33, 1
      %p370 = por %p368, %p369
      %p372 = scmp.ne.s32.totalorder %s355, %s371
      %p373 = scmp.eq.s32.totalorder %s33, 0
      %p374 = por %p372, %p373
      %p375 = scmp.le.s32.totalorder 1, %s27
      %p376 = scmp.lt.s32.totalorder %s27, 3
      %p377 = pnand %p375, %p376
      %p378 = pneg %p377
      // Predicated region
      $region9: #{decoder_layer_pallas.1} parent=5 // pred_check
        _
      $region10: #{decoder_layer_pallas.1} parent=5 // pred_check_branch
        %380 = sbr.rel (%p377) target = $region12
      $region11: #{decoder_layer_pallas.1} parent=5 // pred_region
        %s381 = ssub.s32 %s27, 1
        // Predicated region
        $region13: #{decoder_layer_pallas.1} parent=11 // pred_check
          %p382 = pneg %p100
        $region14: #{decoder_layer_pallas.1} parent=11 // pred_check_branch
          %384 = sbr.rel (%p382) target = $region16
        $region15: #{decoder_layer_pallas.1} parent=11 // pred_region
          _
        $region16: #{decoder_layer_pallas.1} parent=11 // pred_fallthru
          _
        // Predicated region
        $region17: #{decoder_layer_pallas.1} parent=11 // pred_check
          %p385 = pneg %p121
        $region18: #{decoder_layer_pallas.1} parent=11 // pred_check_branch
          %387 = sbr.rel (%p385) target = $region20
        $region19: #{decoder_layer_pallas.1} parent=11 // pred_region
          _
        $region20: #{decoder_layer_pallas.1} parent=11 // pred_fallthru
          _
        // Predicated region
        $region21: #{decoder_layer_pallas.1} parent=11 // pred_check
          %p388 = pneg %p142
        $region22: #{decoder_layer_pallas.1} parent=11 // pred_check_branch
          %390 = sbr.rel (%p388) target = $region24
        $region23: #{decoder_layer_pallas.1} parent=11 // pred_region
          _
        $region24: #{decoder_layer_pallas.1} parent=11 // pred_fallthru
          _
        // Predicated region
        $region25: #{decoder_layer_pallas.1} parent=11 // pred_check
          %p391 = pneg %p163
        $region26: #{decoder_layer_pallas.1} parent=11 // pred_check_branch
          %393 = sbr.rel (%p391) target = $region28
        $region27: #{decoder_layer_pallas.1} parent=11 // pred_region
          _
        $region28: #{decoder_layer_pallas.1} parent=11 // pred_fallthru
          _
        // Predicated region
        $region29: #{decoder_layer_pallas.1} parent=11 // pred_check
          %p394 = pneg %p184
        $region30: #{decoder_layer_pallas.1} parent=11 // pred_check_branch
          %396 = sbr.rel (%p394) target = $region32
        $region31: #{decoder_layer_pallas.1} parent=11 // pred_region
          _
        $region32: #{decoder_layer_pallas.1} parent=11 // pred_fallthru
          _
        // Predicated region
        $region33: #{decoder_layer_pallas.1} parent=11 // pred_check
          %p397 = pneg %p205
        $region34: #{decoder_layer_pallas.1} parent=11 // pred_check_branch
          %399 = sbr.rel (%p397) target = $region36
        $region35: #{decoder_layer_pallas.1} parent=11 // pred_region
          _
        $region36: #{decoder_layer_pallas.1} parent=11 // pred_fallthru
          _
        // Predicated region
        $region37: #{decoder_layer_pallas.1} parent=11 // pred_check
          %p400 = pneg %p226
        $region38: #{decoder_layer_pallas.1} parent=11 // pred_check_branch
          %402 = sbr.rel (%p400) target = $region40
        $region39: #{decoder_layer_pallas.1} parent=11 // pred_region
          _
        $region40: #{decoder_layer_pallas.1} parent=11 // pred_fallthru
          _
        // Predicated region
        $region41: #{decoder_layer_pallas.1} parent=11 // pred_check
          %p403 = pneg %p247
        $region42: #{decoder_layer_pallas.1} parent=11 // pred_check_branch
          %405 = sbr.rel (%p403) target = $region44
        $region43: #{decoder_layer_pallas.1} parent=11 // pred_region
          _
        $region44: #{decoder_layer_pallas.1} parent=11 // pred_fallthru
          _
        // Predicated region
        $region45: #{decoder_layer_pallas.1} parent=11 // pred_check
          %p406 = pneg %p268
        $region46: #{decoder_layer_pallas.1} parent=11 // pred_check_branch
          %408 = sbr.rel (%p406) target = $region48
        $region47: #{decoder_layer_pallas.1} parent=11 // pred_region
          _
        $region48: #{decoder_layer_pallas.1} parent=11 // pred_fallthru
          _
        // Predicated region
        $region49: #{decoder_layer_pallas.1} parent=11 // pred_check
          %p409 = pneg %p289
        $region50: #{decoder_layer_pallas.1} parent=11 // pred_check_branch
          %411 = sbr.rel (%p409) target = $region52
        $region51: #{decoder_layer_pallas.1} parent=11 // pred_region
          _
        $region52: #{decoder_layer_pallas.1} parent=11 // pred_fallthru
          _
      $region12: #{decoder_layer_pallas.1} parent=5 // pred_fallthru
        _
      %p412 = scmp.lt.s32.totalorder %s27, 2
      // Predicated region
      $region53: #{decoder_layer_pallas.1} parent=5 // pred_check
        %p413 = pneg %p412
      $region54: #{decoder_layer_pallas.1} parent=5 // pred_check_branch
        %415 = sbr.rel (%p413) target = $region56
      $region55: #{decoder_layer_pallas.1} parent=5 // pred_region
        // Predicated region
        $region57: #{decoder_layer_pallas.1} parent=55 // pred_check
          %p416 = pneg %p47
        $region58: #{decoder_layer_pallas.1} parent=55 // pred_check_branch
          %418 = sbr.rel (%p416) target = $region60
        $region59: #{decoder_layer_pallas.1} parent=55 // pred_region
          %p419 = scmp.lt.s32.totalorder %s27, 1
          %s420 = scalar_select %p419, %s27, 1
          %s421 = smul.addr %s420, 8
          %s422 = scalar_lea.vmem %s0, %s421
        $region60: #{decoder_layer_pallas.1} parent=55 // pred_fallthru
          _
        // Predicated region
        $region61: #{decoder_layer_pallas.1} parent=55 // pred_check
          %p423 = pneg %p73
        $region62: #{decoder_layer_pallas.1} parent=55 // pred_check_branch
          %425 = sbr.rel (%p423) target = $region64
        $region63: #{decoder_layer_pallas.1} parent=55 // pred_region
          %p426 = scmp.lt.s32.totalorder %s27, 1
          %s427 = scalar_select %p426, %s27, 1
          %s428 = smul.addr %s427, 8
          %s429 = scalar_lea.vmem %s1, %s428
        $region64: #{decoder_layer_pallas.1} parent=55 // pred_fallthru
          _
      $region56: #{decoder_layer_pallas.1} parent=5 // pred_fallthru
        _
      %p430 = scmp.le.s32.totalorder 1, %s27
      %p431 = scmp.lt.s32.totalorder %s27, 3
      %p432 = pnand %p430, %p431
      %p433 = pneg %p432
      // Predicated region
      $region65: #{decoder_layer_pallas.1} parent=5 // pred_check
        _
      $region66: #{decoder_layer_pallas.1} parent=5 // pred_check_branch
        %435 = sbr.rel (%p432) target = $region68
      $region67: #{decoder_layer_pallas.1} parent=5 // pred_region
        %s436 = ssub.s32 %s27, 1
        %p437 = scmp.lt.s32.totalorder %s32, 1
        %s438 = scalar_select %p437, %s32, 1
        %s439 = smul.addr %s438, 8
        %s440 = scalar_lea.vmem %s0, %s439
        %p441 = pneg %p53
        %p442 = pneg %p50
        %p443 = scmp.lt.s32.totalorder %s32, 1
        %s444 = scalar_select %p443, %s32, 1
        %s445 = smul.addr %s444, 8
        %s446 = scalar_lea.vmem %s1, %s445
        %p447 = pneg %p79
        %p448 = pneg %p76
        %p449 = pneg %p100
        %p450 = pneg %p97
        %p451 = pneg %p121
        %p452 = pneg %p118
        %p453 = pneg %p142
        %p454 = pneg %p139
        %p455 = pneg %p163
        %p456 = pneg %p160
        %p457 = pneg %p184
        %p458 = pneg %p181
        %p459 = pneg %p205
        %p460 = pneg %p202
        %p461 = pneg %p226
        %p462 = pneg %p223
        %p463 = pneg %p247
        %p464 = pneg %p244
        %p465 = pneg %p268
        %p466 = pneg %p265
        %p467 = pneg %p289
        %p468 = pneg %p286
        %p469 = pneg %p315
        %p470 = pneg %p312
        %s471 = sand.u32 %s302, 1
        %s472 = scalar_lea.sflag [#allocation3], %s471
        %s473 = sand.u32 %s302, 1
        %s474 = smul.addr %s473, 8
        %s475 = scalar_lea.vmem [#allocation2], %s474
        %p476 = pneg %p341
        %p477 = pneg %p338
        %s478 = sand.u32 %s32, 1
        %s479 = scalar_lea.sflag [#allocation5], %s478
        %s480 = sand.u32 %s328, 1
        %s481 = smul.addr %s480, 64
        %s482 = scalar_lea.vmem [#allocation4], %s481
        %p483 = pneg %p367
        %p484 = pneg %p364
        %s485 = sand.u32 %s32, 1
        %s486 = scalar_lea.sflag [#allocation5], %s485
        %s487 = sand.u32 %s354, 1
        %s488 = smul.addr %s487, 64
        %s489 = scalar_lea.vmem [#allocation6], %s488
        %p490 = scmp.lt.s32.totalorder %s32, 1
        %s491 = scalar_select %p490, %s32, 1
        %s492 = smul.addr %s491, 8
        %s493 = scalar_lea.vmem %s0, %s492
        %p494 = scmp.lt.s32.totalorder %s32, 1
        %s495 = scalar_select %p494, %s32, 1
        %s496 = smul.addr %s495, 8
        %s497 = scalar_lea.vmem %s1, %s496
        %v499 = vld [vmem:[%s493] sm:$0xff]
        %v500 = vld [vmem:[%s497] sm:$0xff]
        %v501 = vld [vmem:[%s2] sm:$0xf]
        %v502 = vld [vmem:[%s2 + $0x4] sm:$0xf]
        %v503 = vld [vmem:[%s2 + $0x8] sm:$0xf]
        %v504 = vld [vmem:[%s2 + $0xc] sm:$0xf]
        %v505 = vld [vmem:[%s2 + $0x10] sm:$0xf]
        %v506 = vld [vmem:[%s2 + $0x14] sm:$0xf]
        %v507 = vld [vmem:[%s2 + $0x18] sm:$0xf]
        %v508 = vld [vmem:[%s2 + $0x1c] sm:$0xf]
        %v509 = vld [vmem:[%s2 + $0x20] sm:$0xf]
        %v510 = vld [vmem:[%s2 + $0x24] sm:$0xf]
        %v511 = vld [vmem:[%s2 + $0x28] sm:$0xf]
        %v512 = vld [vmem:[%s2 + $0x2c] sm:$0xf]
        %v513 = vld [vmem:[%s2 + $0x30] sm:$0xf]
        %v514 = vld [vmem:[%s2 + $0x34] sm:$0xf]
        %v515 = vld [vmem:[%s2 + $0x38] sm:$0xf]
        %v516 = vld [vmem:[%s2 + $0x3c] sm:$0xf]
        %v517 = vld [vmem:[%s2 + $0x40] sm:$0xf]
        %v518 = vld [vmem:[%s2 + $0x44] sm:$0xf]
        %v519 = vld [vmem:[%s2 + $0x48] sm:$0xf]
        %v520 = vld [vmem:[%s2 + $0x4c] sm:$0xf]
        %v521 = vld [vmem:[%s2 + $0x50] sm:$0xf]
        %v522 = vld [vmem:[%s2 + $0x54] sm:$0xf]
        %v523 = vld [vmem:[%s2 + $0x58] sm:$0xf]
        %v524 = vld [vmem:[%s2 + $0x5c] sm:$0xf]
        %v525 = vld [vmem:[%s2 + $0x60] sm:$0xf]
        %v526 = vld [vmem:[%s2 + $0x64] sm:$0xf]
        %v527 = vld [vmem:[%s2 + $0x68] sm:$0xf]
        %v528 = vld [vmem:[%s2 + $0x6c] sm:$0xf]
        %v529 = vld [vmem:[%s2 + $0x70] sm:$0xf]
        %v530 = vld [vmem:[%s2 + $0x74] sm:$0xf]
        %v531 = vld [vmem:[%s2 + $0x78] sm:$0xf]
        %v532 = vld [vmem:[%s2 + $0x7c] sm:$0xf]
        %v533 = vld [vmem:[%s2 + $0x80] sm:$0xf]
        %v534 = vld [vmem:[%s2 + $0x84] sm:$0xf]
        %v535 = vld [vmem:[%s2 + $0x88] sm:$0xf]
        %v536 = vld [vmem:[%s2 + $0x8c] sm:$0xf]
        %v537 = vld [vmem:[%s2 + $0x90] sm:$0xf]
        %v538 = vld [vmem:[%s2 + $0x94] sm:$0xf]
        %v539 = vld [vmem:[%s2 + $0x98] sm:$0xf]
        %v540 = vld [vmem:[%s2 + $0x9c] sm:$0xf]
        %v541 = vld [vmem:[%s2 + $0xa0] sm:$0xf]
        %v542 = vld [vmem:[%s2 + $0xa4] sm:$0xf]
        %v543 = vld [vmem:[%s2 + $0xa8] sm:$0xf]
        %v544 = vld [vmem:[%s2 + $0xac] sm:$0xf]
        %v545 = vld [vmem:[%s2 + $0xb0] sm:$0xf]
        %v546 = vld [vmem:[%s2 + $0xb4] sm:$0xf]
        %v547 = vld [vmem:[%s2 + $0xb8] sm:$0xf]
        %v548 = vld [vmem:[%s2 + $0xbc] sm:$0xf]
        %v549 = vld [vmem:[%s2 + $0xc0] sm:$0xf]
        %v550 = vld [vmem:[%s2 + $0xc4] sm:$0xf]
        %v551 = vld [vmem:[%s2 + $0xc8] sm:$0xf]
        %v552 = vld [vmem:[%s2 + $0xcc] sm:$0xf]
        %v553 = vld [vmem:[%s2 + $0xd0] sm:$0xf]
        %v554 = vld [vmem:[%s2 + $0xd4] sm:$0xf]
        %v555 = vld [vmem:[%s2 + $0xd8] sm:$0xf]
        %v556 = vld [vmem:[%s2 + $0xdc] sm:$0xf]
        %v557 = vld [vmem:[%s2 + $0xe0] sm:$0xf]
        %v558 = vld [vmem:[%s2 + $0xe4] sm:$0xf]
        %v559 = vld [vmem:[%s2 + $0xe8] sm:$0xf]
        %v560 = vld [vmem:[%s2 + $0xec] sm:$0xf]
        %v561 = vld [vmem:[%s2 + $0xf0] sm:$0xf]
        %v562 = vld [vmem:[%s2 + $0xf4] sm:$0xf]
        %v563 = vld [vmem:[%s2 + $0xf8] sm:$0xf]
        %v564 = vld [vmem:[%s2 + $0xfc] sm:$0xf]
        %v565 = vld [vmem:[%s3] sm:$0xf]
        %v566 = vld [vmem:[%s3 + $0x4] sm:$0xf]
        %v567 = vld [vmem:[%s3 + $0x8] sm:$0xf]
        %v568 = vld [vmem:[%s3 + $0xc] sm:$0xf]
        %v569 = vld [vmem:[%s3 + $0x10] sm:$0xf]
        %v570 = vld [vmem:[%s3 + $0x14] sm:$0xf]
        %v571 = vld [vmem:[%s3 + $0x18] sm:$0xf]
        %v572 = vld [vmem:[%s3 + $0x1c] sm:$0xf]
        %v573 = vld [vmem:[%s3 + $0x20] sm:$0xf]
        %v574 = vld [vmem:[%s3 + $0x24] sm:$0xf]
        %v575 = vld [vmem:[%s3 + $0x28] sm:$0xf]
        %v576 = vld [vmem:[%s3 + $0x2c] sm:$0xf]
        %v577 = vld [vmem:[%s3 + $0x30] sm:$0xf]
        %v578 = vld [vmem:[%s3 + $0x34] sm:$0xf]
        %v579 = vld [vmem:[%s3 + $0x38] sm:$0xf]
        %v580 = vld [vmem:[%s3 + $0x3c] sm:$0xf]
        %v581 = vld [vmem:[%s3 + $0x40] sm:$0xf]
        %v582 = vld [vmem:[%s3 + $0x44] sm:$0xf]
        %v583 = vld [vmem:[%s3 + $0x48] sm:$0xf]
        %v584 = vld [vmem:[%s3 + $0x4c] sm:$0xf]
        %v585 = vld [vmem:[%s3 + $0x50] sm:$0xf]
        %v586 = vld [vmem:[%s3 + $0x54] sm:$0xf]
        %v587 = vld [vmem:[%s3 + $0x58] sm:$0xf]
        %v588 = vld [vmem:[%s3 + $0x5c] sm:$0xf]
        %v589 = vld [vmem:[%s3 + $0x60] sm:$0xf]
        %v590 = vld [vmem:[%s3 + $0x64] sm:$0xf]
        %v591 = vld [vmem:[%s3 + $0x68] sm:$0xf]
        %v592 = vld [vmem:[%s3 + $0x6c] sm:$0xf]
        %v593 = vld [vmem:[%s3 + $0x70] sm:$0xf]
        %v594 = vld [vmem:[%s3 + $0x74] sm:$0xf]
        %v595 = vld [vmem:[%s3 + $0x78] sm:$0xf]
        %v596 = vld [vmem:[%s3 + $0x7c] sm:$0xf]
        %v597 = vld [vmem:[%s3 + $0x80] sm:$0xf]
        %v598 = vld [vmem:[%s3 + $0x84] sm:$0xf]
        %v599 = vld [vmem:[%s3 + $0x88] sm:$0xf]
        %v600 = vld [vmem:[%s3 + $0x8c] sm:$0xf]
        %v601 = vld [vmem:[%s3 + $0x90] sm:$0xf]
        %v602 = vld [vmem:[%s3 + $0x94] sm:$0xf]
        %v603 = vld [vmem:[%s3 + $0x98] sm:$0xf]
        %v604 = vld [vmem:[%s3 + $0x9c] sm:$0xf]
        %v605 = vld [vmem:[%s3 + $0xa0] sm:$0xf]
        %v606 = vld [vmem:[%s3 + $0xa4] sm:$0xf]
        %v607 = vld [vmem:[%s3 + $0xa8] sm:$0xf]
        %v608 = vld [vmem:[%s3 + $0xac] sm:$0xf]
        %v609 = vld [vmem:[%s3 + $0xb0] sm:$0xf]
        %v610 = vld [vmem:[%s3 + $0xb4] sm:$0xf]
        %v611 = vld [vmem:[%s3 + $0xb8] sm:$0xf]
        %v612 = vld [vmem:[%s3 + $0xbc] sm:$0xf]
        %v613 = vld [vmem:[%s3 + $0xc0] sm:$0xf]
        %v614 = vld [vmem:[%s3 + $0xc4] sm:$0xf]
        %v615 = vld [vmem:[%s3 + $0xc8] sm:$0xf]
        %v616 = vld [vmem:[%s3 + $0xcc] sm:$0xf]
        %v617 = vld [vmem:[%s3 + $0xd0] sm:$0xf]
        %v618 = vld [vmem:[%s3 + $0xd4] sm:$0xf]
        %v619 = vld [vmem:[%s3 + $0xd8] sm:$0xf]
        %v620 = vld [vmem:[%s3 + $0xdc] sm:$0xf]
        %v621 = vld [vmem:[%s3 + $0xe0] sm:$0xf]
        %v622 = vld [vmem:[%s3 + $0xe4] sm:$0xf]
        %v623 = vld [vmem:[%s3 + $0xe8] sm:$0xf]
        %v624 = vld [vmem:[%s3 + $0xec] sm:$0xf]
        %v625 = vld [vmem:[%s3 + $0xf0] sm:$0xf]
        %v626 = vld [vmem:[%s3 + $0xf4] sm:$0xf]
        %v627 = vld [vmem:[%s3 + $0xf8] sm:$0xf]
        %v628 = vld [vmem:[%s3 + $0xfc] sm:$0xf]
        %v629 = vld [vmem:[%s4] sm:$0xf]
        %v630 = vld [vmem:[%s4 + $0x4] sm:$0xf]
        %v631 = vld [vmem:[%s4 + $0x8] sm:$0xf]
        %v632 = vld [vmem:[%s4 + $0xc] sm:$0xf]
        %v633 = vld [vmem:[%s4 + $0x10] sm:$0xf]
        %v634 = vld [vmem:[%s4 + $0x14] sm:$0xf]
        %v635 = vld [vmem:[%s4 + $0x18] sm:$0xf]
        %v636 = vld [vmem:[%s4 + $0x1c] sm:$0xf]
        %v637 = vld [vmem:[%s4 + $0x20] sm:$0xf]
        %v638 = vld [vmem:[%s4 + $0x24] sm:$0xf]
        %v639 = vld [vmem:[%s4 + $0x28] sm:$0xf]
        %v640 = vld [vmem:[%s4 + $0x2c] sm:$0xf]
        %v641 = vld [vmem:[%s4 + $0x30] sm:$0xf]
        %v642 = vld [vmem:[%s4 + $0x34] sm:$0xf]
        %v643 = vld [vmem:[%s4 + $0x38] sm:$0xf]
        %v644 = vld [vmem:[%s4 + $0x3c] sm:$0xf]
        %v645 = vld [vmem:[%s4 + $0x40] sm:$0xf]
        %v646 = vld [vmem:[%s4 + $0x44] sm:$0xf]
        %v647 = vld [vmem:[%s4 + $0x48] sm:$0xf]
        %v648 = vld [vmem:[%s4 + $0x4c] sm:$0xf]
        %v649 = vld [vmem:[%s4 + $0x50] sm:$0xf]
        %v650 = vld [vmem:[%s4 + $0x54] sm:$0xf]
        %v651 = vld [vmem:[%s4 + $0x58] sm:$0xf]
        %v652 = vld [vmem:[%s4 + $0x5c] sm:$0xf]
        %v653 = vld [vmem:[%s4 + $0x60] sm:$0xf]
        %v654 = vld [vmem:[%s4 + $0x64] sm:$0xf]
        %v655 = vld [vmem:[%s4 + $0x68] sm:$0xf]
        %v656 = vld [vmem:[%s4 + $0x6c] sm:$0xf]
        %v657 = vld [vmem:[%s4 + $0x70] sm:$0xf]
        %v658 = vld [vmem:[%s4 + $0x74] sm:$0xf]
        %v659 = vld [vmem:[%s4 + $0x78] sm:$0xf]
        %v660 = vld [vmem:[%s4 + $0x7c] sm:$0xf]
        %v661 = vld [vmem:[%s4 + $0x80] sm:$0xf]
        %v662 = vld [vmem:[%s4 + $0x84] sm:$0xf]
        %v663 = vld [vmem:[%s4 + $0x88] sm:$0xf]
        %v664 = vld [vmem:[%s4 + $0x8c] sm:$0xf]
        %v665 = vld [vmem:[%s4 + $0x90] sm:$0xf]
        %v666 = vld [vmem:[%s4 + $0x94] sm:$0xf]
        %v667 = vld [vmem:[%s4 + $0x98] sm:$0xf]
        %v668 = vld [vmem:[%s4 + $0x9c] sm:$0xf]
        %v669 = vld [vmem:[%s4 + $0xa0] sm:$0xf]
        %v670 = vld [vmem:[%s4 + $0xa4] sm:$0xf]
        %v671 = vld [vmem:[%s4 + $0xa8] sm:$0xf]
        %v672 = vld [vmem:[%s4 + $0xac] sm:$0xf]
        %v673 = vld [vmem:[%s4 + $0xb0] sm:$0xf]
        %v674 = vld [vmem:[%s4 + $0xb4] sm:$0xf]
        %v675 = vld [vmem:[%s4 + $0xb8] sm:$0xf]
        %v676 = vld [vmem:[%s4 + $0xbc] sm:$0xf]
        %v677 = vld [vmem:[%s4 + $0xc0] sm:$0xf]
        %v678 = vld [vmem:[%s4 + $0xc4] sm:$0xf]
        %v679 = vld [vmem:[%s4 + $0xc8] sm:$0xf]
        %v680 = vld [vmem:[%s4 + $0xcc] sm:$0xf]
        %v681 = vld [vmem:[%s4 + $0xd0] sm:$0xf]
        %v682 = vld [vmem:[%s4 + $0xd4] sm:$0xf]
        %v683 = vld [vmem:[%s4 + $0xd8] sm:$0xf]
        %v684 = vld [vmem:[%s4 + $0xdc] sm:$0xf]
        %v685 = vld [vmem:[%s4 + $0xe0] sm:$0xf]
        %v686 = vld [vmem:[%s4 + $0xe4] sm:$0xf]
        %v687 = vld [vmem:[%s4 + $0xe8] sm:$0xf]
        %v688 = vld [vmem:[%s4 + $0xec] sm:$0xf]
        %v689 = vld [vmem:[%s4 + $0xf0] sm:$0xf]
        %v690 = vld [vmem:[%s4 + $0xf4] sm:$0xf]
        %v691 = vld [vmem:[%s4 + $0xf8] sm:$0xf]
        %v692 = vld [vmem:[%s4 + $0xfc] sm:$0xf]
        %v693 = vld [vmem:[%s5] sm:$0xf]
        %v694 = vld [vmem:[%s5 + $0x4] sm:$0xf]
        %v695 = vld [vmem:[%s5 + $0x8] sm:$0xf]
        %v696 = vld [vmem:[%s5 + $0xc] sm:$0xf]
        %v697 = vld [vmem:[%s5 + $0x10] sm:$0xf]
        %v698 = vld [vmem:[%s5 + $0x14] sm:$0xf]
        %v699 = vld [vmem:[%s5 + $0x18] sm:$0xf]
        %v700 = vld [vmem:[%s5 + $0x1c] sm:$0xf]
        %v701 = vld [vmem:[%s5 + $0x20] sm:$0xf]
        %v702 = vld [vmem:[%s5 + $0x24] sm:$0xf]
        %v703 = vld [vmem:[%s5 + $0x28] sm:$0xf]
        %v704 = vld [vmem:[%s5 + $0x2c] sm:$0xf]
        %v705 = vld [vmem:[%s5 + $0x30] sm:$0xf]
        %v706 = vld [vmem:[%s5 + $0x34] sm:$0xf]
        %v707 = vld [vmem:[%s5 + $0x38] sm:$0xf]
        %v708 = vld [vmem:[%s5 + $0x3c] sm:$0xf]
        %v709 = vld [vmem:[%s5 + $0x40] sm:$0xf]
        %v710 = vld [vmem:[%s5 + $0x44] sm:$0xf]
        %v711 = vld [vmem:[%s5 + $0x48] sm:$0xf]
        %v712 = vld [vmem:[%s5 + $0x4c] sm:$0xf]
        %v713 = vld [vmem:[%s5 + $0x50] sm:$0xf]
        %v714 = vld [vmem:[%s5 + $0x54] sm:$0xf]
        %v715 = vld [vmem:[%s5 + $0x58] sm:$0xf]
        %v716 = vld [vmem:[%s5 + $0x5c] sm:$0xf]
        %v717 = vld [vmem:[%s5 + $0x60] sm:$0xf]
        %v718 = vld [vmem:[%s5 + $0x64] sm:$0xf]
        %v719 = vld [vmem:[%s5 + $0x68] sm:$0xf]
        %v720 = vld [vmem:[%s5 + $0x6c] sm:$0xf]
        %v721 = vld [vmem:[%s5 + $0x70] sm:$0xf]
        %v722 = vld [vmem:[%s5 + $0x74] sm:$0xf]
        %v723 = vld [vmem:[%s5 + $0x78] sm:$0xf]
        %v724 = vld [vmem:[%s5 + $0x7c] sm:$0xf]
        %v725 = vld [vmem:[%s5 + $0x80] sm:$0xf]
        %v726 = vld [vmem:[%s5 + $0x84] sm:$0xf]
        %v727 = vld [vmem:[%s5 + $0x88] sm:$0xf]
        %v728 = vld [vmem:[%s5 + $0x8c] sm:$0xf]
        %v729 = vld [vmem:[%s5 + $0x90] sm:$0xf]
        %v730 = vld [vmem:[%s5 + $0x94] sm:$0xf]
        %v731 = vld [vmem:[%s5 + $0x98] sm:$0xf]
        %v732 = vld [vmem:[%s5 + $0x9c] sm:$0xf]
        %v733 = vld [vmem:[%s5 + $0xa0] sm:$0xf]
        %v734 = vld [vmem:[%s5 + $0xa4] sm:$0xf]
        %v735 = vld [vmem:[%s5 + $0xa8] sm:$0xf]
        %v736 = vld [vmem:[%s5 + $0xac] sm:$0xf]
        %v737 = vld [vmem:[%s5 + $0xb0] sm:$0xf]
        %v738 = vld [vmem:[%s5 + $0xb4] sm:$0xf]
        %v739 = vld [vmem:[%s5 + $0xb8] sm:$0xf]
        %v740 = vld [vmem:[%s5 + $0xbc] sm:$0xf]
        %v741 = vld [vmem:[%s5 + $0xc0] sm:$0xf]
        %v742 = vld [vmem:[%s5 + $0xc4] sm:$0xf]
        %v743 = vld [vmem:[%s5 + $0xc8] sm:$0xf]
        %v744 = vld [vmem:[%s5 + $0xcc] sm:$0xf]
        %v745 = vld [vmem:[%s5 + $0xd0] sm:$0xf]
        %v746 = vld [vmem:[%s5 + $0xd4] sm:$0xf]
        %v747 = vld [vmem:[%s5 + $0xd8] sm:$0xf]
        %v748 = vld [vmem:[%s5 + $0xdc] sm:$0xf]
        %v749 = vld [vmem:[%s5 + $0xe0] sm:$0xf]
        %v750 = vld [vmem:[%s5 + $0xe4] sm:$0xf]
        %v751 = vld [vmem:[%s5 + $0xe8] sm:$0xf]
        %v752 = vld [vmem:[%s5 + $0xec] sm:$0xf]
        %v753 = vld [vmem:[%s5 + $0xf0] sm:$0xf]
        %v754 = vld [vmem:[%s5 + $0xf4] sm:$0xf]
        %v755 = vld [vmem:[%s5 + $0xf8] sm:$0xf]
        %v756 = vld [vmem:[%s5 + $0xfc] sm:$0xf]
        %757 = vxpose.xlu0.b32.start [1/16] %v499, 128
        %758 = vxpose.xlu0.b32.cont [2/16] 0.0, 128
        %759 = vxpose.xlu0.b32.cont [3/16] 0.0, 128
        %760 = vxpose.xlu0.b32.cont [4/16] 0.0, 128
        %761 = vxpose.xlu0.b32.cont [5/16] 0.0, 128
        %762 = vxpose.xlu0.b32.cont [6/16] 0.0, 128
        %763 = vxpose.xlu0.b32.cont [7/16] 0.0, 128
        %764 = vxpose.xlu0.b32.cont [8/16] 0.0, 128
        %765 = vxpose.xlu0.b32.cont [9/16] 0.0, 128
        %766 = vxpose.xlu0.b32.cont [10/16] 0.0, 128
        %767 = vxpose.xlu0.b32.cont [11/16] 0.0, 128
        %768 = vxpose.xlu0.b32.cont [12/16] 0.0, 128
        %769 = vxpose.xlu0.b32.cont [13/16] 0.0, 128
        %770 = vxpose.xlu0.b32.cont [14/16] 0.0, 128
        %771 = vxpose.xlu0.b32.cont [15/16] 0.0, 128
        %772 = vxpose.xlu0.b32.end [16/16] 0.0, 128
        %v773 = vpop.trf.xlu0
        %v774 = vpop.trf.xlu0
        %v775 = vpop.trf.xlu0
        %v776 = vpop.trf.xlu0
        %v777 = vpop.trf.xlu0
        %v778 = vpop.trf.xlu0
        %v779 = vpop.trf.xlu0
        %v780 = vpop.trf.xlu0
        %v781 = vpop.trf.xlu0
        %v782 = vpop.trf.xlu0
        %v783 = vpop.trf.xlu0
        %v784 = vpop.trf.xlu0
        %v785 = vpop.trf.xlu0
        %v786 = vpop.trf.xlu0
        %v787 = vpop.trf.xlu0
        %v788 = vpop.trf.xlu0
        %v789 = vpack.c.bf16 %v774, %v773
        %v790 = vpack.c.bf16 %v776, %v775
        %v855 = vunpack.c.l.b16 %v501
        %v856 = vunpack.c.l.b16 %v502
        %v857 = vunpack.c.l.b16 %v503
        %v858 = vunpack.c.l.b16 %v504
        %v859 = vunpack.c.l.b16 %v505
        %v860 = vunpack.c.l.b16 %v506
        %v861 = vunpack.c.l.b16 %v507
        %v862 = vunpack.c.l.b16 %v508
        %v863 = vunpack.c.l.b16 %v509
        %v864 = vunpack.c.l.b16 %v510
        %v865 = vunpack.c.l.b16 %v511
        %v866 = vunpack.c.l.b16 %v512
        %v867 = vunpack.c.l.b16 %v513
        %v868 = vunpack.c.l.b16 %v514
        %v869 = vunpack.c.l.b16 %v515
        %v870 = vunpack.c.l.b16 %v516
        %v871 = vunpack.c.l.b16 %v517
        %v872 = vunpack.c.l.b16 %v518
        %v873 = vunpack.c.l.b16 %v519
        %v874 = vunpack.c.l.b16 %v520
        %v875 = vunpack.c.l.b16 %v521
        %v876 = vunpack.c.l.b16 %v522
        %v877 = vunpack.c.l.b16 %v523
        %v878 = vunpack.c.l.b16 %v524
        %v879 = vunpack.c.l.b16 %v525
        %v880 = vunpack.c.l.b16 %v526
        %v881 = vunpack.c.l.b16 %v527
        %v882 = vunpack.c.l.b16 %v528
        %v883 = vunpack.c.l.b16 %v529
        %v884 = vunpack.c.l.b16 %v530
        %v885 = vunpack.c.l.b16 %v531
        %v886 = vunpack.c.l.b16 %v532
        %v887 = vunpack.c.l.b16 %v533
        %v888 = vunpack.c.l.b16 %v534
        %v889 = vunpack.c.l.b16 %v535
        %v890 = vunpack.c.l.b16 %v536
        %v891 = vunpack.c.l.b16 %v537
        %v892 = vunpack.c.l.b16 %v538
        %v893 = vunpack.c.l.b16 %v539
        %v894 = vunpack.c.l.b16 %v540
        %v895 = vunpack.c.l.b16 %v541
        %v896 = vunpack.c.l.b16 %v542
        %v897 = vunpack.c.l.b16 %v543
        %v898 = vunpack.c.l.b16 %v544
        %v899 = vunpack.c.l.b16 %v545
        %v900 = vunpack.c.l.b16 %v546
        %v901 = vunpack.c.l.b16 %v547
        %v902 = vunpack.c.l.b16 %v548
        %v903 = vunpack.c.l.b16 %v549
        %v904 = vunpack.c.l.b16 %v550
        %v905 = vunpack.c.l.b16 %v551
        %v906 = vunpack.c.l.b16 %v552
        %v907 = vunpack.c.l.b16 %v553
        %v908 = vunpack.c.l.b16 %v554
        %v909 = vunpack.c.l.b16 %v555
        %v910 = vunpack.c.l.b16 %v556
        %v911 = vunpack.c.l.b16 %v557
        %v912 = vunpack.c.l.b16 %v558
        %v913 = vunpack.c.l.b16 %v559
        %v914 = vunpack.c.l.b16 %v560
        %v915 = vunpack.c.l.b16 %v561
        %v916 = vunpack.c.l.b16 %v562
        %v917 = vunpack.c.l.b16 %v563
        %v918 = vunpack.c.l.b16 %v564
        %v919 = vpack.c.b16 %v856, %v855
        %v920 = vpack.c.b16 %v858, %v857
        %v921 = vpack.c.b16 %v860, %v859
        %v922 = vpack.c.b16 %v862, %v861
        %v923 = vpack.c.b16 %v864, %v863
        %v924 = vpack.c.b16 %v866, %v865
        %v925 = vpack.c.b16 %v868, %v867
        %v926 = vpack.c.b16 %v870, %v869
        %v927 = vpack.c.b16 %v872, %v871
        %v928 = vpack.c.b16 %v874, %v873
        %v929 = vpack.c.b16 %v876, %v875
        %v930 = vpack.c.b16 %v878, %v877
        %v931 = vpack.c.b16 %v880, %v879
        %v932 = vpack.c.b16 %v882, %v881
        %v933 = vpack.c.b16 %v884, %v883
        %v934 = vpack.c.b16 %v886, %v885
        %v935 = vpack.c.b16 %v888, %v887
        %v936 = vpack.c.b16 %v890, %v889
        %v937 = vpack.c.b16 %v892, %v891
        %v938 = vpack.c.b16 %v894, %v893
        %v939 = vpack.c.b16 %v896, %v895
        %v940 = vpack.c.b16 %v898, %v897
        %v941 = vpack.c.b16 %v900, %v899
        %v942 = vpack.c.b16 %v902, %v901
        %v943 = vpack.c.b16 %v904, %v903
        %v944 = vpack.c.b16 %v906, %v905
        %v945 = vpack.c.b16 %v908, %v907
        %v946 = vpack.c.b16 %v910, %v909
        %v947 = vpack.c.b16 %v912, %v911
        %v948 = vpack.c.b16 %v914, %v913
        %v949 = vpack.c.b16 %v916, %v915
        %v950 = vpack.c.b16 %v918, %v917
        %vm951 = vcmask 261120
        %v953 = vsel %vm951, %v919, 0
        %v956 = vsel %vm951, %v920, 0
        %v959 = vsel %vm951, %v921, 0
        %v962 = vsel %vm951, %v922, 0
        %v965 = vsel %vm951, %v923, 0
        %v968 = vsel %vm951, %v924, 0
        %v971 = vsel %vm951, %v925, 0
        %v974 = vsel %vm951, %v926, 0
        %v977 = vsel %vm951, %v927, 0
        %v980 = vsel %vm951, %v928, 0
        %v983 = vsel %vm951, %v929, 0
        %v986 = vsel %vm951, %v930, 0
        %v989 = vsel %vm951, %v931, 0
        %v992 = vsel %vm951, %v932, 0
        %v995 = vsel %vm951, %v933, 0
        %v998 = vsel %vm951, %v934, 0
        %v1001 = vsel %vm951, %v935, 0
        %v1004 = vsel %vm951, %v936, 0
        %v1007 = vsel %vm951, %v937, 0
        %v1010 = vsel %vm951, %v938, 0
        %v1013 = vsel %vm951, %v939, 0
        %v1016 = vsel %vm951, %v940, 0
        %v1019 = vsel %vm951, %v941, 0
        %v1022 = vsel %vm951, %v942, 0
        %v1025 = vsel %vm951, %v943, 0
        %v1028 = vsel %vm951, %v944, 0
        %v1031 = vsel %vm951, %v945, 0
        %v1034 = vsel %vm951, %v946, 0
        %v1037 = vsel %vm951, %v947, 0
        %v1040 = vsel %vm951, %v948, 0
        %v1043 = vsel %vm951, %v949, 0
        %v1046 = vsel %vm951, %v950, 0
        %1048 = vmatprep.subr.bf16.mxu0 0
        %1049 = vmatpush1.bf16.msra.mxu0 0
        %1050 = vmatprep.subr.bf16.mxu0 0
        %1051 = vmatpush1.bf16.msra.mxu0 0
        %1052 = vmatprep.subr.bf16.mxu0 0
        %1053 = vmatpush1.bf16.msra.mxu0 0
        %1054 = vmatprep.subr.bf16.mxu0 0
        %1055 = vmatpush1.bf16.msra.mxu0 0
        %1056 = vmatprep.subr.bf16.mxu0 0
        %1057 = vmatpush1.bf16.msra.mxu0 0
        %1058 = vmatprep.subr.bf16.mxu0 0
        %1059 = vmatpush1.bf16.msra.mxu0 0
        %1060 = vmatprep.subr.bf16.mxu0 0
        %1061 = vmatpush1.bf16.msra.mxu0 %v790
        %1062 = vmatprep.subr.bf16.mxu0 0
        %1063 = vmatpush1.bf16.msra.mxu0 %v789
        %1064 = vmatprep.subr.bf16.mxu0 0
        %1065 = vmatpush2.bf16.msra.mxu0 0
        %1066 = vmatprep.subr.bf16.mxu0 0
        %1067 = vmatpush2.bf16.msra.mxu0 0
        %1068 = vmatprep.subr.bf16.mxu0 0
        %1069 = vmatpush2.bf16.msra.mxu0 0
        %1070 = vmatprep.subr.bf16.mxu0 0
        %1071 = vmatpush2.bf16.msra.mxu0 0
        %1072 = vmatprep.subr.bf16.mxu0 0
        %1073 = vmatpush2.bf16.msra.mxu0 0
        %1074 = vmatprep.subr.bf16.mxu0 0
        %1075 = vmatpush2.bf16.msra.mxu0 0
        %1076 = vmatprep.subr.bf16.mxu0 0
        %1077 = vmatpush2.bf16.msra.mxu0 0
        %1078 = vmatprep.subr.bf16.mxu0 0
        %1079 = vmatpush2.bf16.msra.mxu0 0
        %1080 = vmatprep.mubr.bf16.mxu0 0
        %1081 = vmatmul.mubr.bf16.gmra.mxu0 %v953
        %v1082 = vpop.f32.mrf.mxu0
        %v1083 = vadd.f32 0.0, %v1082
        %v1084 = vpop.f32.mrf.mxu0
        %v1085 = vpop.f32.mrf.mxu0
        %v1086 = vadd.f32 0.0, %v1085
        %v1087 = vpop.f32.mrf.mxu0
        %1088 = vmatprep.mubr.bf16.mxu0 0
        %1089 = vmatmul.mubr.bf16.gmra.mxu0 %v956
        %v1090 = vpop.f32.mrf.mxu0
        %v1091 = vadd.f32 0.0, %v1090
        %v1092 = vpop.f32.mrf.mxu0
        %v1093 = vpop.f32.mrf.mxu0
        %v1094 = vadd.f32 0.0, %v1093
        %v1095 = vpop.f32.mrf.mxu0
        %1096 = vmatprep.mubr.bf16.mxu0 0
        %1097 = vmatmul.mubr.bf16.gmra.mxu0 %v959
        %v1098 = vpop.f32.mrf.mxu0
        %v1099 = vadd.f32 0.0, %v1098
        %v1100 = vpop.f32.mrf.mxu0
        %v1101 = vpop.f32.mrf.mxu0
        %v1102 = vadd.f32 0.0, %v1101
        %v1103 = vpop.f32.mrf.mxu0
        %1104 = vmatprep.mubr.bf16.mxu0 0
        %1105 = vmatmul.mubr.bf16.gmra.mxu0 %v962
        %v1106 = vpop.f32.mrf.mxu0
        %v1107 = vadd.f32 0.0, %v1106
        %v1108 = vpop.f32.mrf.mxu0
        %v1109 = vpop.f32.mrf.mxu0
        %v1110 = vadd.f32 0.0, %v1109
        %v1111 = vpop.f32.mrf.mxu0
        %1112 = vmatprep.mubr.bf16.mxu0 0
        %1113 = vmatmul.mubr.bf16.gmra.mxu0 %v965
        %v1114 = vpop.f32.mrf.mxu0
        %v1115 = vadd.f32 0.0, %v1114
        %v1116 = vpop.f32.mrf.mxu0
        %v1117 = vpop.f32.mrf.mxu0
        %v1118 = vadd.f32 0.0, %v1117
        %v1119 = vpop.f32.mrf.mxu0
        %1120 = vmatprep.mubr.bf16.mxu0 0
        %1121 = vmatmul.mubr.bf16.gmra.mxu0 %v968
        %v1122 = vpop.f32.mrf.mxu0
        %v1123 = vadd.f32 0.0, %v1122
        %v1124 = vpop.f32.mrf.mxu0
        %v1125 = vpop.f32.mrf.mxu0
        %v1126 = vadd.f32 0.0, %v1125
        %v1127 = vpop.f32.mrf.mxu0
        %1128 = vmatprep.mubr.bf16.mxu0 0
        %1129 = vmatmul.mubr.bf16.gmra.mxu0 %v971
        %v1130 = vpop.f32.mrf.mxu0
        %v1131 = vadd.f32 0.0, %v1130
        %v1132 = vpop.f32.mrf.mxu0
        %v1133 = vpop.f32.mrf.mxu0
        %v1134 = vadd.f32 0.0, %v1133
        %v1135 = vpop.f32.mrf.mxu0
        %1136 = vmatprep.mubr.bf16.mxu0 0
        %1137 = vmatmul.mubr.bf16.gmra.mxu0 %v974
        %v1138 = vpop.f32.mrf.mxu0
        %v1139 = vadd.f32 0.0, %v1138
        %v1140 = vpop.f32.mrf.mxu0
        %v1141 = vpop.f32.mrf.mxu0
        %v1142 = vadd.f32 0.0, %v1141
        %v1143 = vpop.f32.mrf.mxu0
        %1144 = vmatprep.mubr.bf16.mxu0 0
        %1145 = vmatmul.mubr.bf16.gmra.mxu0 %v977
        %v1146 = vpop.f32.mrf.mxu0
        %v1147 = vadd.f32 0.0, %v1146
        %v1148 = vpop.f32.mrf.mxu0
        %v1149 = vpop.f32.mrf.mxu0
        %v1150 = vadd.f32 0.0, %v1149
        %v1151 = vpop.f32.mrf.mxu0
        %1152 = vmatprep.mubr.bf16.mxu0 0
        %1153 = vmatmul.mubr.bf16.gmra.mxu0 %v980
        %v1154 = vpop.f32.mrf.mxu0
        %v1155 = vadd.f32 0.0, %v1154
        %v1156 = vpop.f32.mrf.mxu0
        %v1157 = vpop.f32.mrf.mxu0
        %v1158 = vadd.f32 0.0, %v1157
        %v1159 = vpop.f32.mrf.mxu0
        %1160 = vmatprep.mubr.bf16.mxu0 0
        %1161 = vmatmul.mubr.bf16.gmra.mxu0 %v983
        %v1162 = vpop.f32.mrf.mxu0
        %v1163 = vadd.f32 0.0, %v1162
        %v1164 = vpop.f32.mrf.mxu0
        %v1165 = vpop.f32.mrf.mxu0
        %v1166 = vadd.f32 0.0, %v1165
        %v1167 = vpop.f32.mrf.mxu0
        %1168 = vmatprep.mubr.bf16.mxu0 0
        %1169 = vmatmul.mubr.bf16.gmra.mxu0 %v986
        %v1170 = vpop.f32.mrf.mxu0
        %v1171 = vadd.f32 0.0, %v1170
        %v1172 = vpop.f32.mrf.mxu0
        %v1173 = vpop.f32.mrf.mxu0
        %v1174 = vadd.f32 0.0, %v1173
        %v1175 = vpop.f32.mrf.mxu0
        %1176 = vmatprep.mubr.bf16.mxu0 0
        %1177 = vmatmul.mubr.bf16.gmra.mxu0 %v989
        %v1178 = vpop.f32.mrf.mxu0
        %v1179 = vadd.f32 0.0, %v1178
        %v1180 = vpop.f32.mrf.mxu0
        %v1181 = vpop.f32.mrf.mxu0
        %v1182 = vadd.f32 0.0, %v1181
        %v1183 = vpop.f32.mrf.mxu0
        %1184 = vmatprep.mubr.bf16.mxu0 0
        %1185 = vmatmul.mubr.bf16.gmra.mxu0 %v992
        %v1186 = vpop.f32.mrf.mxu0
        %v1187 = vadd.f32 0.0, %v1186
        %v1188 = vpop.f32.mrf.mxu0
        %v1189 = vpop.f32.mrf.mxu0
        %v1190 = vadd.f32 0.0, %v1189
        %v1191 = vpop.f32.mrf.mxu0
        %1192 = vmatprep.mubr.bf16.mxu0 0
        %1193 = vmatmul.mubr.bf16.gmra.mxu0 %v995
        %v1194 = vpop.f32.mrf.mxu0
        %v1195 = vadd.f32 0.0, %v1194
        %v1196 = vpop.f32.mrf.mxu0
        %v1197 = vpop.f32.mrf.mxu0
        %v1198 = vadd.f32 0.0, %v1197
        %v1199 = vpop.f32.mrf.mxu0
        %1200 = vmatprep.mubr.bf16.mxu0 0
        %1201 = vmatmul.mubr.bf16.gmra.mxu0 %v998
        %v1202 = vpop.f32.mrf.mxu0
        %v1203 = vadd.f32 0.0, %v1202
        %v1204 = vpop.f32.mrf.mxu0
        %v1205 = vpop.f32.mrf.mxu0
        %v1206 = vadd.f32 0.0, %v1205
        %v1207 = vpop.f32.mrf.mxu0
        %1208 = vmatprep.mubr.bf16.mxu0 0
        %1209 = vmatmul.mubr.bf16.gmra.mxu0 %v1001
        %v1210 = vpop.f32.mrf.mxu0
        %v1211 = vadd.f32 0.0, %v1210
        %v1212 = vpop.f32.mrf.mxu0
        %v1213 = vpop.f32.mrf.mxu0
        %v1214 = vadd.f32 0.0, %v1213
        %v1215 = vpop.f32.mrf.mxu0
        %1216 = vmatprep.mubr.bf16.mxu0 0
        %1217 = vmatmul.mubr.bf16.gmra.mxu0 %v1004
        %v1218 = vpop.f32.mrf.mxu0
        %v1219 = vadd.f32 0.0, %v1218
        %v1220 = vpop.f32.mrf.mxu0
        %v1221 = vpop.f32.mrf.mxu0
        %v1222 = vadd.f32 0.0, %v1221
        %v1223 = vpop.f32.mrf.mxu0
        %1224 = vmatprep.mubr.bf16.mxu0 0
        %1225 = vmatmul.mubr.bf16.gmra.mxu0 %v1007
        %v1226 = vpop.f32.mrf.mxu0
        %v1227 = vadd.f32 0.0, %v1226
        %v1228 = vpop.f32.mrf.mxu0
        %v1229 = vpop.f32.mrf.mxu0
        %v1230 = vadd.f32 0.0, %v1229
        %v1231 = vpop.f32.mrf.mxu0
        %1232 = vmatprep.mubr.bf16.mxu0 0
        %1233 = vmatmul.mubr.bf16.gmra.mxu0 %v1010
        %v1234 = vpop.f32.mrf.mxu0
        %v1235 = vadd.f32 0.0, %v1234
        %v1236 = vpop.f32.mrf.mxu0
        %v1237 = vpop.f32.mrf.mxu0
        %v1238 = vadd.f32 0.0, %v1237
        %v1239 = vpop.f32.mrf.mxu0
        %1240 = vmatprep.mubr.bf16.mxu0 0
        %1241 = vmatmul.mubr.bf16.gmra.mxu0 %v1013
        %v1242 = vpop.f32.mrf.mxu0
        %v1243 = vadd.f32 0.0, %v1242
        %v1244 = vpop.f32.mrf.mxu0
        %v1245 = vpop.f32.mrf.mxu0
        %v1246 = vadd.f32 0.0, %v1245
        %v1247 = vpop.f32.mrf.mxu0
        %1248 = vmatprep.mubr.bf16.mxu0 0
        %1249 = vmatmul.mubr.bf16.gmra.mxu0 %v1016
        %v1250 = vpop.f32.mrf.mxu0
        %v1251 = vadd.f32 0.0, %v1250
        %v1252 = vpop.f32.mrf.mxu0
        %v1253 = vpop.f32.mrf.mxu0
        %v1254 = vadd.f32 0.0, %v1253
        %v1255 = vpop.f32.mrf.mxu0
        %1256 = vmatprep.mubr.bf16.mxu0 0
        %1257 = vmatmul.mubr.bf16.gmra.mxu0 %v1019
        %v1258 = vpop.f32.mrf.mxu0
        %v1259 = vadd.f32 0.0, %v1258
        %v1260 = vpop.f32.mrf.mxu0
        %v1261 = vpop.f32.mrf.mxu0
        %v1262 = vadd.f32 0.0, %v1261
        %v1263 = vpop.f32.mrf.mxu0
        %1264 = vmatprep.mubr.bf16.mxu0 0
        %1265 = vmatmul.mubr.bf16.gmra.mxu0 %v1022
        %v1266 = vpop.f32.mrf.mxu0
        %v1267 = vadd.f32 0.0, %v1266
        %v1268 = vpop.f32.mrf.mxu0
        %v1269 = vpop.f32.mrf.mxu0
        %v1270 = vadd.f32 0.0, %v1269
        %v1271 = vpop.f32.mrf.mxu0
        %1272 = vmatprep.mubr.bf16.mxu0 0
        %1273 = vmatmul.mubr.bf16.gmra.mxu0 %v1025
        %v1274 = vpop.f32.mrf.mxu0
        %v1275 = vadd.f32 0.0, %v1274
        %v1276 = vpop.f32.mrf.mxu0
        %v1277 = vpop.f32.mrf.mxu0
        %v1278 = vadd.f32 0.0, %v1277
        %v1279 = vpop.f32.mrf.mxu0
        %1280 = vmatprep.mubr.bf16.mxu0 0
        %1281 = vmatmul.mubr.bf16.gmra.mxu0 %v1028
        %v1282 = vpop.f32.mrf.mxu0
        %v1283 = vadd.f32 0.0, %v1282
        %v1284 = vpop.f32.mrf.mxu0
        %v1285 = vpop.f32.mrf.mxu0
        %v1286 = vadd.f32 0.0, %v1285
        %v1287 = vpop.f32.mrf.mxu0
        %1288 = vmatprep.mubr.bf16.mxu0 0
        %1289 = vmatmul.mubr.bf16.gmra.mxu0 %v1031
        %v1290 = vpop.f32.mrf.mxu0
        %v1291 = vadd.f32 0.0, %v1290
        %v1292 = vpop.f32.mrf.mxu0
        %v1293 = vpop.f32.mrf.mxu0
        %v1294 = vadd.f32 0.0, %v1293
        %v1295 = vpop.f32.mrf.mxu0
        %1296 = vmatprep.mubr.bf16.mxu0 0
        %1297 = vmatmul.mubr.bf16.gmra.mxu0 %v1034
        %v1298 = vpop.f32.mrf.mxu0
        %v1299 = vadd.f32 0.0, %v1298
        %v1300 = vpop.f32.mrf.mxu0
        %v1301 = vpop.f32.mrf.mxu0
        %v1302 = vadd.f32 0.0, %v1301
        %v1303 = vpop.f32.mrf.mxu0
        %1304 = vmatprep.mubr.bf16.mxu0 0
        %1305 = vmatmul.mubr.bf16.gmra.mxu0 %v1037
        %v1306 = vpop.f32.mrf.mxu0
        %v1307 = vadd.f32 0.0, %v1306
        %v1308 = vpop.f32.mrf.mxu0
        %v1309 = vpop.f32.mrf.mxu0
        %v1310 = vadd.f32 0.0, %v1309
        %v1311 = vpop.f32.mrf.mxu0
        %1312 = vmatprep.mubr.bf16.mxu0 0
        %1313 = vmatmul.mubr.bf16.gmra.mxu0 %v1040
        %v1314 = vpop.f32.mrf.mxu0
        %v1315 = vadd.f32 0.0, %v1314
        %v1316 = vpop.f32.mrf.mxu0
        %v1317 = vpop.f32.mrf.mxu0
        %v1318 = vadd.f32 0.0, %v1317
        %v1319 = vpop.f32.mrf.mxu0
        %1320 = vmatprep.mubr.bf16.mxu0 0
        %1321 = vmatmul.mubr.bf16.gmra.mxu0 %v1043
        %v1322 = vpop.f32.mrf.mxu0
        %v1323 = vadd.f32 0.0, %v1322
        %v1324 = vpop.f32.mrf.mxu0
        %v1325 = vpop.f32.mrf.mxu0
        %v1326 = vadd.f32 0.0, %v1325
        %v1327 = vpop.f32.mrf.mxu0
        %1328 = vmatprep.mubr.bf16.mxu0 0
        %1329 = vmatmul.mubr.bf16.gmra.mxu0 %v1046
        %v1330 = vpop.f32.mrf.mxu0
        %v1331 = vadd.f32 0.0, %v1330
        %v1332 = vpop.f32.mrf.mxu0
        %v1333 = vpop.f32.mrf.mxu0
        %v1334 = vadd.f32 0.0, %v1333
        %v1335 = vpop.f32.mrf.mxu0
        %1336 = vdwg.mxu0
        %v1401 = vunpack.c.l.b16 %v565
        %v1402 = vunpack.c.l.b16 %v566
        %v1403 = vunpack.c.l.b16 %v567
        %v1404 = vunpack.c.l.b16 %v568
        %v1405 = vunpack.c.l.b16 %v569
        %v1406 = vunpack.c.l.b16 %v570
        %v1407 = vunpack.c.l.b16 %v571
        %v1408 = vunpack.c.l.b16 %v572
        %v1409 = vunpack.c.l.b16 %v573
        %v1410 = vunpack.c.l.b16 %v574
        %v1411 = vunpack.c.l.b16 %v575
        %v1412 = vunpack.c.l.b16 %v576
        %v1413 = vunpack.c.l.b16 %v577
        %v1414 = vunpack.c.l.b16 %v578
        %v1415 = vunpack.c.l.b16 %v579
        %v1416 = vunpack.c.l.b16 %v580
        %v1417 = vunpack.c.l.b16 %v581
        %v1418 = vunpack.c.l.b16 %v582
        %v1419 = vunpack.c.l.b16 %v583
        %v1420 = vunpack.c.l.b16 %v584
        %v1421 = vunpack.c.l.b16 %v585
        %v1422 = vunpack.c.l.b16 %v586
        %v1423 = vunpack.c.l.b16 %v587
        %v1424 = vunpack.c.l.b16 %v588
        %v1425 = vunpack.c.l.b16 %v589
        %v1426 = vunpack.c.l.b16 %v590
        %v1427 = vunpack.c.l.b16 %v591
        %v1428 = vunpack.c.l.b16 %v592
        %v1429 = vunpack.c.l.b16 %v593
        %v1430 = vunpack.c.l.b16 %v594
        %v1431 = vunpack.c.l.b16 %v595
        %v1432 = vunpack.c.l.b16 %v596
        %v1433 = vunpack.c.l.b16 %v597
        %v1434 = vunpack.c.l.b16 %v598
        %v1435 = vunpack.c.l.b16 %v599
        %v1436 = vunpack.c.l.b16 %v600
        %v1437 = vunpack.c.l.b16 %v601
        %v1438 = vunpack.c.l.b16 %v602
        %v1439 = vunpack.c.l.b16 %v603
        %v1440 = vunpack.c.l.b16 %v604
        %v1441 = vunpack.c.l.b16 %v605
        %v1442 = vunpack.c.l.b16 %v606
        %v1443 = vunpack.c.l.b16 %v607
        %v1444 = vunpack.c.l.b16 %v608
        %v1445 = vunpack.c.l.b16 %v609
        %v1446 = vunpack.c.l.b16 %v610
        %v1447 = vunpack.c.l.b16 %v611
        %v1448 = vunpack.c.l.b16 %v612
        %v1449 = vunpack.c.l.b16 %v613
        %v1450 = vunpack.c.l.b16 %v614
        %v1451 = vunpack.c.l.b16 %v615
        %v1452 = vunpack.c.l.b16 %v616
        %v1453 = vunpack.c.l.b16 %v617
        %v1454 = vunpack.c.l.b16 %v618
        %v1455 = vunpack.c.l.b16 %v619
        %v1456 = vunpack.c.l.b16 %v620
        %v1457 = vunpack.c.l.b16 %v621
        %v1458 = vunpack.c.l.b16 %v622
        %v1459 = vunpack.c.l.b16 %v623
        %v1460 = vunpack.c.l.b16 %v624
        %v1461 = vunpack.c.l.b16 %v625
        %v1462 = vunpack.c.l.b16 %v626
        %v1463 = vunpack.c.l.b16 %v627
        %v1464 = vunpack.c.l.b16 %v628
        %v1465 = vpack.c.b16 %v1402, %v1401
        %v1466 = vpack.c.b16 %v1404, %v1403
        %v1467 = vpack.c.b16 %v1406, %v1405
        %v1468 = vpack.c.b16 %v1408, %v1407
        %v1469 = vpack.c.b16 %v1410, %v1409
        %v1470 = vpack.c.b16 %v1412, %v1411
        %v1471 = vpack.c.b16 %v1414, %v1413
        %v1472 = vpack.c.b16 %v1416, %v1415
        %v1473 = vpack.c.b16 %v1418, %v1417
        %v1474 = vpack.c.b16 %v1420, %v1419
        %v1475 = vpack.c.b16 %v1422, %v1421
        %v1476 = vpack.c.b16 %v1424, %v1423
        %v1477 = vpack.c.b16 %v1426, %v1425
        %v1478 = vpack.c.b16 %v1428, %v1427
        %v1479 = vpack.c.b16 %v1430, %v1429
        %v1480 = vpack.c.b16 %v1432, %v1431
        %v1481 = vpack.c.b16 %v1434, %v1433
        %v1482 = vpack.c.b16 %v1436, %v1435
        %v1483 = vpack.c.b16 %v1438, %v1437
        %v1484 = vpack.c.b16 %v1440, %v1439
        %v1485 = vpack.c.b16 %v1442, %v1441
        %v1486 = vpack.c.b16 %v1444, %v1443
        %v1487 = vpack.c.b16 %v1446, %v1445
        %v1488 = vpack.c.b16 %v1448, %v1447
        %v1489 = vpack.c.b16 %v1450, %v1449
        %v1490 = vpack.c.b16 %v1452, %v1451
        %v1491 = vpack.c.b16 %v1454, %v1453
        %v1492 = vpack.c.b16 %v1456, %v1455
        %v1493 = vpack.c.b16 %v1458, %v1457
        %v1494 = vpack.c.b16 %v1460, %v1459
        %v1495 = vpack.c.b16 %v1462, %v1461
        %v1496 = vpack.c.b16 %v1464, %v1463
        %v1498 = vsel %vm951, %v1465, 0
        %v1501 = vsel %vm951, %v1466, 0
        %v1504 = vsel %vm951, %v1467, 0
        %v1507 = vsel %vm951, %v1468, 0
        %v1510 = vsel %vm951, %v1469, 0
        %v1513 = vsel %vm951, %v1470, 0
        %v1516 = vsel %vm951, %v1471, 0
        %v1519 = vsel %vm951, %v1472, 0
        %v1522 = vsel %vm951, %v1473, 0
        %v1525 = vsel %vm951, %v1474, 0
        %v1528 = vsel %vm951, %v1475, 0
        %v1531 = vsel %vm951, %v1476, 0
        %v1534 = vsel %vm951, %v1477, 0
        %v1537 = vsel %vm951, %v1478, 0
        %v1540 = vsel %vm951, %v1479, 0
        %v1543 = vsel %vm951, %v1480, 0
        %v1546 = vsel %vm951, %v1481, 0
        %v1549 = vsel %vm951, %v1482, 0
        %v1552 = vsel %vm951, %v1483, 0
        %v1555 = vsel %vm951, %v1484, 0
        %v1558 = vsel %vm951, %v1485, 0
        %v1561 = vsel %vm951, %v1486, 0
        %v1564 = vsel %vm951, %v1487, 0
        %v1567 = vsel %vm951, %v1488, 0
        %v1570 = vsel %vm951, %v1489, 0
        %v1573 = vsel %vm951, %v1490, 0
        %v1576 = vsel %vm951, %v1491, 0
        %v1579 = vsel %vm951, %v1492, 0
        %v1582 = vsel %vm951, %v1493, 0
        %v1585 = vsel %vm951, %v1494, 0
        %v1588 = vsel %vm951, %v1495, 0
        %v1591 = vsel %vm951, %v1496, 0
        %1593 = vmatprep.subr.bf16.mxu0 0
        %1594 = vmatpush1.bf16.msra.mxu0 0
        %1595 = vmatprep.subr.bf16.mxu0 0
        %1596 = vmatpush1.bf16.msra.mxu0 0
        %1597 = vmatprep.subr.bf16.mxu0 0
        %1598 = vmatpush1.bf16.msra.mxu0 0
        %1599 = vmatprep.subr.bf16.mxu0 0
        %1600 = vmatpush1.bf16.msra.mxu0 0
        %1601 = vmatprep.subr.bf16.mxu0 0
        %1602 = vmatpush1.bf16.msra.mxu0 0
        %1603 = vmatprep.subr.bf16.mxu0 0
        %1604 = vmatpush1.bf16.msra.mxu0 0
        %1605 = vmatprep.subr.bf16.mxu0 0
        %1606 = vmatpush1.bf16.msra.mxu0 %v790
        %1607 = vmatprep.subr.bf16.mxu0 0
        %1608 = vmatpush1.bf16.msra.mxu0 %v789
        %1609 = vmatprep.subr.bf16.mxu0 0
        %1610 = vmatpush2.bf16.msra.mxu0 0
        %1611 = vmatprep.subr.bf16.mxu0 0
        %1612 = vmatpush2.bf16.msra.mxu0 0
        %1613 = vmatprep.subr.bf16.mxu0 0
        %1614 = vmatpush2.bf16.msra.mxu0 0
        %1615 = vmatprep.subr.bf16.mxu0 0
        %1616 = vmatpush2.bf16.msra.mxu0 0
        %1617 = vmatprep.subr.bf16.mxu0 0
        %1618 = vmatpush2.bf16.msra.mxu0 0
        %1619 = vmatprep.subr.bf16.mxu0 0
        %1620 = vmatpush2.bf16.msra.mxu0 0
        %1621 = vmatprep.subr.bf16.mxu0 0
        %1622 = vmatpush2.bf16.msra.mxu0 0
        %1623 = vmatprep.subr.bf16.mxu0 0
        %1624 = vmatpush2.bf16.msra.mxu0 0
        %1625 = vmatprep.mubr.bf16.mxu0 0
        %1626 = vmatmul.mubr.bf16.gmra.mxu0 %v1498
        %v1627 = vpop.f32.mrf.mxu0
        %v1628 = vadd.f32 0.0, %v1627
        %v1629 = vpop.f32.mrf.mxu0
        %v1630 = vpop.f32.mrf.mxu0
        %v1631 = vadd.f32 0.0, %v1630
        %v1632 = vpop.f32.mrf.mxu0
        %1633 = vmatprep.mubr.bf16.mxu0 0
        %1634 = vmatmul.mubr.bf16.gmra.mxu0 %v1501
        %v1635 = vpop.f32.mrf.mxu0
        %v1636 = vadd.f32 0.0, %v1635
        %v1637 = vpop.f32.mrf.mxu0
        %v1638 = vpop.f32.mrf.mxu0
        %v1639 = vadd.f32 0.0, %v1638
        %v1640 = vpop.f32.mrf.mxu0
        %1641 = vmatprep.mubr.bf16.mxu0 0
        %1642 = vmatmul.mubr.bf16.gmra.mxu0 %v1504
        %v1643 = vpop.f32.mrf.mxu0
        %v1644 = vadd.f32 0.0, %v1643
        %v1645 = vpop.f32.mrf.mxu0
        %v1646 = vpop.f32.mrf.mxu0
        %v1647 = vadd.f32 0.0, %v1646
        %v1648 = vpop.f32.mrf.mxu0
        %1649 = vmatprep.mubr.bf16.mxu0 0
        %1650 = vmatmul.mubr.bf16.gmra.mxu0 %v1507
        %v1651 = vpop.f32.mrf.mxu0
        %v1652 = vadd.f32 0.0, %v1651
        %v1653 = vpop.f32.mrf.mxu0
        %v1654 = vpop.f32.mrf.mxu0
        %v1655 = vadd.f32 0.0, %v1654
        %v1656 = vpop.f32.mrf.mxu0
        %1657 = vmatprep.mubr.bf16.mxu0 0
        %1658 = vmatmul.mubr.bf16.gmra.mxu0 %v1510
        %v1659 = vpop.f32.mrf.mxu0
        %v1660 = vadd.f32 0.0, %v1659
        %v1661 = vpop.f32.mrf.mxu0
        %v1662 = vpop.f32.mrf.mxu0
        %v1663 = vadd.f32 0.0, %v1662
        %v1664 = vpop.f32.mrf.mxu0
        %1665 = vmatprep.mubr.bf16.mxu0 0
        %1666 = vmatmul.mubr.bf16.gmra.mxu0 %v1513
        %v1667 = vpop.f32.mrf.mxu0
        %v1668 = vadd.f32 0.0, %v1667
        %v1669 = vpop.f32.mrf.mxu0
        %v1670 = vpop.f32.mrf.mxu0
        %v1671 = vadd.f32 0.0, %v1670
        %v1672 = vpop.f32.mrf.mxu0
        %1673 = vmatprep.mubr.bf16.mxu0 0
        %1674 = vmatmul.mubr.bf16.gmra.mxu0 %v1516
        %v1675 = vpop.f32.mrf.mxu0
        %v1676 = vadd.f32 0.0, %v1675
        %v1677 = vpop.f32.mrf.mxu0
        %v1678 = vpop.f32.mrf.mxu0
        %v1679 = vadd.f32 0.0, %v1678
        %v1680 = vpop.f32.mrf.mxu0
        %1681 = vmatprep.mubr.bf16.mxu0 0
        %1682 = vmatmul.mubr.bf16.gmra.mxu0 %v1519
        %v1683 = vpop.f32.mrf.mxu0
        %v1684 = vadd.f32 0.0, %v1683
        %v1685 = vpop.f32.mrf.mxu0
        %v1686 = vpop.f32.mrf.mxu0
        %v1687 = vadd.f32 0.0, %v1686
        %v1688 = vpop.f32.mrf.mxu0
        %1689 = vmatprep.mubr.bf16.mxu0 0
        %1690 = vmatmul.mubr.bf16.gmra.mxu0 %v1522
        %v1691 = vpop.f32.mrf.mxu0
        %v1692 = vadd.f32 0.0, %v1691
        %v1693 = vpop.f32.mrf.mxu0
        %v1694 = vpop.f32.mrf.mxu0
        %v1695 = vadd.f32 0.0, %v1694
        %v1696 = vpop.f32.mrf.mxu0
        %1697 = vmatprep.mubr.bf16.mxu0 0
        %1698 = vmatmul.mubr.bf16.gmra.mxu0 %v1525
        %v1699 = vpop.f32.mrf.mxu0
        %v1700 = vadd.f32 0.0, %v1699
        %v1701 = vpop.f32.mrf.mxu0
        %v1702 = vpop.f32.mrf.mxu0
        %v1703 = vadd.f32 0.0, %v1702
        %v1704 = vpop.f32.mrf.mxu0
        %1705 = vmatprep.mubr.bf16.mxu0 0
        %1706 = vmatmul.mubr.bf16.gmra.mxu0 %v1528
        %v1707 = vpop.f32.mrf.mxu0
        %v1708 = vadd.f32 0.0, %v1707
        %v1709 = vpop.f32.mrf.mxu0
        %v1710 = vpop.f32.mrf.mxu0
        %v1711 = vadd.f32 0.0, %v1710
        %v1712 = vpop.f32.mrf.mxu0
        %1713 = vmatprep.mubr.bf16.mxu0 0
        %1714 = vmatmul.mubr.bf16.gmra.mxu0 %v1531
        %v1715 = vpop.f32.mrf.mxu0
        %v1716 = vadd.f32 0.0, %v1715
        %v1717 = vpop.f32.mrf.mxu0
        %v1718 = vpop.f32.mrf.mxu0
        %v1719 = vadd.f32 0.0, %v1718
        %v1720 = vpop.f32.mrf.mxu0
        %1721 = vmatprep.mubr.bf16.mxu0 0
        %1722 = vmatmul.mubr.bf16.gmra.mxu0 %v1534
        %v1723 = vpop.f32.mrf.mxu0
        %v1724 = vadd.f32 0.0, %v1723
        %v1725 = vpop.f32.mrf.mxu0
        %v1726 = vpop.f32.mrf.mxu0
        %v1727 = vadd.f32 0.0, %v1726
        %v1728 = vpop.f32.mrf.mxu0
        %1729 = vmatprep.mubr.bf16.mxu0 0
        %1730 = vmatmul.mubr.bf16.gmra.mxu0 %v1537
        %v1731 = vpop.f32.mrf.mxu0
        %v1732 = vadd.f32 0.0, %v1731
        %v1733 = vpop.f32.mrf.mxu0
        %v1734 = vpop.f32.mrf.mxu0
        %v1735 = vadd.f32 0.0, %v1734
        %v1736 = vpop.f32.mrf.mxu0
        %1737 = vmatprep.mubr.bf16.mxu0 0
        %1738 = vmatmul.mubr.bf16.gmra.mxu0 %v1540
        %v1739 = vpop.f32.mrf.mxu0
        %v1740 = vadd.f32 0.0, %v1739
        %v1741 = vpop.f32.mrf.mxu0
        %v1742 = vpop.f32.mrf.mxu0
        %v1743 = vadd.f32 0.0, %v1742
        %v1744 = vpop.f32.mrf.mxu0
        %1745 = vmatprep.mubr.bf16.mxu0 0
        %1746 = vmatmul.mubr.bf16.gmra.mxu0 %v1543
        %v1747 = vpop.f32.mrf.mxu0
        %v1748 = vadd.f32 0.0, %v1747
        %v1749 = vpop.f32.mrf.mxu0
        %v1750 = vpop.f32.mrf.mxu0
        %v1751 = vadd.f32 0.0, %v1750
        %v1752 = vpop.f32.mrf.mxu0
        %1753 = vmatprep.mubr.bf16.mxu0 0
        %1754 = vmatmul.mubr.bf16.gmra.mxu0 %v1546
        %v1755 = vpop.f32.mrf.mxu0
        %v1756 = vadd.f32 0.0, %v1755
        %v1757 = vpop.f32.mrf.mxu0
        %v1758 = vpop.f32.mrf.mxu0
        %v1759 = vadd.f32 0.0, %v1758
        %v1760 = vpop.f32.mrf.mxu0
        %1761 = vmatprep.mubr.bf16.mxu0 0
        %1762 = vmatmul.mubr.bf16.gmra.mxu0 %v1549
        %v1763 = vpop.f32.mrf.mxu0
        %v1764 = vadd.f32 0.0, %v1763
        %v1765 = vpop.f32.mrf.mxu0
        %v1766 = vpop.f32.mrf.mxu0
        %v1767 = vadd.f32 0.0, %v1766
        %v1768 = vpop.f32.mrf.mxu0
        %1769 = vmatprep.mubr.bf16.mxu0 0
        %1770 = vmatmul.mubr.bf16.gmra.mxu0 %v1552
        %v1771 = vpop.f32.mrf.mxu0
        %v1772 = vadd.f32 0.0, %v1771
        %v1773 = vpop.f32.mrf.mxu0
        %v1774 = vpop.f32.mrf.mxu0
        %v1775 = vadd.f32 0.0, %v1774
        %v1776 = vpop.f32.mrf.mxu0
        %1777 = vmatprep.mubr.bf16.mxu0 0
        %1778 = vmatmul.mubr.bf16.gmra.mxu0 %v1555
        %v1779 = vpop.f32.mrf.mxu0
        %v1780 = vadd.f32 0.0, %v1779
        %v1781 = vpop.f32.mrf.mxu0
        %v1782 = vpop.f32.mrf.mxu0
        %v1783 = vadd.f32 0.0, %v1782
        %v1784 = vpop.f32.mrf.mxu0
        %1785 = vmatprep.mubr.bf16.mxu0 0
        %1786 = vmatmul.mubr.bf16.gmra.mxu0 %v1558
        %v1787 = vpop.f32.mrf.mxu0
        %v1788 = vadd.f32 0.0, %v1787
        %v1789 = vpop.f32.mrf.mxu0
        %v1790 = vpop.f32.mrf.mxu0
        %v1791 = vadd.f32 0.0, %v1790
        %v1792 = vpop.f32.mrf.mxu0
        %1793 = vmatprep.mubr.bf16.mxu0 0
        %1794 = vmatmul.mubr.bf16.gmra.mxu0 %v1561
        %v1795 = vpop.f32.mrf.mxu0
        %v1796 = vadd.f32 0.0, %v1795
        %v1797 = vpop.f32.mrf.mxu0
        %v1798 = vpop.f32.mrf.mxu0
        %v1799 = vadd.f32 0.0, %v1798
        %v1800 = vpop.f32.mrf.mxu0
        %1801 = vmatprep.mubr.bf16.mxu0 0
        %1802 = vmatmul.mubr.bf16.gmra.mxu0 %v1564
        %v1803 = vpop.f32.mrf.mxu0
        %v1804 = vadd.f32 0.0, %v1803
        %v1805 = vpop.f32.mrf.mxu0
        %v1806 = vpop.f32.mrf.mxu0
        %v1807 = vadd.f32 0.0, %v1806
        %v1808 = vpop.f32.mrf.mxu0
        %1809 = vmatprep.mubr.bf16.mxu0 0
        %1810 = vmatmul.mubr.bf16.gmra.mxu0 %v1567
        %v1811 = vpop.f32.mrf.mxu0
        %v1812 = vadd.f32 0.0, %v1811
        %v1813 = vpop.f32.mrf.mxu0
        %v1814 = vpop.f32.mrf.mxu0
        %v1815 = vadd.f32 0.0, %v1814
        %v1816 = vpop.f32.mrf.mxu0
        %1817 = vmatprep.mubr.bf16.mxu0 0
        %1818 = vmatmul.mubr.bf16.gmra.mxu0 %v1570
        %v1819 = vpop.f32.mrf.mxu0
        %v1820 = vadd.f32 0.0, %v1819
        %v1821 = vpop.f32.mrf.mxu0
        %v1822 = vpop.f32.mrf.mxu0
        %v1823 = vadd.f32 0.0, %v1822
        %v1824 = vpop.f32.mrf.mxu0
        %1825 = vmatprep.mubr.bf16.mxu0 0
        %1826 = vmatmul.mubr.bf16.gmra.mxu0 %v1573
        %v1827 = vpop.f32.mrf.mxu0
        %v1828 = vadd.f32 0.0, %v1827
        %v1829 = vpop.f32.mrf.mxu0
        %v1830 = vpop.f32.mrf.mxu0
        %v1831 = vadd.f32 0.0, %v1830
        %v1832 = vpop.f32.mrf.mxu0
        %1833 = vmatprep.mubr.bf16.mxu0 0
        %1834 = vmatmul.mubr.bf16.gmra.mxu0 %v1576
        %v1835 = vpop.f32.mrf.mxu0
        %v1836 = vadd.f32 0.0, %v1835
        %v1837 = vpop.f32.mrf.mxu0
        %v1838 = vpop.f32.mrf.mxu0
        %v1839 = vadd.f32 0.0, %v1838
        %v1840 = vpop.f32.mrf.mxu0
        %1841 = vmatprep.mubr.bf16.mxu0 0
        %1842 = vmatmul.mubr.bf16.gmra.mxu0 %v1579
        %v1843 = vpop.f32.mrf.mxu0
        %v1844 = vadd.f32 0.0, %v1843
        %v1845 = vpop.f32.mrf.mxu0
        %v1846 = vpop.f32.mrf.mxu0
        %v1847 = vadd.f32 0.0, %v1846
        %v1848 = vpop.f32.mrf.mxu0
        %1849 = vmatprep.mubr.bf16.mxu0 0
        %1850 = vmatmul.mubr.bf16.gmra.mxu0 %v1582
        %v1851 = vpop.f32.mrf.mxu0
        %v1852 = vadd.f32 0.0, %v1851
        %v1853 = vpop.f32.mrf.mxu0
        %v1854 = vpop.f32.mrf.mxu0
        %v1855 = vadd.f32 0.0, %v1854
        %v1856 = vpop.f32.mrf.mxu0
        %1857 = vmatprep.mubr.bf16.mxu0 0
        %1858 = vmatmul.mubr.bf16.gmra.mxu0 %v1585
        %v1859 = vpop.f32.mrf.mxu0
        %v1860 = vadd.f32 0.0, %v1859
        %v1861 = vpop.f32.mrf.mxu0
        %v1862 = vpop.f32.mrf.mxu0
        %v1863 = vadd.f32 0.0, %v1862
        %v1864 = vpop.f32.mrf.mxu0
        %1865 = vmatprep.mubr.bf16.mxu0 0
        %1866 = vmatmul.mubr.bf16.gmra.mxu0 %v1588
        %v1867 = vpop.f32.mrf.mxu0
        %v1868 = vadd.f32 0.0, %v1867
        %v1869 = vpop.f32.mrf.mxu0
        %v1870 = vpop.f32.mrf.mxu0
        %v1871 = vadd.f32 0.0, %v1870
        %v1872 = vpop.f32.mrf.mxu0
        %1873 = vmatprep.mubr.bf16.mxu0 0
        %1874 = vmatmul.mubr.bf16.gmra.mxu0 %v1591
        %v1875 = vpop.f32.mrf.mxu0
        %v1876 = vadd.f32 0.0, %v1875
        %v1877 = vpop.f32.mrf.mxu0
        %v1878 = vpop.f32.mrf.mxu0
        %v1879 = vadd.f32 0.0, %v1878
        %v1880 = vpop.f32.mrf.mxu0
        %1881 = vdwg.mxu0
        %v1946 = vunpack.c.l.b16 %v629
        %v1947 = vunpack.c.l.b16 %v630
        %v1948 = vunpack.c.l.b16 %v631
        %v1949 = vunpack.c.l.b16 %v632
        %v1950 = vunpack.c.l.b16 %v633
        %v1951 = vunpack.c.l.b16 %v634
        %v1952 = vunpack.c.l.b16 %v635
        %v1953 = vunpack.c.l.b16 %v636
        %v1954 = vunpack.c.l.b16 %v637
        %v1955 = vunpack.c.l.b16 %v638
        %v1956 = vunpack.c.l.b16 %v639
        %v1957 = vunpack.c.l.b16 %v640
        %v1958 = vunpack.c.l.b16 %v641
        %v1959 = vunpack.c.l.b16 %v642
        %v1960 = vunpack.c.l.b16 %v643
        %v1961 = vunpack.c.l.b16 %v644
        %v1962 = vunpack.c.l.b16 %v645
        %v1963 = vunpack.c.l.b16 %v646
        %v1964 = vunpack.c.l.b16 %v647
        %v1965 = vunpack.c.l.b16 %v648
        %v1966 = vunpack.c.l.b16 %v649
        %v1967 = vunpack.c.l.b16 %v650
        %v1968 = vunpack.c.l.b16 %v651
        %v1969 = vunpack.c.l.b16 %v652
        %v1970 = vunpack.c.l.b16 %v653
        %v1971 = vunpack.c.l.b16 %v654
        %v1972 = vunpack.c.l.b16 %v655
        %v1973 = vunpack.c.l.b16 %v656
        %v1974 = vunpack.c.l.b16 %v657
        %v1975 = vunpack.c.l.b16 %v658
        %v1976 = vunpack.c.l.b16 %v659
        %v1977 = vunpack.c.l.b16 %v660
        %v1978 = vunpack.c.l.b16 %v661
        %v1979 = vunpack.c.l.b16 %v662
        %v1980 = vunpack.c.l.b16 %v663
        %v1981 = vunpack.c.l.b16 %v664
        %v1982 = vunpack.c.l.b16 %v665
        %v1983 = vunpack.c.l.b16 %v666
        %v1984 = vunpack.c.l.b16 %v667
        %v1985 = vunpack.c.l.b16 %v668
        %v1986 = vunpack.c.l.b16 %v669
        %v1987 = vunpack.c.l.b16 %v670
        %v1988 = vunpack.c.l.b16 %v671
        %v1989 = vunpack.c.l.b16 %v672
        %v1990 = vunpack.c.l.b16 %v673
        %v1991 = vunpack.c.l.b16 %v674
        %v1992 = vunpack.c.l.b16 %v675
        %v1993 = vunpack.c.l.b16 %v676
        %v1994 = vunpack.c.l.b16 %v677
        %v1995 = vunpack.c.l.b16 %v678
        %v1996 = vunpack.c.l.b16 %v679
        %v1997 = vunpack.c.l.b16 %v680
        %v1998 = vunpack.c.l.b16 %v681
        %v1999 = vunpack.c.l.b16 %v682
        %v2000 = vunpack.c.l.b16 %v683
        %v2001 = vunpack.c.l.b16 %v684
        %v2002 = vunpack.c.l.b16 %v685
        %v2003 = vunpack.c.l.b16 %v686
        %v2004 = vunpack.c.l.b16 %v687
        %v2005 = vunpack.c.l.b16 %v688
        %v2006 = vunpack.c.l.b16 %v689
        %v2007 = vunpack.c.l.b16 %v690
        %v2008 = vunpack.c.l.b16 %v691
        %v2009 = vunpack.c.l.b16 %v692
        %v2010 = vpack.c.b16 %v1947, %v1946
        %v2011 = vpack.c.b16 %v1949, %v1948
        %v2012 = vpack.c.b16 %v1951, %v1950
        %v2013 = vpack.c.b16 %v1953, %v1952
        %v2014 = vpack.c.b16 %v1955, %v1954
        %v2015 = vpack.c.b16 %v1957, %v1956
        %v2016 = vpack.c.b16 %v1959, %v1958
        %v2017 = vpack.c.b16 %v1961, %v1960
        %v2018 = vpack.c.b16 %v1963, %v1962
        %v2019 = vpack.c.b16 %v1965, %v1964
        %v2020 = vpack.c.b16 %v1967, %v1966
        %v2021 = vpack.c.b16 %v1969, %v1968
        %v2022 = vpack.c.b16 %v1971, %v1970
        %v2023 = vpack.c.b16 %v1973, %v1972
        %v2024 = vpack.c.b16 %v1975, %v1974
        %v2025 = vpack.c.b16 %v1977, %v1976
        %v2026 = vpack.c.b16 %v1979, %v1978
        %v2027 = vpack.c.b16 %v1981, %v1980
        %v2028 = vpack.c.b16 %v1983, %v1982
        %v2029 = vpack.c.b16 %v1985, %v1984
        %v2030 = vpack.c.b16 %v1987, %v1986
        %v2031 = vpack.c.b16 %v1989, %v1988
        %v2032 = vpack.c.b16 %v1991, %v1990
        %v2033 = vpack.c.b16 %v1993, %v1992
        %v2034 = vpack.c.b16 %v1995, %v1994
        %v2035 = vpack.c.b16 %v1997, %v1996
        %v2036 = vpack.c.b16 %v1999, %v1998
        %v2037 = vpack.c.b16 %v2001, %v2000
        %v2038 = vpack.c.b16 %v2003, %v2002
        %v2039 = vpack.c.b16 %v2005, %v2004
        %v2040 = vpack.c.b16 %v2007, %v2006
        %v2041 = vpack.c.b16 %v2009, %v2008
        %v2043 = vsel %vm951, %v2010, 0
        %v2046 = vsel %vm951, %v2011, 0
        %v2049 = vsel %vm951, %v2012, 0
        %v2052 = vsel %vm951, %v2013, 0
        %v2055 = vsel %vm951, %v2014, 0
        %v2058 = vsel %vm951, %v2015, 0
        %v2061 = vsel %vm951, %v2016, 0
        %v2064 = vsel %vm951, %v2017, 0
        %v2067 = vsel %vm951, %v2018, 0
        %v2070 = vsel %vm951, %v2019, 0
        %v2073 = vsel %vm951, %v2020, 0
        %v2076 = vsel %vm951, %v2021, 0
        %v2079 = vsel %vm951, %v2022, 0
        %v2082 = vsel %vm951, %v2023, 0
        %v2085 = vsel %vm951, %v2024, 0
        %v2088 = vsel %vm951, %v2025, 0
        %v2091 = vsel %vm951, %v2026, 0
        %v2094 = vsel %vm951, %v2027, 0
        %v2097 = vsel %vm951, %v2028, 0
        %v2100 = vsel %vm951, %v2029, 0
        %v2103 = vsel %vm951, %v2030, 0
        %v2106 = vsel %vm951, %v2031, 0
        %v2109 = vsel %vm951, %v2032, 0
        %v2112 = vsel %vm951, %v2033, 0
        %v2115 = vsel %vm951, %v2034, 0
        %v2118 = vsel %vm951, %v2035, 0
        %v2121 = vsel %vm951, %v2036, 0
        %v2124 = vsel %vm951, %v2037, 0
        %v2127 = vsel %vm951, %v2038, 0
        %v2130 = vsel %vm951, %v2039, 0
        %v2133 = vsel %vm951, %v2040, 0
        %v2136 = vsel %vm951, %v2041, 0
        %2138 = vmatprep.subr.bf16.mxu0 0
        %2139 = vmatpush1.bf16.msra.mxu0 0
        %2140 = vmatprep.subr.bf16.mxu0 0
        %2141 = vmatpush1.bf16.msra.mxu0 0
        %2142 = vmatprep.subr.bf16.mxu0 0
        %2143 = vmatpush1.bf16.msra.mxu0 0
        %2144 = vmatprep.subr.bf16.mxu0 0
        %2145 = vmatpush1.bf16.msra.mxu0 0
        %2146 = vmatprep.subr.bf16.mxu0 0
        %2147 = vmatpush1.bf16.msra.mxu0 0
        %2148 = vmatprep.subr.bf16.mxu0 0
        %2149 = vmatpush1.bf16.msra.mxu0 0
        %2150 = vmatprep.subr.bf16.mxu0 0
        %2151 = vmatpush1.bf16.msra.mxu0 %v790
        %2152 = vmatprep.subr.bf16.mxu0 0
        %2153 = vmatpush1.bf16.msra.mxu0 %v789
        %2154 = vmatprep.subr.bf16.mxu0 0
        %2155 = vmatpush2.bf16.msra.mxu0 0
        %2156 = vmatprep.subr.bf16.mxu0 0
        %2157 = vmatpush2.bf16.msra.mxu0 0
        %2158 = vmatprep.subr.bf16.mxu0 0
        %2159 = vmatpush2.bf16.msra.mxu0 0
        %2160 = vmatprep.subr.bf16.mxu0 0
        %2161 = vmatpush2.bf16.msra.mxu0 0
        %2162 = vmatprep.subr.bf16.mxu0 0
        %2163 = vmatpush2.bf16.msra.mxu0 0
        %2164 = vmatprep.subr.bf16.mxu0 0
        %2165 = vmatpush2.bf16.msra.mxu0 0
        %2166 = vmatprep.subr.bf16.mxu0 0
        %2167 = vmatpush2.bf16.msra.mxu0 0
        %2168 = vmatprep.subr.bf16.mxu0 0
        %2169 = vmatpush2.bf16.msra.mxu0 0
        %2170 = vmatprep.mubr.bf16.mxu0 0
        %2171 = vmatmul.mubr.bf16.gmra.mxu0 %v2043
        %v2172 = vpop.f32.mrf.mxu0
        %v2173 = vadd.f32 0.0, %v2172
        %v2174 = vpop.f32.mrf.mxu0
        %v2175 = vpop.f32.mrf.mxu0
        %v2176 = vadd.f32 0.0, %v2175
        %v2177 = vpop.f32.mrf.mxu0
        %2178 = vmatprep.mubr.bf16.mxu0 0
        %2179 = vmatmul.mubr.bf16.gmra.mxu0 %v2046
        %v2180 = vpop.f32.mrf.mxu0
        %v2181 = vadd.f32 0.0, %v2180
        %v2182 = vpop.f32.mrf.mxu0
        %v2183 = vpop.f32.mrf.mxu0
        %v2184 = vadd.f32 0.0, %v2183
        %v2185 = vpop.f32.mrf.mxu0
        %2186 = vmatprep.mubr.bf16.mxu0 0
        %2187 = vmatmul.mubr.bf16.gmra.mxu0 %v2049
        %v2188 = vpop.f32.mrf.mxu0
        %v2189 = vadd.f32 0.0, %v2188
        %v2190 = vpop.f32.mrf.mxu0
        %v2191 = vpop.f32.mrf.mxu0
        %v2192 = vadd.f32 0.0, %v2191
        %v2193 = vpop.f32.mrf.mxu0
        %2194 = vmatprep.mubr.bf16.mxu0 0
        %2195 = vmatmul.mubr.bf16.gmra.mxu0 %v2052
        %v2196 = vpop.f32.mrf.mxu0
        %v2197 = vadd.f32 0.0, %v2196
        %v2198 = vpop.f32.mrf.mxu0
        %v2199 = vpop.f32.mrf.mxu0
        %v2200 = vadd.f32 0.0, %v2199
        %v2201 = vpop.f32.mrf.mxu0
        %2202 = vmatprep.mubr.bf16.mxu0 0
        %2203 = vmatmul.mubr.bf16.gmra.mxu0 %v2055
        %v2204 = vpop.f32.mrf.mxu0
        %v2205 = vadd.f32 0.0, %v2204
        %v2206 = vpop.f32.mrf.mxu0
        %v2207 = vpop.f32.mrf.mxu0
        %v2208 = vadd.f32 0.0, %v2207
        %v2209 = vpop.f32.mrf.mxu0
        %2210 = vmatprep.mubr.bf16.mxu0 0
        %2211 = vmatmul.mubr.bf16.gmra.mxu0 %v2058
        %v2212 = vpop.f32.mrf.mxu0
        %v2213 = vadd.f32 0.0, %v2212
        %v2214 = vpop.f32.mrf.mxu0
        %v2215 = vpop.f32.mrf.mxu0
        %v2216 = vadd.f32 0.0, %v2215
        %v2217 = vpop.f32.mrf.mxu0
        %2218 = vmatprep.mubr.bf16.mxu0 0
        %2219 = vmatmul.mubr.bf16.gmra.mxu0 %v2061
        %v2220 = vpop.f32.mrf.mxu0
        %v2221 = vadd.f32 0.0, %v2220
        %v2222 = vpop.f32.mrf.mxu0
        %v2223 = vpop.f32.mrf.mxu0
        %v2224 = vadd.f32 0.0, %v2223
        %v2225 = vpop.f32.mrf.mxu0
        %2226 = vmatprep.mubr.bf16.mxu0 0
        %2227 = vmatmul.mubr.bf16.gmra.mxu0 %v2064
        %v2228 = vpop.f32.mrf.mxu0
        %v2229 = vadd.f32 0.0, %v2228
        %v2230 = vpop.f32.mrf.mxu0
        %v2231 = vpop.f32.mrf.mxu0
        %v2232 = vadd.f32 0.0, %v2231
        %v2233 = vpop.f32.mrf.mxu0
        %2234 = vmatprep.mubr.bf16.mxu0 0
        %2235 = vmatmul.mubr.bf16.gmra.mxu0 %v2067
        %v2236 = vpop.f32.mrf.mxu0
        %v2237 = vadd.f32 0.0, %v2236
        %v2238 = vpop.f32.mrf.mxu0
        %v2239 = vpop.f32.mrf.mxu0
        %v2240 = vadd.f32 0.0, %v2239
        %v2241 = vpop.f32.mrf.mxu0
        %2242 = vmatprep.mubr.bf16.mxu0 0
        %2243 = vmatmul.mubr.bf16.gmra.mxu0 %v2070
        %v2244 = vpop.f32.mrf.mxu0
        %v2245 = vadd.f32 0.0, %v2244
        %v2246 = vpop.f32.mrf.mxu0
        %v2247 = vpop.f32.mrf.mxu0
        %v2248 = vadd.f32 0.0, %v2247
        %v2249 = vpop.f32.mrf.mxu0
        %2250 = vmatprep.mubr.bf16.mxu0 0
        %2251 = vmatmul.mubr.bf16.gmra.mxu0 %v2073
        %v2252 = vpop.f32.mrf.mxu0
        %v2253 = vadd.f32 0.0, %v2252
        %v2254 = vpop.f32.mrf.mxu0
        %v2255 = vpop.f32.mrf.mxu0
        %v2256 = vadd.f32 0.0, %v2255
        %v2257 = vpop.f32.mrf.mxu0
        %2258 = vmatprep.mubr.bf16.mxu0 0
        %2259 = vmatmul.mubr.bf16.gmra.mxu0 %v2076
        %v2260 = vpop.f32.mrf.mxu0
        %v2261 = vadd.f32 0.0, %v2260
        %v2262 = vpop.f32.mrf.mxu0
        %v2263 = vpop.f32.mrf.mxu0
        %v2264 = vadd.f32 0.0, %v2263
        %v2265 = vpop.f32.mrf.mxu0
        %2266 = vmatprep.mubr.bf16.mxu0 0
        %2267 = vmatmul.mubr.bf16.gmra.mxu0 %v2079
        %v2268 = vpop.f32.mrf.mxu0
        %v2269 = vadd.f32 0.0, %v2268
        %v2270 = vpop.f32.mrf.mxu0
        %v2271 = vpop.f32.mrf.mxu0
        %v2272 = vadd.f32 0.0, %v2271
        %v2273 = vpop.f32.mrf.mxu0
        %2274 = vmatprep.mubr.bf16.mxu0 0
        %2275 = vmatmul.mubr.bf16.gmra.mxu0 %v2082
        %v2276 = vpop.f32.mrf.mxu0
        %v2277 = vadd.f32 0.0, %v2276
        %v2278 = vpop.f32.mrf.mxu0
        %v2279 = vpop.f32.mrf.mxu0
        %v2280 = vadd.f32 0.0, %v2279
        %v2281 = vpop.f32.mrf.mxu0
        %2282 = vmatprep.mubr.bf16.mxu0 0
        %2283 = vmatmul.mubr.bf16.gmra.mxu0 %v2085
        %v2284 = vpop.f32.mrf.mxu0
        %v2285 = vadd.f32 0.0, %v2284
        %v2286 = vpop.f32.mrf.mxu0
        %v2287 = vpop.f32.mrf.mxu0
        %v2288 = vadd.f32 0.0, %v2287
        %v2289 = vpop.f32.mrf.mxu0
        %2290 = vmatprep.mubr.bf16.mxu0 0
        %2291 = vmatmul.mubr.bf16.gmra.mxu0 %v2088
        %v2292 = vpop.f32.mrf.mxu0
        %v2293 = vadd.f32 0.0, %v2292
        %v2294 = vpop.f32.mrf.mxu0
        %v2295 = vpop.f32.mrf.mxu0
        %v2296 = vadd.f32 0.0, %v2295
        %v2297 = vpop.f32.mrf.mxu0
        %2298 = vmatprep.mubr.bf16.mxu0 0
        %2299 = vmatmul.mubr.bf16.gmra.mxu0 %v2091
        %v2300 = vpop.f32.mrf.mxu0
        %v2301 = vadd.f32 0.0, %v2300
        %v2302 = vpop.f32.mrf.mxu0
        %v2303 = vpop.f32.mrf.mxu0
        %v2304 = vadd.f32 0.0, %v2303
        %v2305 = vpop.f32.mrf.mxu0
        %2306 = vmatprep.mubr.bf16.mxu0 0
        %2307 = vmatmul.mubr.bf16.gmra.mxu0 %v2094
        %v2308 = vpop.f32.mrf.mxu0
        %v2309 = vadd.f32 0.0, %v2308
        %v2310 = vpop.f32.mrf.mxu0
        %v2311 = vpop.f32.mrf.mxu0
        %v2312 = vadd.f32 0.0, %v2311
        %v2313 = vpop.f32.mrf.mxu0
        %2314 = vmatprep.mubr.bf16.mxu0 0
        %2315 = vmatmul.mubr.bf16.gmra.mxu0 %v2097
        %v2316 = vpop.f32.mrf.mxu0
        %v2317 = vadd.f32 0.0, %v2316
        %v2318 = vpop.f32.mrf.mxu0
        %v2319 = vpop.f32.mrf.mxu0
        %v2320 = vadd.f32 0.0, %v2319
        %v2321 = vpop.f32.mrf.mxu0
        %2322 = vmatprep.mubr.bf16.mxu0 0
        %2323 = vmatmul.mubr.bf16.gmra.mxu0 %v2100
        %v2324 = vpop.f32.mrf.mxu0
        %v2325 = vadd.f32 0.0, %v2324
        %v2326 = vpop.f32.mrf.mxu0
        %v2327 = vpop.f32.mrf.mxu0
        %v2328 = vadd.f32 0.0, %v2327
        %v2329 = vpop.f32.mrf.mxu0
        %2330 = vmatprep.mubr.bf16.mxu0 0
        %2331 = vmatmul.mubr.bf16.gmra.mxu0 %v2103
        %v2332 = vpop.f32.mrf.mxu0
        %v2333 = vadd.f32 0.0, %v2332
        %v2334 = vpop.f32.mrf.mxu0
        %v2335 = vpop.f32.mrf.mxu0
        %v2336 = vadd.f32 0.0, %v2335
        %v2337 = vpop.f32.mrf.mxu0
        %2338 = vmatprep.mubr.bf16.mxu0 0
        %2339 = vmatmul.mubr.bf16.gmra.mxu0 %v2106
        %v2340 = vpop.f32.mrf.mxu0
        %v2341 = vadd.f32 0.0, %v2340
        %v2342 = vpop.f32.mrf.mxu0
        %v2343 = vpop.f32.mrf.mxu0
        %v2344 = vadd.f32 0.0, %v2343
        %v2345 = vpop.f32.mrf.mxu0
        %2346 = vmatprep.mubr.bf16.mxu0 0
        %2347 = vmatmul.mubr.bf16.gmra.mxu0 %v2109
        %v2348 = vpop.f32.mrf.mxu0
        %v2349 = vadd.f32 0.0, %v2348
        %v2350 = vpop.f32.mrf.mxu0
        %v2351 = vpop.f32.mrf.mxu0
        %v2352 = vadd.f32 0.0, %v2351
        %v2353 = vpop.f32.mrf.mxu0
        %2354 = vmatprep.mubr.bf16.mxu0 0
        %2355 = vmatmul.mubr.bf16.gmra.mxu0 %v2112
        %v2356 = vpop.f32.mrf.mxu0
        %v2357 = vadd.f32 0.0, %v2356
        %v2358 = vpop.f32.mrf.mxu0
        %v2359 = vpop.f32.mrf.mxu0
        %v2360 = vadd.f32 0.0, %v2359
        %v2361 = vpop.f32.mrf.mxu0
        %2362 = vmatprep.mubr.bf16.mxu0 0
        %2363 = vmatmul.mubr.bf16.gmra.mxu0 %v2115
        %v2364 = vpop.f32.mrf.mxu0
        %v2365 = vadd.f32 0.0, %v2364
        %v2366 = vpop.f32.mrf.mxu0
        %v2367 = vpop.f32.mrf.mxu0
        %v2368 = vadd.f32 0.0, %v2367
        %v2369 = vpop.f32.mrf.mxu0
        %2370 = vmatprep.mubr.bf16.mxu0 0
        %2371 = vmatmul.mubr.bf16.gmra.mxu0 %v2118
        %v2372 = vpop.f32.mrf.mxu0
        %v2373 = vadd.f32 0.0, %v2372
        %v2374 = vpop.f32.mrf.mxu0
        %v2375 = vpop.f32.mrf.mxu0
        %v2376 = vadd.f32 0.0, %v2375
        %v2377 = vpop.f32.mrf.mxu0
        %2378 = vmatprep.mubr.bf16.mxu0 0
        %2379 = vmatmul.mubr.bf16.gmra.mxu0 %v2121
        %v2380 = vpop.f32.mrf.mxu0
        %v2381 = vadd.f32 0.0, %v2380
        %v2382 = vpop.f32.mrf.mxu0
        %v2383 = vpop.f32.mrf.mxu0
        %v2384 = vadd.f32 0.0, %v2383
        %v2385 = vpop.f32.mrf.mxu0
        %2386 = vmatprep.mubr.bf16.mxu0 0
        %2387 = vmatmul.mubr.bf16.gmra.mxu0 %v2124
        %v2388 = vpop.f32.mrf.mxu0
        %v2389 = vadd.f32 0.0, %v2388
        %v2390 = vpop.f32.mrf.mxu0
        %v2391 = vpop.f32.mrf.mxu0
        %v2392 = vadd.f32 0.0, %v2391
        %v2393 = vpop.f32.mrf.mxu0
        %2394 = vmatprep.mubr.bf16.mxu0 0
        %2395 = vmatmul.mubr.bf16.gmra.mxu0 %v2127
        %v2396 = vpop.f32.mrf.mxu0
        %v2397 = vadd.f32 0.0, %v2396
        %v2398 = vpop.f32.mrf.mxu0
        %v2399 = vpop.f32.mrf.mxu0
        %v2400 = vadd.f32 0.0, %v2399
        %v2401 = vpop.f32.mrf.mxu0
        %2402 = vmatprep.mubr.bf16.mxu0 0
        %2403 = vmatmul.mubr.bf16.gmra.mxu0 %v2130
        %v2404 = vpop.f32.mrf.mxu0
        %v2405 = vadd.f32 0.0, %v2404
        %v2406 = vpop.f32.mrf.mxu0
        %v2407 = vpop.f32.mrf.mxu0
        %v2408 = vadd.f32 0.0, %v2407
        %v2409 = vpop.f32.mrf.mxu0
        %2410 = vmatprep.mubr.bf16.mxu0 0
        %2411 = vmatmul.mubr.bf16.gmra.mxu0 %v2133
        %v2412 = vpop.f32.mrf.mxu0
        %v2413 = vadd.f32 0.0, %v2412
        %v2414 = vpop.f32.mrf.mxu0
        %v2415 = vpop.f32.mrf.mxu0
        %v2416 = vadd.f32 0.0, %v2415
        %v2417 = vpop.f32.mrf.mxu0
        %2418 = vmatprep.mubr.bf16.mxu0 0
        %2419 = vmatmul.mubr.bf16.gmra.mxu0 %v2136
        %v2420 = vpop.f32.mrf.mxu0
        %v2421 = vadd.f32 0.0, %v2420
        %v2422 = vpop.f32.mrf.mxu0
        %v2423 = vpop.f32.mrf.mxu0
        %v2424 = vadd.f32 0.0, %v2423
        %v2425 = vpop.f32.mrf.mxu0
        %2426 = vdwg.mxu0
        %2427 = vxpose.xlu0.b32.start [1/16] %v1083, 128
        %2428 = vxpose.xlu0.b32.cont [2/16] %v1086, 128
        %2429 = vxpose.xlu0.b32.cont [3/16] %v1091, 128
        %2430 = vxpose.xlu0.b32.cont [4/16] %v1094, 128
        %2431 = vxpose.xlu0.b32.cont [5/16] %v1099, 128
        %2432 = vxpose.xlu0.b32.cont [6/16] %v1102, 128
        %2433 = vxpose.xlu0.b32.cont [7/16] %v1107, 128
        %2434 = vxpose.xlu0.b32.cont [8/16] %v1110, 128
        %2435 = vxpose.xlu0.b32.cont [9/16] 0.0, 128
        %2436 = vxpose.xlu0.b32.cont [10/16] 0.0, 128
        %2437 = vxpose.xlu0.b32.cont [11/16] 0.0, 128
        %2438 = vxpose.xlu0.b32.cont [12/16] 0.0, 128
        %2439 = vxpose.xlu0.b32.cont [13/16] 0.0, 128
        %2440 = vxpose.xlu0.b32.cont [14/16] 0.0, 128
        %2441 = vxpose.xlu0.b32.cont [15/16] 0.0, 128
        %2442 = vxpose.xlu0.b32.end [16/16] 0.0, 128
        %v2443 = vpop.trf.xlu0
        %v2444 = vpop.trf.xlu0
        %v2445 = vpop.trf.xlu0
        %v2446 = vpop.trf.xlu0
        %v2447 = vpop.trf.xlu0
        %v2448 = vpop.trf.xlu0
        %v2449 = vpop.trf.xlu0
        %v2450 = vpop.trf.xlu0
        %v2451 = vpop.trf.xlu0
        %v2452 = vpop.trf.xlu0
        %v2453 = vpop.trf.xlu0
        %v2454 = vpop.trf.xlu0
        %v2455 = vpop.trf.xlu0
        %v2456 = vpop.trf.xlu0
        %v2457 = vpop.trf.xlu0
        %v2458 = vpop.trf.xlu0
        %2459 = vxpose.xlu0.b32.start [1/16] %v1115, 128
        %2460 = vxpose.xlu0.b32.cont [2/16] %v1118, 128
        %2461 = vxpose.xlu0.b32.cont [3/16] %v1123, 128
        %2462 = vxpose.xlu0.b32.cont [4/16] %v1126, 128
        %2463 = vxpose.xlu0.b32.cont [5/16] %v1131, 128
        %2464 = vxpose.xlu0.b32.cont [6/16] %v1134, 128
        %2465 = vxpose.xlu0.b32.cont [7/16] %v1139, 128
        %2466 = vxpose.xlu0.b32.cont [8/16] %v1142, 128
        %2467 = vxpose.xlu0.b32.cont [9/16] 0.0, 128
        %2468 = vxpose.xlu0.b32.cont [10/16] 0.0, 128
        %2469 = vxpose.xlu0.b32.cont [11/16] 0.0, 128
        %2470 = vxpose.xlu0.b32.cont [12/16] 0.0, 128
        %2471 = vxpose.xlu0.b32.cont [13/16] 0.0, 128
        %2472 = vxpose.xlu0.b32.cont [14/16] 0.0, 128
        %2473 = vxpose.xlu0.b32.cont [15/16] 0.0, 128
        %2474 = vxpose.xlu0.b32.end [16/16] 0.0, 128
        %v2475 = vpop.trf.xlu0
        %v2476 = vpop.trf.xlu0
        %v2477 = vpop.trf.xlu0
        %v2478 = vpop.trf.xlu0
        %v2479 = vpop.trf.xlu0
        %v2480 = vpop.trf.xlu0
        %v2481 = vpop.trf.xlu0
        %v2482 = vpop.trf.xlu0
        %v2483 = vpop.trf.xlu0
        %v2484 = vpop.trf.xlu0
        %v2485 = vpop.trf.xlu0
        %v2486 = vpop.trf.xlu0
        %v2487 = vpop.trf.xlu0
        %v2488 = vpop.trf.xlu0
        %v2489 = vpop.trf.xlu0
        %v2490 = vpop.trf.xlu0
        %2491 = vxpose.xlu0.b32.start [1/16] %v1147, 128
        %2492 = vxpose.xlu0.b32.cont [2/16] %v1150, 128
        %2493 = vxpose.xlu0.b32.cont [3/16] %v1155, 128
        %2494 = vxpose.xlu0.b32.cont [4/16] %v1158, 128
        %2495 = vxpose.xlu0.b32.cont [5/16] %v1163, 128
        %2496 = vxpose.xlu0.b32.cont [6/16] %v1166, 128
        %2497 = vxpose.xlu0.b32.cont [7/16] %v1171, 128
        %2498 = vxpose.xlu0.b32.cont [8/16] %v1174, 128
        %2499 = vxpose.xlu0.b32.cont [9/16] 0.0, 128
        %2500 = vxpose.xlu0.b32.cont [10/16] 0.0, 128
        %2501 = vxpose.xlu0.b32.cont [11/16] 0.0, 128
        %2502 = vxpose.xlu0.b32.cont [12/16] 0.0, 128
        %2503 = vxpose.xlu0.b32.cont [13/16] 0.0, 128
        %2504 = vxpose.xlu0.b32.cont [14/16] 0.0, 128
        %2505 = vxpose.xlu0.b32.cont [15/16] 0.0, 128
        %2506 = vxpose.xlu0.b32.end [16/16] 0.0, 128
        %v2507 = vpop.trf.xlu0
        %v2508 = vpop.trf.xlu0
        %v2509 = vpop.trf.xlu0
        %v2510 = vpop.trf.xlu0
        %v2511 = vpop.trf.xlu0
        %v2512 = vpop.trf.xlu0
        %v2513 = vpop.trf.xlu0
        %v2514 = vpop.trf.xlu0
        %v2515 = vpop.trf.xlu0
        %v2516 = vpop.trf.xlu0
        %v2517 = vpop.trf.xlu0
        %v2518 = vpop.trf.xlu0
        %v2519 = vpop.trf.xlu0
        %v2520 = vpop.trf.xlu0
        %v2521 = vpop.trf.xlu0
        %v2522 = vpop.trf.xlu0
        %2523 = vxpose.xlu0.b32.start [1/16] %v1179, 128
        %2524 = vxpose.xlu0.b32.cont [2/16] %v1182, 128
        %2525 = vxpose.xlu0.b32.cont [3/16] %v1187, 128
        %2526 = vxpose.xlu0.b32.cont [4/16] %v1190, 128
        %2527 = vxpose.xlu0.b32.cont [5/16] %v1195, 128
        %2528 = vxpose.xlu0.b32.cont [6/16] %v1198, 128
        %2529 = vxpose.xlu0.b32.cont [7/16] %v1203, 128
        %2530 = vxpose.xlu0.b32.cont [8/16] %v1206, 128
        %2531 = vxpose.xlu0.b32.cont [9/16] 0.0, 128
        %2532 = vxpose.xlu0.b32.cont [10/16] 0.0, 128
        %2533 = vxpose.xlu0.b32.cont [11/16] 0.0, 128
        %2534 = vxpose.xlu0.b32.cont [12/16] 0.0, 128
        %2535 = vxpose.xlu0.b32.cont [13/16] 0.0, 128
        %2536 = vxpose.xlu0.b32.cont [14/16] 0.0, 128
        %2537 = vxpose.xlu0.b32.cont [15/16] 0.0, 128
        %2538 = vxpose.xlu0.b32.end [16/16] 0.0, 128
        %v2539 = vpop.trf.xlu0
        %v2540 = vpop.trf.xlu0
        %v2541 = vpop.trf.xlu0
        %v2542 = vpop.trf.xlu0
        %v2543 = vpop.trf.xlu0
        %v2544 = vpop.trf.xlu0
        %v2545 = vpop.trf.xlu0
        %v2546 = vpop.trf.xlu0
        %v2547 = vpop.trf.xlu0
        %v2548 = vpop.trf.xlu0
        %v2549 = vpop.trf.xlu0
        %v2550 = vpop.trf.xlu0
        %v2551 = vpop.trf.xlu0
        %v2552 = vpop.trf.xlu0
        %v2553 = vpop.trf.xlu0
        %v2554 = vpop.trf.xlu0
        %2555 = vxpose.xlu0.b32.start [1/16] %v1211, 128
        %2556 = vxpose.xlu0.b32.cont [2/16] %v1214, 128
        %2557 = vxpose.xlu0.b32.cont [3/16] %v1219, 128
        %2558 = vxpose.xlu0.b32.cont [4/16] %v1222, 128
        %2559 = vxpose.xlu0.b32.cont [5/16] %v1227, 128
        %2560 = vxpose.xlu0.b32.cont [6/16] %v1230, 128
        %2561 = vxpose.xlu0.b32.cont [7/16] %v1235, 128
        %2562 = vxpose.xlu0.b32.cont [8/16] %v1238, 128
        %2563 = vxpose.xlu0.b32.cont [9/16] 0.0, 128
        %2564 = vxpose.xlu0.b32.cont [10/16] 0.0, 128
        %2565 = vxpose.xlu0.b32.cont [11/16] 0.0, 128
        %2566 = vxpose.xlu0.b32.cont [12/16] 0.0, 128
        %2567 = vxpose.xlu0.b32.cont [13/16] 0.0, 128
        %2568 = vxpose.xlu0.b32.cont [14/16] 0.0, 128
        %2569 = vxpose.xlu0.b32.cont [15/16] 0.0, 128
        %2570 = vxpose.xlu0.b32.end [16/16] 0.0, 128
        %v2571 = vpop.trf.xlu0
        %v2572 = vpop.trf.xlu0
        %v2573 = vpop.trf.xlu0
        %v2574 = vpop.trf.xlu0
        %v2575 = vpop.trf.xlu0
        %v2576 = vpop.trf.xlu0
        %v2577 = vpop.trf.xlu0
        %v2578 = vpop.trf.xlu0
        %v2579 = vpop.trf.xlu0
        %v2580 = vpop.trf.xlu0
        %v2581 = vpop.trf.xlu0
        %v2582 = vpop.trf.xlu0
        %v2583 = vpop.trf.xlu0
        %v2584 = vpop.trf.xlu0
        %v2585 = vpop.trf.xlu0
        %v2586 = vpop.trf.xlu0
        %2587 = vxpose.xlu0.b32.start [1/16] %v1243, 128
        %2588 = vxpose.xlu0.b32.cont [2/16] %v1246, 128
        %2589 = vxpose.xlu0.b32.cont [3/16] %v1251, 128
        %2590 = vxpose.xlu0.b32.cont [4/16] %v1254, 128
        %2591 = vxpose.xlu0.b32.cont [5/16] %v1259, 128
        %2592 = vxpose.xlu0.b32.cont [6/16] %v1262, 128
        %2593 = vxpose.xlu0.b32.cont [7/16] %v1267, 128
        %2594 = vxpose.xlu0.b32.cont [8/16] %v1270, 128
        %2595 = vxpose.xlu0.b32.cont [9/16] 0.0, 128
        %2596 = vxpose.xlu0.b32.cont [10/16] 0.0, 128
        %2597 = vxpose.xlu0.b32.cont [11/16] 0.0, 128
        %2598 = vxpose.xlu0.b32.cont [12/16] 0.0, 128
        %2599 = vxpose.xlu0.b32.cont [13/16] 0.0, 128
        %2600 = vxpose.xlu0.b32.cont [14/16] 0.0, 128
        %2601 = vxpose.xlu0.b32.cont [15/16] 0.0, 128
        %2602 = vxpose.xlu0.b32.end [16/16] 0.0, 128
        %v2603 = vpop.trf.xlu0
        %v2604 = vpop.trf.xlu0
        %v2605 = vpop.trf.xlu0
        %v2606 = vpop.trf.xlu0
        %v2607 = vpop.trf.xlu0
        %v2608 = vpop.trf.xlu0
        %v2609 = vpop.trf.xlu0
        %v2610 = vpop.trf.xlu0
        %v2611 = vpop.trf.xlu0
        %v2612 = vpop.trf.xlu0
        %v2613 = vpop.trf.xlu0
        %v2614 = vpop.trf.xlu0
        %v2615 = vpop.trf.xlu0
        %v2616 = vpop.trf.xlu0
        %v2617 = vpop.trf.xlu0
        %v2618 = vpop.trf.xlu0
        %2619 = vxpose.xlu0.b32.start [1/16] %v1275, 128
        %2620 = vxpose.xlu0.b32.cont [2/16] %v1278, 128
        %2621 = vxpose.xlu0.b32.cont [3/16] %v1283, 128
        %2622 = vxpose.xlu0.b32.cont [4/16] %v1286, 128
        %2623 = vxpose.xlu0.b32.cont [5/16] %v1291, 128
        %2624 = vxpose.xlu0.b32.cont [6/16] %v1294, 128
        %2625 = vxpose.xlu0.b32.cont [7/16] %v1299, 128
        %2626 = vxpose.xlu0.b32.cont [8/16] %v1302, 128
        %2627 = vxpose.xlu0.b32.cont [9/16] 0.0, 128
        %2628 = vxpose.xlu0.b32.cont [10/16] 0.0, 128
        %2629 = vxpose.xlu0.b32.cont [11/16] 0.0, 128
        %2630 = vxpose.xlu0.b32.cont [12/16] 0.0, 128
        %2631 = vxpose.xlu0.b32.cont [13/16] 0.0, 128
        %2632 = vxpose.xlu0.b32.cont [14/16] 0.0, 128
        %2633 = vxpose.xlu0.b32.cont [15/16] 0.0, 128
        %2634 = vxpose.xlu0.b32.end [16/16] 0.0, 128
        %v2635 = vpop.trf.xlu0
        %v2636 = vpop.trf.xlu0
        %v2637 = vpop.trf.xlu0
        %v2638 = vpop.trf.xlu0
        %v2639 = vpop.trf.xlu0
        %v2640 = vpop.trf.xlu0
        %v2641 = vpop.trf.xlu0
        %v2642 = vpop.trf.xlu0
        %v2643 = vpop.trf.xlu0
        %v2644 = vpop.trf.xlu0
        %v2645 = vpop.trf.xlu0
        %v2646 = vpop.trf.xlu0
        %v2647 = vpop.trf.xlu0
        %v2648 = vpop.trf.xlu0
        %v2649 = vpop.trf.xlu0
        %v2650 = vpop.trf.xlu0
        %2651 = vxpose.xlu0.b32.start [1/16] %v1307, 128
        %2652 = vxpose.xlu0.b32.cont [2/16] %v1310, 128
        %2653 = vxpose.xlu0.b32.cont [3/16] %v1315, 128
        %2654 = vxpose.xlu0.b32.cont [4/16] %v1318, 128
        %2655 = vxpose.xlu0.b32.cont [5/16] %v1323, 128
        %2656 = vxpose.xlu0.b32.cont [6/16] %v1326, 128
        %2657 = vxpose.xlu0.b32.cont [7/16] %v1331, 128
        %2658 = vxpose.xlu0.b32.cont [8/16] %v1334, 128
        %2659 = vxpose.xlu0.b32.cont [9/16] 0.0, 128
        %2660 = vxpose.xlu0.b32.cont [10/16] 0.0, 128
        %2661 = vxpose.xlu0.b32.cont [11/16] 0.0, 128
        %2662 = vxpose.xlu0.b32.cont [12/16] 0.0, 128
        %2663 = vxpose.xlu0.b32.cont [13/16] 0.0, 128
        %2664 = vxpose.xlu0.b32.cont [14/16] 0.0, 128
        %2665 = vxpose.xlu0.b32.cont [15/16] 0.0, 128
        %2666 = vxpose.xlu0.b32.end [16/16] 0.0, 128
        %v2667 = vpop.trf.xlu0
        %v2668 = vpop.trf.xlu0
        %v2669 = vpop.trf.xlu0
        %v2670 = vpop.trf.xlu0
        %v2671 = vpop.trf.xlu0
        %v2672 = vpop.trf.xlu0
        %v2673 = vpop.trf.xlu0
        %v2674 = vpop.trf.xlu0
        %v2675 = vpop.trf.xlu0
        %v2676 = vpop.trf.xlu0
        %v2677 = vpop.trf.xlu0
        %v2678 = vpop.trf.xlu0
        %v2679 = vpop.trf.xlu0
        %v2680 = vpop.trf.xlu0
        %v2681 = vpop.trf.xlu0
        %v2682 = vpop.trf.xlu0
        %v2683 = vpack.c.bf16 %v2443, %v2443
        %v2684 = vpack.c.bf16 %v2475, %v2475
        %v2685 = vpack.c.bf16 %v2507, %v2507
        %v2686 = vpack.c.bf16 %v2539, %v2539
        %v2687 = vpack.c.bf16 %v2571, %v2571
        %v2688 = vpack.c.bf16 %v2603, %v2603
        %v2689 = vpack.c.bf16 %v2635, %v2635
        %v2690 = vpack.c.bf16 %v2667, %v2667
        %v2691 = vpack.c.bf16 %v1631, %v1628
        %v2692 = vpack.c.bf16 %v1639, %v1636
        %v2693 = vpack.c.bf16 %v1647, %v1644
        %v2694 = vpack.c.bf16 %v1655, %v1652
        %v2695 = vpack.c.bf16 %v1663, %v1660
        %v2696 = vpack.c.bf16 %v1671, %v1668
        %v2697 = vpack.c.bf16 %v1679, %v1676
        %v2698 = vpack.c.bf16 %v1687, %v1684
        %v2699 = vpack.c.bf16 %v1695, %v1692
        %v2700 = vpack.c.bf16 %v1703, %v1700
        %v2701 = vpack.c.bf16 %v1711, %v1708
        %v2702 = vpack.c.bf16 %v1719, %v1716
        %v2703 = vpack.c.bf16 %v1727, %v1724
        %v2704 = vpack.c.bf16 %v1735, %v1732
        %v2705 = vpack.c.bf16 %v1743, %v1740
        %v2706 = vpack.c.bf16 %v1751, %v1748
        %v2707 = vpack.c.bf16 %v1759, %v1756
        %v2708 = vpack.c.bf16 %v1767, %v1764
        %v2709 = vpack.c.bf16 %v1775, %v1772
        %v2710 = vpack.c.bf16 %v1783, %v1780
        %v2711 = vpack.c.bf16 %v1791, %v1788
        %v2712 = vpack.c.bf16 %v1799, %v1796
        %v2713 = vpack.c.bf16 %v1807, %v1804
        %v2714 = vpack.c.bf16 %v1815, %v1812
        %v2715 = vpack.c.bf16 %v1823, %v1820
        %v2716 = vpack.c.bf16 %v1831, %v1828
        %v2717 = vpack.c.bf16 %v1839, %v1836
        %v2718 = vpack.c.bf16 %v1847, %v1844
        %v2719 = vpack.c.bf16 %v1855, %v1852
        %v2720 = vpack.c.bf16 %v1863, %v1860
        %v2721 = vpack.c.bf16 %v1871, %v1868
        %v2722 = vpack.c.bf16 %v1879, %v1876
        %vm2723 = vcmask 523264
        %v2725 = vsel %vm2723, %v2683, 0
        %2727 = vmatprep.subr.bf16.mxu0 0
        %2728 = vmatpush1.bf16.msra.mxu0 0
        %2729 = vmatprep.subr.bf16.mxu0 0
        %2730 = vmatpush1.bf16.msra.mxu0 0
        %2731 = vmatprep.subr.bf16.mxu0 0
        %2732 = vmatpush1.bf16.msra.mxu0 0
        %2733 = vmatprep.subr.bf16.mxu0 0
        %2734 = vmatpush1.bf16.msra.mxu0 0
        %2735 = vmatprep.subr.bf16.mxu0 0
        %2736 = vmatpush1.bf16.msra.mxu0 %v2694
        %2737 = vmatprep.subr.bf16.mxu0 0
        %2738 = vmatpush1.bf16.msra.mxu0 %v2693
        %2739 = vmatprep.subr.bf16.mxu0 0
        %2740 = vmatpush1.bf16.msra.mxu0 %v2692
        %2741 = vmatprep.subr.bf16.mxu0 0
        %2742 = vmatpush1.bf16.msra.mxu0 %v2691
        %2743 = vmatprep.subr.bf16.mxu0 0
        %2744 = vmatpush2.bf16.msra.mxu0 0
        %2745 = vmatprep.subr.bf16.mxu0 0
        %2746 = vmatpush2.bf16.msra.mxu0 0
        %2747 = vmatprep.subr.bf16.mxu0 0
        %2748 = vmatpush2.bf16.msra.mxu0 0
        %2749 = vmatprep.subr.bf16.mxu0 0
        %2750 = vmatpush2.bf16.msra.mxu0 0
        %2751 = vmatprep.subr.bf16.mxu0 0
        %2752 = vmatpush2.bf16.msra.mxu0 0
        %2753 = vmatprep.subr.bf16.mxu0 0
        %2754 = vmatpush2.bf16.msra.mxu0 0
        %2755 = vmatprep.subr.bf16.mxu0 0
        %2756 = vmatpush2.bf16.msra.mxu0 0
        %2757 = vmatprep.subr.bf16.mxu0 0
        %2758 = vmatpush2.bf16.msra.mxu0 0
        %2759 = vmatprep.mubr.bf16.mxu0 0
        %2760 = vmatmul.mubr.bf16.gmra.mxu0 %v2725
        %v2761 = vpop.f32.mrf.mxu0
        %v2762 = vadd.f32 0.0, %v2761
        %v2763 = vpop.f32.mrf.mxu0
        %v2764 = vpop.f32.mrf.mxu0
        %v2765 = vpop.f32.mrf.mxu0
        %2766 = vdwg.mxu0
        %v2768 = vsel %vm2723, %v2684, 0
        %2770 = vmatprep.subr.bf16.mxu0 0
        %2771 = vmatpush1.bf16.msra.mxu0 0
        %2772 = vmatprep.subr.bf16.mxu0 0
        %2773 = vmatpush1.bf16.msra.mxu0 0
        %2774 = vmatprep.subr.bf16.mxu0 0
        %2775 = vmatpush1.bf16.msra.mxu0 0
        %2776 = vmatprep.subr.bf16.mxu0 0
        %2777 = vmatpush1.bf16.msra.mxu0 0
        %2778 = vmatprep.subr.bf16.mxu0 0
        %2779 = vmatpush1.bf16.msra.mxu0 %v2698
        %2780 = vmatprep.subr.bf16.mxu0 0
        %2781 = vmatpush1.bf16.msra.mxu0 %v2697
        %2782 = vmatprep.subr.bf16.mxu0 0
        %2783 = vmatpush1.bf16.msra.mxu0 %v2696
        %2784 = vmatprep.subr.bf16.mxu0 0
        %2785 = vmatpush1.bf16.msra.mxu0 %v2695
        %2786 = vmatprep.subr.bf16.mxu0 0
        %2787 = vmatpush2.bf16.msra.mxu0 0
        %2788 = vmatprep.subr.bf16.mxu0 0
        %2789 = vmatpush2.bf16.msra.mxu0 0
        %2790 = vmatprep.subr.bf16.mxu0 0
        %2791 = vmatpush2.bf16.msra.mxu0 0
        %2792 = vmatprep.subr.bf16.mxu0 0
        %2793 = vmatpush2.bf16.msra.mxu0 0
        %2794 = vmatprep.subr.bf16.mxu0 0
        %2795 = vmatpush2.bf16.msra.mxu0 0
        %2796 = vmatprep.subr.bf16.mxu0 0
        %2797 = vmatpush2.bf16.msra.mxu0 0
        %2798 = vmatprep.subr.bf16.mxu0 0
        %2799 = vmatpush2.bf16.msra.mxu0 0
        %2800 = vmatprep.subr.bf16.mxu0 0
        %2801 = vmatpush2.bf16.msra.mxu0 0
        %2802 = vmatprep.mubr.bf16.mxu0 0
        %2803 = vmatmul.mubr.bf16.gmra.mxu0 %v2768
        %v2804 = vpop.f32.mrf.mxu0
        %v2805 = vadd.f32 0.0, %v2804
        %v2806 = vpop.f32.mrf.mxu0
        %v2807 = vpop.f32.mrf.mxu0
        %v2808 = vpop.f32.mrf.mxu0
        %2809 = vdwg.mxu0
        %v2811 = vsel %vm2723, %v2685, 0
        %2813 = vmatprep.subr.bf16.mxu0 0
        %2814 = vmatpush1.bf16.msra.mxu0 0
        %2815 = vmatprep.subr.bf16.mxu0 0
        %2816 = vmatpush1.bf16.msra.mxu0 0
        %2817 = vmatprep.subr.bf16.mxu0 0
        %2818 = vmatpush1.bf16.msra.mxu0 0
        %2819 = vmatprep.subr.bf16.mxu0 0
        %2820 = vmatpush1.bf16.msra.mxu0 0
        %2821 = vmatprep.subr.bf16.mxu0 0
        %2822 = vmatpush1.bf16.msra.mxu0 %v2702
        %2823 = vmatprep.subr.bf16.mxu0 0
        %2824 = vmatpush1.bf16.msra.mxu0 %v2701
        %2825 = vmatprep.subr.bf16.mxu0 0
        %2826 = vmatpush1.bf16.msra.mxu0 %v2700
        %2827 = vmatprep.subr.bf16.mxu0 0
        %2828 = vmatpush1.bf16.msra.mxu0 %v2699
        %2829 = vmatprep.subr.bf16.mxu0 0
        %2830 = vmatpush2.bf16.msra.mxu0 0
        %2831 = vmatprep.subr.bf16.mxu0 0
        %2832 = vmatpush2.bf16.msra.mxu0 0
        %2833 = vmatprep.subr.bf16.mxu0 0
        %2834 = vmatpush2.bf16.msra.mxu0 0
        %2835 = vmatprep.subr.bf16.mxu0 0
        %2836 = vmatpush2.bf16.msra.mxu0 0
        %2837 = vmatprep.subr.bf16.mxu0 0
        %2838 = vmatpush2.bf16.msra.mxu0 0
        %2839 = vmatprep.subr.bf16.mxu0 0
        %2840 = vmatpush2.bf16.msra.mxu0 0
        %2841 = vmatprep.subr.bf16.mxu0 0
        %2842 = vmatpush2.bf16.msra.mxu0 0
        %2843 = vmatprep.subr.bf16.mxu0 0
        %2844 = vmatpush2.bf16.msra.mxu0 0
        %2845 = vmatprep.mubr.bf16.mxu0 0
        %2846 = vmatmul.mubr.bf16.gmra.mxu0 %v2811
        %v2847 = vpop.f32.mrf.mxu0
        %v2848 = vadd.f32 0.0, %v2847
        %v2849 = vpop.f32.mrf.mxu0
        %v2850 = vpop.f32.mrf.mxu0
        %v2851 = vpop.f32.mrf.mxu0
        %2852 = vdwg.mxu0
        %v2854 = vsel %vm2723, %v2686, 0
        %2856 = vmatprep.subr.bf16.mxu0 0
        %2857 = vmatpush1.bf16.msra.mxu0 0
        %2858 = vmatprep.subr.bf16.mxu0 0
        %2859 = vmatpush1.bf16.msra.mxu0 0
        %2860 = vmatprep.subr.bf16.mxu0 0
        %2861 = vmatpush1.bf16.msra.mxu0 0
        %2862 = vmatprep.subr.bf16.mxu0 0
        %2863 = vmatpush1.bf16.msra.mxu0 0
        %2864 = vmatprep.subr.bf16.mxu0 0
        %2865 = vmatpush1.bf16.msra.mxu0 %v2706
        %2866 = vmatprep.subr.bf16.mxu0 0
        %2867 = vmatpush1.bf16.msra.mxu0 %v2705
        %2868 = vmatprep.subr.bf16.mxu0 0
        %2869 = vmatpush1.bf16.msra.mxu0 %v2704
        %2870 = vmatprep.subr.bf16.mxu0 0
        %2871 = vmatpush1.bf16.msra.mxu0 %v2703
        %2872 = vmatprep.subr.bf16.mxu0 0
        %2873 = vmatpush2.bf16.msra.mxu0 0
        %2874 = vmatprep.subr.bf16.mxu0 0
        %2875 = vmatpush2.bf16.msra.mxu0 0
        %2876 = vmatprep.subr.bf16.mxu0 0
        %2877 = vmatpush2.bf16.msra.mxu0 0
        %2878 = vmatprep.subr.bf16.mxu0 0
        %2879 = vmatpush2.bf16.msra.mxu0 0
        %2880 = vmatprep.subr.bf16.mxu0 0
        %2881 = vmatpush2.bf16.msra.mxu0 0
        %2882 = vmatprep.subr.bf16.mxu0 0
        %2883 = vmatpush2.bf16.msra.mxu0 0
        %2884 = vmatprep.subr.bf16.mxu0 0
        %2885 = vmatpush2.bf16.msra.mxu0 0
        %2886 = vmatprep.subr.bf16.mxu0 0
        %2887 = vmatpush2.bf16.msra.mxu0 0
        %2888 = vmatprep.mubr.bf16.mxu0 0
        %2889 = vmatmul.mubr.bf16.gmra.mxu0 %v2854
        %v2890 = vpop.f32.mrf.mxu0
        %v2891 = vadd.f32 0.0, %v2890
        %v2892 = vpop.f32.mrf.mxu0
        %v2893 = vpop.f32.mrf.mxu0
        %v2894 = vpop.f32.mrf.mxu0
        %2895 = vdwg.mxu0
        %v2897 = vsel %vm2723, %v2687, 0
        %2899 = vmatprep.subr.bf16.mxu0 0
        %2900 = vmatpush1.bf16.msra.mxu0 0
        %2901 = vmatprep.subr.bf16.mxu0 0
        %2902 = vmatpush1.bf16.msra.mxu0 0
        %2903 = vmatprep.subr.bf16.mxu0 0
        %2904 = vmatpush1.bf16.msra.mxu0 0
        %2905 = vmatprep.subr.bf16.mxu0 0
        %2906 = vmatpush1.bf16.msra.mxu0 0
        %2907 = vmatprep.subr.bf16.mxu0 0
        %2908 = vmatpush1.bf16.msra.mxu0 %v2710
        %2909 = vmatprep.subr.bf16.mxu0 0
        %2910 = vmatpush1.bf16.msra.mxu0 %v2709
        %2911 = vmatprep.subr.bf16.mxu0 0
        %2912 = vmatpush1.bf16.msra.mxu0 %v2708
        %2913 = vmatprep.subr.bf16.mxu0 0
        %2914 = vmatpush1.bf16.msra.mxu0 %v2707
        %2915 = vmatprep.subr.bf16.mxu0 0
        %2916 = vmatpush2.bf16.msra.mxu0 0
        %2917 = vmatprep.subr.bf16.mxu0 0
        %2918 = vmatpush2.bf16.msra.mxu0 0
        %2919 = vmatprep.subr.bf16.mxu0 0
        %2920 = vmatpush2.bf16.msra.mxu0 0
        %2921 = vmatprep.subr.bf16.mxu0 0
        %2922 = vmatpush2.bf16.msra.mxu0 0
        %2923 = vmatprep.subr.bf16.mxu0 0
        %2924 = vmatpush2.bf16.msra.mxu0 0
        %2925 = vmatprep.subr.bf16.mxu0 0
        %2926 = vmatpush2.bf16.msra.mxu0 0
        %2927 = vmatprep.subr.bf16.mxu0 0
        %2928 = vmatpush2.bf16.msra.mxu0 0
        %2929 = vmatprep.subr.bf16.mxu0 0
        %2930 = vmatpush2.bf16.msra.mxu0 0
        %2931 = vmatprep.mubr.bf16.mxu0 0
        %2932 = vmatmul.mubr.bf16.gmra.mxu0 %v2897
        %v2933 = vpop.f32.mrf.mxu0
        %v2934 = vadd.f32 0.0, %v2933
        %v2935 = vpop.f32.mrf.mxu0
        %v2936 = vpop.f32.mrf.mxu0
        %v2937 = vpop.f32.mrf.mxu0
        %2938 = vdwg.mxu0
        %v2940 = vsel %vm2723, %v2688, 0
        %2942 = vmatprep.subr.bf16.mxu0 0
        %2943 = vmatpush1.bf16.msra.mxu0 0
        %2944 = vmatprep.subr.bf16.mxu0 0
        %2945 = vmatpush1.bf16.msra.mxu0 0
        %2946 = vmatprep.subr.bf16.mxu0 0
        %2947 = vmatpush1.bf16.msra.mxu0 0
        %2948 = vmatprep.subr.bf16.mxu0 0
        %2949 = vmatpush1.bf16.msra.mxu0 0
        %2950 = vmatprep.subr.bf16.mxu0 0
        %2951 = vmatpush1.bf16.msra.mxu0 %v2714
        %2952 = vmatprep.subr.bf16.mxu0 0
        %2953 = vmatpush1.bf16.msra.mxu0 %v2713
        %2954 = vmatprep.subr.bf16.mxu0 0
        %2955 = vmatpush1.bf16.msra.mxu0 %v2712
        %2956 = vmatprep.subr.bf16.mxu0 0
        %2957 = vmatpush1.bf16.msra.mxu0 %v2711
        %2958 = vmatprep.subr.bf16.mxu0 0
        %2959 = vmatpush2.bf16.msra.mxu0 0
        %2960 = vmatprep.subr.bf16.mxu0 0
        %2961 = vmatpush2.bf16.msra.mxu0 0
        %2962 = vmatprep.subr.bf16.mxu0 0
        %2963 = vmatpush2.bf16.msra.mxu0 0
        %2964 = vmatprep.subr.bf16.mxu0 0
        %2965 = vmatpush2.bf16.msra.mxu0 0
        %2966 = vmatprep.subr.bf16.mxu0 0
        %2967 = vmatpush2.bf16.msra.mxu0 0
        %2968 = vmatprep.subr.bf16.mxu0 0
        %2969 = vmatpush2.bf16.msra.mxu0 0
        %2970 = vmatprep.subr.bf16.mxu0 0
        %2971 = vmatpush2.bf16.msra.mxu0 0
        %2972 = vmatprep.subr.bf16.mxu0 0
        %2973 = vmatpush2.bf16.msra.mxu0 0
        %2974 = vmatprep.mubr.bf16.mxu0 0
        %2975 = vmatmul.mubr.bf16.gmra.mxu0 %v2940
        %v2976 = vpop.f32.mrf.mxu0
        %v2977 = vadd.f32 0.0, %v2976
        %v2978 = vpop.f32.mrf.mxu0
        %v2979 = vpop.f32.mrf.mxu0
        %v2980 = vpop.f32.mrf.mxu0
        %2981 = vdwg.mxu0
        %v2983 = vsel %vm2723, %v2689, 0
        %2985 = vmatprep.subr.bf16.mxu0 0
        %2986 = vmatpush1.bf16.msra.mxu0 0
        %2987 = vmatprep.subr.bf16.mxu0 0
        %2988 = vmatpush1.bf16.msra.mxu0 0
        %2989 = vmatprep.subr.bf16.mxu0 0
        %2990 = vmatpush1.bf16.msra.mxu0 0
        %2991 = vmatprep.subr.bf16.mxu0 0
        %2992 = vmatpush1.bf16.msra.mxu0 0
        %2993 = vmatprep.subr.bf16.mxu0 0
        %2994 = vmatpush1.bf16.msra.mxu0 %v2718
        %2995 = vmatprep.subr.bf16.mxu0 0
        %2996 = vmatpush1.bf16.msra.mxu0 %v2717
        %2997 = vmatprep.subr.bf16.mxu0 0
        %2998 = vmatpush1.bf16.msra.mxu0 %v2716
        %2999 = vmatprep.subr.bf16.mxu0 0
        %3000 = vmatpush1.bf16.msra.mxu0 %v2715
        %3001 = vmatprep.subr.bf16.mxu0 0
        %3002 = vmatpush2.bf16.msra.mxu0 0
        %3003 = vmatprep.subr.bf16.mxu0 0
        %3004 = vmatpush2.bf16.msra.mxu0 0
        %3005 = vmatprep.subr.bf16.mxu0 0
        %3006 = vmatpush2.bf16.msra.mxu0 0
        %3007 = vmatprep.subr.bf16.mxu0 0
        %3008 = vmatpush2.bf16.msra.mxu0 0
        %3009 = vmatprep.subr.bf16.mxu0 0
        %3010 = vmatpush2.bf16.msra.mxu0 0
        %3011 = vmatprep.subr.bf16.mxu0 0
        %3012 = vmatpush2.bf16.msra.mxu0 0
        %3013 = vmatprep.subr.bf16.mxu0 0
        %3014 = vmatpush2.bf16.msra.mxu0 0
        %3015 = vmatprep.subr.bf16.mxu0 0
        %3016 = vmatpush2.bf16.msra.mxu0 0
        %3017 = vmatprep.mubr.bf16.mxu0 0
        %3018 = vmatmul.mubr.bf16.gmra.mxu0 %v2983
        %v3019 = vpop.f32.mrf.mxu0
        %v3020 = vadd.f32 0.0, %v3019
        %v3021 = vpop.f32.mrf.mxu0
        %v3022 = vpop.f32.mrf.mxu0
        %v3023 = vpop.f32.mrf.mxu0
        %3024 = vdwg.mxu0
        %v3026 = vsel %vm2723, %v2690, 0
        %3028 = vmatprep.subr.bf16.mxu0 0
        %3029 = vmatpush1.bf16.msra.mxu0 0
        %3030 = vmatprep.subr.bf16.mxu0 0
        %3031 = vmatpush1.bf16.msra.mxu0 0
        %3032 = vmatprep.subr.bf16.mxu0 0
        %3033 = vmatpush1.bf16.msra.mxu0 0
        %3034 = vmatprep.subr.bf16.mxu0 0
        %3035 = vmatpush1.bf16.msra.mxu0 0
        %3036 = vmatprep.subr.bf16.mxu0 0
        %3037 = vmatpush1.bf16.msra.mxu0 %v2722
        %3038 = vmatprep.subr.bf16.mxu0 0
        %3039 = vmatpush1.bf16.msra.mxu0 %v2721
        %3040 = vmatprep.subr.bf16.mxu0 0
        %3041 = vmatpush1.bf16.msra.mxu0 %v2720
        %3042 = vmatprep.subr.bf16.mxu0 0
        %3043 = vmatpush1.bf16.msra.mxu0 %v2719
        %3044 = vmatprep.subr.bf16.mxu0 0
        %3045 = vmatpush2.bf16.msra.mxu0 0
        %3046 = vmatprep.subr.bf16.mxu0 0
        %3047 = vmatpush2.bf16.msra.mxu0 0
        %3048 = vmatprep.subr.bf16.mxu0 0
        %3049 = vmatpush2.bf16.msra.mxu0 0
        %3050 = vmatprep.subr.bf16.mxu0 0
        %3051 = vmatpush2.bf16.msra.mxu0 0
        %3052 = vmatprep.subr.bf16.mxu0 0
        %3053 = vmatpush2.bf16.msra.mxu0 0
        %3054 = vmatprep.subr.bf16.mxu0 0
        %3055 = vmatpush2.bf16.msra.mxu0 0
        %3056 = vmatprep.subr.bf16.mxu0 0
        %3057 = vmatpush2.bf16.msra.mxu0 0
        %3058 = vmatprep.subr.bf16.mxu0 0
        %3059 = vmatpush2.bf16.msra.mxu0 0
        %3060 = vmatprep.mubr.bf16.mxu0 0
        %3061 = vmatmul.mubr.bf16.gmra.mxu0 %v3026
        %v3062 = vpop.f32.mrf.mxu0
        %v3063 = vadd.f32 0.0, %v3062
        %v3064 = vpop.f32.mrf.mxu0
        %v3065 = vpop.f32.mrf.mxu0
        %v3066 = vpop.f32.mrf.mxu0
        %3067 = vdwg.mxu0
        %v3068 = vmul.f32 %v2762, 0.125
        %v3069 = vmul.f32 %v2805, 0.125
        %v3070 = vmul.f32 %v2848, 0.125
        %v3071 = vmul.f32 %v2891, 0.125
        %v3072 = vmul.f32 %v2934, 0.125
        %v3073 = vmul.f32 %v2977, 0.125
        %v3074 = vmul.f32 %v3020, 0.125
        %v3075 = vmul.f32 %v3063, 0.125
        %vm3076 = vcmask 64512
        %v3077 = vsel %vm3076, %v3068, -inf
        %3078 = vmax.xlane.f32.xlu0 %v3077
        %v3079 = vpop.xlane.xlu0 %3078
        %v3080 = vsel %vm3076, %v3069, -inf
        %3081 = vmax.xlane.f32.xlu0 %v3080
        %v3082 = vpop.xlane.xlu0 %3081
        %v3083 = vsel %vm3076, %v3070, -inf
        %3084 = vmax.xlane.f32.xlu0 %v3083
        %v3085 = vpop.xlane.xlu0 %3084
        %v3086 = vsel %vm3076, %v3071, -inf
        %3087 = vmax.xlane.f32.xlu0 %v3086
        %v3088 = vpop.xlane.xlu0 %3087
        %v3089 = vsel %vm3076, %v3072, -inf
        %3090 = vmax.xlane.f32.xlu0 %v3089
        %v3091 = vpop.xlane.xlu0 %3090
        %v3092 = vsel %vm3076, %v3073, -inf
        %3093 = vmax.xlane.f32.xlu0 %v3092
        %v3094 = vpop.xlane.xlu0 %3093
        %v3095 = vsel %vm3076, %v3074, -inf
        %3096 = vmax.xlane.f32.xlu0 %v3095
        %v3097 = vpop.xlane.xlu0 %3096
        %v3098 = vsel %vm3076, %v3075, -inf
        %3099 = vmax.xlane.f32.xlu0 %v3098
        %v3100 = vpop.xlane.xlu0 %3099
        %v3101 = vsub.f32 %v3068, %v3079
        %v3102 = vsub.f32 %v3069, %v3082
        %v3103 = vsub.f32 %v3070, %v3085
        %v3104 = vsub.f32 %v3071, %v3088
        %v3105 = vsub.f32 %v3072, %v3091
        %v3106 = vsub.f32 %v3073, %v3094
        %v3107 = vsub.f32 %v3074, %v3097
        %v3108 = vsub.f32 %v3075, %v3100
        %v3109 = vmul.f32 %v3101, 1.442695
        %v3110 = vpow.pop %v3109
        %v3111 = vmul.f32 %v3102, 1.442695
        %v3112 = vpow.pop %v3111
        %v3113 = vmul.f32 %v3103, 1.442695
        %v3114 = vpow.pop %v3113
        %v3115 = vmul.f32 %v3104, 1.442695
        %v3116 = vpow.pop %v3115
        %v3117 = vmul.f32 %v3105, 1.442695
        %v3118 = vpow.pop %v3117
        %v3119 = vmul.f32 %v3106, 1.442695
        %v3120 = vpow.pop %v3119
        %v3121 = vmul.f32 %v3107, 1.442695
        %v3122 = vpow.pop %v3121
        %v3123 = vmul.f32 %v3108, 1.442695
        %v3124 = vpow.pop %v3123
        %v3125 = vsel %vm3076, %v3110, 0.0
        %3126 = vadd.xlane.f32.xlu0 %v3125
        %v3127 = vpop.xlane.xlu0 %3126
        %v3128 = vsel %vm3076, %v3112, 0.0
        %3129 = vadd.xlane.f32.xlu0 %v3128
        %v3130 = vpop.xlane.xlu0 %3129
        %v3131 = vsel %vm3076, %v3114, 0.0
        %3132 = vadd.xlane.f32.xlu0 %v3131
        %v3133 = vpop.xlane.xlu0 %3132
        %v3134 = vsel %vm3076, %v3116, 0.0
        %3135 = vadd.xlane.f32.xlu0 %v3134
        %v3136 = vpop.xlane.xlu0 %3135
        %v3137 = vsel %vm3076, %v3118, 0.0
        %3138 = vadd.xlane.f32.xlu0 %v3137
        %v3139 = vpop.xlane.xlu0 %3138
        %v3140 = vsel %vm3076, %v3120, 0.0
        %3141 = vadd.xlane.f32.xlu0 %v3140
        %v3142 = vpop.xlane.xlu0 %3141
        %v3143 = vsel %vm3076, %v3122, 0.0
        %3144 = vadd.xlane.f32.xlu0 %v3143
        %v3145 = vpop.xlane.xlu0 %3144
        %v3146 = vsel %vm3076, %v3124, 0.0
        %3147 = vadd.xlane.f32.xlu0 %v3146
        %v3148 = vpop.xlane.xlu0 %3147
        %v3149 = vrcp.pop %v3127
        %v3150 = vrcp.pop %v3130
        %v3151 = vrcp.pop %v3133
        %v3152 = vrcp.pop %v3136
        %v3153 = vrcp.pop %v3139
        %v3154 = vrcp.pop %v3142
        %v3155 = vrcp.pop %v3145
        %v3156 = vrcp.pop %v3148
        %v3157 = vmul.f32 %v3110, %v3149
        %v3158 = vmul.f32 %v3112, %v3150
        %v3159 = vmul.f32 %v3114, %v3151
        %v3160 = vmul.f32 %v3116, %v3152
        %v3161 = vmul.f32 %v3118, %v3153
        %v3162 = vmul.f32 %v3120, %v3154
        %v3163 = vmul.f32 %v3122, %v3155
        %v3164 = vmul.f32 %v3124, %v3156
        %v3165 = vpack.c.bf16 %v3157, %v3157
        %v3166 = vpack.c.bf16 %v3158, %v3158
        %v3167 = vpack.c.bf16 %v3159, %v3159
        %v3168 = vpack.c.bf16 %v3160, %v3160
        %v3169 = vpack.c.bf16 %v3161, %v3161
        %v3170 = vpack.c.bf16 %v3162, %v3162
        %v3171 = vpack.c.bf16 %v3163, %v3163
        %v3172 = vpack.c.bf16 %v3164, %v3164
        %v3173 = vpack.c.bf16 %v2176, %v2173
        %v3174 = vpack.c.bf16 %v2184, %v2181
        %v3175 = vpack.c.bf16 %v2192, %v2189
        %v3176 = vpack.c.bf16 %v2200, %v2197
        %v3177 = vpack.c.bf16 %v2208, %v2205
        %v3178 = vpack.c.bf16 %v2216, %v2213
        %v3179 = vpack.c.bf16 %v2224, %v2221
        %v3180 = vpack.c.bf16 %v2232, %v2229
        %v3181 = vpack.c.bf16 %v2240, %v2237
        %v3182 = vpack.c.bf16 %v2248, %v2245
        %v3183 = vpack.c.bf16 %v2256, %v2253
        %v3184 = vpack.c.bf16 %v2264, %v2261
        %v3185 = vpack.c.bf16 %v2272, %v2269
        %v3186 = vpack.c.bf16 %v2280, %v2277
        %v3187 = vpack.c.bf16 %v2288, %v2285
        %v3188 = vpack.c.bf16 %v2296, %v2293
        %v3189 = vpack.c.bf16 %v2304, %v2301
        %v3190 = vpack.c.bf16 %v2312, %v2309
        %v3191 = vpack.c.bf16 %v2320, %v2317
        %v3192 = vpack.c.bf16 %v2328, %v2325
        %v3193 = vpack.c.bf16 %v2336, %v2333
        %v3194 = vpack.c.bf16 %v2344, %v2341
        %v3195 = vpack.c.bf16 %v2352, %v2349
        %v3196 = vpack.c.bf16 %v2360, %v2357
        %v3197 = vpack.c.bf16 %v2368, %v2365
        %v3198 = vpack.c.bf16 %v2376, %v2373
        %v3199 = vpack.c.bf16 %v2384, %v2381
        %v3200 = vpack.c.bf16 %v2392, %v2389
        %v3201 = vpack.c.bf16 %v2400, %v2397
        %v3202 = vpack.c.bf16 %v2408, %v2405
        %v3203 = vpack.c.bf16 %v2416, %v2413
        %v3204 = vpack.c.bf16 %v2424, %v2421
        %v3206 = vsel %vm3076, %v3165, 0
        %v3209 = vsel %vm3076, %v3173, 0
        %v3212 = vsel %vm3076, %v3174, 0
        %v3215 = vsel %vm3076, %v3175, 0
        %v3218 = vsel %vm3076, %v3176, 0
        %3220 = vmatprep.subr.bf16.mxu0 0
        %3221 = vmatpush1.bf16.xpose.msra.mxu0 0
        %3222 = vmatprep.subr.bf16.mxu0 0
        %3223 = vmatpush1.bf16.xpose.msra.mxu0 0
        %3224 = vmatprep.subr.bf16.mxu0 0
        %3225 = vmatpush1.bf16.xpose.msra.mxu0 0
        %3226 = vmatprep.subr.bf16.mxu0 0
        %3227 = vmatpush1.bf16.xpose.msra.mxu0 0
        %3228 = vmatprep.subr.bf16.mxu0 0
        %3229 = vmatpush1.bf16.xpose.msra.mxu0 %v3218
        %3230 = vmatprep.subr.bf16.mxu0 0
        %3231 = vmatpush1.bf16.xpose.msra.mxu0 %v3215
        %3232 = vmatprep.subr.bf16.mxu0 0
        %3233 = vmatpush1.bf16.xpose.msra.mxu0 %v3212
        %3234 = vmatprep.subr.bf16.mxu0 0
        %3235 = vmatpush1.bf16.xpose.msra.mxu0 %v3209
        %3236 = vmatprep.subr.bf16.mxu0 0
        %3237 = vmatpush2.bf16.xpose.msra.mxu0 0
        %3238 = vmatprep.subr.bf16.mxu0 0
        %3239 = vmatpush2.bf16.xpose.msra.mxu0 0
        %3240 = vmatprep.subr.bf16.mxu0 0
        %3241 = vmatpush2.bf16.xpose.msra.mxu0 0
        %3242 = vmatprep.subr.bf16.mxu0 0
        %3243 = vmatpush2.bf16.xpose.msra.mxu0 0
        %3244 = vmatprep.subr.bf16.mxu0 0
        %3245 = vmatpush2.bf16.xpose.msra.mxu0 0
        %3246 = vmatprep.subr.bf16.mxu0 0
        %3247 = vmatpush2.bf16.xpose.msra.mxu0 0
        %3248 = vmatprep.subr.bf16.mxu0 0
        %3249 = vmatpush2.bf16.xpose.msra.mxu0 0
        %3250 = vmatprep.subr.bf16.mxu0 0
        %3251 = vmatpush2.bf16.xpose.msra.mxu0 0
        %3252 = vmatprep.mubr.bf16.mxu0 0
        %3253 = vmatmul.mubr.bf16.gmra.mxu0 %v3206
        %v3254 = vpop.f32.mrf.mxu0
        %v3255 = vadd.f32 0.0, %v3254
        %v3256 = vpop.f32.mrf.mxu0
        %v3257 = vpop.f32.mrf.mxu0
        %v3258 = vpop.f32.mrf.mxu0
        %3259 = vdwg.mxu0
        %v3261 = vsel %vm3076, %v3166, 0
        %v3264 = vsel %vm3076, %v3177, 0
        %v3267 = vsel %vm3076, %v3178, 0
        %v3270 = vsel %vm3076, %v3179, 0
        %v3273 = vsel %vm3076, %v3180, 0
        %3275 = vmatprep.subr.bf16.mxu0 0
        %3276 = vmatpush1.bf16.xpose.msra.mxu0 0
        %3277 = vmatprep.subr.bf16.mxu0 0
        %3278 = vmatpush1.bf16.xpose.msra.mxu0 0
        %3279 = vmatprep.subr.bf16.mxu0 0
        %3280 = vmatpush1.bf16.xpose.msra.mxu0 0
        %3281 = vmatprep.subr.bf16.mxu0 0
        %3282 = vmatpush1.bf16.xpose.msra.mxu0 0
        %3283 = vmatprep.subr.bf16.mxu0 0
        %3284 = vmatpush1.bf16.xpose.msra.mxu0 %v3273
        %3285 = vmatprep.subr.bf16.mxu0 0
        %3286 = vmatpush1.bf16.xpose.msra.mxu0 %v3270
        %3287 = vmatprep.subr.bf16.mxu0 0
        %3288 = vmatpush1.bf16.xpose.msra.mxu0 %v3267
        %3289 = vmatprep.subr.bf16.mxu0 0
        %3290 = vmatpush1.bf16.xpose.msra.mxu0 %v3264
        %3291 = vmatprep.subr.bf16.mxu0 0
        %3292 = vmatpush2.bf16.xpose.msra.mxu0 0
        %3293 = vmatprep.subr.bf16.mxu0 0
        %3294 = vmatpush2.bf16.xpose.msra.mxu0 0
        %3295 = vmatprep.subr.bf16.mxu0 0
        %3296 = vmatpush2.bf16.xpose.msra.mxu0 0
        %3297 = vmatprep.subr.bf16.mxu0 0
        %3298 = vmatpush2.bf16.xpose.msra.mxu0 0
        %3299 = vmatprep.subr.bf16.mxu0 0
        %3300 = vmatpush2.bf16.xpose.msra.mxu0 0
        %3301 = vmatprep.subr.bf16.mxu0 0
        %3302 = vmatpush2.bf16.xpose.msra.mxu0 0
        %3303 = vmatprep.subr.bf16.mxu0 0
        %3304 = vmatpush2.bf16.xpose.msra.mxu0 0
        %3305 = vmatprep.subr.bf16.mxu0 0
        %3306 = vmatpush2.bf16.xpose.msra.mxu0 0
        %3307 = vmatprep.mubr.bf16.mxu0 0
        %3308 = vmatmul.mubr.bf16.gmra.mxu0 %v3261
        %v3309 = vpop.f32.mrf.mxu0
        %v3310 = vadd.f32 0.0, %v3309
        %v3311 = vpop.f32.mrf.mxu0
        %v3312 = vpop.f32.mrf.mxu0
        %v3313 = vpop.f32.mrf.mxu0
        %3314 = vdwg.mxu0
        %v3316 = vsel %vm3076, %v3167, 0
        %v3319 = vsel %vm3076, %v3181, 0
        %v3322 = vsel %vm3076, %v3182, 0
        %v3325 = vsel %vm3076, %v3183, 0
        %v3328 = vsel %vm3076, %v3184, 0
        %3330 = vmatprep.subr.bf16.mxu0 0
        %3331 = vmatpush1.bf16.xpose.msra.mxu0 0
        %3332 = vmatprep.subr.bf16.mxu0 0
        %3333 = vmatpush1.bf16.xpose.msra.mxu0 0
        %3334 = vmatprep.subr.bf16.mxu0 0
        %3335 = vmatpush1.bf16.xpose.msra.mxu0 0
        %3336 = vmatprep.subr.bf16.mxu0 0
        %3337 = vmatpush1.bf16.xpose.msra.mxu0 0
        %3338 = vmatprep.subr.bf16.mxu0 0
        %3339 = vmatpush1.bf16.xpose.msra.mxu0 %v3328
        %3340 = vmatprep.subr.bf16.mxu0 0
        %3341 = vmatpush1.bf16.xpose.msra.mxu0 %v3325
        %3342 = vmatprep.subr.bf16.mxu0 0
        %3343 = vmatpush1.bf16.xpose.msra.mxu0 %v3322
        %3344 = vmatprep.subr.bf16.mxu0 0
        %3345 = vmatpush1.bf16.xpose.msra.mxu0 %v3319
        %3346 = vmatprep.subr.bf16.mxu0 0
        %3347 = vmatpush2.bf16.xpose.msra.mxu0 0
        %3348 = vmatprep.subr.bf16.mxu0 0
        %3349 = vmatpush2.bf16.xpose.msra.mxu0 0
        %3350 = vmatprep.subr.bf16.mxu0 0
        %3351 = vmatpush2.bf16.xpose.msra.mxu0 0
        %3352 = vmatprep.subr.bf16.mxu0 0
        %3353 = vmatpush2.bf16.xpose.msra.mxu0 0
        %3354 = vmatprep.subr.bf16.mxu0 0
        %3355 = vmatpush2.bf16.xpose.msra.mxu0 0
        %3356 = vmatprep.subr.bf16.mxu0 0
        %3357 = vmatpush2.bf16.xpose.msra.mxu0 0
        %3358 = vmatprep.subr.bf16.mxu0 0
        %3359 = vmatpush2.bf16.xpose.msra.mxu0 0
        %3360 = vmatprep.subr.bf16.mxu0 0
        %3361 = vmatpush2.bf16.xpose.msra.mxu0 0
        %3362 = vmatprep.mubr.bf16.mxu0 0
        %3363 = vmatmul.mubr.bf16.gmra.mxu0 %v3316
        %v3364 = vpop.f32.mrf.mxu0
        %v3365 = vadd.f32 0.0, %v3364
        %v3366 = vpop.f32.mrf.mxu0
        %v3367 = vpop.f32.mrf.mxu0
        %v3368 = vpop.f32.mrf.mxu0
        %3369 = vdwg.mxu0
        %v3371 = vsel %vm3076, %v3168, 0
        %v3374 = vsel %vm3076, %v3185, 0
        %v3377 = vsel %vm3076, %v3186, 0
        %v3380 = vsel %vm3076, %v3187, 0
        %v3383 = vsel %vm3076, %v3188, 0
        %3385 = vmatprep.subr.bf16.mxu0 0
        %3386 = vmatpush1.bf16.xpose.msra.mxu0 0
        %3387 = vmatprep.subr.bf16.mxu0 0
        %3388 = vmatpush1.bf16.xpose.msra.mxu0 0
        %3389 = vmatprep.subr.bf16.mxu0 0
        %3390 = vmatpush1.bf16.xpose.msra.mxu0 0
        %3391 = vmatprep.subr.bf16.mxu0 0
        %3392 = vmatpush1.bf16.xpose.msra.mxu0 0
        %3393 = vmatprep.subr.bf16.mxu0 0
        %3394 = vmatpush1.bf16.xpose.msra.mxu0 %v3383
        %3395 = vmatprep.subr.bf16.mxu0 0
        %3396 = vmatpush1.bf16.xpose.msra.mxu0 %v3380
        %3397 = vmatprep.subr.bf16.mxu0 0
        %3398 = vmatpush1.bf16.xpose.msra.mxu0 %v3377
        %3399 = vmatprep.subr.bf16.mxu0 0
        %3400 = vmatpush1.bf16.xpose.msra.mxu0 %v3374
        %3401 = vmatprep.subr.bf16.mxu0 0
        %3402 = vmatpush2.bf16.xpose.msra.mxu0 0
        %3403 = vmatprep.subr.bf16.mxu0 0
        %3404 = vmatpush2.bf16.xpose.msra.mxu0 0
        %3405 = vmatprep.subr.bf16.mxu0 0
        %3406 = vmatpush2.bf16.xpose.msra.mxu0 0
        %3407 = vmatprep.subr.bf16.mxu0 0
        %3408 = vmatpush2.bf16.xpose.msra.mxu0 0
        %3409 = vmatprep.subr.bf16.mxu0 0
        %3410 = vmatpush2.bf16.xpose.msra.mxu0 0
        %3411 = vmatprep.subr.bf16.mxu0 0
        %3412 = vmatpush2.bf16.xpose.msra.mxu0 0
        %3413 = vmatprep.subr.bf16.mxu0 0
        %3414 = vmatpush2.bf16.xpose.msra.mxu0 0
        %3415 = vmatprep.subr.bf16.mxu0 0
        %3416 = vmatpush2.bf16.xpose.msra.mxu0 0
        %3417 = vmatprep.mubr.bf16.mxu0 0
        %3418 = vmatmul.mubr.bf16.gmra.mxu0 %v3371
        %v3419 = vpop.f32.mrf.mxu0
        %v3420 = vadd.f32 0.0, %v3419
        %v3421 = vpop.f32.mrf.mxu0
        %v3422 = vpop.f32.mrf.mxu0
        %v3423 = vpop.f32.mrf.mxu0
        %3424 = vdwg.mxu0
        %v3426 = vsel %vm3076, %v3169, 0
        %v3429 = vsel %vm3076, %v3189, 0
        %v3432 = vsel %vm3076, %v3190, 0
        %v3435 = vsel %vm3076, %v3191, 0
        %v3438 = vsel %vm3076, %v3192, 0
        %3440 = vmatprep.subr.bf16.mxu0 0
        %3441 = vmatpush1.bf16.xpose.msra.mxu0 0
        %3442 = vmatprep.subr.bf16.mxu0 0
        %3443 = vmatpush1.bf16.xpose.msra.mxu0 0
        %3444 = vmatprep.subr.bf16.mxu0 0
        %3445 = vmatpush1.bf16.xpose.msra.mxu0 0
        %3446 = vmatprep.subr.bf16.mxu0 0
        %3447 = vmatpush1.bf16.xpose.msra.mxu0 0
        %3448 = vmatprep.subr.bf16.mxu0 0
        %3449 = vmatpush1.bf16.xpose.msra.mxu0 %v3438
        %3450 = vmatprep.subr.bf16.mxu0 0
        %3451 = vmatpush1.bf16.xpose.msra.mxu0 %v3435
        %3452 = vmatprep.subr.bf16.mxu0 0
        %3453 = vmatpush1.bf16.xpose.msra.mxu0 %v3432
        %3454 = vmatprep.subr.bf16.mxu0 0
        %3455 = vmatpush1.bf16.xpose.msra.mxu0 %v3429
        %3456 = vmatprep.subr.bf16.mxu0 0
        %3457 = vmatpush2.bf16.xpose.msra.mxu0 0
        %3458 = vmatprep.subr.bf16.mxu0 0
        %3459 = vmatpush2.bf16.xpose.msra.mxu0 0
        %3460 = vmatprep.subr.bf16.mxu0 0
        %3461 = vmatpush2.bf16.xpose.msra.mxu0 0
        %3462 = vmatprep.subr.bf16.mxu0 0
        %3463 = vmatpush2.bf16.xpose.msra.mxu0 0
        %3464 = vmatprep.subr.bf16.mxu0 0
        %3465 = vmatpush2.bf16.xpose.msra.mxu0 0
        %3466 = vmatprep.subr.bf16.mxu0 0
        %3467 = vmatpush2.bf16.xpose.msra.mxu0 0
        %3468 = vmatprep.subr.bf16.mxu0 0
        %3469 = vmatpush2.bf16.xpose.msra.mxu0 0
        %3470 = vmatprep.subr.bf16.mxu0 0
        %3471 = vmatpush2.bf16.xpose.msra.mxu0 0
        %3472 = vmatprep.mubr.bf16.mxu0 0
        %3473 = vmatmul.mubr.bf16.gmra.mxu0 %v3426
        %v3474 = vpop.f32.mrf.mxu0
        %v3475 = vadd.f32 0.0, %v3474
        %v3476 = vpop.f32.mrf.mxu0
        %v3477 = vpop.f32.mrf.mxu0
        %v3478 = vpop.f32.mrf.mxu0
        %3479 = vdwg.mxu0
        %v3481 = vsel %vm3076, %v3170, 0
        %v3484 = vsel %vm3076, %v3193, 0
        %v3487 = vsel %vm3076, %v3194, 0
        %v3490 = vsel %vm3076, %v3195, 0
        %v3493 = vsel %vm3076, %v3196, 0
        %3495 = vmatprep.subr.bf16.mxu0 0
        %3496 = vmatpush1.bf16.xpose.msra.mxu0 0
        %3497 = vmatprep.subr.bf16.mxu0 0
        %3498 = vmatpush1.bf16.xpose.msra.mxu0 0
        %3499 = vmatprep.subr.bf16.mxu0 0
        %3500 = vmatpush1.bf16.xpose.msra.mxu0 0
        %3501 = vmatprep.subr.bf16.mxu0 0
        %3502 = vmatpush1.bf16.xpose.msra.mxu0 0
        %3503 = vmatprep.subr.bf16.mxu0 0
        %3504 = vmatpush1.bf16.xpose.msra.mxu0 %v3493
        %3505 = vmatprep.subr.bf16.mxu0 0
        %3506 = vmatpush1.bf16.xpose.msra.mxu0 %v3490
        %3507 = vmatprep.subr.bf16.mxu0 0
        %3508 = vmatpush1.bf16.xpose.msra.mxu0 %v3487
        %3509 = vmatprep.subr.bf16.mxu0 0
        %3510 = vmatpush1.bf16.xpose.msra.mxu0 %v3484
        %3511 = vmatprep.subr.bf16.mxu0 0
        %3512 = vmatpush2.bf16.xpose.msra.mxu0 0
        %3513 = vmatprep.subr.bf16.mxu0 0
        %3514 = vmatpush2.bf16.xpose.msra.mxu0 0
        %3515 = vmatprep.subr.bf16.mxu0 0
        %3516 = vmatpush2.bf16.xpose.msra.mxu0 0
        %3517 = vmatprep.subr.bf16.mxu0 0
        %3518 = vmatpush2.bf16.xpose.msra.mxu0 0
        %3519 = vmatprep.subr.bf16.mxu0 0
        %3520 = vmatpush2.bf16.xpose.msra.mxu0 0
        %3521 = vmatprep.subr.bf16.mxu0 0
        %3522 = vmatpush2.bf16.xpose.msra.mxu0 0
        %3523 = vmatprep.subr.bf16.mxu0 0
        %3524 = vmatpush2.bf16.xpose.msra.mxu0 0
        %3525 = vmatprep.subr.bf16.mxu0 0
        %3526 = vmatpush2.bf16.xpose.msra.mxu0 0
        %3527 = vmatprep.mubr.bf16.mxu0 0
        %3528 = vmatmul.mubr.bf16.gmra.mxu0 %v3481
        %v3529 = vpop.f32.mrf.mxu0
        %v3530 = vadd.f32 0.0, %v3529
        %v3531 = vpop.f32.mrf.mxu0
        %v3532 = vpop.f32.mrf.mxu0
        %v3533 = vpop.f32.mrf.mxu0
        %3534 = vdwg.mxu0
        %v3536 = vsel %vm3076, %v3171, 0
        %v3539 = vsel %vm3076, %v3197, 0
        %v3542 = vsel %vm3076, %v3198, 0
        %v3545 = vsel %vm3076, %v3199, 0
        %v3548 = vsel %vm3076, %v3200, 0
        %3550 = vmatprep.subr.bf16.mxu0 0
        %3551 = vmatpush1.bf16.xpose.msra.mxu0 0
        %3552 = vmatprep.subr.bf16.mxu0 0
        %3553 = vmatpush1.bf16.xpose.msra.mxu0 0
        %3554 = vmatprep.subr.bf16.mxu0 0
        %3555 = vmatpush1.bf16.xpose.msra.mxu0 0
        %3556 = vmatprep.subr.bf16.mxu0 0
        %3557 = vmatpush1.bf16.xpose.msra.mxu0 0
        %3558 = vmatprep.subr.bf16.mxu0 0
        %3559 = vmatpush1.bf16.xpose.msra.mxu0 %v3548
        %3560 = vmatprep.subr.bf16.mxu0 0
        %3561 = vmatpush1.bf16.xpose.msra.mxu0 %v3545
        %3562 = vmatprep.subr.bf16.mxu0 0
        %3563 = vmatpush1.bf16.xpose.msra.mxu0 %v3542
        %3564 = vmatprep.subr.bf16.mxu0 0
        %3565 = vmatpush1.bf16.xpose.msra.mxu0 %v3539
        %3566 = vmatprep.subr.bf16.mxu0 0
        %3567 = vmatpush2.bf16.xpose.msra.mxu0 0
        %3568 = vmatprep.subr.bf16.mxu0 0
        %3569 = vmatpush2.bf16.xpose.msra.mxu0 0
        %3570 = vmatprep.subr.bf16.mxu0 0
        %3571 = vmatpush2.bf16.xpose.msra.mxu0 0
        %3572 = vmatprep.subr.bf16.mxu0 0
        %3573 = vmatpush2.bf16.xpose.msra.mxu0 0
        %3574 = vmatprep.subr.bf16.mxu0 0
        %3575 = vmatpush2.bf16.xpose.msra.mxu0 0
        %3576 = vmatprep.subr.bf16.mxu0 0
        %3577 = vmatpush2.bf16.xpose.msra.mxu0 0
        %3578 = vmatprep.subr.bf16.mxu0 0
        %3579 = vmatpush2.bf16.xpose.msra.mxu0 0
        %3580 = vmatprep.subr.bf16.mxu0 0
        %3581 = vmatpush2.bf16.xpose.msra.mxu0 0
        %3582 = vmatprep.mubr.bf16.mxu0 0
        %3583 = vmatmul.mubr.bf16.gmra.mxu0 %v3536
        %v3584 = vpop.f32.mrf.mxu0
        %v3585 = vadd.f32 0.0, %v3584
        %v3586 = vpop.f32.mrf.mxu0
        %v3587 = vpop.f32.mrf.mxu0
        %v3588 = vpop.f32.mrf.mxu0
        %3589 = vdwg.mxu0
        %v3591 = vsel %vm3076, %v3172, 0
        %v3594 = vsel %vm3076, %v3201, 0
        %v3597 = vsel %vm3076, %v3202, 0
        %v3600 = vsel %vm3076, %v3203, 0
        %v3603 = vsel %vm3076, %v3204, 0
        %3605 = vmatprep.subr.bf16.mxu0 0
        %3606 = vmatpush1.bf16.xpose.msra.mxu0 0
        %3607 = vmatprep.subr.bf16.mxu0 0
        %3608 = vmatpush1.bf16.xpose.msra.mxu0 0
        %3609 = vmatprep.subr.bf16.mxu0 0
        %3610 = vmatpush1.bf16.xpose.msra.mxu0 0
        %3611 = vmatprep.subr.bf16.mxu0 0
        %3612 = vmatpush1.bf16.xpose.msra.mxu0 0
        %3613 = vmatprep.subr.bf16.mxu0 0
        %3614 = vmatpush1.bf16.xpose.msra.mxu0 %v3603
        %3615 = vmatprep.subr.bf16.mxu0 0
        %3616 = vmatpush1.bf16.xpose.msra.mxu0 %v3600
        %3617 = vmatprep.subr.bf16.mxu0 0
        %3618 = vmatpush1.bf16.xpose.msra.mxu0 %v3597
        %3619 = vmatprep.subr.bf16.mxu0 0
        %3620 = vmatpush1.bf16.xpose.msra.mxu0 %v3594
        %3621 = vmatprep.subr.bf16.mxu0 0
        %3622 = vmatpush2.bf16.xpose.msra.mxu0 0
        %3623 = vmatprep.subr.bf16.mxu0 0
        %3624 = vmatpush2.bf16.xpose.msra.mxu0 0
        %3625 = vmatprep.subr.bf16.mxu0 0
        %3626 = vmatpush2.bf16.xpose.msra.mxu0 0
        %3627 = vmatprep.subr.bf16.mxu0 0
        %3628 = vmatpush2.bf16.xpose.msra.mxu0 0
        %3629 = vmatprep.subr.bf16.mxu0 0
        %3630 = vmatpush2.bf16.xpose.msra.mxu0 0
        %3631 = vmatprep.subr.bf16.mxu0 0
        %3632 = vmatpush2.bf16.xpose.msra.mxu0 0
        %3633 = vmatprep.subr.bf16.mxu0 0
        %3634 = vmatpush2.bf16.xpose.msra.mxu0 0
        %3635 = vmatprep.subr.bf16.mxu0 0
        %3636 = vmatpush2.bf16.xpose.msra.mxu0 0
        %3637 = vmatprep.mubr.bf16.mxu0 0
        %3638 = vmatmul.mubr.bf16.gmra.mxu0 %v3591
        %v3639 = vpop.f32.mrf.mxu0
        %v3640 = vadd.f32 0.0, %v3639
        %v3641 = vpop.f32.mrf.mxu0
        %v3642 = vpop.f32.mrf.mxu0
        %v3643 = vpop.f32.mrf.mxu0
        %3644 = vdwg.mxu0
        %v3645 = vpack.c.bf16 %v3255, %v3255
        %v3646 = vpack.c.bf16 %v3310, %v3310
        %v3647 = vpack.c.bf16 %v3365, %v3365
        %v3648 = vpack.c.bf16 %v3420, %v3420
        %v3649 = vpack.c.bf16 %v3475, %v3475
        %v3650 = vpack.c.bf16 %v3530, %v3530
        %v3651 = vpack.c.bf16 %v3585, %v3585
        %v3652 = vpack.c.bf16 %v3640, %v3640
        %v3661 = vunpack.c.l.b16 %v693
        %v3662 = vunpack.c.l.b16 %v694
        %v3663 = vunpack.c.l.b16 %v695
        %v3664 = vunpack.c.l.b16 %v696
        %v3665 = vunpack.c.l.b16 %v697
        %v3666 = vunpack.c.l.b16 %v698
        %v3667 = vunpack.c.l.b16 %v699
        %v3668 = vunpack.c.l.b16 %v700
        %v3669 = vpack.c.b16 %v3662, %v3661
        %v3670 = vpack.c.b16 %v3664, %v3663
        %v3671 = vpack.c.b16 %v3666, %v3665
        %v3672 = vpack.c.b16 %v3668, %v3667
        %v3678 = vsel %vm2723, %v3645, 0
        %3680 = vmatprep.subr.bf16.mxu0 0
        %3681 = vmatpush1.bf16.msra.mxu0 0
        %3682 = vmatprep.subr.bf16.mxu0 0
        %3683 = vmatpush1.bf16.msra.mxu0 0
        %3684 = vmatprep.subr.bf16.mxu0 0
        %3685 = vmatpush1.bf16.msra.mxu0 0
        %3686 = vmatprep.subr.bf16.mxu0 0
        %3687 = vmatpush1.bf16.msra.mxu0 0
        %3688 = vmatprep.subr.bf16.mxu0 0
        %3689 = vmatpush1.bf16.msra.mxu0 %v3672
        %3690 = vmatprep.subr.bf16.mxu0 0
        %3691 = vmatpush1.bf16.msra.mxu0 %v3671
        %3692 = vmatprep.subr.bf16.mxu0 0
        %3693 = vmatpush1.bf16.msra.mxu0 %v3670
        %3694 = vmatprep.subr.bf16.mxu0 0
        %3695 = vmatpush1.bf16.msra.mxu0 %v3669
        %3696 = vmatprep.subr.bf16.mxu0 0
        %3697 = vmatpush2.bf16.msra.mxu0 0
        %3698 = vmatprep.subr.bf16.mxu0 0
        %3699 = vmatpush2.bf16.msra.mxu0 0
        %3700 = vmatprep.subr.bf16.mxu0 0
        %3701 = vmatpush2.bf16.msra.mxu0 0
        %3702 = vmatprep.subr.bf16.mxu0 0
        %3703 = vmatpush2.bf16.msra.mxu0 0
        %3704 = vmatprep.subr.bf16.mxu0 0
        %3705 = vmatpush2.bf16.msra.mxu0 0
        %3706 = vmatprep.subr.bf16.mxu0 0
        %3707 = vmatpush2.bf16.msra.mxu0 0
        %3708 = vmatprep.subr.bf16.mxu0 0
        %3709 = vmatpush2.bf16.msra.mxu0 0
        %3710 = vmatprep.subr.bf16.mxu0 0
        %3711 = vmatpush2.bf16.msra.mxu0 0
        %3712 = vmatprep.mubr.bf16.mxu0 0
        %3713 = vmatmul.mubr.bf16.gmra.mxu0 %v3678
        %v3714 = vpop.f32.mrf.mxu0
        %v3715 = vadd.f32 0.0, %v3714
        %v3716 = vpop.f32.mrf.mxu0
        %v3717 = vpop.f32.mrf.mxu0
        %v3718 = vpop.f32.mrf.mxu0
        %3719 = vdwg.mxu0
        %v3728 = vunpack.c.l.b16 %v701
        %v3729 = vunpack.c.l.b16 %v702
        %v3730 = vunpack.c.l.b16 %v703
        %v3731 = vunpack.c.l.b16 %v704
        %v3732 = vunpack.c.l.b16 %v705
        %v3733 = vunpack.c.l.b16 %v706
        %v3734 = vunpack.c.l.b16 %v707
        %v3735 = vunpack.c.l.b16 %v708
        %v3736 = vpack.c.b16 %v3729, %v3728
        %v3737 = vpack.c.b16 %v3731, %v3730
        %v3738 = vpack.c.b16 %v3733, %v3732
        %v3739 = vpack.c.b16 %v3735, %v3734
        %v3745 = vsel %vm2723, %v3646, 0
        %3747 = vmatprep.subr.bf16.mxu0 0
        %3748 = vmatpush1.bf16.msra.mxu0 0
        %3749 = vmatprep.subr.bf16.mxu0 0
        %3750 = vmatpush1.bf16.msra.mxu0 0
        %3751 = vmatprep.subr.bf16.mxu0 0
        %3752 = vmatpush1.bf16.msra.mxu0 0
        %3753 = vmatprep.subr.bf16.mxu0 0
        %3754 = vmatpush1.bf16.msra.mxu0 0
        %3755 = vmatprep.subr.bf16.mxu0 0
        %3756 = vmatpush1.bf16.msra.mxu0 %v3739
        %3757 = vmatprep.subr.bf16.mxu0 0
        %3758 = vmatpush1.bf16.msra.mxu0 %v3738
        %3759 = vmatprep.subr.bf16.mxu0 0
        %3760 = vmatpush1.bf16.msra.mxu0 %v3737
        %3761 = vmatprep.subr.bf16.mxu0 0
        %3762 = vmatpush1.bf16.msra.mxu0 %v3736
        %3763 = vmatprep.subr.bf16.mxu0 0
        %3764 = vmatpush2.bf16.msra.mxu0 0
        %3765 = vmatprep.subr.bf16.mxu0 0
        %3766 = vmatpush2.bf16.msra.mxu0 0
        %3767 = vmatprep.subr.bf16.mxu0 0
        %3768 = vmatpush2.bf16.msra.mxu0 0
        %3769 = vmatprep.subr.bf16.mxu0 0
        %3770 = vmatpush2.bf16.msra.mxu0 0
        %3771 = vmatprep.subr.bf16.mxu0 0
        %3772 = vmatpush2.bf16.msra.mxu0 0
        %3773 = vmatprep.subr.bf16.mxu0 0
        %3774 = vmatpush2.bf16.msra.mxu0 0
        %3775 = vmatprep.subr.bf16.mxu0 0
        %3776 = vmatpush2.bf16.msra.mxu0 0
        %3777 = vmatprep.subr.bf16.mxu0 0
        %3778 = vmatpush2.bf16.msra.mxu0 0
        %3779 = vmatprep.mubr.bf16.mxu0 0
        %3780 = vmatmul.mubr.bf16.gmra.mxu0 %v3745
        %v3781 = vpop.f32.mrf.mxu0
        %v3782 = vadd.f32 0.0, %v3781
        %v3783 = vpop.f32.mrf.mxu0
        %v3784 = vpop.f32.mrf.mxu0
        %v3785 = vpop.f32.mrf.mxu0
        %3786 = vdwg.mxu0
        %v3795 = vunpack.c.l.b16 %v709
        %v3796 = vunpack.c.l.b16 %v710
        %v3797 = vunpack.c.l.b16 %v711
        %v3798 = vunpack.c.l.b16 %v712
        %v3799 = vunpack.c.l.b16 %v713
        %v3800 = vunpack.c.l.b16 %v714
        %v3801 = vunpack.c.l.b16 %v715
        %v3802 = vunpack.c.l.b16 %v716
        %v3803 = vpack.c.b16 %v3796, %v3795
        %v3804 = vpack.c.b16 %v3798, %v3797
        %v3805 = vpack.c.b16 %v3800, %v3799
        %v3806 = vpack.c.b16 %v3802, %v3801
        %v3812 = vsel %vm2723, %v3647, 0
        %3814 = vmatprep.subr.bf16.mxu0 0
        %3815 = vmatpush1.bf16.msra.mxu0 0
        %3816 = vmatprep.subr.bf16.mxu0 0
        %3817 = vmatpush1.bf16.msra.mxu0 0
        %3818 = vmatprep.subr.bf16.mxu0 0
        %3819 = vmatpush1.bf16.msra.mxu0 0
        %3820 = vmatprep.subr.bf16.mxu0 0
        %3821 = vmatpush1.bf16.msra.mxu0 0
        %3822 = vmatprep.subr.bf16.mxu0 0
        %3823 = vmatpush1.bf16.msra.mxu0 %v3806
        %3824 = vmatprep.subr.bf16.mxu0 0
        %3825 = vmatpush1.bf16.msra.mxu0 %v3805
        %3826 = vmatprep.subr.bf16.mxu0 0
        %3827 = vmatpush1.bf16.msra.mxu0 %v3804
        %3828 = vmatprep.subr.bf16.mxu0 0
        %3829 = vmatpush1.bf16.msra.mxu0 %v3803
        %3830 = vmatprep.subr.bf16.mxu0 0
        %3831 = vmatpush2.bf16.msra.mxu0 0
        %3832 = vmatprep.subr.bf16.mxu0 0
        %3833 = vmatpush2.bf16.msra.mxu0 0
        %3834 = vmatprep.subr.bf16.mxu0 0
        %3835 = vmatpush2.bf16.msra.mxu0 0
        %3836 = vmatprep.subr.bf16.mxu0 0
        %3837 = vmatpush2.bf16.msra.mxu0 0
        %3838 = vmatprep.subr.bf16.mxu0 0
        %3839 = vmatpush2.bf16.msra.mxu0 0
        %3840 = vmatprep.subr.bf16.mxu0 0
        %3841 = vmatpush2.bf16.msra.mxu0 0
        %3842 = vmatprep.subr.bf16.mxu0 0
        %3843 = vmatpush2.bf16.msra.mxu0 0
        %3844 = vmatprep.subr.bf16.mxu0 0
        %3845 = vmatpush2.bf16.msra.mxu0 0
        %3846 = vmatprep.mubr.bf16.mxu0 0
        %3847 = vmatmul.mubr.bf16.gmra.mxu0 %v3812
        %v3848 = vpop.f32.mrf.mxu0
        %v3849 = vadd.f32 0.0, %v3848
        %v3850 = vpop.f32.mrf.mxu0
        %v3851 = vpop.f32.mrf.mxu0
        %v3852 = vpop.f32.mrf.mxu0
        %3853 = vdwg.mxu0
        %v3862 = vunpack.c.l.b16 %v717
        %v3863 = vunpack.c.l.b16 %v718
        %v3864 = vunpack.c.l.b16 %v719
        %v3865 = vunpack.c.l.b16 %v720
        %v3866 = vunpack.c.l.b16 %v721
        %v3867 = vunpack.c.l.b16 %v722
        %v3868 = vunpack.c.l.b16 %v723
        %v3869 = vunpack.c.l.b16 %v724
        %v3870 = vpack.c.b16 %v3863, %v3862
        %v3871 = vpack.c.b16 %v3865, %v3864
        %v3872 = vpack.c.b16 %v3867, %v3866
        %v3873 = vpack.c.b16 %v3869, %v3868
        %v3879 = vsel %vm2723, %v3648, 0
        %3881 = vmatprep.subr.bf16.mxu0 0
        %3882 = vmatpush1.bf16.msra.mxu0 0
        %3883 = vmatprep.subr.bf16.mxu0 0
        %3884 = vmatpush1.bf16.msra.mxu0 0
        %3885 = vmatprep.subr.bf16.mxu0 0
        %3886 = vmatpush1.bf16.msra.mxu0 0
        %3887 = vmatprep.subr.bf16.mxu0 0
        %3888 = vmatpush1.bf16.msra.mxu0 0
        %3889 = vmatprep.subr.bf16.mxu0 0
        %3890 = vmatpush1.bf16.msra.mxu0 %v3873
        %3891 = vmatprep.subr.bf16.mxu0 0
        %3892 = vmatpush1.bf16.msra.mxu0 %v3872
        %3893 = vmatprep.subr.bf16.mxu0 0
        %3894 = vmatpush1.bf16.msra.mxu0 %v3871
        %3895 = vmatprep.subr.bf16.mxu0 0
        %3896 = vmatpush1.bf16.msra.mxu0 %v3870
        %3897 = vmatprep.subr.bf16.mxu0 0
        %3898 = vmatpush2.bf16.msra.mxu0 0
        %3899 = vmatprep.subr.bf16.mxu0 0
        %3900 = vmatpush2.bf16.msra.mxu0 0
        %3901 = vmatprep.subr.bf16.mxu0 0
        %3902 = vmatpush2.bf16.msra.mxu0 0
        %3903 = vmatprep.subr.bf16.mxu0 0
        %3904 = vmatpush2.bf16.msra.mxu0 0
        %3905 = vmatprep.subr.bf16.mxu0 0
        %3906 = vmatpush2.bf16.msra.mxu0 0
        %3907 = vmatprep.subr.bf16.mxu0 0
        %3908 = vmatpush2.bf16.msra.mxu0 0
        %3909 = vmatprep.subr.bf16.mxu0 0
        %3910 = vmatpush2.bf16.msra.mxu0 0
        %3911 = vmatprep.subr.bf16.mxu0 0
        %3912 = vmatpush2.bf16.msra.mxu0 0
        %3913 = vmatprep.mubr.bf16.mxu0 0
        %3914 = vmatmul.mubr.bf16.gmra.mxu0 %v3879
        %v3915 = vpop.f32.mrf.mxu0
        %v3916 = vadd.f32 0.0, %v3915
        %v3917 = vpop.f32.mrf.mxu0
        %v3918 = vpop.f32.mrf.mxu0
        %v3919 = vpop.f32.mrf.mxu0
        %3920 = vdwg.mxu0
        %v3929 = vunpack.c.l.b16 %v725
        %v3930 = vunpack.c.l.b16 %v726
        %v3931 = vunpack.c.l.b16 %v727
        %v3932 = vunpack.c.l.b16 %v728
        %v3933 = vunpack.c.l.b16 %v729
        %v3934 = vunpack.c.l.b16 %v730
        %v3935 = vunpack.c.l.b16 %v731
        %v3936 = vunpack.c.l.b16 %v732
        %v3937 = vpack.c.b16 %v3930, %v3929
        %v3938 = vpack.c.b16 %v3932, %v3931
        %v3939 = vpack.c.b16 %v3934, %v3933
        %v3940 = vpack.c.b16 %v3936, %v3935
        %v3946 = vsel %vm2723, %v3649, 0
        %3948 = vmatprep.subr.bf16.mxu0 0
        %3949 = vmatpush1.bf16.msra.mxu0 0
        %3950 = vmatprep.subr.bf16.mxu0 0
        %3951 = vmatpush1.bf16.msra.mxu0 0
        %3952 = vmatprep.subr.bf16.mxu0 0
        %3953 = vmatpush1.bf16.msra.mxu0 0
        %3954 = vmatprep.subr.bf16.mxu0 0
        %3955 = vmatpush1.bf16.msra.mxu0 0
        %3956 = vmatprep.subr.bf16.mxu0 0
        %3957 = vmatpush1.bf16.msra.mxu0 %v3940
        %3958 = vmatprep.subr.bf16.mxu0 0
        %3959 = vmatpush1.bf16.msra.mxu0 %v3939
        %3960 = vmatprep.subr.bf16.mxu0 0
        %3961 = vmatpush1.bf16.msra.mxu0 %v3938
        %3962 = vmatprep.subr.bf16.mxu0 0
        %3963 = vmatpush1.bf16.msra.mxu0 %v3937
        %3964 = vmatprep.subr.bf16.mxu0 0
        %3965 = vmatpush2.bf16.msra.mxu0 0
        %3966 = vmatprep.subr.bf16.mxu0 0
        %3967 = vmatpush2.bf16.msra.mxu0 0
        %3968 = vmatprep.subr.bf16.mxu0 0
        %3969 = vmatpush2.bf16.msra.mxu0 0
        %3970 = vmatprep.subr.bf16.mxu0 0
        %3971 = vmatpush2.bf16.msra.mxu0 0
        %3972 = vmatprep.subr.bf16.mxu0 0
        %3973 = vmatpush2.bf16.msra.mxu0 0
        %3974 = vmatprep.subr.bf16.mxu0 0
        %3975 = vmatpush2.bf16.msra.mxu0 0
        %3976 = vmatprep.subr.bf16.mxu0 0
        %3977 = vmatpush2.bf16.msra.mxu0 0
        %3978 = vmatprep.subr.bf16.mxu0 0
        %3979 = vmatpush2.bf16.msra.mxu0 0
        %3980 = vmatprep.mubr.bf16.mxu0 0
        %3981 = vmatmul.mubr.bf16.gmra.mxu0 %v3946
        %v3982 = vpop.f32.mrf.mxu0
        %v3983 = vadd.f32 0.0, %v3982
        %v3984 = vpop.f32.mrf.mxu0
        %v3985 = vpop.f32.mrf.mxu0
        %v3986 = vpop.f32.mrf.mxu0
        %3987 = vdwg.mxu0
        %v3996 = vunpack.c.l.b16 %v733
        %v3997 = vunpack.c.l.b16 %v734
        %v3998 = vunpack.c.l.b16 %v735
        %v3999 = vunpack.c.l.b16 %v736
        %v4000 = vunpack.c.l.b16 %v737
        %v4001 = vunpack.c.l.b16 %v738
        %v4002 = vunpack.c.l.b16 %v739
        %v4003 = vunpack.c.l.b16 %v740
        %v4004 = vpack.c.b16 %v3997, %v3996
        %v4005 = vpack.c.b16 %v3999, %v3998
        %v4006 = vpack.c.b16 %v4001, %v4000
        %v4007 = vpack.c.b16 %v4003, %v4002
        %v4013 = vsel %vm2723, %v3650, 0
        %4015 = vmatprep.subr.bf16.mxu0 0
        %4016 = vmatpush1.bf16.msra.mxu0 0
        %4017 = vmatprep.subr.bf16.mxu0 0
        %4018 = vmatpush1.bf16.msra.mxu0 0
        %4019 = vmatprep.subr.bf16.mxu0 0
        %4020 = vmatpush1.bf16.msra.mxu0 0
        %4021 = vmatprep.subr.bf16.mxu0 0
        %4022 = vmatpush1.bf16.msra.mxu0 0
        %4023 = vmatprep.subr.bf16.mxu0 0
        %4024 = vmatpush1.bf16.msra.mxu0 %v4007
        %4025 = vmatprep.subr.bf16.mxu0 0
        %4026 = vmatpush1.bf16.msra.mxu0 %v4006
        %4027 = vmatprep.subr.bf16.mxu0 0
        %4028 = vmatpush1.bf16.msra.mxu0 %v4005
        %4029 = vmatprep.subr.bf16.mxu0 0
        %4030 = vmatpush1.bf16.msra.mxu0 %v4004
        %4031 = vmatprep.subr.bf16.mxu0 0
        %4032 = vmatpush2.bf16.msra.mxu0 0
        %4033 = vmatprep.subr.bf16.mxu0 0
        %4034 = vmatpush2.bf16.msra.mxu0 0
        %4035 = vmatprep.subr.bf16.mxu0 0
        %4036 = vmatpush2.bf16.msra.mxu0 0
        %4037 = vmatprep.subr.bf16.mxu0 0
        %4038 = vmatpush2.bf16.msra.mxu0 0
        %4039 = vmatprep.subr.bf16.mxu0 0
        %4040 = vmatpush2.bf16.msra.mxu0 0
        %4041 = vmatprep.subr.bf16.mxu0 0
        %4042 = vmatpush2.bf16.msra.mxu0 0
        %4043 = vmatprep.subr.bf16.mxu0 0
        %4044 = vmatpush2.bf16.msra.mxu0 0
        %4045 = vmatprep.subr.bf16.mxu0 0
        %4046 = vmatpush2.bf16.msra.mxu0 0
        %4047 = vmatprep.mubr.bf16.mxu0 0
        %4048 = vmatmul.mubr.bf16.gmra.mxu0 %v4013
        %v4049 = vpop.f32.mrf.mxu0
        %v4050 = vadd.f32 0.0, %v4049
        %v4051 = vpop.f32.mrf.mxu0
        %v4052 = vpop.f32.mrf.mxu0
        %v4053 = vpop.f32.mrf.mxu0
        %4054 = vdwg.mxu0
        %v4063 = vunpack.c.l.b16 %v741
        %v4064 = vunpack.c.l.b16 %v742
        %v4065 = vunpack.c.l.b16 %v743
        %v4066 = vunpack.c.l.b16 %v744
        %v4067 = vunpack.c.l.b16 %v745
        %v4068 = vunpack.c.l.b16 %v746
        %v4069 = vunpack.c.l.b16 %v747
        %v4070 = vunpack.c.l.b16 %v748
        %v4071 = vpack.c.b16 %v4064, %v4063
        %v4072 = vpack.c.b16 %v4066, %v4065
        %v4073 = vpack.c.b16 %v4068, %v4067
        %v4074 = vpack.c.b16 %v4070, %v4069
        %v4080 = vsel %vm2723, %v3651, 0
        %4082 = vmatprep.subr.bf16.mxu0 0
        %4083 = vmatpush1.bf16.msra.mxu0 0
        %4084 = vmatprep.subr.bf16.mxu0 0
        %4085 = vmatpush1.bf16.msra.mxu0 0
        %4086 = vmatprep.subr.bf16.mxu0 0
        %4087 = vmatpush1.bf16.msra.mxu0 0
        %4088 = vmatprep.subr.bf16.mxu0 0
        %4089 = vmatpush1.bf16.msra.mxu0 0
        %4090 = vmatprep.subr.bf16.mxu0 0
        %4091 = vmatpush1.bf16.msra.mxu0 %v4074
        %4092 = vmatprep.subr.bf16.mxu0 0
        %4093 = vmatpush1.bf16.msra.mxu0 %v4073
        %4094 = vmatprep.subr.bf16.mxu0 0
        %4095 = vmatpush1.bf16.msra.mxu0 %v4072
        %4096 = vmatprep.subr.bf16.mxu0 0
        %4097 = vmatpush1.bf16.msra.mxu0 %v4071
        %4098 = vmatprep.subr.bf16.mxu0 0
        %4099 = vmatpush2.bf16.msra.mxu0 0
        %4100 = vmatprep.subr.bf16.mxu0 0
        %4101 = vmatpush2.bf16.msra.mxu0 0
        %4102 = vmatprep.subr.bf16.mxu0 0
        %4103 = vmatpush2.bf16.msra.mxu0 0
        %4104 = vmatprep.subr.bf16.mxu0 0
        %4105 = vmatpush2.bf16.msra.mxu0 0
        %4106 = vmatprep.subr.bf16.mxu0 0
        %4107 = vmatpush2.bf16.msra.mxu0 0
        %4108 = vmatprep.subr.bf16.mxu0 0
        %4109 = vmatpush2.bf16.msra.mxu0 0
        %4110 = vmatprep.subr.bf16.mxu0 0
        %4111 = vmatpush2.bf16.msra.mxu0 0
        %4112 = vmatprep.subr.bf16.mxu0 0
        %4113 = vmatpush2.bf16.msra.mxu0 0
        %4114 = vmatprep.mubr.bf16.mxu0 0
        %4115 = vmatmul.mubr.bf16.gmra.mxu0 %v4080
        %v4116 = vpop.f32.mrf.mxu0
        %v4117 = vadd.f32 0.0, %v4116
        %v4118 = vpop.f32.mrf.mxu0
        %v4119 = vpop.f32.mrf.mxu0
        %v4120 = vpop.f32.mrf.mxu0
        %4121 = vdwg.mxu0
        %v4130 = vunpack.c.l.b16 %v749
        %v4131 = vunpack.c.l.b16 %v750
        %v4132 = vunpack.c.l.b16 %v751
        %v4133 = vunpack.c.l.b16 %v752
        %v4134 = vunpack.c.l.b16 %v753
        %v4135 = vunpack.c.l.b16 %v754
        %v4136 = vunpack.c.l.b16 %v755
        %v4137 = vunpack.c.l.b16 %v756
        %v4138 = vpack.c.b16 %v4131, %v4130
        %v4139 = vpack.c.b16 %v4133, %v4132
        %v4140 = vpack.c.b16 %v4135, %v4134
        %v4141 = vpack.c.b16 %v4137, %v4136
        %v4147 = vsel %vm2723, %v3652, 0
        %4149 = vmatprep.subr.bf16.mxu0 0
        %4150 = vmatpush1.bf16.msra.mxu0 0
        %4151 = vmatprep.subr.bf16.mxu0 0
        %4152 = vmatpush1.bf16.msra.mxu0 0
        %4153 = vmatprep.subr.bf16.mxu0 0
        %4154 = vmatpush1.bf16.msra.mxu0 0
        %4155 = vmatprep.subr.bf16.mxu0 0
        %4156 = vmatpush1.bf16.msra.mxu0 0
        %4157 = vmatprep.subr.bf16.mxu0 0
        %4158 = vmatpush1.bf16.msra.mxu0 %v4141
        %4159 = vmatprep.subr.bf16.mxu0 0
        %4160 = vmatpush1.bf16.msra.mxu0 %v4140
        %4161 = vmatprep.subr.bf16.mxu0 0
        %4162 = vmatpush1.bf16.msra.mxu0 %v4139
        %4163 = vmatprep.subr.bf16.mxu0 0
        %4164 = vmatpush1.bf16.msra.mxu0 %v4138
        %4165 = vmatprep.subr.bf16.mxu0 0
        %4166 = vmatpush2.bf16.msra.mxu0 0
        %4167 = vmatprep.subr.bf16.mxu0 0
        %4168 = vmatpush2.bf16.msra.mxu0 0
        %4169 = vmatprep.subr.bf16.mxu0 0
        %4170 = vmatpush2.bf16.msra.mxu0 0
        %4171 = vmatprep.subr.bf16.mxu0 0
        %4172 = vmatpush2.bf16.msra.mxu0 0
        %4173 = vmatprep.subr.bf16.mxu0 0
        %4174 = vmatpush2.bf16.msra.mxu0 0
        %4175 = vmatprep.subr.bf16.mxu0 0
        %4176 = vmatpush2.bf16.msra.mxu0 0
        %4177 = vmatprep.subr.bf16.mxu0 0
        %4178 = vmatpush2.bf16.msra.mxu0 0
        %4179 = vmatprep.subr.bf16.mxu0 0
        %4180 = vmatpush2.bf16.msra.mxu0 0
        %4181 = vmatprep.mubr.bf16.mxu0 0
        %4182 = vmatmul.mubr.bf16.gmra.mxu0 %v4147
        %v4183 = vpop.f32.mrf.mxu0
        %v4184 = vadd.f32 0.0, %v4183
        %v4185 = vpop.f32.mrf.mxu0
        %v4186 = vpop.f32.mrf.mxu0
        %v4187 = vpop.f32.mrf.mxu0
        %4188 = vdwg.mxu0
        %v4189 = vsel %vm951, %v3715, 0.0
        %v4190 = vsel %vm951, %v3782, 0.0
        %v4191 = vadd.f32 %v4189, %v4190
        %v4192 = vsel %vm951, %v3849, 0.0
        %v4193 = vadd.f32 %v4191, %v4192
        %v4194 = vsel %vm951, %v3916, 0.0
        %v4195 = vadd.f32 %v4193, %v4194
        %v4196 = vsel %vm951, %v3983, 0.0
        %v4197 = vadd.f32 %v4195, %v4196
        %v4198 = vsel %vm951, %v4050, 0.0
        %v4199 = vadd.f32 %v4197, %v4198
        %v4200 = vsel %vm951, %v4117, 0.0
        %v4201 = vadd.f32 %v4199, %v4200
        %v4202 = vsel %vm951, %v4184, 0.0
        %v4203 = vadd.f32 %v4201, %v4202
        %v4204 = vadd.f32 %v4203, %v499
        %v4205 = vsel %vm951, %v4204, 0.0
        %4206 = vadd.xlane.f32.xlu0 %v4205
        %v4207 = vpop.xlane.xlu0 %4206
        %v4208 = vrcp.pop 32.0
        %v4209 = vmul.f32 %v4207, %v4208
        %v4210 = vmul.f32 %v4204, %v4204
        %v4211 = vsel %vm951, %v4210, 0.0
        %4212 = vadd.xlane.f32.xlu0 %v4211
        %v4213 = vpop.xlane.xlu0 %4212
        %v4214 = vmul.f32 %v4213, %v4208
        %v4215 = vmul.f32 %v4209, %v4209
        %v4216 = vsub.f32 %v4214, %v4215
        %v4217 = vsub.f32 %v4204, %v4209
        %v4218 = vadd.f32 %v4216, 1e-05
        %v4219 = vrsqrt.pop %v4218
        %v4220 = vmul.f32 %v4217, %v4219
        %4221 = vst.msk [vmem:[%s482] sm:$0xff] %vm3076, %v3157
        %4222 = vst.msk [vmem:[%s482 + $0x8] sm:$0xff] %vm3076, %v3158
        %4223 = vst.msk [vmem:[%s482 + $0x10] sm:$0xff] %vm3076, %v3159
        %4224 = vst.msk [vmem:[%s482 + $0x18] sm:$0xff] %vm3076, %v3160
        %4225 = vst.msk [vmem:[%s482 + $0x20] sm:$0xff] %vm3076, %v3161
        %4226 = vst.msk [vmem:[%s482 + $0x28] sm:$0xff] %vm3076, %v3162
        %4227 = vst.msk [vmem:[%s482 + $0x30] sm:$0xff] %vm3076, %v3163
        %4228 = vst.msk [vmem:[%s482 + $0x38] sm:$0xff] %vm3076, %v3164
        %v4229 = vld [vmem:[%s6] sm:$0xf]
        %v4230 = vld [vmem:[%s6 + $0x4] sm:$0xf]
        %v4231 = vld [vmem:[%s6 + $0x8] sm:$0xf]
        %v4232 = vld [vmem:[%s6 + $0xc] sm:$0xf]
        %v4233 = vld [vmem:[%s6 + $0x10] sm:$0xf]
        %v4234 = vld [vmem:[%s6 + $0x14] sm:$0xf]
        %v4235 = vld [vmem:[%s6 + $0x18] sm:$0xf]
        %v4236 = vld [vmem:[%s6 + $0x1c] sm:$0xf]
        %v4237 = vld [vmem:[%s6 + $0x20] sm:$0xf]
        %v4238 = vld [vmem:[%s6 + $0x24] sm:$0xf]
        %v4239 = vld [vmem:[%s6 + $0x28] sm:$0xf]
        %v4240 = vld [vmem:[%s6 + $0x2c] sm:$0xf]
        %v4241 = vld [vmem:[%s6 + $0x30] sm:$0xf]
        %v4242 = vld [vmem:[%s6 + $0x34] sm:$0xf]
        %v4243 = vld [vmem:[%s6 + $0x38] sm:$0xf]
        %v4244 = vld [vmem:[%s6 + $0x3c] sm:$0xf]
        %v4245 = vld [vmem:[%s6 + $0x40] sm:$0xf]
        %v4246 = vld [vmem:[%s6 + $0x44] sm:$0xf]
        %v4247 = vld [vmem:[%s6 + $0x48] sm:$0xf]
        %v4248 = vld [vmem:[%s6 + $0x4c] sm:$0xf]
        %v4249 = vld [vmem:[%s6 + $0x50] sm:$0xf]
        %v4250 = vld [vmem:[%s6 + $0x54] sm:$0xf]
        %v4251 = vld [vmem:[%s6 + $0x58] sm:$0xf]
        %v4252 = vld [vmem:[%s6 + $0x5c] sm:$0xf]
        %v4253 = vld [vmem:[%s6 + $0x60] sm:$0xf]
        %v4254 = vld [vmem:[%s6 + $0x64] sm:$0xf]
        %v4255 = vld [vmem:[%s6 + $0x68] sm:$0xf]
        %v4256 = vld [vmem:[%s6 + $0x6c] sm:$0xf]
        %v4257 = vld [vmem:[%s6 + $0x70] sm:$0xf]
        %v4258 = vld [vmem:[%s6 + $0x74] sm:$0xf]
        %v4259 = vld [vmem:[%s6 + $0x78] sm:$0xf]
        %v4260 = vld [vmem:[%s6 + $0x7c] sm:$0xf]
        %v4261 = vld [vmem:[%s6 + $0x80] sm:$0xf]
        %v4262 = vld [vmem:[%s6 + $0x84] sm:$0xf]
        %v4263 = vld [vmem:[%s6 + $0x88] sm:$0xf]
        %v4264 = vld [vmem:[%s6 + $0x8c] sm:$0xf]
        %v4265 = vld [vmem:[%s6 + $0x90] sm:$0xf]
        %v4266 = vld [vmem:[%s6 + $0x94] sm:$0xf]
        %v4267 = vld [vmem:[%s6 + $0x98] sm:$0xf]
        %v4268 = vld [vmem:[%s6 + $0x9c] sm:$0xf]
        %v4269 = vld [vmem:[%s6 + $0xa0] sm:$0xf]
        %v4270 = vld [vmem:[%s6 + $0xa4] sm:$0xf]
        %v4271 = vld [vmem:[%s6 + $0xa8] sm:$0xf]
        %v4272 = vld [vmem:[%s6 + $0xac] sm:$0xf]
        %v4273 = vld [vmem:[%s6 + $0xb0] sm:$0xf]
        %v4274 = vld [vmem:[%s6 + $0xb4] sm:$0xf]
        %v4275 = vld [vmem:[%s6 + $0xb8] sm:$0xf]
        %v4276 = vld [vmem:[%s6 + $0xbc] sm:$0xf]
        %v4277 = vld [vmem:[%s6 + $0xc0] sm:$0xf]
        %v4278 = vld [vmem:[%s6 + $0xc4] sm:$0xf]
        %v4279 = vld [vmem:[%s6 + $0xc8] sm:$0xf]
        %v4280 = vld [vmem:[%s6 + $0xcc] sm:$0xf]
        %v4281 = vld [vmem:[%s6 + $0xd0] sm:$0xf]
        %v4282 = vld [vmem:[%s6 + $0xd4] sm:$0xf]
        %v4283 = vld [vmem:[%s6 + $0xd8] sm:$0xf]
        %v4284 = vld [vmem:[%s6 + $0xdc] sm:$0xf]
        %v4285 = vld [vmem:[%s6 + $0xe0] sm:$0xf]
        %v4286 = vld [vmem:[%s6 + $0xe4] sm:$0xf]
        %v4287 = vld [vmem:[%s6 + $0xe8] sm:$0xf]
        %v4288 = vld [vmem:[%s6 + $0xec] sm:$0xf]
        %v4289 = vld [vmem:[%s6 + $0xf0] sm:$0xf]
        %v4290 = vld [vmem:[%s6 + $0xf4] sm:$0xf]
        %v4291 = vld [vmem:[%s6 + $0xf8] sm:$0xf]
        %v4292 = vld [vmem:[%s6 + $0xfc] sm:$0xf]
        %v4293 = vld [vmem:[%s7] sm:$0xf]
        %v4294 = vld [vmem:[%s7 + $0x4] sm:$0xf]
        %v4295 = vld [vmem:[%s7 + $0x8] sm:$0xf]
        %v4296 = vld [vmem:[%s7 + $0xc] sm:$0xf]
        %v4297 = vld [vmem:[%s7 + $0x10] sm:$0xf]
        %v4298 = vld [vmem:[%s7 + $0x14] sm:$0xf]
        %v4299 = vld [vmem:[%s7 + $0x18] sm:$0xf]
        %v4300 = vld [vmem:[%s7 + $0x1c] sm:$0xf]
        %v4301 = vld [vmem:[%s7 + $0x20] sm:$0xf]
        %v4302 = vld [vmem:[%s7 + $0x24] sm:$0xf]
        %v4303 = vld [vmem:[%s7 + $0x28] sm:$0xf]
        %v4304 = vld [vmem:[%s7 + $0x2c] sm:$0xf]
        %v4305 = vld [vmem:[%s7 + $0x30] sm:$0xf]
        %v4306 = vld [vmem:[%s7 + $0x34] sm:$0xf]
        %v4307 = vld [vmem:[%s7 + $0x38] sm:$0xf]
        %v4308 = vld [vmem:[%s7 + $0x3c] sm:$0xf]
        %v4309 = vld [vmem:[%s7 + $0x40] sm:$0xf]
        %v4310 = vld [vmem:[%s7 + $0x44] sm:$0xf]
        %v4311 = vld [vmem:[%s7 + $0x48] sm:$0xf]
        %v4312 = vld [vmem:[%s7 + $0x4c] sm:$0xf]
        %v4313 = vld [vmem:[%s7 + $0x50] sm:$0xf]
        %v4314 = vld [vmem:[%s7 + $0x54] sm:$0xf]
        %v4315 = vld [vmem:[%s7 + $0x58] sm:$0xf]
        %v4316 = vld [vmem:[%s7 + $0x5c] sm:$0xf]
        %v4317 = vld [vmem:[%s7 + $0x60] sm:$0xf]
        %v4318 = vld [vmem:[%s7 + $0x64] sm:$0xf]
        %v4319 = vld [vmem:[%s7 + $0x68] sm:$0xf]
        %v4320 = vld [vmem:[%s7 + $0x6c] sm:$0xf]
        %v4321 = vld [vmem:[%s7 + $0x70] sm:$0xf]
        %v4322 = vld [vmem:[%s7 + $0x74] sm:$0xf]
        %v4323 = vld [vmem:[%s7 + $0x78] sm:$0xf]
        %v4324 = vld [vmem:[%s7 + $0x7c] sm:$0xf]
        %v4325 = vld [vmem:[%s7 + $0x80] sm:$0xf]
        %v4326 = vld [vmem:[%s7 + $0x84] sm:$0xf]
        %v4327 = vld [vmem:[%s7 + $0x88] sm:$0xf]
        %v4328 = vld [vmem:[%s7 + $0x8c] sm:$0xf]
        %v4329 = vld [vmem:[%s7 + $0x90] sm:$0xf]
        %v4330 = vld [vmem:[%s7 + $0x94] sm:$0xf]
        %v4331 = vld [vmem:[%s7 + $0x98] sm:$0xf]
        %v4332 = vld [vmem:[%s7 + $0x9c] sm:$0xf]
        %v4333 = vld [vmem:[%s7 + $0xa0] sm:$0xf]
        %v4334 = vld [vmem:[%s7 + $0xa4] sm:$0xf]
        %v4335 = vld [vmem:[%s7 + $0xa8] sm:$0xf]
        %v4336 = vld [vmem:[%s7 + $0xac] sm:$0xf]
        %v4337 = vld [vmem:[%s7 + $0xb0] sm:$0xf]
        %v4338 = vld [vmem:[%s7 + $0xb4] sm:$0xf]
        %v4339 = vld [vmem:[%s7 + $0xb8] sm:$0xf]
        %v4340 = vld [vmem:[%s7 + $0xbc] sm:$0xf]
        %v4341 = vld [vmem:[%s7 + $0xc0] sm:$0xf]
        %v4342 = vld [vmem:[%s7 + $0xc4] sm:$0xf]
        %v4343 = vld [vmem:[%s7 + $0xc8] sm:$0xf]
        %v4344 = vld [vmem:[%s7 + $0xcc] sm:$0xf]
        %v4345 = vld [vmem:[%s7 + $0xd0] sm:$0xf]
        %v4346 = vld [vmem:[%s7 + $0xd4] sm:$0xf]
        %v4347 = vld [vmem:[%s7 + $0xd8] sm:$0xf]
        %v4348 = vld [vmem:[%s7 + $0xdc] sm:$0xf]
        %v4349 = vld [vmem:[%s7 + $0xe0] sm:$0xf]
        %v4350 = vld [vmem:[%s7 + $0xe4] sm:$0xf]
        %v4351 = vld [vmem:[%s7 + $0xe8] sm:$0xf]
        %v4352 = vld [vmem:[%s7 + $0xec] sm:$0xf]
        %v4353 = vld [vmem:[%s7 + $0xf0] sm:$0xf]
        %v4354 = vld [vmem:[%s7 + $0xf4] sm:$0xf]
        %v4355 = vld [vmem:[%s7 + $0xf8] sm:$0xf]
        %v4356 = vld [vmem:[%s7 + $0xfc] sm:$0xf]
        %v4357 = vld [vmem:[%s8] sm:$0xf]
        %v4358 = vld [vmem:[%s8 + $0x4] sm:$0xf]
        %v4359 = vld [vmem:[%s8 + $0x8] sm:$0xf]
        %v4360 = vld [vmem:[%s8 + $0xc] sm:$0xf]
        %v4361 = vld [vmem:[%s8 + $0x10] sm:$0xf]
        %v4362 = vld [vmem:[%s8 + $0x14] sm:$0xf]
        %v4363 = vld [vmem:[%s8 + $0x18] sm:$0xf]
        %v4364 = vld [vmem:[%s8 + $0x1c] sm:$0xf]
        %v4365 = vld [vmem:[%s8 + $0x20] sm:$0xf]
        %v4366 = vld [vmem:[%s8 + $0x24] sm:$0xf]
        %v4367 = vld [vmem:[%s8 + $0x28] sm:$0xf]
        %v4368 = vld [vmem:[%s8 + $0x2c] sm:$0xf]
        %v4369 = vld [vmem:[%s8 + $0x30] sm:$0xf]
        %v4370 = vld [vmem:[%s8 + $0x34] sm:$0xf]
        %v4371 = vld [vmem:[%s8 + $0x38] sm:$0xf]
        %v4372 = vld [vmem:[%s8 + $0x3c] sm:$0xf]
        %v4373 = vld [vmem:[%s8 + $0x40] sm:$0xf]
        %v4374 = vld [vmem:[%s8 + $0x44] sm:$0xf]
        %v4375 = vld [vmem:[%s8 + $0x48] sm:$0xf]
        %v4376 = vld [vmem:[%s8 + $0x4c] sm:$0xf]
        %v4377 = vld [vmem:[%s8 + $0x50] sm:$0xf]
        %v4378 = vld [vmem:[%s8 + $0x54] sm:$0xf]
        %v4379 = vld [vmem:[%s8 + $0x58] sm:$0xf]
        %v4380 = vld [vmem:[%s8 + $0x5c] sm:$0xf]
        %v4381 = vld [vmem:[%s8 + $0x60] sm:$0xf]
        %v4382 = vld [vmem:[%s8 + $0x64] sm:$0xf]
        %v4383 = vld [vmem:[%s8 + $0x68] sm:$0xf]
        %v4384 = vld [vmem:[%s8 + $0x6c] sm:$0xf]
        %v4385 = vld [vmem:[%s8 + $0x70] sm:$0xf]
        %v4386 = vld [vmem:[%s8 + $0x74] sm:$0xf]
        %v4387 = vld [vmem:[%s8 + $0x78] sm:$0xf]
        %v4388 = vld [vmem:[%s8 + $0x7c] sm:$0xf]
        %v4389 = vld [vmem:[%s8 + $0x80] sm:$0xf]
        %v4390 = vld [vmem:[%s8 + $0x84] sm:$0xf]
        %v4391 = vld [vmem:[%s8 + $0x88] sm:$0xf]
        %v4392 = vld [vmem:[%s8 + $0x8c] sm:$0xf]
        %v4393 = vld [vmem:[%s8 + $0x90] sm:$0xf]
        %v4394 = vld [vmem:[%s8 + $0x94] sm:$0xf]
        %v4395 = vld [vmem:[%s8 + $0x98] sm:$0xf]
        %v4396 = vld [vmem:[%s8 + $0x9c] sm:$0xf]
        %v4397 = vld [vmem:[%s8 + $0xa0] sm:$0xf]
        %v4398 = vld [vmem:[%s8 + $0xa4] sm:$0xf]
        %v4399 = vld [vmem:[%s8 + $0xa8] sm:$0xf]
        %v4400 = vld [vmem:[%s8 + $0xac] sm:$0xf]
        %v4401 = vld [vmem:[%s8 + $0xb0] sm:$0xf]
        %v4402 = vld [vmem:[%s8 + $0xb4] sm:$0xf]
        %v4403 = vld [vmem:[%s8 + $0xb8] sm:$0xf]
        %v4404 = vld [vmem:[%s8 + $0xbc] sm:$0xf]
        %v4405 = vld [vmem:[%s8 + $0xc0] sm:$0xf]
        %v4406 = vld [vmem:[%s8 + $0xc4] sm:$0xf]
        %v4407 = vld [vmem:[%s8 + $0xc8] sm:$0xf]
        %v4408 = vld [vmem:[%s8 + $0xcc] sm:$0xf]
        %v4409 = vld [vmem:[%s8 + $0xd0] sm:$0xf]
        %v4410 = vld [vmem:[%s8 + $0xd4] sm:$0xf]
        %v4411 = vld [vmem:[%s8 + $0xd8] sm:$0xf]
        %v4412 = vld [vmem:[%s8 + $0xdc] sm:$0xf]
        %v4413 = vld [vmem:[%s8 + $0xe0] sm:$0xf]
        %v4414 = vld [vmem:[%s8 + $0xe4] sm:$0xf]
        %v4415 = vld [vmem:[%s8 + $0xe8] sm:$0xf]
        %v4416 = vld [vmem:[%s8 + $0xec] sm:$0xf]
        %v4417 = vld [vmem:[%s8 + $0xf0] sm:$0xf]
        %v4418 = vld [vmem:[%s8 + $0xf4] sm:$0xf]
        %v4419 = vld [vmem:[%s8 + $0xf8] sm:$0xf]
        %v4420 = vld [vmem:[%s8 + $0xfc] sm:$0xf]
        %v4421 = vld [vmem:[%s9] sm:$0xf]
        %v4422 = vld [vmem:[%s9 + $0x4] sm:$0xf]
        %v4423 = vld [vmem:[%s9 + $0x8] sm:$0xf]
        %v4424 = vld [vmem:[%s9 + $0xc] sm:$0xf]
        %v4425 = vld [vmem:[%s9 + $0x10] sm:$0xf]
        %v4426 = vld [vmem:[%s9 + $0x14] sm:$0xf]
        %v4427 = vld [vmem:[%s9 + $0x18] sm:$0xf]
        %v4428 = vld [vmem:[%s9 + $0x1c] sm:$0xf]
        %v4429 = vld [vmem:[%s9 + $0x20] sm:$0xf]
        %v4430 = vld [vmem:[%s9 + $0x24] sm:$0xf]
        %v4431 = vld [vmem:[%s9 + $0x28] sm:$0xf]
        %v4432 = vld [vmem:[%s9 + $0x2c] sm:$0xf]
        %v4433 = vld [vmem:[%s9 + $0x30] sm:$0xf]
        %v4434 = vld [vmem:[%s9 + $0x34] sm:$0xf]
        %v4435 = vld [vmem:[%s9 + $0x38] sm:$0xf]
        %v4436 = vld [vmem:[%s9 + $0x3c] sm:$0xf]
        %v4437 = vld [vmem:[%s9 + $0x40] sm:$0xf]
        %v4438 = vld [vmem:[%s9 + $0x44] sm:$0xf]
        %v4439 = vld [vmem:[%s9 + $0x48] sm:$0xf]
        %v4440 = vld [vmem:[%s9 + $0x4c] sm:$0xf]
        %v4441 = vld [vmem:[%s9 + $0x50] sm:$0xf]
        %v4442 = vld [vmem:[%s9 + $0x54] sm:$0xf]
        %v4443 = vld [vmem:[%s9 + $0x58] sm:$0xf]
        %v4444 = vld [vmem:[%s9 + $0x5c] sm:$0xf]
        %v4445 = vld [vmem:[%s9 + $0x60] sm:$0xf]
        %v4446 = vld [vmem:[%s9 + $0x64] sm:$0xf]
        %v4447 = vld [vmem:[%s9 + $0x68] sm:$0xf]
        %v4448 = vld [vmem:[%s9 + $0x6c] sm:$0xf]
        %v4449 = vld [vmem:[%s9 + $0x70] sm:$0xf]
        %v4450 = vld [vmem:[%s9 + $0x74] sm:$0xf]
        %v4451 = vld [vmem:[%s9 + $0x78] sm:$0xf]
        %v4452 = vld [vmem:[%s9 + $0x7c] sm:$0xf]
        %v4453 = vld [vmem:[%s9 + $0x80] sm:$0xf]
        %v4454 = vld [vmem:[%s9 + $0x84] sm:$0xf]
        %v4455 = vld [vmem:[%s9 + $0x88] sm:$0xf]
        %v4456 = vld [vmem:[%s9 + $0x8c] sm:$0xf]
        %v4457 = vld [vmem:[%s9 + $0x90] sm:$0xf]
        %v4458 = vld [vmem:[%s9 + $0x94] sm:$0xf]
        %v4459 = vld [vmem:[%s9 + $0x98] sm:$0xf]
        %v4460 = vld [vmem:[%s9 + $0x9c] sm:$0xf]
        %v4461 = vld [vmem:[%s9 + $0xa0] sm:$0xf]
        %v4462 = vld [vmem:[%s9 + $0xa4] sm:$0xf]
        %v4463 = vld [vmem:[%s9 + $0xa8] sm:$0xf]
        %v4464 = vld [vmem:[%s9 + $0xac] sm:$0xf]
        %v4465 = vld [vmem:[%s9 + $0xb0] sm:$0xf]
        %v4466 = vld [vmem:[%s9 + $0xb4] sm:$0xf]
        %v4467 = vld [vmem:[%s9 + $0xb8] sm:$0xf]
        %v4468 = vld [vmem:[%s9 + $0xbc] sm:$0xf]
        %v4469 = vld [vmem:[%s9 + $0xc0] sm:$0xf]
        %v4470 = vld [vmem:[%s9 + $0xc4] sm:$0xf]
        %v4471 = vld [vmem:[%s9 + $0xc8] sm:$0xf]
        %v4472 = vld [vmem:[%s9 + $0xcc] sm:$0xf]
        %v4473 = vld [vmem:[%s9 + $0xd0] sm:$0xf]
        %v4474 = vld [vmem:[%s9 + $0xd4] sm:$0xf]
        %v4475 = vld [vmem:[%s9 + $0xd8] sm:$0xf]
        %v4476 = vld [vmem:[%s9 + $0xdc] sm:$0xf]
        %v4477 = vld [vmem:[%s9 + $0xe0] sm:$0xf]
        %v4478 = vld [vmem:[%s9 + $0xe4] sm:$0xf]
        %v4479 = vld [vmem:[%s9 + $0xe8] sm:$0xf]
        %v4480 = vld [vmem:[%s9 + $0xec] sm:$0xf]
        %v4481 = vld [vmem:[%s9 + $0xf0] sm:$0xf]
        %v4482 = vld [vmem:[%s9 + $0xf4] sm:$0xf]
        %v4483 = vld [vmem:[%s9 + $0xf8] sm:$0xf]
        %v4484 = vld [vmem:[%s9 + $0xfc] sm:$0xf]
        %4485 = vxpose.xlu0.b32.start [1/16] %v4220, 128
        %4486 = vxpose.xlu0.b32.cont [2/16] 0.0, 128
        %4487 = vxpose.xlu0.b32.cont [3/16] 0.0, 128
        %4488 = vxpose.xlu0.b32.cont [4/16] 0.0, 128
        %4489 = vxpose.xlu0.b32.cont [5/16] 0.0, 128
        %4490 = vxpose.xlu0.b32.cont [6/16] 0.0, 128
        %4491 = vxpose.xlu0.b32.cont [7/16] 0.0, 128
        %4492 = vxpose.xlu0.b32.cont [8/16] 0.0, 128
        %4493 = vxpose.xlu0.b32.cont [9/16] 0.0, 128
        %4494 = vxpose.xlu0.b32.cont [10/16] 0.0, 128
        %4495 = vxpose.xlu0.b32.cont [11/16] 0.0, 128
        %4496 = vxpose.xlu0.b32.cont [12/16] 0.0, 128
        %4497 = vxpose.xlu0.b32.cont [13/16] 0.0, 128
        %4498 = vxpose.xlu0.b32.cont [14/16] 0.0, 128
        %4499 = vxpose.xlu0.b32.cont [15/16] 0.0, 128
        %4500 = vxpose.xlu0.b32.end [16/16] 0.0, 128
        %v4501 = vpop.trf.xlu0
        %v4502 = vpop.trf.xlu0
        %v4503 = vpop.trf.xlu0
        %v4504 = vpop.trf.xlu0
        %v4505 = vpop.trf.xlu0
        %v4506 = vpop.trf.xlu0
        %v4507 = vpop.trf.xlu0
        %v4508 = vpop.trf.xlu0
        %v4509 = vpop.trf.xlu0
        %v4510 = vpop.trf.xlu0
        %v4511 = vpop.trf.xlu0
        %v4512 = vpop.trf.xlu0
        %v4513 = vpop.trf.xlu0
        %v4514 = vpop.trf.xlu0
        %v4515 = vpop.trf.xlu0
        %v4516 = vpop.trf.xlu0
        %v4517 = vpack.c.bf16 %v4502, %v4501
        %v4518 = vpack.c.bf16 %v4504, %v4503
        %4519 = vxpose.xlu0.b32.start [1/16] %v500, 128
        %4520 = vxpose.xlu0.b32.cont [2/16] 0.0, 128
        %4521 = vxpose.xlu0.b32.cont [3/16] 0.0, 128
        %4522 = vxpose.xlu0.b32.cont [4/16] 0.0, 128
        %4523 = vxpose.xlu0.b32.cont [5/16] 0.0, 128
        %4524 = vxpose.xlu0.b32.cont [6/16] 0.0, 128
        %4525 = vxpose.xlu0.b32.cont [7/16] 0.0, 128
        %4526 = vxpose.xlu0.b32.cont [8/16] 0.0, 128
        %4527 = vxpose.xlu0.b32.cont [9/16] 0.0, 128
        %4528 = vxpose.xlu0.b32.cont [10/16] 0.0, 128
        %4529 = vxpose.xlu0.b32.cont [11/16] 0.0, 128
        %4530 = vxpose.xlu0.b32.cont [12/16] 0.0, 128
        %4531 = vxpose.xlu0.b32.cont [13/16] 0.0, 128
        %4532 = vxpose.xlu0.b32.cont [14/16] 0.0, 128
        %4533 = vxpose.xlu0.b32.cont [15/16] 0.0, 128
        %4534 = vxpose.xlu0.b32.end [16/16] 0.0, 128
        %v4535 = vpop.trf.xlu0
        %v4536 = vpop.trf.xlu0
        %v4537 = vpop.trf.xlu0
        %v4538 = vpop.trf.xlu0
        %v4539 = vpop.trf.xlu0
        %v4540 = vpop.trf.xlu0
        %v4541 = vpop.trf.xlu0
        %v4542 = vpop.trf.xlu0
        %v4543 = vpop.trf.xlu0
        %v4544 = vpop.trf.xlu0
        %v4545 = vpop.trf.xlu0
        %v4546 = vpop.trf.xlu0
        %v4547 = vpop.trf.xlu0
        %v4548 = vpop.trf.xlu0
        %v4549 = vpop.trf.xlu0
        %v4550 = vpop.trf.xlu0
        %v4551 = vpack.c.bf16 %v4536, %v4535
        %v4552 = vpack.c.bf16 %v4538, %v4537
        %v4617 = vunpack.c.l.b16 %v4229
        %v4618 = vunpack.c.l.b16 %v4230
        %v4619 = vunpack.c.l.b16 %v4231
        %v4620 = vunpack.c.l.b16 %v4232
        %v4621 = vunpack.c.l.b16 %v4233
        %v4622 = vunpack.c.l.b16 %v4234
        %v4623 = vunpack.c.l.b16 %v4235
        %v4624 = vunpack.c.l.b16 %v4236
        %v4625 = vunpack.c.l.b16 %v4237
        %v4626 = vunpack.c.l.b16 %v4238
        %v4627 = vunpack.c.l.b16 %v4239
        %v4628 = vunpack.c.l.b16 %v4240
        %v4629 = vunpack.c.l.b16 %v4241
        %v4630 = vunpack.c.l.b16 %v4242
        %v4631 = vunpack.c.l.b16 %v4243
        %v4632 = vunpack.c.l.b16 %v4244
        %v4633 = vunpack.c.l.b16 %v4245
        %v4634 = vunpack.c.l.b16 %v4246
        %v4635 = vunpack.c.l.b16 %v4247
        %v4636 = vunpack.c.l.b16 %v4248
        %v4637 = vunpack.c.l.b16 %v4249
        %v4638 = vunpack.c.l.b16 %v4250
        %v4639 = vunpack.c.l.b16 %v4251
        %v4640 = vunpack.c.l.b16 %v4252
        %v4641 = vunpack.c.l.b16 %v4253
        %v4642 = vunpack.c.l.b16 %v4254
        %v4643 = vunpack.c.l.b16 %v4255
        %v4644 = vunpack.c.l.b16 %v4256
        %v4645 = vunpack.c.l.b16 %v4257
        %v4646 = vunpack.c.l.b16 %v4258
        %v4647 = vunpack.c.l.b16 %v4259
        %v4648 = vunpack.c.l.b16 %v4260
        %v4649 = vunpack.c.l.b16 %v4261
        %v4650 = vunpack.c.l.b16 %v4262
        %v4651 = vunpack.c.l.b16 %v4263
        %v4652 = vunpack.c.l.b16 %v4264
        %v4653 = vunpack.c.l.b16 %v4265
        %v4654 = vunpack.c.l.b16 %v4266
        %v4655 = vunpack.c.l.b16 %v4267
        %v4656 = vunpack.c.l.b16 %v4268
        %v4657 = vunpack.c.l.b16 %v4269
        %v4658 = vunpack.c.l.b16 %v4270
        %v4659 = vunpack.c.l.b16 %v4271
        %v4660 = vunpack.c.l.b16 %v4272
        %v4661 = vunpack.c.l.b16 %v4273
        %v4662 = vunpack.c.l.b16 %v4274
        %v4663 = vunpack.c.l.b16 %v4275
        %v4664 = vunpack.c.l.b16 %v4276
        %v4665 = vunpack.c.l.b16 %v4277
        %v4666 = vunpack.c.l.b16 %v4278
        %v4667 = vunpack.c.l.b16 %v4279
        %v4668 = vunpack.c.l.b16 %v4280
        %v4669 = vunpack.c.l.b16 %v4281
        %v4670 = vunpack.c.l.b16 %v4282
        %v4671 = vunpack.c.l.b16 %v4283
        %v4672 = vunpack.c.l.b16 %v4284
        %v4673 = vunpack.c.l.b16 %v4285
        %v4674 = vunpack.c.l.b16 %v4286
        %v4675 = vunpack.c.l.b16 %v4287
        %v4676 = vunpack.c.l.b16 %v4288
        %v4677 = vunpack.c.l.b16 %v4289
        %v4678 = vunpack.c.l.b16 %v4290
        %v4679 = vunpack.c.l.b16 %v4291
        %v4680 = vunpack.c.l.b16 %v4292
        %v4681 = vpack.c.b16 %v4618, %v4617
        %v4682 = vpack.c.b16 %v4620, %v4619
        %v4683 = vpack.c.b16 %v4622, %v4621
        %v4684 = vpack.c.b16 %v4624, %v4623
        %v4685 = vpack.c.b16 %v4626, %v4625
        %v4686 = vpack.c.b16 %v4628, %v4627
        %v4687 = vpack.c.b16 %v4630, %v4629
        %v4688 = vpack.c.b16 %v4632, %v4631
        %v4689 = vpack.c.b16 %v4634, %v4633
        %v4690 = vpack.c.b16 %v4636, %v4635
        %v4691 = vpack.c.b16 %v4638, %v4637
        %v4692 = vpack.c.b16 %v4640, %v4639
        %v4693 = vpack.c.b16 %v4642, %v4641
        %v4694 = vpack.c.b16 %v4644, %v4643
        %v4695 = vpack.c.b16 %v4646, %v4645
        %v4696 = vpack.c.b16 %v4648, %v4647
        %v4697 = vpack.c.b16 %v4650, %v4649
        %v4698 = vpack.c.b16 %v4652, %v4651
        %v4699 = vpack.c.b16 %v4654, %v4653
        %v4700 = vpack.c.b16 %v4656, %v4655
        %v4701 = vpack.c.b16 %v4658, %v4657
        %v4702 = vpack.c.b16 %v4660, %v4659
        %v4703 = vpack.c.b16 %v4662, %v4661
        %v4704 = vpack.c.b16 %v4664, %v4663
        %v4705 = vpack.c.b16 %v4666, %v4665
        %v4706 = vpack.c.b16 %v4668, %v4667
        %v4707 = vpack.c.b16 %v4670, %v4669
        %v4708 = vpack.c.b16 %v4672, %v4671
        %v4709 = vpack.c.b16 %v4674, %v4673
        %v4710 = vpack.c.b16 %v4676, %v4675
        %v4711 = vpack.c.b16 %v4678, %v4677
        %v4712 = vpack.c.b16 %v4680, %v4679
        %v4714 = vsel %vm951, %v4681, 0
        %v4717 = vsel %vm951, %v4682, 0
        %v4720 = vsel %vm951, %v4683, 0
        %v4723 = vsel %vm951, %v4684, 0
        %v4726 = vsel %vm951, %v4685, 0
        %v4729 = vsel %vm951, %v4686, 0
        %v4732 = vsel %vm951, %v4687, 0
        %v4735 = vsel %vm951, %v4688, 0
        %v4738 = vsel %vm951, %v4689, 0
        %v4741 = vsel %vm951, %v4690, 0
        %v4744 = vsel %vm951, %v4691, 0
        %v4747 = vsel %vm951, %v4692, 0
        %v4750 = vsel %vm951, %v4693, 0
        %v4753 = vsel %vm951, %v4694, 0
        %v4756 = vsel %vm951, %v4695, 0
        %v4759 = vsel %vm951, %v4696, 0
        %v4762 = vsel %vm951, %v4697, 0
        %v4765 = vsel %vm951, %v4698, 0
        %v4768 = vsel %vm951, %v4699, 0
        %v4771 = vsel %vm951, %v4700, 0
        %v4774 = vsel %vm951, %v4701, 0
        %v4777 = vsel %vm951, %v4702, 0
        %v4780 = vsel %vm951, %v4703, 0
        %v4783 = vsel %vm951, %v4704, 0
        %v4786 = vsel %vm951, %v4705, 0
        %v4789 = vsel %vm951, %v4706, 0
        %v4792 = vsel %vm951, %v4707, 0
        %v4795 = vsel %vm951, %v4708, 0
        %v4798 = vsel %vm951, %v4709, 0
        %v4801 = vsel %vm951, %v4710, 0
        %v4804 = vsel %vm951, %v4711, 0
        %v4807 = vsel %vm951, %v4712, 0
        %4809 = vmatprep.subr.bf16.mxu0 0
        %4810 = vmatpush1.bf16.msra.mxu0 0
        %4811 = vmatprep.subr.bf16.mxu0 0
        %4812 = vmatpush1.bf16.msra.mxu0 0
        %4813 = vmatprep.subr.bf16.mxu0 0
        %4814 = vmatpush1.bf16.msra.mxu0 0
        %4815 = vmatprep.subr.bf16.mxu0 0
        %4816 = vmatpush1.bf16.msra.mxu0 0
        %4817 = vmatprep.subr.bf16.mxu0 0
        %4818 = vmatpush1.bf16.msra.mxu0 0
        %4819 = vmatprep.subr.bf16.mxu0 0
        %4820 = vmatpush1.bf16.msra.mxu0 0
        %4821 = vmatprep.subr.bf16.mxu0 0
        %4822 = vmatpush1.bf16.msra.mxu0 %v4518
        %4823 = vmatprep.subr.bf16.mxu0 0
        %4824 = vmatpush1.bf16.msra.mxu0 %v4517
        %4825 = vmatprep.subr.bf16.mxu0 0
        %4826 = vmatpush2.bf16.msra.mxu0 0
        %4827 = vmatprep.subr.bf16.mxu0 0
        %4828 = vmatpush2.bf16.msra.mxu0 0
        %4829 = vmatprep.subr.bf16.mxu0 0
        %4830 = vmatpush2.bf16.msra.mxu0 0
        %4831 = vmatprep.subr.bf16.mxu0 0
        %4832 = vmatpush2.bf16.msra.mxu0 0
        %4833 = vmatprep.subr.bf16.mxu0 0
        %4834 = vmatpush2.bf16.msra.mxu0 0
        %4835 = vmatprep.subr.bf16.mxu0 0
        %4836 = vmatpush2.bf16.msra.mxu0 0
        %4837 = vmatprep.subr.bf16.mxu0 0
        %4838 = vmatpush2.bf16.msra.mxu0 0
        %4839 = vmatprep.subr.bf16.mxu0 0
        %4840 = vmatpush2.bf16.msra.mxu0 0
        %4841 = vmatprep.mubr.bf16.mxu0 0
        %4842 = vmatmul.mubr.bf16.gmra.mxu0 %v4714
        %v4843 = vpop.f32.mrf.mxu0
        %v4844 = vadd.f32 0.0, %v4843
        %v4845 = vpop.f32.mrf.mxu0
        %v4846 = vpop.f32.mrf.mxu0
        %v4847 = vadd.f32 0.0, %v4846
        %v4848 = vpop.f32.mrf.mxu0
        %4849 = vmatprep.mubr.bf16.mxu0 0
        %4850 = vmatmul.mubr.bf16.gmra.mxu0 %v4717
        %v4851 = vpop.f32.mrf.mxu0
        %v4852 = vadd.f32 0.0, %v4851
        %v4853 = vpop.f32.mrf.mxu0
        %v4854 = vpop.f32.mrf.mxu0
        %v4855 = vadd.f32 0.0, %v4854
        %v4856 = vpop.f32.mrf.mxu0
        %4857 = vmatprep.mubr.bf16.mxu0 0
        %4858 = vmatmul.mubr.bf16.gmra.mxu0 %v4720
        %v4859 = vpop.f32.mrf.mxu0
        %v4860 = vadd.f32 0.0, %v4859
        %v4861 = vpop.f32.mrf.mxu0
        %v4862 = vpop.f32.mrf.mxu0
        %v4863 = vadd.f32 0.0, %v4862
        %v4864 = vpop.f32.mrf.mxu0
        %4865 = vmatprep.mubr.bf16.mxu0 0
        %4866 = vmatmul.mubr.bf16.gmra.mxu0 %v4723
        %v4867 = vpop.f32.mrf.mxu0
        %v4868 = vadd.f32 0.0, %v4867
        %v4869 = vpop.f32.mrf.mxu0
        %v4870 = vpop.f32.mrf.mxu0
        %v4871 = vadd.f32 0.0, %v4870
        %v4872 = vpop.f32.mrf.mxu0
        %4873 = vmatprep.mubr.bf16.mxu0 0
        %4874 = vmatmul.mubr.bf16.gmra.mxu0 %v4726
        %v4875 = vpop.f32.mrf.mxu0
        %v4876 = vadd.f32 0.0, %v4875
        %v4877 = vpop.f32.mrf.mxu0
        %v4878 = vpop.f32.mrf.mxu0
        %v4879 = vadd.f32 0.0, %v4878
        %v4880 = vpop.f32.mrf.mxu0
        %4881 = vmatprep.mubr.bf16.mxu0 0
        %4882 = vmatmul.mubr.bf16.gmra.mxu0 %v4729
        %v4883 = vpop.f32.mrf.mxu0
        %v4884 = vadd.f32 0.0, %v4883
        %v4885 = vpop.f32.mrf.mxu0
        %v4886 = vpop.f32.mrf.mxu0
        %v4887 = vadd.f32 0.0, %v4886
        %v4888 = vpop.f32.mrf.mxu0
        %4889 = vmatprep.mubr.bf16.mxu0 0
        %4890 = vmatmul.mubr.bf16.gmra.mxu0 %v4732
        %v4891 = vpop.f32.mrf.mxu0
        %v4892 = vadd.f32 0.0, %v4891
        %v4893 = vpop.f32.mrf.mxu0
        %v4894 = vpop.f32.mrf.mxu0
        %v4895 = vadd.f32 0.0, %v4894
        %v4896 = vpop.f32.mrf.mxu0
        %4897 = vmatprep.mubr.bf16.mxu0 0
        %4898 = vmatmul.mubr.bf16.gmra.mxu0 %v4735
        %v4899 = vpop.f32.mrf.mxu0
        %v4900 = vadd.f32 0.0, %v4899
        %v4901 = vpop.f32.mrf.mxu0
        %v4902 = vpop.f32.mrf.mxu0
        %v4903 = vadd.f32 0.0, %v4902
        %v4904 = vpop.f32.mrf.mxu0
        %4905 = vmatprep.mubr.bf16.mxu0 0
        %4906 = vmatmul.mubr.bf16.gmra.mxu0 %v4738
        %v4907 = vpop.f32.mrf.mxu0
        %v4908 = vadd.f32 0.0, %v4907
        %v4909 = vpop.f32.mrf.mxu0
        %v4910 = vpop.f32.mrf.mxu0
        %v4911 = vadd.f32 0.0, %v4910
        %v4912 = vpop.f32.mrf.mxu0
        %4913 = vmatprep.mubr.bf16.mxu0 0
        %4914 = vmatmul.mubr.bf16.gmra.mxu0 %v4741
        %v4915 = vpop.f32.mrf.mxu0
        %v4916 = vadd.f32 0.0, %v4915
        %v4917 = vpop.f32.mrf.mxu0
        %v4918 = vpop.f32.mrf.mxu0
        %v4919 = vadd.f32 0.0, %v4918
        %v4920 = vpop.f32.mrf.mxu0
        %4921 = vmatprep.mubr.bf16.mxu0 0
        %4922 = vmatmul.mubr.bf16.gmra.mxu0 %v4744
        %v4923 = vpop.f32.mrf.mxu0
        %v4924 = vadd.f32 0.0, %v4923
        %v4925 = vpop.f32.mrf.mxu0
        %v4926 = vpop.f32.mrf.mxu0
        %v4927 = vadd.f32 0.0, %v4926
        %v4928 = vpop.f32.mrf.mxu0
        %4929 = vmatprep.mubr.bf16.mxu0 0
        %4930 = vmatmul.mubr.bf16.gmra.mxu0 %v4747
        %v4931 = vpop.f32.mrf.mxu0
        %v4932 = vadd.f32 0.0, %v4931
        %v4933 = vpop.f32.mrf.mxu0
        %v4934 = vpop.f32.mrf.mxu0
        %v4935 = vadd.f32 0.0, %v4934
        %v4936 = vpop.f32.mrf.mxu0
        %4937 = vmatprep.mubr.bf16.mxu0 0
        %4938 = vmatmul.mubr.bf16.gmra.mxu0 %v4750
        %v4939 = vpop.f32.mrf.mxu0
        %v4940 = vadd.f32 0.0, %v4939
        %v4941 = vpop.f32.mrf.mxu0
        %v4942 = vpop.f32.mrf.mxu0
        %v4943 = vadd.f32 0.0, %v4942
        %v4944 = vpop.f32.mrf.mxu0
        %4945 = vmatprep.mubr.bf16.mxu0 0
        %4946 = vmatmul.mubr.bf16.gmra.mxu0 %v4753
        %v4947 = vpop.f32.mrf.mxu0
        %v4948 = vadd.f32 0.0, %v4947
        %v4949 = vpop.f32.mrf.mxu0
        %v4950 = vpop.f32.mrf.mxu0
        %v4951 = vadd.f32 0.0, %v4950
        %v4952 = vpop.f32.mrf.mxu0
        %4953 = vmatprep.mubr.bf16.mxu0 0
        %4954 = vmatmul.mubr.bf16.gmra.mxu0 %v4756
        %v4955 = vpop.f32.mrf.mxu0
        %v4956 = vadd.f32 0.0, %v4955
        %v4957 = vpop.f32.mrf.mxu0
        %v4958 = vpop.f32.mrf.mxu0
        %v4959 = vadd.f32 0.0, %v4958
        %v4960 = vpop.f32.mrf.mxu0
        %4961 = vmatprep.mubr.bf16.mxu0 0
        %4962 = vmatmul.mubr.bf16.gmra.mxu0 %v4759
        %v4963 = vpop.f32.mrf.mxu0
        %v4964 = vadd.f32 0.0, %v4963
        %v4965 = vpop.f32.mrf.mxu0
        %v4966 = vpop.f32.mrf.mxu0
        %v4967 = vadd.f32 0.0, %v4966
        %v4968 = vpop.f32.mrf.mxu0
        %4969 = vmatprep.mubr.bf16.mxu0 0
        %4970 = vmatmul.mubr.bf16.gmra.mxu0 %v4762
        %v4971 = vpop.f32.mrf.mxu0
        %v4972 = vadd.f32 0.0, %v4971
        %v4973 = vpop.f32.mrf.mxu0
        %v4974 = vpop.f32.mrf.mxu0
        %v4975 = vadd.f32 0.0, %v4974
        %v4976 = vpop.f32.mrf.mxu0
        %4977 = vmatprep.mubr.bf16.mxu0 0
        %4978 = vmatmul.mubr.bf16.gmra.mxu0 %v4765
        %v4979 = vpop.f32.mrf.mxu0
        %v4980 = vadd.f32 0.0, %v4979
        %v4981 = vpop.f32.mrf.mxu0
        %v4982 = vpop.f32.mrf.mxu0
        %v4983 = vadd.f32 0.0, %v4982
        %v4984 = vpop.f32.mrf.mxu0
        %4985 = vmatprep.mubr.bf16.mxu0 0
        %4986 = vmatmul.mubr.bf16.gmra.mxu0 %v4768
        %v4987 = vpop.f32.mrf.mxu0
        %v4988 = vadd.f32 0.0, %v4987
        %v4989 = vpop.f32.mrf.mxu0
        %v4990 = vpop.f32.mrf.mxu0
        %v4991 = vadd.f32 0.0, %v4990
        %v4992 = vpop.f32.mrf.mxu0
        %4993 = vmatprep.mubr.bf16.mxu0 0
        %4994 = vmatmul.mubr.bf16.gmra.mxu0 %v4771
        %v4995 = vpop.f32.mrf.mxu0
        %v4996 = vadd.f32 0.0, %v4995
        %v4997 = vpop.f32.mrf.mxu0
        %v4998 = vpop.f32.mrf.mxu0
        %v4999 = vadd.f32 0.0, %v4998
        %v5000 = vpop.f32.mrf.mxu0
        %5001 = vmatprep.mubr.bf16.mxu0 0
        %5002 = vmatmul.mubr.bf16.gmra.mxu0 %v4774
        %v5003 = vpop.f32.mrf.mxu0
        %v5004 = vadd.f32 0.0, %v5003
        %v5005 = vpop.f32.mrf.mxu0
        %v5006 = vpop.f32.mrf.mxu0
        %v5007 = vadd.f32 0.0, %v5006
        %v5008 = vpop.f32.mrf.mxu0
        %5009 = vmatprep.mubr.bf16.mxu0 0
        %5010 = vmatmul.mubr.bf16.gmra.mxu0 %v4777
        %v5011 = vpop.f32.mrf.mxu0
        %v5012 = vadd.f32 0.0, %v5011
        %v5013 = vpop.f32.mrf.mxu0
        %v5014 = vpop.f32.mrf.mxu0
        %v5015 = vadd.f32 0.0, %v5014
        %v5016 = vpop.f32.mrf.mxu0
        %5017 = vmatprep.mubr.bf16.mxu0 0
        %5018 = vmatmul.mubr.bf16.gmra.mxu0 %v4780
        %v5019 = vpop.f32.mrf.mxu0
        %v5020 = vadd.f32 0.0, %v5019
        %v5021 = vpop.f32.mrf.mxu0
        %v5022 = vpop.f32.mrf.mxu0
        %v5023 = vadd.f32 0.0, %v5022
        %v5024 = vpop.f32.mrf.mxu0
        %5025 = vmatprep.mubr.bf16.mxu0 0
        %5026 = vmatmul.mubr.bf16.gmra.mxu0 %v4783
        %v5027 = vpop.f32.mrf.mxu0
        %v5028 = vadd.f32 0.0, %v5027
        %v5029 = vpop.f32.mrf.mxu0
        %v5030 = vpop.f32.mrf.mxu0
        %v5031 = vadd.f32 0.0, %v5030
        %v5032 = vpop.f32.mrf.mxu0
        %5033 = vmatprep.mubr.bf16.mxu0 0
        %5034 = vmatmul.mubr.bf16.gmra.mxu0 %v4786
        %v5035 = vpop.f32.mrf.mxu0
        %v5036 = vadd.f32 0.0, %v5035
        %v5037 = vpop.f32.mrf.mxu0
        %v5038 = vpop.f32.mrf.mxu0
        %v5039 = vadd.f32 0.0, %v5038
        %v5040 = vpop.f32.mrf.mxu0
        %5041 = vmatprep.mubr.bf16.mxu0 0
        %5042 = vmatmul.mubr.bf16.gmra.mxu0 %v4789
        %v5043 = vpop.f32.mrf.mxu0
        %v5044 = vadd.f32 0.0, %v5043
        %v5045 = vpop.f32.mrf.mxu0
        %v5046 = vpop.f32.mrf.mxu0
        %v5047 = vadd.f32 0.0, %v5046
        %v5048 = vpop.f32.mrf.mxu0
        %5049 = vmatprep.mubr.bf16.mxu0 0
        %5050 = vmatmul.mubr.bf16.gmra.mxu0 %v4792
        %v5051 = vpop.f32.mrf.mxu0
        %v5052 = vadd.f32 0.0, %v5051
        %v5053 = vpop.f32.mrf.mxu0
        %v5054 = vpop.f32.mrf.mxu0
        %v5055 = vadd.f32 0.0, %v5054
        %v5056 = vpop.f32.mrf.mxu0
        %5057 = vmatprep.mubr.bf16.mxu0 0
        %5058 = vmatmul.mubr.bf16.gmra.mxu0 %v4795
        %v5059 = vpop.f32.mrf.mxu0
        %v5060 = vadd.f32 0.0, %v5059
        %v5061 = vpop.f32.mrf.mxu0
        %v5062 = vpop.f32.mrf.mxu0
        %v5063 = vadd.f32 0.0, %v5062
        %v5064 = vpop.f32.mrf.mxu0
        %5065 = vmatprep.mubr.bf16.mxu0 0
        %5066 = vmatmul.mubr.bf16.gmra.mxu0 %v4798
        %v5067 = vpop.f32.mrf.mxu0
        %v5068 = vadd.f32 0.0, %v5067
        %v5069 = vpop.f32.mrf.mxu0
        %v5070 = vpop.f32.mrf.mxu0
        %v5071 = vadd.f32 0.0, %v5070
        %v5072 = vpop.f32.mrf.mxu0
        %5073 = vmatprep.mubr.bf16.mxu0 0
        %5074 = vmatmul.mubr.bf16.gmra.mxu0 %v4801
        %v5075 = vpop.f32.mrf.mxu0
        %v5076 = vadd.f32 0.0, %v5075
        %v5077 = vpop.f32.mrf.mxu0
        %v5078 = vpop.f32.mrf.mxu0
        %v5079 = vadd.f32 0.0, %v5078
        %v5080 = vpop.f32.mrf.mxu0
        %5081 = vmatprep.mubr.bf16.mxu0 0
        %5082 = vmatmul.mubr.bf16.gmra.mxu0 %v4804
        %v5083 = vpop.f32.mrf.mxu0
        %v5084 = vadd.f32 0.0, %v5083
        %v5085 = vpop.f32.mrf.mxu0
        %v5086 = vpop.f32.mrf.mxu0
        %v5087 = vadd.f32 0.0, %v5086
        %v5088 = vpop.f32.mrf.mxu0
        %5089 = vmatprep.mubr.bf16.mxu0 0
        %5090 = vmatmul.mubr.bf16.gmra.mxu0 %v4807
        %v5091 = vpop.f32.mrf.mxu0
        %v5092 = vadd.f32 0.0, %v5091
        %v5093 = vpop.f32.mrf.mxu0
        %v5094 = vpop.f32.mrf.mxu0
        %v5095 = vadd.f32 0.0, %v5094
        %v5096 = vpop.f32.mrf.mxu0
        %5097 = vdwg.mxu0
        %v5162 = vunpack.c.l.b16 %v4293
        %v5163 = vunpack.c.l.b16 %v4294
        %v5164 = vunpack.c.l.b16 %v4295
        %v5165 = vunpack.c.l.b16 %v4296
        %v5166 = vunpack.c.l.b16 %v4297
        %v5167 = vunpack.c.l.b16 %v4298
        %v5168 = vunpack.c.l.b16 %v4299
        %v5169 = vunpack.c.l.b16 %v4300
        %v5170 = vunpack.c.l.b16 %v4301
        %v5171 = vunpack.c.l.b16 %v4302
        %v5172 = vunpack.c.l.b16 %v4303
        %v5173 = vunpack.c.l.b16 %v4304
        %v5174 = vunpack.c.l.b16 %v4305
        %v5175 = vunpack.c.l.b16 %v4306
        %v5176 = vunpack.c.l.b16 %v4307
        %v5177 = vunpack.c.l.b16 %v4308
        %v5178 = vunpack.c.l.b16 %v4309
        %v5179 = vunpack.c.l.b16 %v4310
        %v5180 = vunpack.c.l.b16 %v4311
        %v5181 = vunpack.c.l.b16 %v4312
        %v5182 = vunpack.c.l.b16 %v4313
        %v5183 = vunpack.c.l.b16 %v4314
        %v5184 = vunpack.c.l.b16 %v4315
        %v5185 = vunpack.c.l.b16 %v4316
        %v5186 = vunpack.c.l.b16 %v4317
        %v5187 = vunpack.c.l.b16 %v4318
        %v5188 = vunpack.c.l.b16 %v4319
        %v5189 = vunpack.c.l.b16 %v4320
        %v5190 = vunpack.c.l.b16 %v4321
        %v5191 = vunpack.c.l.b16 %v4322
        %v5192 = vunpack.c.l.b16 %v4323
        %v5193 = vunpack.c.l.b16 %v4324
        %v5194 = vunpack.c.l.b16 %v4325
        %v5195 = vunpack.c.l.b16 %v4326
        %v5196 = vunpack.c.l.b16 %v4327
        %v5197 = vunpack.c.l.b16 %v4328
        %v5198 = vunpack.c.l.b16 %v4329
        %v5199 = vunpack.c.l.b16 %v4330
        %v5200 = vunpack.c.l.b16 %v4331
        %v5201 = vunpack.c.l.b16 %v4332
        %v5202 = vunpack.c.l.b16 %v4333
        %v5203 = vunpack.c.l.b16 %v4334
        %v5204 = vunpack.c.l.b16 %v4335
        %v5205 = vunpack.c.l.b16 %v4336
        %v5206 = vunpack.c.l.b16 %v4337
        %v5207 = vunpack.c.l.b16 %v4338
        %v5208 = vunpack.c.l.b16 %v4339
        %v5209 = vunpack.c.l.b16 %v4340
        %v5210 = vunpack.c.l.b16 %v4341
        %v5211 = vunpack.c.l.b16 %v4342
        %v5212 = vunpack.c.l.b16 %v4343
        %v5213 = vunpack.c.l.b16 %v4344
        %v5214 = vunpack.c.l.b16 %v4345
        %v5215 = vunpack.c.l.b16 %v4346
        %v5216 = vunpack.c.l.b16 %v4347
        %v5217 = vunpack.c.l.b16 %v4348
        %v5218 = vunpack.c.l.b16 %v4349
        %v5219 = vunpack.c.l.b16 %v4350
        %v5220 = vunpack.c.l.b16 %v4351
        %v5221 = vunpack.c.l.b16 %v4352
        %v5222 = vunpack.c.l.b16 %v4353
        %v5223 = vunpack.c.l.b16 %v4354
        %v5224 = vunpack.c.l.b16 %v4355
        %v5225 = vunpack.c.l.b16 %v4356
        %v5226 = vpack.c.b16 %v5163, %v5162
        %v5227 = vpack.c.b16 %v5165, %v5164
        %v5228 = vpack.c.b16 %v5167, %v5166
        %v5229 = vpack.c.b16 %v5169, %v5168
        %v5230 = vpack.c.b16 %v5171, %v5170
        %v5231 = vpack.c.b16 %v5173, %v5172
        %v5232 = vpack.c.b16 %v5175, %v5174
        %v5233 = vpack.c.b16 %v5177, %v5176
        %v5234 = vpack.c.b16 %v5179, %v5178
        %v5235 = vpack.c.b16 %v5181, %v5180
        %v5236 = vpack.c.b16 %v5183, %v5182
        %v5237 = vpack.c.b16 %v5185, %v5184
        %v5238 = vpack.c.b16 %v5187, %v5186
        %v5239 = vpack.c.b16 %v5189, %v5188
        %v5240 = vpack.c.b16 %v5191, %v5190
        %v5241 = vpack.c.b16 %v5193, %v5192
        %v5242 = vpack.c.b16 %v5195, %v5194
        %v5243 = vpack.c.b16 %v5197, %v5196
        %v5244 = vpack.c.b16 %v5199, %v5198
        %v5245 = vpack.c.b16 %v5201, %v5200
        %v5246 = vpack.c.b16 %v5203, %v5202
        %v5247 = vpack.c.b16 %v5205, %v5204
        %v5248 = vpack.c.b16 %v5207, %v5206
        %v5249 = vpack.c.b16 %v5209, %v5208
        %v5250 = vpack.c.b16 %v5211, %v5210
        %v5251 = vpack.c.b16 %v5213, %v5212
        %v5252 = vpack.c.b16 %v5215, %v5214
        %v5253 = vpack.c.b16 %v5217, %v5216
        %v5254 = vpack.c.b16 %v5219, %v5218
        %v5255 = vpack.c.b16 %v5221, %v5220
        %v5256 = vpack.c.b16 %v5223, %v5222
        %v5257 = vpack.c.b16 %v5225, %v5224
        %v5259 = vsel %vm951, %v5226, 0
        %v5262 = vsel %vm951, %v5227, 0
        %v5265 = vsel %vm951, %v5228, 0
        %v5268 = vsel %vm951, %v5229, 0
        %v5271 = vsel %vm951, %v5230, 0
        %v5274 = vsel %vm951, %v5231, 0
        %v5277 = vsel %vm951, %v5232, 0
        %v5280 = vsel %vm951, %v5233, 0
        %v5283 = vsel %vm951, %v5234, 0
        %v5286 = vsel %vm951, %v5235, 0
        %v5289 = vsel %vm951, %v5236, 0
        %v5292 = vsel %vm951, %v5237, 0
        %v5295 = vsel %vm951, %v5238, 0
        %v5298 = vsel %vm951, %v5239, 0
        %v5301 = vsel %vm951, %v5240, 0
        %v5304 = vsel %vm951, %v5241, 0
        %v5307 = vsel %vm951, %v5242, 0
        %v5310 = vsel %vm951, %v5243, 0
        %v5313 = vsel %vm951, %v5244, 0
        %v5316 = vsel %vm951, %v5245, 0
        %v5319 = vsel %vm951, %v5246, 0
        %v5322 = vsel %vm951, %v5247, 0
        %v5325 = vsel %vm951, %v5248, 0
        %v5328 = vsel %vm951, %v5249, 0
        %v5331 = vsel %vm951, %v5250, 0
        %v5334 = vsel %vm951, %v5251, 0
        %v5337 = vsel %vm951, %v5252, 0
        %v5340 = vsel %vm951, %v5253, 0
        %v5343 = vsel %vm951, %v5254, 0
        %v5346 = vsel %vm951, %v5255, 0
        %v5349 = vsel %vm951, %v5256, 0
        %v5352 = vsel %vm951, %v5257, 0
        %5354 = vmatprep.subr.bf16.mxu0 0
        %5355 = vmatpush1.bf16.msra.mxu0 0
        %5356 = vmatprep.subr.bf16.mxu0 0
        %5357 = vmatpush1.bf16.msra.mxu0 0
        %5358 = vmatprep.subr.bf16.mxu0 0
        %5359 = vmatpush1.bf16.msra.mxu0 0
        %5360 = vmatprep.subr.bf16.mxu0 0
        %5361 = vmatpush1.bf16.msra.mxu0 0
        %5362 = vmatprep.subr.bf16.mxu0 0
        %5363 = vmatpush1.bf16.msra.mxu0 0
        %5364 = vmatprep.subr.bf16.mxu0 0
        %5365 = vmatpush1.bf16.msra.mxu0 0
        %5366 = vmatprep.subr.bf16.mxu0 0
        %5367 = vmatpush1.bf16.msra.mxu0 %v4552
        %5368 = vmatprep.subr.bf16.mxu0 0
        %5369 = vmatpush1.bf16.msra.mxu0 %v4551
        %5370 = vmatprep.subr.bf16.mxu0 0
        %5371 = vmatpush2.bf16.msra.mxu0 0
        %5372 = vmatprep.subr.bf16.mxu0 0
        %5373 = vmatpush2.bf16.msra.mxu0 0
        %5374 = vmatprep.subr.bf16.mxu0 0
        %5375 = vmatpush2.bf16.msra.mxu0 0
        %5376 = vmatprep.subr.bf16.mxu0 0
        %5377 = vmatpush2.bf16.msra.mxu0 0
        %5378 = vmatprep.subr.bf16.mxu0 0
        %5379 = vmatpush2.bf16.msra.mxu0 0
        %5380 = vmatprep.subr.bf16.mxu0 0
        %5381 = vmatpush2.bf16.msra.mxu0 0
        %5382 = vmatprep.subr.bf16.mxu0 0
        %5383 = vmatpush2.bf16.msra.mxu0 0
        %5384 = vmatprep.subr.bf16.mxu0 0
        %5385 = vmatpush2.bf16.msra.mxu0 0
        %5386 = vmatprep.mubr.bf16.mxu0 0
        %5387 = vmatmul.mubr.bf16.gmra.mxu0 %v5259
        %v5388 = vpop.f32.mrf.mxu0
        %v5389 = vadd.f32 0.0, %v5388
        %v5390 = vpop.f32.mrf.mxu0
        %v5391 = vpop.f32.mrf.mxu0
        %v5392 = vadd.f32 0.0, %v5391
        %v5393 = vpop.f32.mrf.mxu0
        %5394 = vmatprep.mubr.bf16.mxu0 0
        %5395 = vmatmul.mubr.bf16.gmra.mxu0 %v5262
        %v5396 = vpop.f32.mrf.mxu0
        %v5397 = vadd.f32 0.0, %v5396
        %v5398 = vpop.f32.mrf.mxu0
        %v5399 = vpop.f32.mrf.mxu0
        %v5400 = vadd.f32 0.0, %v5399
        %v5401 = vpop.f32.mrf.mxu0
        %5402 = vmatprep.mubr.bf16.mxu0 0
        %5403 = vmatmul.mubr.bf16.gmra.mxu0 %v5265
        %v5404 = vpop.f32.mrf.mxu0
        %v5405 = vadd.f32 0.0, %v5404
        %v5406 = vpop.f32.mrf.mxu0
        %v5407 = vpop.f32.mrf.mxu0
        %v5408 = vadd.f32 0.0, %v5407
        %v5409 = vpop.f32.mrf.mxu0
        %5410 = vmatprep.mubr.bf16.mxu0 0
        %5411 = vmatmul.mubr.bf16.gmra.mxu0 %v5268
        %v5412 = vpop.f32.mrf.mxu0
        %v5413 = vadd.f32 0.0, %v5412
        %v5414 = vpop.f32.mrf.mxu0
        %v5415 = vpop.f32.mrf.mxu0
        %v5416 = vadd.f32 0.0, %v5415
        %v5417 = vpop.f32.mrf.mxu0
        %5418 = vmatprep.mubr.bf16.mxu0 0
        %5419 = vmatmul.mubr.bf16.gmra.mxu0 %v5271
        %v5420 = vpop.f32.mrf.mxu0
        %v5421 = vadd.f32 0.0, %v5420
        %v5422 = vpop.f32.mrf.mxu0
        %v5423 = vpop.f32.mrf.mxu0
        %v5424 = vadd.f32 0.0, %v5423
        %v5425 = vpop.f32.mrf.mxu0
        %5426 = vmatprep.mubr.bf16.mxu0 0
        %5427 = vmatmul.mubr.bf16.gmra.mxu0 %v5274
        %v5428 = vpop.f32.mrf.mxu0
        %v5429 = vadd.f32 0.0, %v5428
        %v5430 = vpop.f32.mrf.mxu0
        %v5431 = vpop.f32.mrf.mxu0
        %v5432 = vadd.f32 0.0, %v5431
        %v5433 = vpop.f32.mrf.mxu0
        %5434 = vmatprep.mubr.bf16.mxu0 0
        %5435 = vmatmul.mubr.bf16.gmra.mxu0 %v5277
        %v5436 = vpop.f32.mrf.mxu0
        %v5437 = vadd.f32 0.0, %v5436
        %v5438 = vpop.f32.mrf.mxu0
        %v5439 = vpop.f32.mrf.mxu0
        %v5440 = vadd.f32 0.0, %v5439
        %v5441 = vpop.f32.mrf.mxu0
        %5442 = vmatprep.mubr.bf16.mxu0 0
        %5443 = vmatmul.mubr.bf16.gmra.mxu0 %v5280
        %v5444 = vpop.f32.mrf.mxu0
        %v5445 = vadd.f32 0.0, %v5444
        %v5446 = vpop.f32.mrf.mxu0
        %v5447 = vpop.f32.mrf.mxu0
        %v5448 = vadd.f32 0.0, %v5447
        %v5449 = vpop.f32.mrf.mxu0
        %5450 = vmatprep.mubr.bf16.mxu0 0
        %5451 = vmatmul.mubr.bf16.gmra.mxu0 %v5283
        %v5452 = vpop.f32.mrf.mxu0
        %v5453 = vadd.f32 0.0, %v5452
        %v5454 = vpop.f32.mrf.mxu0
        %v5455 = vpop.f32.mrf.mxu0
        %v5456 = vadd.f32 0.0, %v5455
        %v5457 = vpop.f32.mrf.mxu0
        %5458 = vmatprep.mubr.bf16.mxu0 0
        %5459 = vmatmul.mubr.bf16.gmra.mxu0 %v5286
        %v5460 = vpop.f32.mrf.mxu0
        %v5461 = vadd.f32 0.0, %v5460
        %v5462 = vpop.f32.mrf.mxu0
        %v5463 = vpop.f32.mrf.mxu0
        %v5464 = vadd.f32 0.0, %v5463
        %v5465 = vpop.f32.mrf.mxu0
        %5466 = vmatprep.mubr.bf16.mxu0 0
        %5467 = vmatmul.mubr.bf16.gmra.mxu0 %v5289
        %v5468 = vpop.f32.mrf.mxu0
        %v5469 = vadd.f32 0.0, %v5468
        %v5470 = vpop.f32.mrf.mxu0
        %v5471 = vpop.f32.mrf.mxu0
        %v5472 = vadd.f32 0.0, %v5471
        %v5473 = vpop.f32.mrf.mxu0
        %5474 = vmatprep.mubr.bf16.mxu0 0
        %5475 = vmatmul.mubr.bf16.gmra.mxu0 %v5292
        %v5476 = vpop.f32.mrf.mxu0
        %v5477 = vadd.f32 0.0, %v5476
        %v5478 = vpop.f32.mrf.mxu0
        %v5479 = vpop.f32.mrf.mxu0
        %v5480 = vadd.f32 0.0, %v5479
        %v5481 = vpop.f32.mrf.mxu0
        %5482 = vmatprep.mubr.bf16.mxu0 0
        %5483 = vmatmul.mubr.bf16.gmra.mxu0 %v5295
        %v5484 = vpop.f32.mrf.mxu0
        %v5485 = vadd.f32 0.0, %v5484
        %v5486 = vpop.f32.mrf.mxu0
        %v5487 = vpop.f32.mrf.mxu0
        %v5488 = vadd.f32 0.0, %v5487
        %v5489 = vpop.f32.mrf.mxu0
        %5490 = vmatprep.mubr.bf16.mxu0 0
        %5491 = vmatmul.mubr.bf16.gmra.mxu0 %v5298
        %v5492 = vpop.f32.mrf.mxu0
        %v5493 = vadd.f32 0.0, %v5492
        %v5494 = vpop.f32.mrf.mxu0
        %v5495 = vpop.f32.mrf.mxu0
        %v5496 = vadd.f32 0.0, %v5495
        %v5497 = vpop.f32.mrf.mxu0
        %5498 = vmatprep.mubr.bf16.mxu0 0
        %5499 = vmatmul.mubr.bf16.gmra.mxu0 %v5301
        %v5500 = vpop.f32.mrf.mxu0
        %v5501 = vadd.f32 0.0, %v5500
        %v5502 = vpop.f32.mrf.mxu0
        %v5503 = vpop.f32.mrf.mxu0
        %v5504 = vadd.f32 0.0, %v5503
        %v5505 = vpop.f32.mrf.mxu0
        %5506 = vmatprep.mubr.bf16.mxu0 0
        %5507 = vmatmul.mubr.bf16.gmra.mxu0 %v5304
        %v5508 = vpop.f32.mrf.mxu0
        %v5509 = vadd.f32 0.0, %v5508
        %v5510 = vpop.f32.mrf.mxu0
        %v5511 = vpop.f32.mrf.mxu0
        %v5512 = vadd.f32 0.0, %v5511
        %v5513 = vpop.f32.mrf.mxu0
        %5514 = vmatprep.mubr.bf16.mxu0 0
        %5515 = vmatmul.mubr.bf16.gmra.mxu0 %v5307
        %v5516 = vpop.f32.mrf.mxu0
        %v5517 = vadd.f32 0.0, %v5516
        %v5518 = vpop.f32.mrf.mxu0
        %v5519 = vpop.f32.mrf.mxu0
        %v5520 = vadd.f32 0.0, %v5519
        %v5521 = vpop.f32.mrf.mxu0
        %5522 = vmatprep.mubr.bf16.mxu0 0
        %5523 = vmatmul.mubr.bf16.gmra.mxu0 %v5310
        %v5524 = vpop.f32.mrf.mxu0
        %v5525 = vadd.f32 0.0, %v5524
        %v5526 = vpop.f32.mrf.mxu0
        %v5527 = vpop.f32.mrf.mxu0
        %v5528 = vadd.f32 0.0, %v5527
        %v5529 = vpop.f32.mrf.mxu0
        %5530 = vmatprep.mubr.bf16.mxu0 0
        %5531 = vmatmul.mubr.bf16.gmra.mxu0 %v5313
        %v5532 = vpop.f32.mrf.mxu0
        %v5533 = vadd.f32 0.0, %v5532
        %v5534 = vpop.f32.mrf.mxu0
        %v5535 = vpop.f32.mrf.mxu0
        %v5536 = vadd.f32 0.0, %v5535
        %v5537 = vpop.f32.mrf.mxu0
        %5538 = vmatprep.mubr.bf16.mxu0 0
        %5539 = vmatmul.mubr.bf16.gmra.mxu0 %v5316
        %v5540 = vpop.f32.mrf.mxu0
        %v5541 = vadd.f32 0.0, %v5540
        %v5542 = vpop.f32.mrf.mxu0
        %v5543 = vpop.f32.mrf.mxu0
        %v5544 = vadd.f32 0.0, %v5543
        %v5545 = vpop.f32.mrf.mxu0
        %5546 = vmatprep.mubr.bf16.mxu0 0
        %5547 = vmatmul.mubr.bf16.gmra.mxu0 %v5319
        %v5548 = vpop.f32.mrf.mxu0
        %v5549 = vadd.f32 0.0, %v5548
        %v5550 = vpop.f32.mrf.mxu0
        %v5551 = vpop.f32.mrf.mxu0
        %v5552 = vadd.f32 0.0, %v5551
        %v5553 = vpop.f32.mrf.mxu0
        %5554 = vmatprep.mubr.bf16.mxu0 0
        %5555 = vmatmul.mubr.bf16.gmra.mxu0 %v5322
        %v5556 = vpop.f32.mrf.mxu0
        %v5557 = vadd.f32 0.0, %v5556
        %v5558 = vpop.f32.mrf.mxu0
        %v5559 = vpop.f32.mrf.mxu0
        %v5560 = vadd.f32 0.0, %v5559
        %v5561 = vpop.f32.mrf.mxu0
        %5562 = vmatprep.mubr.bf16.mxu0 0
        %5563 = vmatmul.mubr.bf16.gmra.mxu0 %v5325
        %v5564 = vpop.f32.mrf.mxu0
        %v5565 = vadd.f32 0.0, %v5564
        %v5566 = vpop.f32.mrf.mxu0
        %v5567 = vpop.f32.mrf.mxu0
        %v5568 = vadd.f32 0.0, %v5567
        %v5569 = vpop.f32.mrf.mxu0
        %5570 = vmatprep.mubr.bf16.mxu0 0
        %5571 = vmatmul.mubr.bf16.gmra.mxu0 %v5328
        %v5572 = vpop.f32.mrf.mxu0
        %v5573 = vadd.f32 0.0, %v5572
        %v5574 = vpop.f32.mrf.mxu0
        %v5575 = vpop.f32.mrf.mxu0
        %v5576 = vadd.f32 0.0, %v5575
        %v5577 = vpop.f32.mrf.mxu0
        %5578 = vmatprep.mubr.bf16.mxu0 0
        %5579 = vmatmul.mubr.bf16.gmra.mxu0 %v5331
        %v5580 = vpop.f32.mrf.mxu0
        %v5581 = vadd.f32 0.0, %v5580
        %v5582 = vpop.f32.mrf.mxu0
        %v5583 = vpop.f32.mrf.mxu0
        %v5584 = vadd.f32 0.0, %v5583
        %v5585 = vpop.f32.mrf.mxu0
        %5586 = vmatprep.mubr.bf16.mxu0 0
        %5587 = vmatmul.mubr.bf16.gmra.mxu0 %v5334
        %v5588 = vpop.f32.mrf.mxu0
        %v5589 = vadd.f32 0.0, %v5588
        %v5590 = vpop.f32.mrf.mxu0
        %v5591 = vpop.f32.mrf.mxu0
        %v5592 = vadd.f32 0.0, %v5591
        %v5593 = vpop.f32.mrf.mxu0
        %5594 = vmatprep.mubr.bf16.mxu0 0
        %5595 = vmatmul.mubr.bf16.gmra.mxu0 %v5337
        %v5596 = vpop.f32.mrf.mxu0
        %v5597 = vadd.f32 0.0, %v5596
        %v5598 = vpop.f32.mrf.mxu0
        %v5599 = vpop.f32.mrf.mxu0
        %v5600 = vadd.f32 0.0, %v5599
        %v5601 = vpop.f32.mrf.mxu0
        %5602 = vmatprep.mubr.bf16.mxu0 0
        %5603 = vmatmul.mubr.bf16.gmra.mxu0 %v5340
        %v5604 = vpop.f32.mrf.mxu0
        %v5605 = vadd.f32 0.0, %v5604
        %v5606 = vpop.f32.mrf.mxu0
        %v5607 = vpop.f32.mrf.mxu0
        %v5608 = vadd.f32 0.0, %v5607
        %v5609 = vpop.f32.mrf.mxu0
        %5610 = vmatprep.mubr.bf16.mxu0 0
        %5611 = vmatmul.mubr.bf16.gmra.mxu0 %v5343
        %v5612 = vpop.f32.mrf.mxu0
        %v5613 = vadd.f32 0.0, %v5612
        %v5614 = vpop.f32.mrf.mxu0
        %v5615 = vpop.f32.mrf.mxu0
        %v5616 = vadd.f32 0.0, %v5615
        %v5617 = vpop.f32.mrf.mxu0
        %5618 = vmatprep.mubr.bf16.mxu0 0
        %5619 = vmatmul.mubr.bf16.gmra.mxu0 %v5346
        %v5620 = vpop.f32.mrf.mxu0
        %v5621 = vadd.f32 0.0, %v5620
        %v5622 = vpop.f32.mrf.mxu0
        %v5623 = vpop.f32.mrf.mxu0
        %v5624 = vadd.f32 0.0, %v5623
        %v5625 = vpop.f32.mrf.mxu0
        %5626 = vmatprep.mubr.bf16.mxu0 0
        %5627 = vmatmul.mubr.bf16.gmra.mxu0 %v5349
        %v5628 = vpop.f32.mrf.mxu0
        %v5629 = vadd.f32 0.0, %v5628
        %v5630 = vpop.f32.mrf.mxu0
        %v5631 = vpop.f32.mrf.mxu0
        %v5632 = vadd.f32 0.0, %v5631
        %v5633 = vpop.f32.mrf.mxu0
        %5634 = vmatprep.mubr.bf16.mxu0 0
        %5635 = vmatmul.mubr.bf16.gmra.mxu0 %v5352
        %v5636 = vpop.f32.mrf.mxu0
        %v5637 = vadd.f32 0.0, %v5636
        %v5638 = vpop.f32.mrf.mxu0
        %v5639 = vpop.f32.mrf.mxu0
        %v5640 = vadd.f32 0.0, %v5639
        %v5641 = vpop.f32.mrf.mxu0
        %5642 = vdwg.mxu0
        %v5707 = vunpack.c.l.b16 %v4357
        %v5708 = vunpack.c.l.b16 %v4358
        %v5709 = vunpack.c.l.b16 %v4359
        %v5710 = vunpack.c.l.b16 %v4360
        %v5711 = vunpack.c.l.b16 %v4361
        %v5712 = vunpack.c.l.b16 %v4362
        %v5713 = vunpack.c.l.b16 %v4363
        %v5714 = vunpack.c.l.b16 %v4364
        %v5715 = vunpack.c.l.b16 %v4365
        %v5716 = vunpack.c.l.b16 %v4366
        %v5717 = vunpack.c.l.b16 %v4367
        %v5718 = vunpack.c.l.b16 %v4368
        %v5719 = vunpack.c.l.b16 %v4369
        %v5720 = vunpack.c.l.b16 %v4370
        %v5721 = vunpack.c.l.b16 %v4371
        %v5722 = vunpack.c.l.b16 %v4372
        %v5723 = vunpack.c.l.b16 %v4373
        %v5724 = vunpack.c.l.b16 %v4374
        %v5725 = vunpack.c.l.b16 %v4375
        %v5726 = vunpack.c.l.b16 %v4376
        %v5727 = vunpack.c.l.b16 %v4377
        %v5728 = vunpack.c.l.b16 %v4378
        %v5729 = vunpack.c.l.b16 %v4379
        %v5730 = vunpack.c.l.b16 %v4380
        %v5731 = vunpack.c.l.b16 %v4381
        %v5732 = vunpack.c.l.b16 %v4382
        %v5733 = vunpack.c.l.b16 %v4383
        %v5734 = vunpack.c.l.b16 %v4384
        %v5735 = vunpack.c.l.b16 %v4385
        %v5736 = vunpack.c.l.b16 %v4386
        %v5737 = vunpack.c.l.b16 %v4387
        %v5738 = vunpack.c.l.b16 %v4388
        %v5739 = vunpack.c.l.b16 %v4389
        %v5740 = vunpack.c.l.b16 %v4390
        %v5741 = vunpack.c.l.b16 %v4391
        %v5742 = vunpack.c.l.b16 %v4392
        %v5743 = vunpack.c.l.b16 %v4393
        %v5744 = vunpack.c.l.b16 %v4394
        %v5745 = vunpack.c.l.b16 %v4395
        %v5746 = vunpack.c.l.b16 %v4396
        %v5747 = vunpack.c.l.b16 %v4397
        %v5748 = vunpack.c.l.b16 %v4398
        %v5749 = vunpack.c.l.b16 %v4399
        %v5750 = vunpack.c.l.b16 %v4400
        %v5751 = vunpack.c.l.b16 %v4401
        %v5752 = vunpack.c.l.b16 %v4402
        %v5753 = vunpack.c.l.b16 %v4403
        %v5754 = vunpack.c.l.b16 %v4404
        %v5755 = vunpack.c.l.b16 %v4405
        %v5756 = vunpack.c.l.b16 %v4406
        %v5757 = vunpack.c.l.b16 %v4407
        %v5758 = vunpack.c.l.b16 %v4408
        %v5759 = vunpack.c.l.b16 %v4409
        %v5760 = vunpack.c.l.b16 %v4410
        %v5761 = vunpack.c.l.b16 %v4411
        %v5762 = vunpack.c.l.b16 %v4412
        %v5763 = vunpack.c.l.b16 %v4413
        %v5764 = vunpack.c.l.b16 %v4414
        %v5765 = vunpack.c.l.b16 %v4415
        %v5766 = vunpack.c.l.b16 %v4416
        %v5767 = vunpack.c.l.b16 %v4417
        %v5768 = vunpack.c.l.b16 %v4418
        %v5769 = vunpack.c.l.b16 %v4419
        %v5770 = vunpack.c.l.b16 %v4420
        %v5771 = vpack.c.b16 %v5708, %v5707
        %v5772 = vpack.c.b16 %v5710, %v5709
        %v5773 = vpack.c.b16 %v5712, %v5711
        %v5774 = vpack.c.b16 %v5714, %v5713
        %v5775 = vpack.c.b16 %v5716, %v5715
        %v5776 = vpack.c.b16 %v5718, %v5717
        %v5777 = vpack.c.b16 %v5720, %v5719
        %v5778 = vpack.c.b16 %v5722, %v5721
        %v5779 = vpack.c.b16 %v5724, %v5723
        %v5780 = vpack.c.b16 %v5726, %v5725
        %v5781 = vpack.c.b16 %v5728, %v5727
        %v5782 = vpack.c.b16 %v5730, %v5729
        %v5783 = vpack.c.b16 %v5732, %v5731
        %v5784 = vpack.c.b16 %v5734, %v5733
        %v5785 = vpack.c.b16 %v5736, %v5735
        %v5786 = vpack.c.b16 %v5738, %v5737
        %v5787 = vpack.c.b16 %v5740, %v5739
        %v5788 = vpack.c.b16 %v5742, %v5741
        %v5789 = vpack.c.b16 %v5744, %v5743
        %v5790 = vpack.c.b16 %v5746, %v5745
        %v5791 = vpack.c.b16 %v5748, %v5747
        %v5792 = vpack.c.b16 %v5750, %v5749
        %v5793 = vpack.c.b16 %v5752, %v5751
        %v5794 = vpack.c.b16 %v5754, %v5753
        %v5795 = vpack.c.b16 %v5756, %v5755
        %v5796 = vpack.c.b16 %v5758, %v5757
        %v5797 = vpack.c.b16 %v5760, %v5759
        %v5798 = vpack.c.b16 %v5762, %v5761
        %v5799 = vpack.c.b16 %v5764, %v5763
        %v5800 = vpack.c.b16 %v5766, %v5765
        %v5801 = vpack.c.b16 %v5768, %v5767
        %v5802 = vpack.c.b16 %v5770, %v5769
        %v5804 = vsel %vm951, %v5771, 0
        %v5807 = vsel %vm951, %v5772, 0
        %v5810 = vsel %vm951, %v5773, 0
        %v5813 = vsel %vm951, %v5774, 0
        %v5816 = vsel %vm951, %v5775, 0
        %v5819 = vsel %vm951, %v5776, 0
        %v5822 = vsel %vm951, %v5777, 0
        %v5825 = vsel %vm951, %v5778, 0
        %v5828 = vsel %vm951, %v5779, 0
        %v5831 = vsel %vm951, %v5780, 0
        %v5834 = vsel %vm951, %v5781, 0
        %v5837 = vsel %vm951, %v5782, 0
        %v5840 = vsel %vm951, %v5783, 0
        %v5843 = vsel %vm951, %v5784, 0
        %v5846 = vsel %vm951, %v5785, 0
        %v5849 = vsel %vm951, %v5786, 0
        %v5852 = vsel %vm951, %v5787, 0
        %v5855 = vsel %vm951, %v5788, 0
        %v5858 = vsel %vm951, %v5789, 0
        %v5861 = vsel %vm951, %v5790, 0
        %v5864 = vsel %vm951, %v5791, 0
        %v5867 = vsel %vm951, %v5792, 0
        %v5870 = vsel %vm951, %v5793, 0
        %v5873 = vsel %vm951, %v5794, 0
        %v5876 = vsel %vm951, %v5795, 0
        %v5879 = vsel %vm951, %v5796, 0
        %v5882 = vsel %vm951, %v5797, 0
        %v5885 = vsel %vm951, %v5798, 0
        %v5888 = vsel %vm951, %v5799, 0
        %v5891 = vsel %vm951, %v5800, 0
        %v5894 = vsel %vm951, %v5801, 0
        %v5897 = vsel %vm951, %v5802, 0
        %5899 = vmatprep.subr.bf16.mxu0 0
        %5900 = vmatpush1.bf16.msra.mxu0 0
        %5901 = vmatprep.subr.bf16.mxu0 0
        %5902 = vmatpush1.bf16.msra.mxu0 0
        %5903 = vmatprep.subr.bf16.mxu0 0
        %5904 = vmatpush1.bf16.msra.mxu0 0
        %5905 = vmatprep.subr.bf16.mxu0 0
        %5906 = vmatpush1.bf16.msra.mxu0 0
        %5907 = vmatprep.subr.bf16.mxu0 0
        %5908 = vmatpush1.bf16.msra.mxu0 0
        %5909 = vmatprep.subr.bf16.mxu0 0
        %5910 = vmatpush1.bf16.msra.mxu0 0
        %5911 = vmatprep.subr.bf16.mxu0 0
        %5912 = vmatpush1.bf16.msra.mxu0 %v4552
        %5913 = vmatprep.subr.bf16.mxu0 0
        %5914 = vmatpush1.bf16.msra.mxu0 %v4551
        %5915 = vmatprep.subr.bf16.mxu0 0
        %5916 = vmatpush2.bf16.msra.mxu0 0
        %5917 = vmatprep.subr.bf16.mxu0 0
        %5918 = vmatpush2.bf16.msra.mxu0 0
        %5919 = vmatprep.subr.bf16.mxu0 0
        %5920 = vmatpush2.bf16.msra.mxu0 0
        %5921 = vmatprep.subr.bf16.mxu0 0
        %5922 = vmatpush2.bf16.msra.mxu0 0
        %5923 = vmatprep.subr.bf16.mxu0 0
        %5924 = vmatpush2.bf16.msra.mxu0 0
        %5925 = vmatprep.subr.bf16.mxu0 0
        %5926 = vmatpush2.bf16.msra.mxu0 0
        %5927 = vmatprep.subr.bf16.mxu0 0
        %5928 = vmatpush2.bf16.msra.mxu0 0
        %5929 = vmatprep.subr.bf16.mxu0 0
        %5930 = vmatpush2.bf16.msra.mxu0 0
        %5931 = vmatprep.mubr.bf16.mxu0 0
        %5932 = vmatmul.mubr.bf16.gmra.mxu0 %v5804
        %v5933 = vpop.f32.mrf.mxu0
        %v5934 = vadd.f32 0.0, %v5933
        %v5935 = vpop.f32.mrf.mxu0
        %v5936 = vpop.f32.mrf.mxu0
        %v5937 = vadd.f32 0.0, %v5936
        %v5938 = vpop.f32.mrf.mxu0
        %5939 = vmatprep.mubr.bf16.mxu0 0
        %5940 = vmatmul.mubr.bf16.gmra.mxu0 %v5807
        %v5941 = vpop.f32.mrf.mxu0
        %v5942 = vadd.f32 0.0, %v5941
        %v5943 = vpop.f32.mrf.mxu0
        %v5944 = vpop.f32.mrf.mxu0
        %v5945 = vadd.f32 0.0, %v5944
        %v5946 = vpop.f32.mrf.mxu0
        %5947 = vmatprep.mubr.bf16.mxu0 0
        %5948 = vmatmul.mubr.bf16.gmra.mxu0 %v5810
        %v5949 = vpop.f32.mrf.mxu0
        %v5950 = vadd.f32 0.0, %v5949
        %v5951 = vpop.f32.mrf.mxu0
        %v5952 = vpop.f32.mrf.mxu0
        %v5953 = vadd.f32 0.0, %v5952
        %v5954 = vpop.f32.mrf.mxu0
        %5955 = vmatprep.mubr.bf16.mxu0 0
        %5956 = vmatmul.mubr.bf16.gmra.mxu0 %v5813
        %v5957 = vpop.f32.mrf.mxu0
        %v5958 = vadd.f32 0.0, %v5957
        %v5959 = vpop.f32.mrf.mxu0
        %v5960 = vpop.f32.mrf.mxu0
        %v5961 = vadd.f32 0.0, %v5960
        %v5962 = vpop.f32.mrf.mxu0
        %5963 = vmatprep.mubr.bf16.mxu0 0
        %5964 = vmatmul.mubr.bf16.gmra.mxu0 %v5816
        %v5965 = vpop.f32.mrf.mxu0
        %v5966 = vadd.f32 0.0, %v5965
        %v5967 = vpop.f32.mrf.mxu0
        %v5968 = vpop.f32.mrf.mxu0
        %v5969 = vadd.f32 0.0, %v5968
        %v5970 = vpop.f32.mrf.mxu0
        %5971 = vmatprep.mubr.bf16.mxu0 0
        %5972 = vmatmul.mubr.bf16.gmra.mxu0 %v5819
        %v5973 = vpop.f32.mrf.mxu0
        %v5974 = vadd.f32 0.0, %v5973
        %v5975 = vpop.f32.mrf.mxu0
        %v5976 = vpop.f32.mrf.mxu0
        %v5977 = vadd.f32 0.0, %v5976
        %v5978 = vpop.f32.mrf.mxu0
        %5979 = vmatprep.mubr.bf16.mxu0 0
        %5980 = vmatmul.mubr.bf16.gmra.mxu0 %v5822
        %v5981 = vpop.f32.mrf.mxu0
        %v5982 = vadd.f32 0.0, %v5981
        %v5983 = vpop.f32.mrf.mxu0
        %v5984 = vpop.f32.mrf.mxu0
        %v5985 = vadd.f32 0.0, %v5984
        %v5986 = vpop.f32.mrf.mxu0
        %5987 = vmatprep.mubr.bf16.mxu0 0
        %5988 = vmatmul.mubr.bf16.gmra.mxu0 %v5825
        %v5989 = vpop.f32.mrf.mxu0
        %v5990 = vadd.f32 0.0, %v5989
        %v5991 = vpop.f32.mrf.mxu0
        %v5992 = vpop.f32.mrf.mxu0
        %v5993 = vadd.f32 0.0, %v5992
        %v5994 = vpop.f32.mrf.mxu0
        %5995 = vmatprep.mubr.bf16.mxu0 0
        %5996 = vmatmul.mubr.bf16.gmra.mxu0 %v5828
        %v5997 = vpop.f32.mrf.mxu0
        %v5998 = vadd.f32 0.0, %v5997
        %v5999 = vpop.f32.mrf.mxu0
        %v6000 = vpop.f32.mrf.mxu0
        %v6001 = vadd.f32 0.0, %v6000
        %v6002 = vpop.f32.mrf.mxu0
        %6003 = vmatprep.mubr.bf16.mxu0 0
        %6004 = vmatmul.mubr.bf16.gmra.mxu0 %v5831
        %v6005 = vpop.f32.mrf.mxu0
        %v6006 = vadd.f32 0.0, %v6005
        %v6007 = vpop.f32.mrf.mxu0
        %v6008 = vpop.f32.mrf.mxu0
        %v6009 = vadd.f32 0.0, %v6008
        %v6010 = vpop.f32.mrf.mxu0
        %6011 = vmatprep.mubr.bf16.mxu0 0
        %6012 = vmatmul.mubr.bf16.gmra.mxu0 %v5834
        %v6013 = vpop.f32.mrf.mxu0
        %v6014 = vadd.f32 0.0, %v6013
        %v6015 = vpop.f32.mrf.mxu0
        %v6016 = vpop.f32.mrf.mxu0
        %v6017 = vadd.f32 0.0, %v6016
        %v6018 = vpop.f32.mrf.mxu0
        %6019 = vmatprep.mubr.bf16.mxu0 0
        %6020 = vmatmul.mubr.bf16.gmra.mxu0 %v5837
        %v6021 = vpop.f32.mrf.mxu0
        %v6022 = vadd.f32 0.0, %v6021
        %v6023 = vpop.f32.mrf.mxu0
        %v6024 = vpop.f32.mrf.mxu0
        %v6025 = vadd.f32 0.0, %v6024
        %v6026 = vpop.f32.mrf.mxu0
        %6027 = vmatprep.mubr.bf16.mxu0 0
        %6028 = vmatmul.mubr.bf16.gmra.mxu0 %v5840
        %v6029 = vpop.f32.mrf.mxu0
        %v6030 = vadd.f32 0.0, %v6029
        %v6031 = vpop.f32.mrf.mxu0
        %v6032 = vpop.f32.mrf.mxu0
        %v6033 = vadd.f32 0.0, %v6032
        %v6034 = vpop.f32.mrf.mxu0
        %6035 = vmatprep.mubr.bf16.mxu0 0
        %6036 = vmatmul.mubr.bf16.gmra.mxu0 %v5843
        %v6037 = vpop.f32.mrf.mxu0
        %v6038 = vadd.f32 0.0, %v6037
        %v6039 = vpop.f32.mrf.mxu0
        %v6040 = vpop.f32.mrf.mxu0
        %v6041 = vadd.f32 0.0, %v6040
        %v6042 = vpop.f32.mrf.mxu0
        %6043 = vmatprep.mubr.bf16.mxu0 0
        %6044 = vmatmul.mubr.bf16.gmra.mxu0 %v5846
        %v6045 = vpop.f32.mrf.mxu0
        %v6046 = vadd.f32 0.0, %v6045
        %v6047 = vpop.f32.mrf.mxu0
        %v6048 = vpop.f32.mrf.mxu0
        %v6049 = vadd.f32 0.0, %v6048
        %v6050 = vpop.f32.mrf.mxu0
        %6051 = vmatprep.mubr.bf16.mxu0 0
        %6052 = vmatmul.mubr.bf16.gmra.mxu0 %v5849
        %v6053 = vpop.f32.mrf.mxu0
        %v6054 = vadd.f32 0.0, %v6053
        %v6055 = vpop.f32.mrf.mxu0
        %v6056 = vpop.f32.mrf.mxu0
        %v6057 = vadd.f32 0.0, %v6056
        %v6058 = vpop.f32.mrf.mxu0
        %6059 = vmatprep.mubr.bf16.mxu0 0
        %6060 = vmatmul.mubr.bf16.gmra.mxu0 %v5852
        %v6061 = vpop.f32.mrf.mxu0
        %v6062 = vadd.f32 0.0, %v6061
        %v6063 = vpop.f32.mrf.mxu0
        %v6064 = vpop.f32.mrf.mxu0
        %v6065 = vadd.f32 0.0, %v6064
        %v6066 = vpop.f32.mrf.mxu0
        %6067 = vmatprep.mubr.bf16.mxu0 0
        %6068 = vmatmul.mubr.bf16.gmra.mxu0 %v5855
        %v6069 = vpop.f32.mrf.mxu0
        %v6070 = vadd.f32 0.0, %v6069
        %v6071 = vpop.f32.mrf.mxu0
        %v6072 = vpop.f32.mrf.mxu0
        %v6073 = vadd.f32 0.0, %v6072
        %v6074 = vpop.f32.mrf.mxu0
        %6075 = vmatprep.mubr.bf16.mxu0 0
        %6076 = vmatmul.mubr.bf16.gmra.mxu0 %v5858
        %v6077 = vpop.f32.mrf.mxu0
        %v6078 = vadd.f32 0.0, %v6077
        %v6079 = vpop.f32.mrf.mxu0
        %v6080 = vpop.f32.mrf.mxu0
        %v6081 = vadd.f32 0.0, %v6080
        %v6082 = vpop.f32.mrf.mxu0
        %6083 = vmatprep.mubr.bf16.mxu0 0
        %6084 = vmatmul.mubr.bf16.gmra.mxu0 %v5861
        %v6085 = vpop.f32.mrf.mxu0
        %v6086 = vadd.f32 0.0, %v6085
        %v6087 = vpop.f32.mrf.mxu0
        %v6088 = vpop.f32.mrf.mxu0
        %v6089 = vadd.f32 0.0, %v6088
        %v6090 = vpop.f32.mrf.mxu0
        %6091 = vmatprep.mubr.bf16.mxu0 0
        %6092 = vmatmul.mubr.bf16.gmra.mxu0 %v5864
        %v6093 = vpop.f32.mrf.mxu0
        %v6094 = vadd.f32 0.0, %v6093
        %v6095 = vpop.f32.mrf.mxu0
        %v6096 = vpop.f32.mrf.mxu0
        %v6097 = vadd.f32 0.0, %v6096
        %v6098 = vpop.f32.mrf.mxu0
        %6099 = vmatprep.mubr.bf16.mxu0 0
        %6100 = vmatmul.mubr.bf16.gmra.mxu0 %v5867
        %v6101 = vpop.f32.mrf.mxu0
        %v6102 = vadd.f32 0.0, %v6101
        %v6103 = vpop.f32.mrf.mxu0
        %v6104 = vpop.f32.mrf.mxu0
        %v6105 = vadd.f32 0.0, %v6104
        %v6106 = vpop.f32.mrf.mxu0
        %6107 = vmatprep.mubr.bf16.mxu0 0
        %6108 = vmatmul.mubr.bf16.gmra.mxu0 %v5870
        %v6109 = vpop.f32.mrf.mxu0
        %v6110 = vadd.f32 0.0, %v6109
        %v6111 = vpop.f32.mrf.mxu0
        %v6112 = vpop.f32.mrf.mxu0
        %v6113 = vadd.f32 0.0, %v6112
        %v6114 = vpop.f32.mrf.mxu0
        %6115 = vmatprep.mubr.bf16.mxu0 0
        %6116 = vmatmul.mubr.bf16.gmra.mxu0 %v5873
        %v6117 = vpop.f32.mrf.mxu0
        %v6118 = vadd.f32 0.0, %v6117
        %v6119 = vpop.f32.mrf.mxu0
        %v6120 = vpop.f32.mrf.mxu0
        %v6121 = vadd.f32 0.0, %v6120
        %v6122 = vpop.f32.mrf.mxu0
        %6123 = vmatprep.mubr.bf16.mxu0 0
        %6124 = vmatmul.mubr.bf16.gmra.mxu0 %v5876
        %v6125 = vpop.f32.mrf.mxu0
        %v6126 = vadd.f32 0.0, %v6125
        %v6127 = vpop.f32.mrf.mxu0
        %v6128 = vpop.f32.mrf.mxu0
        %v6129 = vadd.f32 0.0, %v6128
        %v6130 = vpop.f32.mrf.mxu0
        %6131 = vmatprep.mubr.bf16.mxu0 0
        %6132 = vmatmul.mubr.bf16.gmra.mxu0 %v5879
        %v6133 = vpop.f32.mrf.mxu0
        %v6134 = vadd.f32 0.0, %v6133
        %v6135 = vpop.f32.mrf.mxu0
        %v6136 = vpop.f32.mrf.mxu0
        %v6137 = vadd.f32 0.0, %v6136
        %v6138 = vpop.f32.mrf.mxu0
        %6139 = vmatprep.mubr.bf16.mxu0 0
        %6140 = vmatmul.mubr.bf16.gmra.mxu0 %v5882
        %v6141 = vpop.f32.mrf.mxu0
        %v6142 = vadd.f32 0.0, %v6141
        %v6143 = vpop.f32.mrf.mxu0
        %v6144 = vpop.f32.mrf.mxu0
        %v6145 = vadd.f32 0.0, %v6144
        %v6146 = vpop.f32.mrf.mxu0
        %6147 = vmatprep.mubr.bf16.mxu0 0
        %6148 = vmatmul.mubr.bf16.gmra.mxu0 %v5885
        %v6149 = vpop.f32.mrf.mxu0
        %v6150 = vadd.f32 0.0, %v6149
        %v6151 = vpop.f32.mrf.mxu0
        %v6152 = vpop.f32.mrf.mxu0
        %v6153 = vadd.f32 0.0, %v6152
        %v6154 = vpop.f32.mrf.mxu0
        %6155 = vmatprep.mubr.bf16.mxu0 0
        %6156 = vmatmul.mubr.bf16.gmra.mxu0 %v5888
        %v6157 = vpop.f32.mrf.mxu0
        %v6158 = vadd.f32 0.0, %v6157
        %v6159 = vpop.f32.mrf.mxu0
        %v6160 = vpop.f32.mrf.mxu0
        %v6161 = vadd.f32 0.0, %v6160
        %v6162 = vpop.f32.mrf.mxu0
        %6163 = vmatprep.mubr.bf16.mxu0 0
        %6164 = vmatmul.mubr.bf16.gmra.mxu0 %v5891
        %v6165 = vpop.f32.mrf.mxu0
        %v6166 = vadd.f32 0.0, %v6165
        %v6167 = vpop.f32.mrf.mxu0
        %v6168 = vpop.f32.mrf.mxu0
        %v6169 = vadd.f32 0.0, %v6168
        %v6170 = vpop.f32.mrf.mxu0
        %6171 = vmatprep.mubr.bf16.mxu0 0
        %6172 = vmatmul.mubr.bf16.gmra.mxu0 %v5894
        %v6173 = vpop.f32.mrf.mxu0
        %v6174 = vadd.f32 0.0, %v6173
        %v6175 = vpop.f32.mrf.mxu0
        %v6176 = vpop.f32.mrf.mxu0
        %v6177 = vadd.f32 0.0, %v6176
        %v6178 = vpop.f32.mrf.mxu0
        %6179 = vmatprep.mubr.bf16.mxu0 0
        %6180 = vmatmul.mubr.bf16.gmra.mxu0 %v5897
        %v6181 = vpop.f32.mrf.mxu0
        %v6182 = vadd.f32 0.0, %v6181
        %v6183 = vpop.f32.mrf.mxu0
        %v6184 = vpop.f32.mrf.mxu0
        %v6185 = vadd.f32 0.0, %v6184
        %v6186 = vpop.f32.mrf.mxu0
        %6187 = vdwg.mxu0
        %6188 = vxpose.xlu0.b32.start [1/16] %v4844, 128
        %6189 = vxpose.xlu0.b32.cont [2/16] %v4847, 128
        %6190 = vxpose.xlu0.b32.cont [3/16] %v4852, 128
        %6191 = vxpose.xlu0.b32.cont [4/16] %v4855, 128
        %6192 = vxpose.xlu0.b32.cont [5/16] %v4860, 128
        %6193 = vxpose.xlu0.b32.cont [6/16] %v4863, 128
        %6194 = vxpose.xlu0.b32.cont [7/16] %v4868, 128
        %6195 = vxpose.xlu0.b32.cont [8/16] %v4871, 128
        %6196 = vxpose.xlu0.b32.cont [9/16] 0.0, 128
        %6197 = vxpose.xlu0.b32.cont [10/16] 0.0, 128
        %6198 = vxpose.xlu0.b32.cont [11/16] 0.0, 128
        %6199 = vxpose.xlu0.b32.cont [12/16] 0.0, 128
        %6200 = vxpose.xlu0.b32.cont [13/16] 0.0, 128
        %6201 = vxpose.xlu0.b32.cont [14/16] 0.0, 128
        %6202 = vxpose.xlu0.b32.cont [15/16] 0.0, 128
        %6203 = vxpose.xlu0.b32.end [16/16] 0.0, 128
        %v6204 = vpop.trf.xlu0
        %v6205 = vpop.trf.xlu0
        %v6206 = vpop.trf.xlu0
        %v6207 = vpop.trf.xlu0
        %v6208 = vpop.trf.xlu0
        %v6209 = vpop.trf.xlu0
        %v6210 = vpop.trf.xlu0
        %v6211 = vpop.trf.xlu0
        %v6212 = vpop.trf.xlu0
        %v6213 = vpop.trf.xlu0
        %v6214 = vpop.trf.xlu0
        %v6215 = vpop.trf.xlu0
        %v6216 = vpop.trf.xlu0
        %v6217 = vpop.trf.xlu0
        %v6218 = vpop.trf.xlu0
        %v6219 = vpop.trf.xlu0
        %6220 = vxpose.xlu0.b32.start [1/16] %v4876, 128
        %6221 = vxpose.xlu0.b32.cont [2/16] %v4879, 128
        %6222 = vxpose.xlu0.b32.cont [3/16] %v4884, 128
        %6223 = vxpose.xlu0.b32.cont [4/16] %v4887, 128
        %6224 = vxpose.xlu0.b32.cont [5/16] %v4892, 128
        %6225 = vxpose.xlu0.b32.cont [6/16] %v4895, 128
        %6226 = vxpose.xlu0.b32.cont [7/16] %v4900, 128
        %6227 = vxpose.xlu0.b32.cont [8/16] %v4903, 128
        %6228 = vxpose.xlu0.b32.cont [9/16] 0.0, 128
        %6229 = vxpose.xlu0.b32.cont [10/16] 0.0, 128
        %6230 = vxpose.xlu0.b32.cont [11/16] 0.0, 128
        %6231 = vxpose.xlu0.b32.cont [12/16] 0.0, 128
        %6232 = vxpose.xlu0.b32.cont [13/16] 0.0, 128
        %6233 = vxpose.xlu0.b32.cont [14/16] 0.0, 128
        %6234 = vxpose.xlu0.b32.cont [15/16] 0.0, 128
        %6235 = vxpose.xlu0.b32.end [16/16] 0.0, 128
        %v6236 = vpop.trf.xlu0
        %v6237 = vpop.trf.xlu0
        %v6238 = vpop.trf.xlu0
        %v6239 = vpop.trf.xlu0
        %v6240 = vpop.trf.xlu0
        %v6241 = vpop.trf.xlu0
        %v6242 = vpop.trf.xlu0
        %v6243 = vpop.trf.xlu0
        %v6244 = vpop.trf.xlu0
        %v6245 = vpop.trf.xlu0
        %v6246 = vpop.trf.xlu0
        %v6247 = vpop.trf.xlu0
        %v6248 = vpop.trf.xlu0
        %v6249 = vpop.trf.xlu0
        %v6250 = vpop.trf.xlu0
        %v6251 = vpop.trf.xlu0
        %6252 = vxpose.xlu0.b32.start [1/16] %v4908, 128
        %6253 = vxpose.xlu0.b32.cont [2/16] %v4911, 128
        %6254 = vxpose.xlu0.b32.cont [3/16] %v4916, 128
        %6255 = vxpose.xlu0.b32.cont [4/16] %v4919, 128
        %6256 = vxpose.xlu0.b32.cont [5/16] %v4924, 128
        %6257 = vxpose.xlu0.b32.cont [6/16] %v4927, 128
        %6258 = vxpose.xlu0.b32.cont [7/16] %v4932, 128
        %6259 = vxpose.xlu0.b32.cont [8/16] %v4935, 128
        %6260 = vxpose.xlu0.b32.cont [9/16] 0.0, 128
        %6261 = vxpose.xlu0.b32.cont [10/16] 0.0, 128
        %6262 = vxpose.xlu0.b32.cont [11/16] 0.0, 128
        %6263 = vxpose.xlu0.b32.cont [12/16] 0.0, 128
        %6264 = vxpose.xlu0.b32.cont [13/16] 0.0, 128
        %6265 = vxpose.xlu0.b32.cont [14/16] 0.0, 128
        %6266 = vxpose.xlu0.b32.cont [15/16] 0.0, 128
        %6267 = vxpose.xlu0.b32.end [16/16] 0.0, 128
        %v6268 = vpop.trf.xlu0
        %v6269 = vpop.trf.xlu0
        %v6270 = vpop.trf.xlu0
        %v6271 = vpop.trf.xlu0
        %v6272 = vpop.trf.xlu0
        %v6273 = vpop.trf.xlu0
        %v6274 = vpop.trf.xlu0
        %v6275 = vpop.trf.xlu0
        %v6276 = vpop.trf.xlu0
        %v6277 = vpop.trf.xlu0
        %v6278 = vpop.trf.xlu0
        %v6279 = vpop.trf.xlu0
        %v6280 = vpop.trf.xlu0
        %v6281 = vpop.trf.xlu0
        %v6282 = vpop.trf.xlu0
        %v6283 = vpop.trf.xlu0
        %6284 = vxpose.xlu0.b32.start [1/16] %v4940, 128
        %6285 = vxpose.xlu0.b32.cont [2/16] %v4943, 128
        %6286 = vxpose.xlu0.b32.cont [3/16] %v4948, 128
        %6287 = vxpose.xlu0.b32.cont [4/16] %v4951, 128
        %6288 = vxpose.xlu0.b32.cont [5/16] %v4956, 128
        %6289 = vxpose.xlu0.b32.cont [6/16] %v4959, 128
        %6290 = vxpose.xlu0.b32.cont [7/16] %v4964, 128
        %6291 = vxpose.xlu0.b32.cont [8/16] %v4967, 128
        %6292 = vxpose.xlu0.b32.cont [9/16] 0.0, 128
        %6293 = vxpose.xlu0.b32.cont [10/16] 0.0, 128
        %6294 = vxpose.xlu0.b32.cont [11/16] 0.0, 128
        %6295 = vxpose.xlu0.b32.cont [12/16] 0.0, 128
        %6296 = vxpose.xlu0.b32.cont [13/16] 0.0, 128
        %6297 = vxpose.xlu0.b32.cont [14/16] 0.0, 128
        %6298 = vxpose.xlu0.b32.cont [15/16] 0.0, 128
        %6299 = vxpose.xlu0.b32.end [16/16] 0.0, 128
        %v6300 = vpop.trf.xlu0
        %v6301 = vpop.trf.xlu0
        %v6302 = vpop.trf.xlu0
        %v6303 = vpop.trf.xlu0
        %v6304 = vpop.trf.xlu0
        %v6305 = vpop.trf.xlu0
        %v6306 = vpop.trf.xlu0
        %v6307 = vpop.trf.xlu0
        %v6308 = vpop.trf.xlu0
        %v6309 = vpop.trf.xlu0
        %v6310 = vpop.trf.xlu0
        %v6311 = vpop.trf.xlu0
        %v6312 = vpop.trf.xlu0
        %v6313 = vpop.trf.xlu0
        %v6314 = vpop.trf.xlu0
        %v6315 = vpop.trf.xlu0
        %6316 = vxpose.xlu0.b32.start [1/16] %v4972, 128
        %6317 = vxpose.xlu0.b32.cont [2/16] %v4975, 128
        %6318 = vxpose.xlu0.b32.cont [3/16] %v4980, 128
        %6319 = vxpose.xlu0.b32.cont [4/16] %v4983, 128
        %6320 = vxpose.xlu0.b32.cont [5/16] %v4988, 128
        %6321 = vxpose.xlu0.b32.cont [6/16] %v4991, 128
        %6322 = vxpose.xlu0.b32.cont [7/16] %v4996, 128
        %6323 = vxpose.xlu0.b32.cont [8/16] %v4999, 128
        %6324 = vxpose.xlu0.b32.cont [9/16] 0.0, 128
        %6325 = vxpose.xlu0.b32.cont [10/16] 0.0, 128
        %6326 = vxpose.xlu0.b32.cont [11/16] 0.0, 128
        %6327 = vxpose.xlu0.b32.cont [12/16] 0.0, 128
        %6328 = vxpose.xlu0.b32.cont [13/16] 0.0, 128
        %6329 = vxpose.xlu0.b32.cont [14/16] 0.0, 128
        %6330 = vxpose.xlu0.b32.cont [15/16] 0.0, 128
        %6331 = vxpose.xlu0.b32.end [16/16] 0.0, 128
        %v6332 = vpop.trf.xlu0
        %v6333 = vpop.trf.xlu0
        %v6334 = vpop.trf.xlu0
        %v6335 = vpop.trf.xlu0
        %v6336 = vpop.trf.xlu0
        %v6337 = vpop.trf.xlu0
        %v6338 = vpop.trf.xlu0
        %v6339 = vpop.trf.xlu0
        %v6340 = vpop.trf.xlu0
        %v6341 = vpop.trf.xlu0
        %v6342 = vpop.trf.xlu0
        %v6343 = vpop.trf.xlu0
        %v6344 = vpop.trf.xlu0
        %v6345 = vpop.trf.xlu0
        %v6346 = vpop.trf.xlu0
        %v6347 = vpop.trf.xlu0
        %6348 = vxpose.xlu0.b32.start [1/16] %v5004, 128
        %6349 = vxpose.xlu0.b32.cont [2/16] %v5007, 128
        %6350 = vxpose.xlu0.b32.cont [3/16] %v5012, 128
        %6351 = vxpose.xlu0.b32.cont [4/16] %v5015, 128
        %6352 = vxpose.xlu0.b32.cont [5/16] %v5020, 128
        %6353 = vxpose.xlu0.b32.cont [6/16] %v5023, 128
        %6354 = vxpose.xlu0.b32.cont [7/16] %v5028, 128
        %6355 = vxpose.xlu0.b32.cont [8/16] %v5031, 128
        %6356 = vxpose.xlu0.b32.cont [9/16] 0.0, 128
        %6357 = vxpose.xlu0.b32.cont [10/16] 0.0, 128
        %6358 = vxpose.xlu0.b32.cont [11/16] 0.0, 128
        %6359 = vxpose.xlu0.b32.cont [12/16] 0.0, 128
        %6360 = vxpose.xlu0.b32.cont [13/16] 0.0, 128
        %6361 = vxpose.xlu0.b32.cont [14/16] 0.0, 128
        %6362 = vxpose.xlu0.b32.cont [15/16] 0.0, 128
        %6363 = vxpose.xlu0.b32.end [16/16] 0.0, 128
        %v6364 = vpop.trf.xlu0
        %v6365 = vpop.trf.xlu0
        %v6366 = vpop.trf.xlu0
        %v6367 = vpop.trf.xlu0
        %v6368 = vpop.trf.xlu0
        %v6369 = vpop.trf.xlu0
        %v6370 = vpop.trf.xlu0
        %v6371 = vpop.trf.xlu0
        %v6372 = vpop.trf.xlu0
        %v6373 = vpop.trf.xlu0
        %v6374 = vpop.trf.xlu0
        %v6375 = vpop.trf.xlu0
        %v6376 = vpop.trf.xlu0
        %v6377 = vpop.trf.xlu0
        %v6378 = vpop.trf.xlu0
        %v6379 = vpop.trf.xlu0
        %6380 = vxpose.xlu0.b32.start [1/16] %v5036, 128
        %6381 = vxpose.xlu0.b32.cont [2/16] %v5039, 128
        %6382 = vxpose.xlu0.b32.cont [3/16] %v5044, 128
        %6383 = vxpose.xlu0.b32.cont [4/16] %v5047, 128
        %6384 = vxpose.xlu0.b32.cont [5/16] %v5052, 128
        %6385 = vxpose.xlu0.b32.cont [6/16] %v5055, 128
        %6386 = vxpose.xlu0.b32.cont [7/16] %v5060, 128
        %6387 = vxpose.xlu0.b32.cont [8/16] %v5063, 128
        %6388 = vxpose.xlu0.b32.cont [9/16] 0.0, 128
        %6389 = vxpose.xlu0.b32.cont [10/16] 0.0, 128
        %6390 = vxpose.xlu0.b32.cont [11/16] 0.0, 128
        %6391 = vxpose.xlu0.b32.cont [12/16] 0.0, 128
        %6392 = vxpose.xlu0.b32.cont [13/16] 0.0, 128
        %6393 = vxpose.xlu0.b32.cont [14/16] 0.0, 128
        %6394 = vxpose.xlu0.b32.cont [15/16] 0.0, 128
        %6395 = vxpose.xlu0.b32.end [16/16] 0.0, 128
        %v6396 = vpop.trf.xlu0
        %v6397 = vpop.trf.xlu0
        %v6398 = vpop.trf.xlu0
        %v6399 = vpop.trf.xlu0
        %v6400 = vpop.trf.xlu0
        %v6401 = vpop.trf.xlu0
        %v6402 = vpop.trf.xlu0
        %v6403 = vpop.trf.xlu0
        %v6404 = vpop.trf.xlu0
        %v6405 = vpop.trf.xlu0
        %v6406 = vpop.trf.xlu0
        %v6407 = vpop.trf.xlu0
        %v6408 = vpop.trf.xlu0
        %v6409 = vpop.trf.xlu0
        %v6410 = vpop.trf.xlu0
        %v6411 = vpop.trf.xlu0
        %6412 = vxpose.xlu0.b32.start [1/16] %v5068, 128
        %6413 = vxpose.xlu0.b32.cont [2/16] %v5071, 128
        %6414 = vxpose.xlu0.b32.cont [3/16] %v5076, 128
        %6415 = vxpose.xlu0.b32.cont [4/16] %v5079, 128
        %6416 = vxpose.xlu0.b32.cont [5/16] %v5084, 128
        %6417 = vxpose.xlu0.b32.cont [6/16] %v5087, 128
        %6418 = vxpose.xlu0.b32.cont [7/16] %v5092, 128
        %6419 = vxpose.xlu0.b32.cont [8/16] %v5095, 128
        %6420 = vxpose.xlu0.b32.cont [9/16] 0.0, 128
        %6421 = vxpose.xlu0.b32.cont [10/16] 0.0, 128
        %6422 = vxpose.xlu0.b32.cont [11/16] 0.0, 128
        %6423 = vxpose.xlu0.b32.cont [12/16] 0.0, 128
        %6424 = vxpose.xlu0.b32.cont [13/16] 0.0, 128
        %6425 = vxpose.xlu0.b32.cont [14/16] 0.0, 128
        %6426 = vxpose.xlu0.b32.cont [15/16] 0.0, 128
        %6427 = vxpose.xlu0.b32.end [16/16] 0.0, 128
        %v6428 = vpop.trf.xlu0
        %v6429 = vpop.trf.xlu0
        %v6430 = vpop.trf.xlu0
        %v6431 = vpop.trf.xlu0
        %v6432 = vpop.trf.xlu0
        %v6433 = vpop.trf.xlu0
        %v6434 = vpop.trf.xlu0
        %v6435 = vpop.trf.xlu0
        %v6436 = vpop.trf.xlu0
        %v6437 = vpop.trf.xlu0
        %v6438 = vpop.trf.xlu0
        %v6439 = vpop.trf.xlu0
        %v6440 = vpop.trf.xlu0
        %v6441 = vpop.trf.xlu0
        %v6442 = vpop.trf.xlu0
        %v6443 = vpop.trf.xlu0
        %v6444 = vpack.c.bf16 %v6204, %v6204
        %v6445 = vpack.c.bf16 %v6236, %v6236
        %v6446 = vpack.c.bf16 %v6268, %v6268
        %v6447 = vpack.c.bf16 %v6300, %v6300
        %v6448 = vpack.c.bf16 %v6332, %v6332
        %v6449 = vpack.c.bf16 %v6364, %v6364
        %v6450 = vpack.c.bf16 %v6396, %v6396
        %v6451 = vpack.c.bf16 %v6428, %v6428
        %v6452 = vpack.c.bf16 %v5392, %v5389
        %v6453 = vpack.c.bf16 %v5400, %v5397
        %v6454 = vpack.c.bf16 %v5408, %v5405
        %v6455 = vpack.c.bf16 %v5416, %v5413
        %v6456 = vpack.c.bf16 %v5424, %v5421
        %v6457 = vpack.c.bf16 %v5432, %v5429
        %v6458 = vpack.c.bf16 %v5440, %v5437
        %v6459 = vpack.c.bf16 %v5448, %v5445
        %v6460 = vpack.c.bf16 %v5456, %v5453
        %v6461 = vpack.c.bf16 %v5464, %v5461
        %v6462 = vpack.c.bf16 %v5472, %v5469
        %v6463 = vpack.c.bf16 %v5480, %v5477
        %v6464 = vpack.c.bf16 %v5488, %v5485
        %v6465 = vpack.c.bf16 %v5496, %v5493
        %v6466 = vpack.c.bf16 %v5504, %v5501
        %v6467 = vpack.c.bf16 %v5512, %v5509
        %v6468 = vpack.c.bf16 %v5520, %v5517
        %v6469 = vpack.c.bf16 %v5528, %v5525
        %v6470 = vpack.c.bf16 %v5536, %v5533
        %v6471 = vpack.c.bf16 %v5544, %v5541
        %v6472 = vpack.c.bf16 %v5552, %v5549
        %v6473 = vpack.c.bf16 %v5560, %v5557
        %v6474 = vpack.c.bf16 %v5568, %v5565
        %v6475 = vpack.c.bf16 %v5576, %v5573
        %v6476 = vpack.c.bf16 %v5584, %v5581
        %v6477 = vpack.c.bf16 %v5592, %v5589
        %v6478 = vpack.c.bf16 %v5600, %v5597
        %v6479 = vpack.c.bf16 %v5608, %v5605
        %v6480 = vpack.c.bf16 %v5616, %v5613
        %v6481 = vpack.c.bf16 %v5624, %v5621
        %v6482 = vpack.c.bf16 %v5632, %v5629
        %v6483 = vpack.c.bf16 %v5640, %v5637
        %v6485 = vsel %vm2723, %v6444, 0
        %6487 = vmatprep.subr.bf16.mxu0 0
        %6488 = vmatpush1.bf16.msra.mxu0 0
        %6489 = vmatprep.subr.bf16.mxu0 0
        %6490 = vmatpush1.bf16.msra.mxu0 0
        %6491 = vmatprep.subr.bf16.mxu0 0
        %6492 = vmatpush1.bf16.msra.mxu0 0
        %6493 = vmatprep.subr.bf16.mxu0 0
        %6494 = vmatpush1.bf16.msra.mxu0 0
        %6495 = vmatprep.subr.bf16.mxu0 0
        %6496 = vmatpush1.bf16.msra.mxu0 %v6455
        %6497 = vmatprep.subr.bf16.mxu0 0
        %6498 = vmatpush1.bf16.msra.mxu0 %v6454
        %6499 = vmatprep.subr.bf16.mxu0 0
        %6500 = vmatpush1.bf16.msra.mxu0 %v6453
        %6501 = vmatprep.subr.bf16.mxu0 0
        %6502 = vmatpush1.bf16.msra.mxu0 %v6452
        %6503 = vmatprep.subr.bf16.mxu0 0
        %6504 = vmatpush2.bf16.msra.mxu0 0
        %6505 = vmatprep.subr.bf16.mxu0 0
        %6506 = vmatpush2.bf16.msra.mxu0 0
        %6507 = vmatprep.subr.bf16.mxu0 0
        %6508 = vmatpush2.bf16.msra.mxu0 0
        %6509 = vmatprep.subr.bf16.mxu0 0
        %6510 = vmatpush2.bf16.msra.mxu0 0
        %6511 = vmatprep.subr.bf16.mxu0 0
        %6512 = vmatpush2.bf16.msra.mxu0 0
        %6513 = vmatprep.subr.bf16.mxu0 0
        %6514 = vmatpush2.bf16.msra.mxu0 0
        %6515 = vmatprep.subr.bf16.mxu0 0
        %6516 = vmatpush2.bf16.msra.mxu0 0
        %6517 = vmatprep.subr.bf16.mxu0 0
        %6518 = vmatpush2.bf16.msra.mxu0 0
        %6519 = vmatprep.mubr.bf16.mxu0 0
        %6520 = vmatmul.mubr.bf16.gmra.mxu0 %v6485
        %v6521 = vpop.f32.mrf.mxu0
        %v6522 = vadd.f32 0.0, %v6521
        %v6523 = vpop.f32.mrf.mxu0
        %v6524 = vpop.f32.mrf.mxu0
        %v6525 = vpop.f32.mrf.mxu0
        %6526 = vdwg.mxu0
        %v6528 = vsel %vm2723, %v6445, 0
        %6530 = vmatprep.subr.bf16.mxu0 0
        %6531 = vmatpush1.bf16.msra.mxu0 0
        %6532 = vmatprep.subr.bf16.mxu0 0
        %6533 = vmatpush1.bf16.msra.mxu0 0
        %6534 = vmatprep.subr.bf16.mxu0 0
        %6535 = vmatpush1.bf16.msra.mxu0 0
        %6536 = vmatprep.subr.bf16.mxu0 0
        %6537 = vmatpush1.bf16.msra.mxu0 0
        %6538 = vmatprep.subr.bf16.mxu0 0
        %6539 = vmatpush1.bf16.msra.mxu0 %v6459
        %6540 = vmatprep.subr.bf16.mxu0 0
        %6541 = vmatpush1.bf16.msra.mxu0 %v6458
        %6542 = vmatprep.subr.bf16.mxu0 0
        %6543 = vmatpush1.bf16.msra.mxu0 %v6457
        %6544 = vmatprep.subr.bf16.mxu0 0
        %6545 = vmatpush1.bf16.msra.mxu0 %v6456
        %6546 = vmatprep.subr.bf16.mxu0 0
        %6547 = vmatpush2.bf16.msra.mxu0 0
        %6548 = vmatprep.subr.bf16.mxu0 0
        %6549 = vmatpush2.bf16.msra.mxu0 0
        %6550 = vmatprep.subr.bf16.mxu0 0
        %6551 = vmatpush2.bf16.msra.mxu0 0
        %6552 = vmatprep.subr.bf16.mxu0 0
        %6553 = vmatpush2.bf16.msra.mxu0 0
        %6554 = vmatprep.subr.bf16.mxu0 0
        %6555 = vmatpush2.bf16.msra.mxu0 0
        %6556 = vmatprep.subr.bf16.mxu0 0
        %6557 = vmatpush2.bf16.msra.mxu0 0
        %6558 = vmatprep.subr.bf16.mxu0 0
        %6559 = vmatpush2.bf16.msra.mxu0 0
        %6560 = vmatprep.subr.bf16.mxu0 0
        %6561 = vmatpush2.bf16.msra.mxu0 0
        %6562 = vmatprep.mubr.bf16.mxu0 0
        %6563 = vmatmul.mubr.bf16.gmra.mxu0 %v6528
        %v6564 = vpop.f32.mrf.mxu0
        %v6565 = vadd.f32 0.0, %v6564
        %v6566 = vpop.f32.mrf.mxu0
        %v6567 = vpop.f32.mrf.mxu0
        %v6568 = vpop.f32.mrf.mxu0
        %6569 = vdwg.mxu0
        %v6571 = vsel %vm2723, %v6446, 0
        %6573 = vmatprep.subr.bf16.mxu0 0
        %6574 = vmatpush1.bf16.msra.mxu0 0
        %6575 = vmatprep.subr.bf16.mxu0 0
        %6576 = vmatpush1.bf16.msra.mxu0 0
        %6577 = vmatprep.subr.bf16.mxu0 0
        %6578 = vmatpush1.bf16.msra.mxu0 0
        %6579 = vmatprep.subr.bf16.mxu0 0
        %6580 = vmatpush1.bf16.msra.mxu0 0
        %6581 = vmatprep.subr.bf16.mxu0 0
        %6582 = vmatpush1.bf16.msra.mxu0 %v6463
        %6583 = vmatprep.subr.bf16.mxu0 0
        %6584 = vmatpush1.bf16.msra.mxu0 %v6462
        %6585 = vmatprep.subr.bf16.mxu0 0
        %6586 = vmatpush1.bf16.msra.mxu0 %v6461
        %6587 = vmatprep.subr.bf16.mxu0 0
        %6588 = vmatpush1.bf16.msra.mxu0 %v6460
        %6589 = vmatprep.subr.bf16.mxu0 0
        %6590 = vmatpush2.bf16.msra.mxu0 0
        %6591 = vmatprep.subr.bf16.mxu0 0
        %6592 = vmatpush2.bf16.msra.mxu0 0
        %6593 = vmatprep.subr.bf16.mxu0 0
        %6594 = vmatpush2.bf16.msra.mxu0 0
        %6595 = vmatprep.subr.bf16.mxu0 0
        %6596 = vmatpush2.bf16.msra.mxu0 0
        %6597 = vmatprep.subr.bf16.mxu0 0
        %6598 = vmatpush2.bf16.msra.mxu0 0
        %6599 = vmatprep.subr.bf16.mxu0 0
        %6600 = vmatpush2.bf16.msra.mxu0 0
        %6601 = vmatprep.subr.bf16.mxu0 0
        %6602 = vmatpush2.bf16.msra.mxu0 0
        %6603 = vmatprep.subr.bf16.mxu0 0
        %6604 = vmatpush2.bf16.msra.mxu0 0
        %6605 = vmatprep.mubr.bf16.mxu0 0
        %6606 = vmatmul.mubr.bf16.gmra.mxu0 %v6571
        %v6607 = vpop.f32.mrf.mxu0
        %v6608 = vadd.f32 0.0, %v6607
        %v6609 = vpop.f32.mrf.mxu0
        %v6610 = vpop.f32.mrf.mxu0
        %v6611 = vpop.f32.mrf.mxu0
        %6612 = vdwg.mxu0
        %v6614 = vsel %vm2723, %v6447, 0
        %6616 = vmatprep.subr.bf16.mxu0 0
        %6617 = vmatpush1.bf16.msra.mxu0 0
        %6618 = vmatprep.subr.bf16.mxu0 0
        %6619 = vmatpush1.bf16.msra.mxu0 0
        %6620 = vmatprep.subr.bf16.mxu0 0
        %6621 = vmatpush1.bf16.msra.mxu0 0
        %6622 = vmatprep.subr.bf16.mxu0 0
        %6623 = vmatpush1.bf16.msra.mxu0 0
        %6624 = vmatprep.subr.bf16.mxu0 0
        %6625 = vmatpush1.bf16.msra.mxu0 %v6467
        %6626 = vmatprep.subr.bf16.mxu0 0
        %6627 = vmatpush1.bf16.msra.mxu0 %v6466
        %6628 = vmatprep.subr.bf16.mxu0 0
        %6629 = vmatpush1.bf16.msra.mxu0 %v6465
        %6630 = vmatprep.subr.bf16.mxu0 0
        %6631 = vmatpush1.bf16.msra.mxu0 %v6464
        %6632 = vmatprep.subr.bf16.mxu0 0
        %6633 = vmatpush2.bf16.msra.mxu0 0
        %6634 = vmatprep.subr.bf16.mxu0 0
        %6635 = vmatpush2.bf16.msra.mxu0 0
        %6636 = vmatprep.subr.bf16.mxu0 0
        %6637 = vmatpush2.bf16.msra.mxu0 0
        %6638 = vmatprep.subr.bf16.mxu0 0
        %6639 = vmatpush2.bf16.msra.mxu0 0
        %6640 = vmatprep.subr.bf16.mxu0 0
        %6641 = vmatpush2.bf16.msra.mxu0 0
        %6642 = vmatprep.subr.bf16.mxu0 0
        %6643 = vmatpush2.bf16.msra.mxu0 0
        %6644 = vmatprep.subr.bf16.mxu0 0
        %6645 = vmatpush2.bf16.msra.mxu0 0
        %6646 = vmatprep.subr.bf16.mxu0 0
        %6647 = vmatpush2.bf16.msra.mxu0 0
        %6648 = vmatprep.mubr.bf16.mxu0 0
        %6649 = vmatmul.mubr.bf16.gmra.mxu0 %v6614
        %v6650 = vpop.f32.mrf.mxu0
        %v6651 = vadd.f32 0.0, %v6650
        %v6652 = vpop.f32.mrf.mxu0
        %v6653 = vpop.f32.mrf.mxu0
        %v6654 = vpop.f32.mrf.mxu0
        %6655 = vdwg.mxu0
        %v6657 = vsel %vm2723, %v6448, 0
        %6659 = vmatprep.subr.bf16.mxu0 0
        %6660 = vmatpush1.bf16.msra.mxu0 0
        %6661 = vmatprep.subr.bf16.mxu0 0
        %6662 = vmatpush1.bf16.msra.mxu0 0
        %6663 = vmatprep.subr.bf16.mxu0 0
        %6664 = vmatpush1.bf16.msra.mxu0 0
        %6665 = vmatprep.subr.bf16.mxu0 0
        %6666 = vmatpush1.bf16.msra.mxu0 0
        %6667 = vmatprep.subr.bf16.mxu0 0
        %6668 = vmatpush1.bf16.msra.mxu0 %v6471
        %6669 = vmatprep.subr.bf16.mxu0 0
        %6670 = vmatpush1.bf16.msra.mxu0 %v6470
        %6671 = vmatprep.subr.bf16.mxu0 0
        %6672 = vmatpush1.bf16.msra.mxu0 %v6469
        %6673 = vmatprep.subr.bf16.mxu0 0
        %6674 = vmatpush1.bf16.msra.mxu0 %v6468
        %6675 = vmatprep.subr.bf16.mxu0 0
        %6676 = vmatpush2.bf16.msra.mxu0 0
        %6677 = vmatprep.subr.bf16.mxu0 0
        %6678 = vmatpush2.bf16.msra.mxu0 0
        %6679 = vmatprep.subr.bf16.mxu0 0
        %6680 = vmatpush2.bf16.msra.mxu0 0
        %6681 = vmatprep.subr.bf16.mxu0 0
        %6682 = vmatpush2.bf16.msra.mxu0 0
        %6683 = vmatprep.subr.bf16.mxu0 0
        %6684 = vmatpush2.bf16.msra.mxu0 0
        %6685 = vmatprep.subr.bf16.mxu0 0
        %6686 = vmatpush2.bf16.msra.mxu0 0
        %6687 = vmatprep.subr.bf16.mxu0 0
        %6688 = vmatpush2.bf16.msra.mxu0 0
        %6689 = vmatprep.subr.bf16.mxu0 0
        %6690 = vmatpush2.bf16.msra.mxu0 0
        %6691 = vmatprep.mubr.bf16.mxu0 0
        %6692 = vmatmul.mubr.bf16.gmra.mxu0 %v6657
        %v6693 = vpop.f32.mrf.mxu0
        %v6694 = vadd.f32 0.0, %v6693
        %v6695 = vpop.f32.mrf.mxu0
        %v6696 = vpop.f32.mrf.mxu0
        %v6697 = vpop.f32.mrf.mxu0
        %6698 = vdwg.mxu0
        %v6700 = vsel %vm2723, %v6449, 0
        %6702 = vmatprep.subr.bf16.mxu0 0
        %6703 = vmatpush1.bf16.msra.mxu0 0
        %6704 = vmatprep.subr.bf16.mxu0 0
        %6705 = vmatpush1.bf16.msra.mxu0 0
        %6706 = vmatprep.subr.bf16.mxu0 0
        %6707 = vmatpush1.bf16.msra.mxu0 0
        %6708 = vmatprep.subr.bf16.mxu0 0
        %6709 = vmatpush1.bf16.msra.mxu0 0
        %6710 = vmatprep.subr.bf16.mxu0 0
        %6711 = vmatpush1.bf16.msra.mxu0 %v6475
        %6712 = vmatprep.subr.bf16.mxu0 0
        %6713 = vmatpush1.bf16.msra.mxu0 %v6474
        %6714 = vmatprep.subr.bf16.mxu0 0
        %6715 = vmatpush1.bf16.msra.mxu0 %v6473
        %6716 = vmatprep.subr.bf16.mxu0 0
        %6717 = vmatpush1.bf16.msra.mxu0 %v6472
        %6718 = vmatprep.subr.bf16.mxu0 0
        %6719 = vmatpush2.bf16.msra.mxu0 0
        %6720 = vmatprep.subr.bf16.mxu0 0
        %6721 = vmatpush2.bf16.msra.mxu0 0
        %6722 = vmatprep.subr.bf16.mxu0 0
        %6723 = vmatpush2.bf16.msra.mxu0 0
        %6724 = vmatprep.subr.bf16.mxu0 0
        %6725 = vmatpush2.bf16.msra.mxu0 0
        %6726 = vmatprep.subr.bf16.mxu0 0
        %6727 = vmatpush2.bf16.msra.mxu0 0
        %6728 = vmatprep.subr.bf16.mxu0 0
        %6729 = vmatpush2.bf16.msra.mxu0 0
        %6730 = vmatprep.subr.bf16.mxu0 0
        %6731 = vmatpush2.bf16.msra.mxu0 0
        %6732 = vmatprep.subr.bf16.mxu0 0
        %6733 = vmatpush2.bf16.msra.mxu0 0
        %6734 = vmatprep.mubr.bf16.mxu0 0
        %6735 = vmatmul.mubr.bf16.gmra.mxu0 %v6700
        %v6736 = vpop.f32.mrf.mxu0
        %v6737 = vadd.f32 0.0, %v6736
        %v6738 = vpop.f32.mrf.mxu0
        %v6739 = vpop.f32.mrf.mxu0
        %v6740 = vpop.f32.mrf.mxu0
        %6741 = vdwg.mxu0
        %v6743 = vsel %vm2723, %v6450, 0
        %6745 = vmatprep.subr.bf16.mxu0 0
        %6746 = vmatpush1.bf16.msra.mxu0 0
        %6747 = vmatprep.subr.bf16.mxu0 0
        %6748 = vmatpush1.bf16.msra.mxu0 0
        %6749 = vmatprep.subr.bf16.mxu0 0
        %6750 = vmatpush1.bf16.msra.mxu0 0
        %6751 = vmatprep.subr.bf16.mxu0 0
        %6752 = vmatpush1.bf16.msra.mxu0 0
        %6753 = vmatprep.subr.bf16.mxu0 0
        %6754 = vmatpush1.bf16.msra.mxu0 %v6479
        %6755 = vmatprep.subr.bf16.mxu0 0
        %6756 = vmatpush1.bf16.msra.mxu0 %v6478
        %6757 = vmatprep.subr.bf16.mxu0 0
        %6758 = vmatpush1.bf16.msra.mxu0 %v6477
        %6759 = vmatprep.subr.bf16.mxu0 0
        %6760 = vmatpush1.bf16.msra.mxu0 %v6476
        %6761 = vmatprep.subr.bf16.mxu0 0
        %6762 = vmatpush2.bf16.msra.mxu0 0
        %6763 = vmatprep.subr.bf16.mxu0 0
        %6764 = vmatpush2.bf16.msra.mxu0 0
        %6765 = vmatprep.subr.bf16.mxu0 0
        %6766 = vmatpush2.bf16.msra.mxu0 0
        %6767 = vmatprep.subr.bf16.mxu0 0
        %6768 = vmatpush2.bf16.msra.mxu0 0
        %6769 = vmatprep.subr.bf16.mxu0 0
        %6770 = vmatpush2.bf16.msra.mxu0 0
        %6771 = vmatprep.subr.bf16.mxu0 0
        %6772 = vmatpush2.bf16.msra.mxu0 0
        %6773 = vmatprep.subr.bf16.mxu0 0
        %6774 = vmatpush2.bf16.msra.mxu0 0
        %6775 = vmatprep.subr.bf16.mxu0 0
        %6776 = vmatpush2.bf16.msra.mxu0 0
        %6777 = vmatprep.mubr.bf16.mxu0 0
        %6778 = vmatmul.mubr.bf16.gmra.mxu0 %v6743
        %v6779 = vpop.f32.mrf.mxu0
        %v6780 = vadd.f32 0.0, %v6779
        %v6781 = vpop.f32.mrf.mxu0
        %v6782 = vpop.f32.mrf.mxu0
        %v6783 = vpop.f32.mrf.mxu0
        %6784 = vdwg.mxu0
        %v6786 = vsel %vm2723, %v6451, 0
        %6788 = vmatprep.subr.bf16.mxu0 0
        %6789 = vmatpush1.bf16.msra.mxu0 0
        %6790 = vmatprep.subr.bf16.mxu0 0
        %6791 = vmatpush1.bf16.msra.mxu0 0
        %6792 = vmatprep.subr.bf16.mxu0 0
        %6793 = vmatpush1.bf16.msra.mxu0 0
        %6794 = vmatprep.subr.bf16.mxu0 0
        %6795 = vmatpush1.bf16.msra.mxu0 0
        %6796 = vmatprep.subr.bf16.mxu0 0
        %6797 = vmatpush1.bf16.msra.mxu0 %v6483
        %6798 = vmatprep.subr.bf16.mxu0 0
        %6799 = vmatpush1.bf16.msra.mxu0 %v6482
        %6800 = vmatprep.subr.bf16.mxu0 0
        %6801 = vmatpush1.bf16.msra.mxu0 %v6481
        %6802 = vmatprep.subr.bf16.mxu0 0
        %6803 = vmatpush1.bf16.msra.mxu0 %v6480
        %6804 = vmatprep.subr.bf16.mxu0 0
        %6805 = vmatpush2.bf16.msra.mxu0 0
        %6806 = vmatprep.subr.bf16.mxu0 0
        %6807 = vmatpush2.bf16.msra.mxu0 0
        %6808 = vmatprep.subr.bf16.mxu0 0
        %6809 = vmatpush2.bf16.msra.mxu0 0
        %6810 = vmatprep.subr.bf16.mxu0 0
        %6811 = vmatpush2.bf16.msra.mxu0 0
        %6812 = vmatprep.subr.bf16.mxu0 0
        %6813 = vmatpush2.bf16.msra.mxu0 0
        %6814 = vmatprep.subr.bf16.mxu0 0
        %6815 = vmatpush2.bf16.msra.mxu0 0
        %6816 = vmatprep.subr.bf16.mxu0 0
        %6817 = vmatpush2.bf16.msra.mxu0 0
        %6818 = vmatprep.subr.bf16.mxu0 0
        %6819 = vmatpush2.bf16.msra.mxu0 0
        %6820 = vmatprep.mubr.bf16.mxu0 0
        %6821 = vmatmul.mubr.bf16.gmra.mxu0 %v6786
        %v6822 = vpop.f32.mrf.mxu0
        %v6823 = vadd.f32 0.0, %v6822
        %v6824 = vpop.f32.mrf.mxu0
        %v6825 = vpop.f32.mrf.mxu0
        %v6826 = vpop.f32.mrf.mxu0
        %6827 = vdwg.mxu0
        %v6828 = vmul.f32 %v6522, 0.125
        %v6829 = vmul.f32 %v6565, 0.125
        %v6830 = vmul.f32 %v6608, 0.125
        %v6831 = vmul.f32 %v6651, 0.125
        %v6832 = vmul.f32 %v6694, 0.125
        %v6833 = vmul.f32 %v6737, 0.125
        %v6834 = vmul.f32 %v6780, 0.125
        %v6835 = vmul.f32 %v6823, 0.125
        %v6836 = vsel %vm3076, %v6828, -inf
        %6837 = vmax.xlane.f32.xlu0 %v6836
        %v6838 = vpop.xlane.xlu0 %6837
        %v6839 = vsel %vm3076, %v6829, -inf
        %6840 = vmax.xlane.f32.xlu0 %v6839
        %v6841 = vpop.xlane.xlu0 %6840
        %v6842 = vsel %vm3076, %v6830, -inf
        %6843 = vmax.xlane.f32.xlu0 %v6842
        %v6844 = vpop.xlane.xlu0 %6843
        %v6845 = vsel %vm3076, %v6831, -inf
        %6846 = vmax.xlane.f32.xlu0 %v6845
        %v6847 = vpop.xlane.xlu0 %6846
        %v6848 = vsel %vm3076, %v6832, -inf
        %6849 = vmax.xlane.f32.xlu0 %v6848
        %v6850 = vpop.xlane.xlu0 %6849
        %v6851 = vsel %vm3076, %v6833, -inf
        %6852 = vmax.xlane.f32.xlu0 %v6851
        %v6853 = vpop.xlane.xlu0 %6852
        %v6854 = vsel %vm3076, %v6834, -inf
        %6855 = vmax.xlane.f32.xlu0 %v6854
        %v6856 = vpop.xlane.xlu0 %6855
        %v6857 = vsel %vm3076, %v6835, -inf
        %6858 = vmax.xlane.f32.xlu0 %v6857
        %v6859 = vpop.xlane.xlu0 %6858
        %v6860 = vsub.f32 %v6828, %v6838
        %v6861 = vsub.f32 %v6829, %v6841
        %v6862 = vsub.f32 %v6830, %v6844
        %v6863 = vsub.f32 %v6831, %v6847
        %v6864 = vsub.f32 %v6832, %v6850
        %v6865 = vsub.f32 %v6833, %v6853
        %v6866 = vsub.f32 %v6834, %v6856
        %v6867 = vsub.f32 %v6835, %v6859
        %v6868 = vmul.f32 %v6860, 1.442695
        %v6869 = vpow.pop %v6868
        %v6870 = vmul.f32 %v6861, 1.442695
        %v6871 = vpow.pop %v6870
        %v6872 = vmul.f32 %v6862, 1.442695
        %v6873 = vpow.pop %v6872
        %v6874 = vmul.f32 %v6863, 1.442695
        %v6875 = vpow.pop %v6874
        %v6876 = vmul.f32 %v6864, 1.442695
        %v6877 = vpow.pop %v6876
        %v6878 = vmul.f32 %v6865, 1.442695
        %v6879 = vpow.pop %v6878
        %v6880 = vmul.f32 %v6866, 1.442695
        %v6881 = vpow.pop %v6880
        %v6882 = vmul.f32 %v6867, 1.442695
        %v6883 = vpow.pop %v6882
        %v6884 = vsel %vm3076, %v6869, 0.0
        %6885 = vadd.xlane.f32.xlu0 %v6884
        %v6886 = vpop.xlane.xlu0 %6885
        %v6887 = vsel %vm3076, %v6871, 0.0
        %6888 = vadd.xlane.f32.xlu0 %v6887
        %v6889 = vpop.xlane.xlu0 %6888
        %v6890 = vsel %vm3076, %v6873, 0.0
        %6891 = vadd.xlane.f32.xlu0 %v6890
        %v6892 = vpop.xlane.xlu0 %6891
        %v6893 = vsel %vm3076, %v6875, 0.0
        %6894 = vadd.xlane.f32.xlu0 %v6893
        %v6895 = vpop.xlane.xlu0 %6894
        %v6896 = vsel %vm3076, %v6877, 0.0
        %6897 = vadd.xlane.f32.xlu0 %v6896
        %v6898 = vpop.xlane.xlu0 %6897
        %v6899 = vsel %vm3076, %v6879, 0.0
        %6900 = vadd.xlane.f32.xlu0 %v6899
        %v6901 = vpop.xlane.xlu0 %6900
        %v6902 = vsel %vm3076, %v6881, 0.0
        %6903 = vadd.xlane.f32.xlu0 %v6902
        %v6904 = vpop.xlane.xlu0 %6903
        %v6905 = vsel %vm3076, %v6883, 0.0
        %6906 = vadd.xlane.f32.xlu0 %v6905
        %v6907 = vpop.xlane.xlu0 %6906
        %v6908 = vrcp.pop %v6886
        %v6909 = vrcp.pop %v6889
        %v6910 = vrcp.pop %v6892
        %v6911 = vrcp.pop %v6895
        %v6912 = vrcp.pop %v6898
        %v6913 = vrcp.pop %v6901
        %v6914 = vrcp.pop %v6904
        %v6915 = vrcp.pop %v6907
        %v6916 = vmul.f32 %v6869, %v6908
        %v6917 = vmul.f32 %v6871, %v6909
        %v6918 = vmul.f32 %v6873, %v6910
        %v6919 = vmul.f32 %v6875, %v6911
        %v6920 = vmul.f32 %v6877, %v6912
        %v6921 = vmul.f32 %v6879, %v6913
        %v6922 = vmul.f32 %v6881, %v6914
        %v6923 = vmul.f32 %v6883, %v6915
        %v6924 = vpack.c.bf16 %v6916, %v6916
        %v6925 = vpack.c.bf16 %v6917, %v6917
        %v6926 = vpack.c.bf16 %v6918, %v6918
        %v6927 = vpack.c.bf16 %v6919, %v6919
        %v6928 = vpack.c.bf16 %v6920, %v6920
        %v6929 = vpack.c.bf16 %v6921, %v6921
        %v6930 = vpack.c.bf16 %v6922, %v6922
        %v6931 = vpack.c.bf16 %v6923, %v6923
        %v6932 = vpack.c.bf16 %v5937, %v5934
        %v6933 = vpack.c.bf16 %v5945, %v5942
        %v6934 = vpack.c.bf16 %v5953, %v5950
        %v6935 = vpack.c.bf16 %v5961, %v5958
        %v6936 = vpack.c.bf16 %v5969, %v5966
        %v6937 = vpack.c.bf16 %v5977, %v5974
        %v6938 = vpack.c.bf16 %v5985, %v5982
        %v6939 = vpack.c.bf16 %v5993, %v5990
        %v6940 = vpack.c.bf16 %v6001, %v5998
        %v6941 = vpack.c.bf16 %v6009, %v6006
        %v6942 = vpack.c.bf16 %v6017, %v6014
        %v6943 = vpack.c.bf16 %v6025, %v6022
        %v6944 = vpack.c.bf16 %v6033, %v6030
        %v6945 = vpack.c.bf16 %v6041, %v6038
        %v6946 = vpack.c.bf16 %v6049, %v6046
        %v6947 = vpack.c.bf16 %v6057, %v6054
        %v6948 = vpack.c.bf16 %v6065, %v6062
        %v6949 = vpack.c.bf16 %v6073, %v6070
        %v6950 = vpack.c.bf16 %v6081, %v6078
        %v6951 = vpack.c.bf16 %v6089, %v6086
        %v6952 = vpack.c.bf16 %v6097, %v6094
        %v6953 = vpack.c.bf16 %v6105, %v6102
        %v6954 = vpack.c.bf16 %v6113, %v6110
        %v6955 = vpack.c.bf16 %v6121, %v6118
        %v6956 = vpack.c.bf16 %v6129, %v6126
        %v6957 = vpack.c.bf16 %v6137, %v6134
        %v6958 = vpack.c.bf16 %v6145, %v6142
        %v6959 = vpack.c.bf16 %v6153, %v6150
        %v6960 = vpack.c.bf16 %v6161, %v6158
        %v6961 = vpack.c.bf16 %v6169, %v6166
        %v6962 = vpack.c.bf16 %v6177, %v6174
        %v6963 = vpack.c.bf16 %v6185, %v6182
        %v6965 = vsel %vm3076, %v6924, 0
        %v6968 = vsel %vm3076, %v6932, 0
        %v6971 = vsel %vm3076, %v6933, 0
        %v6974 = vsel %vm3076, %v6934, 0
        %v6977 = vsel %vm3076, %v6935, 0
        %6979 = vmatprep.subr.bf16.mxu0 0
        %6980 = vmatpush1.bf16.xpose.msra.mxu0 0
        %6981 = vmatprep.subr.bf16.mxu0 0
        %6982 = vmatpush1.bf16.xpose.msra.mxu0 0
        %6983 = vmatprep.subr.bf16.mxu0 0
        %6984 = vmatpush1.bf16.xpose.msra.mxu0 0
        %6985 = vmatprep.subr.bf16.mxu0 0
        %6986 = vmatpush1.bf16.xpose.msra.mxu0 0
        %6987 = vmatprep.subr.bf16.mxu0 0
        %6988 = vmatpush1.bf16.xpose.msra.mxu0 %v6977
        %6989 = vmatprep.subr.bf16.mxu0 0
        %6990 = vmatpush1.bf16.xpose.msra.mxu0 %v6974
        %6991 = vmatprep.subr.bf16.mxu0 0
        %6992 = vmatpush1.bf16.xpose.msra.mxu0 %v6971
        %6993 = vmatprep.subr.bf16.mxu0 0
        %6994 = vmatpush1.bf16.xpose.msra.mxu0 %v6968
        %6995 = vmatprep.subr.bf16.mxu0 0
        %6996 = vmatpush2.bf16.xpose.msra.mxu0 0
        %6997 = vmatprep.subr.bf16.mxu0 0
        %6998 = vmatpush2.bf16.xpose.msra.mxu0 0
        %6999 = vmatprep.subr.bf16.mxu0 0
        %7000 = vmatpush2.bf16.xpose.msra.mxu0 0
        %7001 = vmatprep.subr.bf16.mxu0 0
        %7002 = vmatpush2.bf16.xpose.msra.mxu0 0
        %7003 = vmatprep.subr.bf16.mxu0 0
        %7004 = vmatpush2.bf16.xpose.msra.mxu0 0
        %7005 = vmatprep.subr.bf16.mxu0 0
        %7006 = vmatpush2.bf16.xpose.msra.mxu0 0
        %7007 = vmatprep.subr.bf16.mxu0 0
        %7008 = vmatpush2.bf16.xpose.msra.mxu0 0
        %7009 = vmatprep.subr.bf16.mxu0 0
        %7010 = vmatpush2.bf16.xpose.msra.mxu0 0
        %7011 = vmatprep.mubr.bf16.mxu0 0
        %7012 = vmatmul.mubr.bf16.gmra.mxu0 %v6965
        %v7013 = vpop.f32.mrf.mxu0
        %v7014 = vadd.f32 0.0, %v7013
        %v7015 = vpop.f32.mrf.mxu0
        %v7016 = vpop.f32.mrf.mxu0
        %v7017 = vpop.f32.mrf.mxu0
        %7018 = vdwg.mxu0
        %v7020 = vsel %vm3076, %v6925, 0
        %v7023 = vsel %vm3076, %v6936, 0
        %v7026 = vsel %vm3076, %v6937, 0
        %v7029 = vsel %vm3076, %v6938, 0
        %v7032 = vsel %vm3076, %v6939, 0
        %7034 = vmatprep.subr.bf16.mxu0 0
        %7035 = vmatpush1.bf16.xpose.msra.mxu0 0
        %7036 = vmatprep.subr.bf16.mxu0 0
        %7037 = vmatpush1.bf16.xpose.msra.mxu0 0
        %7038 = vmatprep.subr.bf16.mxu0 0
        %7039 = vmatpush1.bf16.xpose.msra.mxu0 0
        %7040 = vmatprep.subr.bf16.mxu0 0
        %7041 = vmatpush1.bf16.xpose.msra.mxu0 0
        %7042 = vmatprep.subr.bf16.mxu0 0
        %7043 = vmatpush1.bf16.xpose.msra.mxu0 %v7032
        %7044 = vmatprep.subr.bf16.mxu0 0
        %7045 = vmatpush1.bf16.xpose.msra.mxu0 %v7029
        %7046 = vmatprep.subr.bf16.mxu0 0
        %7047 = vmatpush1.bf16.xpose.msra.mxu0 %v7026
        %7048 = vmatprep.subr.bf16.mxu0 0
        %7049 = vmatpush1.bf16.xpose.msra.mxu0 %v7023
        %7050 = vmatprep.subr.bf16.mxu0 0
        %7051 = vmatpush2.bf16.xpose.msra.mxu0 0
        %7052 = vmatprep.subr.bf16.mxu0 0
        %7053 = vmatpush2.bf16.xpose.msra.mxu0 0
        %7054 = vmatprep.subr.bf16.mxu0 0
        %7055 = vmatpush2.bf16.xpose.msra.mxu0 0
        %7056 = vmatprep.subr.bf16.mxu0 0
        %7057 = vmatpush2.bf16.xpose.msra.mxu0 0
        %7058 = vmatprep.subr.bf16.mxu0 0
        %7059 = vmatpush2.bf16.xpose.msra.mxu0 0
        %7060 = vmatprep.subr.bf16.mxu0 0
        %7061 = vmatpush2.bf16.xpose.msra.mxu0 0
        %7062 = vmatprep.subr.bf16.mxu0 0
        %7063 = vmatpush2.bf16.xpose.msra.mxu0 0
        %7064 = vmatprep.subr.bf16.mxu0 0
        %7065 = vmatpush2.bf16.xpose.msra.mxu0 0
        %7066 = vmatprep.mubr.bf16.mxu0 0
        %7067 = vmatmul.mubr.bf16.gmra.mxu0 %v7020
        %v7068 = vpop.f32.mrf.mxu0
        %v7069 = vadd.f32 0.0, %v7068
        %v7070 = vpop.f32.mrf.mxu0
        %v7071 = vpop.f32.mrf.mxu0
        %v7072 = vpop.f32.mrf.mxu0
        %7073 = vdwg.mxu0
        %v7075 = vsel %vm3076, %v6926, 0
        %v7078 = vsel %vm3076, %v6940, 0
        %v7081 = vsel %vm3076, %v6941, 0
        %v7084 = vsel %vm3076, %v6942, 0
        %v7087 = vsel %vm3076, %v6943, 0
        %7089 = vmatprep.subr.bf16.mxu0 0
        %7090 = vmatpush1.bf16.xpose.msra.mxu0 0
        %7091 = vmatprep.subr.bf16.mxu0 0
        %7092 = vmatpush1.bf16.xpose.msra.mxu0 0
        %7093 = vmatprep.subr.bf16.mxu0 0
        %7094 = vmatpush1.bf16.xpose.msra.mxu0 0
        %7095 = vmatprep.subr.bf16.mxu0 0
        %7096 = vmatpush1.bf16.xpose.msra.mxu0 0
        %7097 = vmatprep.subr.bf16.mxu0 0
        %7098 = vmatpush1.bf16.xpose.msra.mxu0 %v7087
        %7099 = vmatprep.subr.bf16.mxu0 0
        %7100 = vmatpush1.bf16.xpose.msra.mxu0 %v7084
        %7101 = vmatprep.subr.bf16.mxu0 0
        %7102 = vmatpush1.bf16.xpose.msra.mxu0 %v7081
        %7103 = vmatprep.subr.bf16.mxu0 0
        %7104 = vmatpush1.bf16.xpose.msra.mxu0 %v7078
        %7105 = vmatprep.subr.bf16.mxu0 0
        %7106 = vmatpush2.bf16.xpose.msra.mxu0 0
        %7107 = vmatprep.subr.bf16.mxu0 0
        %7108 = vmatpush2.bf16.xpose.msra.mxu0 0
        %7109 = vmatprep.subr.bf16.mxu0 0
        %7110 = vmatpush2.bf16.xpose.msra.mxu0 0
        %7111 = vmatprep.subr.bf16.mxu0 0
        %7112 = vmatpush2.bf16.xpose.msra.mxu0 0
        %7113 = vmatprep.subr.bf16.mxu0 0
        %7114 = vmatpush2.bf16.xpose.msra.mxu0 0
        %7115 = vmatprep.subr.bf16.mxu0 0
        %7116 = vmatpush2.bf16.xpose.msra.mxu0 0
        %7117 = vmatprep.subr.bf16.mxu0 0
        %7118 = vmatpush2.bf16.xpose.msra.mxu0 0
        %7119 = vmatprep.subr.bf16.mxu0 0
        %7120 = vmatpush2.bf16.xpose.msra.mxu0 0
        %7121 = vmatprep.mubr.bf16.mxu0 0
        %7122 = vmatmul.mubr.bf16.gmra.mxu0 %v7075
        %v7123 = vpop.f32.mrf.mxu0
        %v7124 = vadd.f32 0.0, %v7123
        %v7125 = vpop.f32.mrf.mxu0
        %v7126 = vpop.f32.mrf.mxu0
        %v7127 = vpop.f32.mrf.mxu0
        %7128 = vdwg.mxu0
        %v7130 = vsel %vm3076, %v6927, 0
        %v7133 = vsel %vm3076, %v6944, 0
        %v7136 = vsel %vm3076, %v6945, 0
        %v7139 = vsel %vm3076, %v6946, 0
        %v7142 = vsel %vm3076, %v6947, 0
        %7144 = vmatprep.subr.bf16.mxu0 0
        %7145 = vmatpush1.bf16.xpose.msra.mxu0 0
        %7146 = vmatprep.subr.bf16.mxu0 0
        %7147 = vmatpush1.bf16.xpose.msra.mxu0 0
        %7148 = vmatprep.subr.bf16.mxu0 0
        %7149 = vmatpush1.bf16.xpose.msra.mxu0 0
        %7150 = vmatprep.subr.bf16.mxu0 0
        %7151 = vmatpush1.bf16.xpose.msra.mxu0 0
        %7152 = vmatprep.subr.bf16.mxu0 0
        %7153 = vmatpush1.bf16.xpose.msra.mxu0 %v7142
        %7154 = vmatprep.subr.bf16.mxu0 0
        %7155 = vmatpush1.bf16.xpose.msra.mxu0 %v7139
        %7156 = vmatprep.subr.bf16.mxu0 0
        %7157 = vmatpush1.bf16.xpose.msra.mxu0 %v7136
        %7158 = vmatprep.subr.bf16.mxu0 0
        %7159 = vmatpush1.bf16.xpose.msra.mxu0 %v7133
        %7160 = vmatprep.subr.bf16.mxu0 0
        %7161 = vmatpush2.bf16.xpose.msra.mxu0 0
        %7162 = vmatprep.subr.bf16.mxu0 0
        %7163 = vmatpush2.bf16.xpose.msra.mxu0 0
        %7164 = vmatprep.subr.bf16.mxu0 0
        %7165 = vmatpush2.bf16.xpose.msra.mxu0 0
        %7166 = vmatprep.subr.bf16.mxu0 0
        %7167 = vmatpush2.bf16.xpose.msra.mxu0 0
        %7168 = vmatprep.subr.bf16.mxu0 0
        %7169 = vmatpush2.bf16.xpose.msra.mxu0 0
        %7170 = vmatprep.subr.bf16.mxu0 0
        %7171 = vmatpush2.bf16.xpose.msra.mxu0 0
        %7172 = vmatprep.subr.bf16.mxu0 0
        %7173 = vmatpush2.bf16.xpose.msra.mxu0 0
        %7174 = vmatprep.subr.bf16.mxu0 0
        %7175 = vmatpush2.bf16.xpose.msra.mxu0 0
        %7176 = vmatprep.mubr.bf16.mxu0 0
        %7177 = vmatmul.mubr.bf16.gmra.mxu0 %v7130
        %v7178 = vpop.f32.mrf.mxu0
        %v7179 = vadd.f32 0.0, %v7178
        %v7180 = vpop.f32.mrf.mxu0
        %v7181 = vpop.f32.mrf.mxu0
        %v7182 = vpop.f32.mrf.mxu0
        %7183 = vdwg.mxu0
        %v7185 = vsel %vm3076, %v6928, 0
        %v7188 = vsel %vm3076, %v6948, 0
        %v7191 = vsel %vm3076, %v6949, 0
        %v7194 = vsel %vm3076, %v6950, 0
        %v7197 = vsel %vm3076, %v6951, 0
        %7199 = vmatprep.subr.bf16.mxu0 0
        %7200 = vmatpush1.bf16.xpose.msra.mxu0 0
        %7201 = vmatprep.subr.bf16.mxu0 0
        %7202 = vmatpush1.bf16.xpose.msra.mxu0 0
        %7203 = vmatprep.subr.bf16.mxu0 0
        %7204 = vmatpush1.bf16.xpose.msra.mxu0 0
        %7205 = vmatprep.subr.bf16.mxu0 0
        %7206 = vmatpush1.bf16.xpose.msra.mxu0 0
        %7207 = vmatprep.subr.bf16.mxu0 0
        %7208 = vmatpush1.bf16.xpose.msra.mxu0 %v7197
        %7209 = vmatprep.subr.bf16.mxu0 0
        %7210 = vmatpush1.bf16.xpose.msra.mxu0 %v7194
        %7211 = vmatprep.subr.bf16.mxu0 0
        %7212 = vmatpush1.bf16.xpose.msra.mxu0 %v7191
        %7213 = vmatprep.subr.bf16.mxu0 0
        %7214 = vmatpush1.bf16.xpose.msra.mxu0 %v7188
        %7215 = vmatprep.subr.bf16.mxu0 0
        %7216 = vmatpush2.bf16.xpose.msra.mxu0 0
        %7217 = vmatprep.subr.bf16.mxu0 0
        %7218 = vmatpush2.bf16.xpose.msra.mxu0 0
        %7219 = vmatprep.subr.bf16.mxu0 0
        %7220 = vmatpush2.bf16.xpose.msra.mxu0 0
        %7221 = vmatprep.subr.bf16.mxu0 0
        %7222 = vmatpush2.bf16.xpose.msra.mxu0 0
        %7223 = vmatprep.subr.bf16.mxu0 0
        %7224 = vmatpush2.bf16.xpose.msra.mxu0 0
        %7225 = vmatprep.subr.bf16.mxu0 0
        %7226 = vmatpush2.bf16.xpose.msra.mxu0 0
        %7227 = vmatprep.subr.bf16.mxu0 0
        %7228 = vmatpush2.bf16.xpose.msra.mxu0 0
        %7229 = vmatprep.subr.bf16.mxu0 0
        %7230 = vmatpush2.bf16.xpose.msra.mxu0 0
        %7231 = vmatprep.mubr.bf16.mxu0 0
        %7232 = vmatmul.mubr.bf16.gmra.mxu0 %v7185
        %v7233 = vpop.f32.mrf.mxu0
        %v7234 = vadd.f32 0.0, %v7233
        %v7235 = vpop.f32.mrf.mxu0
        %v7236 = vpop.f32.mrf.mxu0
        %v7237 = vpop.f32.mrf.mxu0
        %7238 = vdwg.mxu0
        %v7240 = vsel %vm3076, %v6929, 0
        %v7243 = vsel %vm3076, %v6952, 0
        %v7246 = vsel %vm3076, %v6953, 0
        %v7249 = vsel %vm3076, %v6954, 0
        %v7252 = vsel %vm3076, %v6955, 0
        %7254 = vmatprep.subr.bf16.mxu0 0
        %7255 = vmatpush1.bf16.xpose.msra.mxu0 0
        %7256 = vmatprep.subr.bf16.mxu0 0
        %7257 = vmatpush1.bf16.xpose.msra.mxu0 0
        %7258 = vmatprep.subr.bf16.mxu0 0
        %7259 = vmatpush1.bf16.xpose.msra.mxu0 0
        %7260 = vmatprep.subr.bf16.mxu0 0
        %7261 = vmatpush1.bf16.xpose.msra.mxu0 0
        %7262 = vmatprep.subr.bf16.mxu0 0
        %7263 = vmatpush1.bf16.xpose.msra.mxu0 %v7252
        %7264 = vmatprep.subr.bf16.mxu0 0
        %7265 = vmatpush1.bf16.xpose.msra.mxu0 %v7249
        %7266 = vmatprep.subr.bf16.mxu0 0
        %7267 = vmatpush1.bf16.xpose.msra.mxu0 %v7246
        %7268 = vmatprep.subr.bf16.mxu0 0
        %7269 = vmatpush1.bf16.xpose.msra.mxu0 %v7243
        %7270 = vmatprep.subr.bf16.mxu0 0
        %7271 = vmatpush2.bf16.xpose.msra.mxu0 0
        %7272 = vmatprep.subr.bf16.mxu0 0
        %7273 = vmatpush2.bf16.xpose.msra.mxu0 0
        %7274 = vmatprep.subr.bf16.mxu0 0
        %7275 = vmatpush2.bf16.xpose.msra.mxu0 0
        %7276 = vmatprep.subr.bf16.mxu0 0
        %7277 = vmatpush2.bf16.xpose.msra.mxu0 0
        %7278 = vmatprep.subr.bf16.mxu0 0
        %7279 = vmatpush2.bf16.xpose.msra.mxu0 0
        %7280 = vmatprep.subr.bf16.mxu0 0
        %7281 = vmatpush2.bf16.xpose.msra.mxu0 0
        %7282 = vmatprep.subr.bf16.mxu0 0
        %7283 = vmatpush2.bf16.xpose.msra.mxu0 0
        %7284 = vmatprep.subr.bf16.mxu0 0
        %7285 = vmatpush2.bf16.xpose.msra.mxu0 0
        %7286 = vmatprep.mubr.bf16.mxu0 0
        %7287 = vmatmul.mubr.bf16.gmra.mxu0 %v7240
        %v7288 = vpop.f32.mrf.mxu0
        %v7289 = vadd.f32 0.0, %v7288
        %v7290 = vpop.f32.mrf.mxu0
        %v7291 = vpop.f32.mrf.mxu0
        %v7292 = vpop.f32.mrf.mxu0
        %7293 = vdwg.mxu0
        %v7295 = vsel %vm3076, %v6930, 0
        %v7298 = vsel %vm3076, %v6956, 0
        %v7301 = vsel %vm3076, %v6957, 0
        %v7304 = vsel %vm3076, %v6958, 0
        %v7307 = vsel %vm3076, %v6959, 0
        %7309 = vmatprep.subr.bf16.mxu0 0
        %7310 = vmatpush1.bf16.xpose.msra.mxu0 0
        %7311 = vmatprep.subr.bf16.mxu0 0
        %7312 = vmatpush1.bf16.xpose.msra.mxu0 0
        %7313 = vmatprep.subr.bf16.mxu0 0
        %7314 = vmatpush1.bf16.xpose.msra.mxu0 0
        %7315 = vmatprep.subr.bf16.mxu0 0
        %7316 = vmatpush1.bf16.xpose.msra.mxu0 0
        %7317 = vmatprep.subr.bf16.mxu0 0
        %7318 = vmatpush1.bf16.xpose.msra.mxu0 %v7307
        %7319 = vmatprep.subr.bf16.mxu0 0
        %7320 = vmatpush1.bf16.xpose.msra.mxu0 %v7304
        %7321 = vmatprep.subr.bf16.mxu0 0
        %7322 = vmatpush1.bf16.xpose.msra.mxu0 %v7301
        %7323 = vmatprep.subr.bf16.mxu0 0
        %7324 = vmatpush1.bf16.xpose.msra.mxu0 %v7298
        %7325 = vmatprep.subr.bf16.mxu0 0
        %7326 = vmatpush2.bf16.xpose.msra.mxu0 0
        %7327 = vmatprep.subr.bf16.mxu0 0
        %7328 = vmatpush2.bf16.xpose.msra.mxu0 0
        %7329 = vmatprep.subr.bf16.mxu0 0
        %7330 = vmatpush2.bf16.xpose.msra.mxu0 0
        %7331 = vmatprep.subr.bf16.mxu0 0
        %7332 = vmatpush2.bf16.xpose.msra.mxu0 0
        %7333 = vmatprep.subr.bf16.mxu0 0
        %7334 = vmatpush2.bf16.xpose.msra.mxu0 0
        %7335 = vmatprep.subr.bf16.mxu0 0
        %7336 = vmatpush2.bf16.xpose.msra.mxu0 0
        %7337 = vmatprep.subr.bf16.mxu0 0
        %7338 = vmatpush2.bf16.xpose.msra.mxu0 0
        %7339 = vmatprep.subr.bf16.mxu0 0
        %7340 = vmatpush2.bf16.xpose.msra.mxu0 0
        %7341 = vmatprep.mubr.bf16.mxu0 0
        %7342 = vmatmul.mubr.bf16.gmra.mxu0 %v7295
        %v7343 = vpop.f32.mrf.mxu0
        %v7344 = vadd.f32 0.0, %v7343
        %v7345 = vpop.f32.mrf.mxu0
        %v7346 = vpop.f32.mrf.mxu0
        %v7347 = vpop.f32.mrf.mxu0
        %7348 = vdwg.mxu0
        %v7350 = vsel %vm3076, %v6931, 0
        %v7353 = vsel %vm3076, %v6960, 0
        %v7356 = vsel %vm3076, %v6961, 0
        %v7359 = vsel %vm3076, %v6962, 0
        %v7362 = vsel %vm3076, %v6963, 0
        %7364 = vmatprep.subr.bf16.mxu0 0
        %7365 = vmatpush1.bf16.xpose.msra.mxu0 0
        %7366 = vmatprep.subr.bf16.mxu0 0
        %7367 = vmatpush1.bf16.xpose.msra.mxu0 0
        %7368 = vmatprep.subr.bf16.mxu0 0
        %7369 = vmatpush1.bf16.xpose.msra.mxu0 0
        %7370 = vmatprep.subr.bf16.mxu0 0
        %7371 = vmatpush1.bf16.xpose.msra.mxu0 0
        %7372 = vmatprep.subr.bf16.mxu0 0
        %7373 = vmatpush1.bf16.xpose.msra.mxu0 %v7362
        %7374 = vmatprep.subr.bf16.mxu0 0
        %7375 = vmatpush1.bf16.xpose.msra.mxu0 %v7359
        %7376 = vmatprep.subr.bf16.mxu0 0
        %7377 = vmatpush1.bf16.xpose.msra.mxu0 %v7356
        %7378 = vmatprep.subr.bf16.mxu0 0
        %7379 = vmatpush1.bf16.xpose.msra.mxu0 %v7353
        %7380 = vmatprep.subr.bf16.mxu0 0
        %7381 = vmatpush2.bf16.xpose.msra.mxu0 0
        %7382 = vmatprep.subr.bf16.mxu0 0
        %7383 = vmatpush2.bf16.xpose.msra.mxu0 0
        %7384 = vmatprep.subr.bf16.mxu0 0
        %7385 = vmatpush2.bf16.xpose.msra.mxu0 0
        %7386 = vmatprep.subr.bf16.mxu0 0
        %7387 = vmatpush2.bf16.xpose.msra.mxu0 0
        %7388 = vmatprep.subr.bf16.mxu0 0
        %7389 = vmatpush2.bf16.xpose.msra.mxu0 0
        %7390 = vmatprep.subr.bf16.mxu0 0
        %7391 = vmatpush2.bf16.xpose.msra.mxu0 0
        %7392 = vmatprep.subr.bf16.mxu0 0
        %7393 = vmatpush2.bf16.xpose.msra.mxu0 0
        %7394 = vmatprep.subr.bf16.mxu0 0
        %7395 = vmatpush2.bf16.xpose.msra.mxu0 0
        %7396 = vmatprep.mubr.bf16.mxu0 0
        %7397 = vmatmul.mubr.bf16.gmra.mxu0 %v7350
        %v7398 = vpop.f32.mrf.mxu0
        %v7399 = vadd.f32 0.0, %v7398
        %v7400 = vpop.f32.mrf.mxu0
        %v7401 = vpop.f32.mrf.mxu0
        %v7402 = vpop.f32.mrf.mxu0
        %7403 = vdwg.mxu0
        %v7404 = vpack.c.bf16 %v7014, %v7014
        %v7405 = vpack.c.bf16 %v7069, %v7069
        %v7406 = vpack.c.bf16 %v7124, %v7124
        %v7407 = vpack.c.bf16 %v7179, %v7179
        %v7408 = vpack.c.bf16 %v7234, %v7234
        %v7409 = vpack.c.bf16 %v7289, %v7289
        %v7410 = vpack.c.bf16 %v7344, %v7344
        %v7411 = vpack.c.bf16 %v7399, %v7399
        %v7420 = vunpack.c.l.b16 %v4421
        %v7421 = vunpack.c.l.b16 %v4422
        %v7422 = vunpack.c.l.b16 %v4423
        %v7423 = vunpack.c.l.b16 %v4424
        %v7424 = vunpack.c.l.b16 %v4425
        %v7425 = vunpack.c.l.b16 %v4426
        %v7426 = vunpack.c.l.b16 %v4427
        %v7427 = vunpack.c.l.b16 %v4428
        %v7428 = vpack.c.b16 %v7421, %v7420
        %v7429 = vpack.c.b16 %v7423, %v7422
        %v7430 = vpack.c.b16 %v7425, %v7424
        %v7431 = vpack.c.b16 %v7427, %v7426
        %v7437 = vsel %vm2723, %v7404, 0
        %7439 = vmatprep.subr.bf16.mxu0 0
        %7440 = vmatpush1.bf16.msra.mxu0 0
        %7441 = vmatprep.subr.bf16.mxu0 0
        %7442 = vmatpush1.bf16.msra.mxu0 0
        %7443 = vmatprep.subr.bf16.mxu0 0
        %7444 = vmatpush1.bf16.msra.mxu0 0
        %7445 = vmatprep.subr.bf16.mxu0 0
        %7446 = vmatpush1.bf16.msra.mxu0 0
        %7447 = vmatprep.subr.bf16.mxu0 0
        %7448 = vmatpush1.bf16.msra.mxu0 %v7431
        %7449 = vmatprep.subr.bf16.mxu0 0
        %7450 = vmatpush1.bf16.msra.mxu0 %v7430
        %7451 = vmatprep.subr.bf16.mxu0 0
        %7452 = vmatpush1.bf16.msra.mxu0 %v7429
        %7453 = vmatprep.subr.bf16.mxu0 0
        %7454 = vmatpush1.bf16.msra.mxu0 %v7428
        %7455 = vmatprep.subr.bf16.mxu0 0
        %7456 = vmatpush2.bf16.msra.mxu0 0
        %7457 = vmatprep.subr.bf16.mxu0 0
        %7458 = vmatpush2.bf16.msra.mxu0 0
        %7459 = vmatprep.subr.bf16.mxu0 0
        %7460 = vmatpush2.bf16.msra.mxu0 0
        %7461 = vmatprep.subr.bf16.mxu0 0
        %7462 = vmatpush2.bf16.msra.mxu0 0
        %7463 = vmatprep.subr.bf16.mxu0 0
        %7464 = vmatpush2.bf16.msra.mxu0 0
        %7465 = vmatprep.subr.bf16.mxu0 0
        %7466 = vmatpush2.bf16.msra.mxu0 0
        %7467 = vmatprep.subr.bf16.mxu0 0
        %7468 = vmatpush2.bf16.msra.mxu0 0
        %7469 = vmatprep.subr.bf16.mxu0 0
        %7470 = vmatpush2.bf16.msra.mxu0 0
        %7471 = vmatprep.mubr.bf16.mxu0 0
        %7472 = vmatmul.mubr.bf16.gmra.mxu0 %v7437
        %v7473 = vpop.f32.mrf.mxu0
        %v7474 = vadd.f32 0.0, %v7473
        %v7475 = vpop.f32.mrf.mxu0
        %v7476 = vpop.f32.mrf.mxu0
        %v7477 = vpop.f32.mrf.mxu0
        %7478 = vdwg.mxu0
        %v7487 = vunpack.c.l.b16 %v4429
        %v7488 = vunpack.c.l.b16 %v4430
        %v7489 = vunpack.c.l.b16 %v4431
        %v7490 = vunpack.c.l.b16 %v4432
        %v7491 = vunpack.c.l.b16 %v4433
        %v7492 = vunpack.c.l.b16 %v4434
        %v7493 = vunpack.c.l.b16 %v4435
        %v7494 = vunpack.c.l.b16 %v4436
        %v7495 = vpack.c.b16 %v7488, %v7487
        %v7496 = vpack.c.b16 %v7490, %v7489
        %v7497 = vpack.c.b16 %v7492, %v7491
        %v7498 = vpack.c.b16 %v7494, %v7493
        %v7504 = vsel %vm2723, %v7405, 0
        %7506 = vmatprep.subr.bf16.mxu0 0
        %7507 = vmatpush1.bf16.msra.mxu0 0
        %7508 = vmatprep.subr.bf16.mxu0 0
        %7509 = vmatpush1.bf16.msra.mxu0 0
        %7510 = vmatprep.subr.bf16.mxu0 0
        %7511 = vmatpush1.bf16.msra.mxu0 0
        %7512 = vmatprep.subr.bf16.mxu0 0
        %7513 = vmatpush1.bf16.msra.mxu0 0
        %7514 = vmatprep.subr.bf16.mxu0 0
        %7515 = vmatpush1.bf16.msra.mxu0 %v7498
        %7516 = vmatprep.subr.bf16.mxu0 0
        %7517 = vmatpush1.bf16.msra.mxu0 %v7497
        %7518 = vmatprep.subr.bf16.mxu0 0
        %7519 = vmatpush1.bf16.msra.mxu0 %v7496
        %7520 = vmatprep.subr.bf16.mxu0 0
        %7521 = vmatpush1.bf16.msra.mxu0 %v7495
        %7522 = vmatprep.subr.bf16.mxu0 0
        %7523 = vmatpush2.bf16.msra.mxu0 0
        %7524 = vmatprep.subr.bf16.mxu0 0
        %7525 = vmatpush2.bf16.msra.mxu0 0
        %7526 = vmatprep.subr.bf16.mxu0 0
        %7527 = vmatpush2.bf16.msra.mxu0 0
        %7528 = vmatprep.subr.bf16.mxu0 0
        %7529 = vmatpush2.bf16.msra.mxu0 0
        %7530 = vmatprep.subr.bf16.mxu0 0
        %7531 = vmatpush2.bf16.msra.mxu0 0
        %7532 = vmatprep.subr.bf16.mxu0 0
        %7533 = vmatpush2.bf16.msra.mxu0 0
        %7534 = vmatprep.subr.bf16.mxu0 0
        %7535 = vmatpush2.bf16.msra.mxu0 0
        %7536 = vmatprep.subr.bf16.mxu0 0
        %7537 = vmatpush2.bf16.msra.mxu0 0
        %7538 = vmatprep.mubr.bf16.mxu0 0
        %7539 = vmatmul.mubr.bf16.gmra.mxu0 %v7504
        %v7540 = vpop.f32.mrf.mxu0
        %v7541 = vadd.f32 0.0, %v7540
        %v7542 = vpop.f32.mrf.mxu0
        %v7543 = vpop.f32.mrf.mxu0
        %v7544 = vpop.f32.mrf.mxu0
        %7545 = vdwg.mxu0
        %v7554 = vunpack.c.l.b16 %v4437
        %v7555 = vunpack.c.l.b16 %v4438
        %v7556 = vunpack.c.l.b16 %v4439
        %v7557 = vunpack.c.l.b16 %v4440
        %v7558 = vunpack.c.l.b16 %v4441
        %v7559 = vunpack.c.l.b16 %v4442
        %v7560 = vunpack.c.l.b16 %v4443
        %v7561 = vunpack.c.l.b16 %v4444
        %v7562 = vpack.c.b16 %v7555, %v7554
        %v7563 = vpack.c.b16 %v7557, %v7556
        %v7564 = vpack.c.b16 %v7559, %v7558
        %v7565 = vpack.c.b16 %v7561, %v7560
        %v7571 = vsel %vm2723, %v7406, 0
        %7573 = vmatprep.subr.bf16.mxu0 0
        %7574 = vmatpush1.bf16.msra.mxu0 0
        %7575 = vmatprep.subr.bf16.mxu0 0
        %7576 = vmatpush1.bf16.msra.mxu0 0
        %7577 = vmatprep.subr.bf16.mxu0 0
        %7578 = vmatpush1.bf16.msra.mxu0 0
        %7579 = vmatprep.subr.bf16.mxu0 0
        %7580 = vmatpush1.bf16.msra.mxu0 0
        %7581 = vmatprep.subr.bf16.mxu0 0
        %7582 = vmatpush1.bf16.msra.mxu0 %v7565
        %7583 = vmatprep.subr.bf16.mxu0 0
        %7584 = vmatpush1.bf16.msra.mxu0 %v7564
        %7585 = vmatprep.subr.bf16.mxu0 0
        %7586 = vmatpush1.bf16.msra.mxu0 %v7563
        %7587 = vmatprep.subr.bf16.mxu0 0
        %7588 = vmatpush1.bf16.msra.mxu0 %v7562
        %7589 = vmatprep.subr.bf16.mxu0 0
        %7590 = vmatpush2.bf16.msra.mxu0 0
        %7591 = vmatprep.subr.bf16.mxu0 0
        %7592 = vmatpush2.bf16.msra.mxu0 0
        %7593 = vmatprep.subr.bf16.mxu0 0
        %7594 = vmatpush2.bf16.msra.mxu0 0
        %7595 = vmatprep.subr.bf16.mxu0 0
        %7596 = vmatpush2.bf16.msra.mxu0 0
        %7597 = vmatprep.subr.bf16.mxu0 0
        %7598 = vmatpush2.bf16.msra.mxu0 0
        %7599 = vmatprep.subr.bf16.mxu0 0
        %7600 = vmatpush2.bf16.msra.mxu0 0
        %7601 = vmatprep.subr.bf16.mxu0 0
        %7602 = vmatpush2.bf16.msra.mxu0 0
        %7603 = vmatprep.subr.bf16.mxu0 0
        %7604 = vmatpush2.bf16.msra.mxu0 0
        %7605 = vmatprep.mubr.bf16.mxu0 0
        %7606 = vmatmul.mubr.bf16.gmra.mxu0 %v7571
        %v7607 = vpop.f32.mrf.mxu0
        %v7608 = vadd.f32 0.0, %v7607
        %v7609 = vpop.f32.mrf.mxu0
        %v7610 = vpop.f32.mrf.mxu0
        %v7611 = vpop.f32.mrf.mxu0
        %7612 = vdwg.mxu0
        %v7621 = vunpack.c.l.b16 %v4445
        %v7622 = vunpack.c.l.b16 %v4446
        %v7623 = vunpack.c.l.b16 %v4447
        %v7624 = vunpack.c.l.b16 %v4448
        %v7625 = vunpack.c.l.b16 %v4449
        %v7626 = vunpack.c.l.b16 %v4450
        %v7627 = vunpack.c.l.b16 %v4451
        %v7628 = vunpack.c.l.b16 %v4452
        %v7629 = vpack.c.b16 %v7622, %v7621
        %v7630 = vpack.c.b16 %v7624, %v7623
        %v7631 = vpack.c.b16 %v7626, %v7625
        %v7632 = vpack.c.b16 %v7628, %v7627
        %v7638 = vsel %vm2723, %v7407, 0
        %7640 = vmatprep.subr.bf16.mxu0 0
        %7641 = vmatpush1.bf16.msra.mxu0 0
        %7642 = vmatprep.subr.bf16.mxu0 0
        %7643 = vmatpush1.bf16.msra.mxu0 0
        %7644 = vmatprep.subr.bf16.mxu0 0
        %7645 = vmatpush1.bf16.msra.mxu0 0
        %7646 = vmatprep.subr.bf16.mxu0 0
        %7647 = vmatpush1.bf16.msra.mxu0 0
        %7648 = vmatprep.subr.bf16.mxu0 0
        %7649 = vmatpush1.bf16.msra.mxu0 %v7632
        %7650 = vmatprep.subr.bf16.mxu0 0
        %7651 = vmatpush1.bf16.msra.mxu0 %v7631
        %7652 = vmatprep.subr.bf16.mxu0 0
        %7653 = vmatpush1.bf16.msra.mxu0 %v7630
        %7654 = vmatprep.subr.bf16.mxu0 0
        %7655 = vmatpush1.bf16.msra.mxu0 %v7629
        %7656 = vmatprep.subr.bf16.mxu0 0
        %7657 = vmatpush2.bf16.msra.mxu0 0
        %7658 = vmatprep.subr.bf16.mxu0 0
        %7659 = vmatpush2.bf16.msra.mxu0 0
        %7660 = vmatprep.subr.bf16.mxu0 0
        %7661 = vmatpush2.bf16.msra.mxu0 0
        %7662 = vmatprep.subr.bf16.mxu0 0
        %7663 = vmatpush2.bf16.msra.mxu0 0
        %7664 = vmatprep.subr.bf16.mxu0 0
        %7665 = vmatpush2.bf16.msra.mxu0 0
        %7666 = vmatprep.subr.bf16.mxu0 0
        %7667 = vmatpush2.bf16.msra.mxu0 0
        %7668 = vmatprep.subr.bf16.mxu0 0
        %7669 = vmatpush2.bf16.msra.mxu0 0
        %7670 = vmatprep.subr.bf16.mxu0 0
        %7671 = vmatpush2.bf16.msra.mxu0 0
        %7672 = vmatprep.mubr.bf16.mxu0 0
        %7673 = vmatmul.mubr.bf16.gmra.mxu0 %v7638
        %v7674 = vpop.f32.mrf.mxu0
        %v7675 = vadd.f32 0.0, %v7674
        %v7676 = vpop.f32.mrf.mxu0
        %v7677 = vpop.f32.mrf.mxu0
        %v7678 = vpop.f32.mrf.mxu0
        %7679 = vdwg.mxu0
        %v7688 = vunpack.c.l.b16 %v4453
        %v7689 = vunpack.c.l.b16 %v4454
        %v7690 = vunpack.c.l.b16 %v4455
        %v7691 = vunpack.c.l.b16 %v4456
        %v7692 = vunpack.c.l.b16 %v4457
        %v7693 = vunpack.c.l.b16 %v4458
        %v7694 = vunpack.c.l.b16 %v4459
        %v7695 = vunpack.c.l.b16 %v4460
        %v7696 = vpack.c.b16 %v7689, %v7688
        %v7697 = vpack.c.b16 %v7691, %v7690
        %v7698 = vpack.c.b16 %v7693, %v7692
        %v7699 = vpack.c.b16 %v7695, %v7694
        %v7705 = vsel %vm2723, %v7408, 0
        %7707 = vmatprep.subr.bf16.mxu0 0
        %7708 = vmatpush1.bf16.msra.mxu0 0
        %7709 = vmatprep.subr.bf16.mxu0 0
        %7710 = vmatpush1.bf16.msra.mxu0 0
        %7711 = vmatprep.subr.bf16.mxu0 0
        %7712 = vmatpush1.bf16.msra.mxu0 0
        %7713 = vmatprep.subr.bf16.mxu0 0
        %7714 = vmatpush1.bf16.msra.mxu0 0
        %7715 = vmatprep.subr.bf16.mxu0 0
        %7716 = vmatpush1.bf16.msra.mxu0 %v7699
        %7717 = vmatprep.subr.bf16.mxu0 0
        %7718 = vmatpush1.bf16.msra.mxu0 %v7698
        %7719 = vmatprep.subr.bf16.mxu0 0
        %7720 = vmatpush1.bf16.msra.mxu0 %v7697
        %7721 = vmatprep.subr.bf16.mxu0 0
        %7722 = vmatpush1.bf16.msra.mxu0 %v7696
        %7723 = vmatprep.subr.bf16.mxu0 0
        %7724 = vmatpush2.bf16.msra.mxu0 0
        %7725 = vmatprep.subr.bf16.mxu0 0
        %7726 = vmatpush2.bf16.msra.mxu0 0
        %7727 = vmatprep.subr.bf16.mxu0 0
        %7728 = vmatpush2.bf16.msra.mxu0 0
        %7729 = vmatprep.subr.bf16.mxu0 0
        %7730 = vmatpush2.bf16.msra.mxu0 0
        %7731 = vmatprep.subr.bf16.mxu0 0
        %7732 = vmatpush2.bf16.msra.mxu0 0
        %7733 = vmatprep.subr.bf16.mxu0 0
        %7734 = vmatpush2.bf16.msra.mxu0 0
        %7735 = vmatprep.subr.bf16.mxu0 0
        %7736 = vmatpush2.bf16.msra.mxu0 0
        %7737 = vmatprep.subr.bf16.mxu0 0
        %7738 = vmatpush2.bf16.msra.mxu0 0
        %7739 = vmatprep.mubr.bf16.mxu0 0
        %7740 = vmatmul.mubr.bf16.gmra.mxu0 %v7705
        %v7741 = vpop.f32.mrf.mxu0
        %v7742 = vadd.f32 0.0, %v7741
        %v7743 = vpop.f32.mrf.mxu0
        %v7744 = vpop.f32.mrf.mxu0
        %v7745 = vpop.f32.mrf.mxu0
        %7746 = vdwg.mxu0
        %v7755 = vunpack.c.l.b16 %v4461
        %v7756 = vunpack.c.l.b16 %v4462
        %v7757 = vunpack.c.l.b16 %v4463
        %v7758 = vunpack.c.l.b16 %v4464
        %v7759 = vunpack.c.l.b16 %v4465
        %v7760 = vunpack.c.l.b16 %v4466
        %v7761 = vunpack.c.l.b16 %v4467
        %v7762 = vunpack.c.l.b16 %v4468
        %v7763 = vpack.c.b16 %v7756, %v7755
        %v7764 = vpack.c.b16 %v7758, %v7757
        %v7765 = vpack.c.b16 %v7760, %v7759
        %v7766 = vpack.c.b16 %v7762, %v7761
        %v7772 = vsel %vm2723, %v7409, 0
        %7774 = vmatprep.subr.bf16.mxu0 0
        %7775 = vmatpush1.bf16.msra.mxu0 0
        %7776 = vmatprep.subr.bf16.mxu0 0
        %7777 = vmatpush1.bf16.msra.mxu0 0
        %7778 = vmatprep.subr.bf16.mxu0 0
        %7779 = vmatpush1.bf16.msra.mxu0 0
        %7780 = vmatprep.subr.bf16.mxu0 0
        %7781 = vmatpush1.bf16.msra.mxu0 0
        %7782 = vmatprep.subr.bf16.mxu0 0
        %7783 = vmatpush1.bf16.msra.mxu0 %v7766
        %7784 = vmatprep.subr.bf16.mxu0 0
        %7785 = vmatpush1.bf16.msra.mxu0 %v7765
        %7786 = vmatprep.subr.bf16.mxu0 0
        %7787 = vmatpush1.bf16.msra.mxu0 %v7764
        %7788 = vmatprep.subr.bf16.mxu0 0
        %7789 = vmatpush1.bf16.msra.mxu0 %v7763
        %7790 = vmatprep.subr.bf16.mxu0 0
        %7791 = vmatpush2.bf16.msra.mxu0 0
        %7792 = vmatprep.subr.bf16.mxu0 0
        %7793 = vmatpush2.bf16.msra.mxu0 0
        %7794 = vmatprep.subr.bf16.mxu0 0
        %7795 = vmatpush2.bf16.msra.mxu0 0
        %7796 = vmatprep.subr.bf16.mxu0 0
        %7797 = vmatpush2.bf16.msra.mxu0 0
        %7798 = vmatprep.subr.bf16.mxu0 0
        %7799 = vmatpush2.bf16.msra.mxu0 0
        %7800 = vmatprep.subr.bf16.mxu0 0
        %7801 = vmatpush2.bf16.msra.mxu0 0
        %7802 = vmatprep.subr.bf16.mxu0 0
        %7803 = vmatpush2.bf16.msra.mxu0 0
        %7804 = vmatprep.subr.bf16.mxu0 0
        %7805 = vmatpush2.bf16.msra.mxu0 0
        %7806 = vmatprep.mubr.bf16.mxu0 0
        %7807 = vmatmul.mubr.bf16.gmra.mxu0 %v7772
        %v7808 = vpop.f32.mrf.mxu0
        %v7809 = vadd.f32 0.0, %v7808
        %v7810 = vpop.f32.mrf.mxu0
        %v7811 = vpop.f32.mrf.mxu0
        %v7812 = vpop.f32.mrf.mxu0
        %7813 = vdwg.mxu0
        %v7822 = vunpack.c.l.b16 %v4469
        %v7823 = vunpack.c.l.b16 %v4470
        %v7824 = vunpack.c.l.b16 %v4471
        %v7825 = vunpack.c.l.b16 %v4472
        %v7826 = vunpack.c.l.b16 %v4473
        %v7827 = vunpack.c.l.b16 %v4474
        %v7828 = vunpack.c.l.b16 %v4475
        %v7829 = vunpack.c.l.b16 %v4476
        %v7830 = vpack.c.b16 %v7823, %v7822
        %v7831 = vpack.c.b16 %v7825, %v7824
        %v7832 = vpack.c.b16 %v7827, %v7826
        %v7833 = vpack.c.b16 %v7829, %v7828
        %v7839 = vsel %vm2723, %v7410, 0
        %7841 = vmatprep.subr.bf16.mxu0 0
        %7842 = vmatpush1.bf16.msra.mxu0 0
        %7843 = vmatprep.subr.bf16.mxu0 0
        %7844 = vmatpush1.bf16.msra.mxu0 0
        %7845 = vmatprep.subr.bf16.mxu0 0
        %7846 = vmatpush1.bf16.msra.mxu0 0
        %7847 = vmatprep.subr.bf16.mxu0 0
        %7848 = vmatpush1.bf16.msra.mxu0 0
        %7849 = vmatprep.subr.bf16.mxu0 0
        %7850 = vmatpush1.bf16.msra.mxu0 %v7833
        %7851 = vmatprep.subr.bf16.mxu0 0
        %7852 = vmatpush1.bf16.msra.mxu0 %v7832
        %7853 = vmatprep.subr.bf16.mxu0 0
        %7854 = vmatpush1.bf16.msra.mxu0 %v7831
        %7855 = vmatprep.subr.bf16.mxu0 0
        %7856 = vmatpush1.bf16.msra.mxu0 %v7830
        %7857 = vmatprep.subr.bf16.mxu0 0
        %7858 = vmatpush2.bf16.msra.mxu0 0
        %7859 = vmatprep.subr.bf16.mxu0 0
        %7860 = vmatpush2.bf16.msra.mxu0 0
        %7861 = vmatprep.subr.bf16.mxu0 0
        %7862 = vmatpush2.bf16.msra.mxu0 0
        %7863 = vmatprep.subr.bf16.mxu0 0
        %7864 = vmatpush2.bf16.msra.mxu0 0
        %7865 = vmatprep.subr.bf16.mxu0 0
        %7866 = vmatpush2.bf16.msra.mxu0 0
        %7867 = vmatprep.subr.bf16.mxu0 0
        %7868 = vmatpush2.bf16.msra.mxu0 0
        %7869 = vmatprep.subr.bf16.mxu0 0
        %7870 = vmatpush2.bf16.msra.mxu0 0
        %7871 = vmatprep.subr.bf16.mxu0 0
        %7872 = vmatpush2.bf16.msra.mxu0 0
        %7873 = vmatprep.mubr.bf16.mxu0 0
        %7874 = vmatmul.mubr.bf16.gmra.mxu0 %v7839
        %v7875 = vpop.f32.mrf.mxu0
        %v7876 = vadd.f32 0.0, %v7875
        %v7877 = vpop.f32.mrf.mxu0
        %v7878 = vpop.f32.mrf.mxu0
        %v7879 = vpop.f32.mrf.mxu0
        %7880 = vdwg.mxu0
        %v7889 = vunpack.c.l.b16 %v4477
        %v7890 = vunpack.c.l.b16 %v4478
        %v7891 = vunpack.c.l.b16 %v4479
        %v7892 = vunpack.c.l.b16 %v4480
        %v7893 = vunpack.c.l.b16 %v4481
        %v7894 = vunpack.c.l.b16 %v4482
        %v7895 = vunpack.c.l.b16 %v4483
        %v7896 = vunpack.c.l.b16 %v4484
        %v7897 = vpack.c.b16 %v7890, %v7889
        %v7898 = vpack.c.b16 %v7892, %v7891
        %v7899 = vpack.c.b16 %v7894, %v7893
        %v7900 = vpack.c.b16 %v7896, %v7895
        %v7906 = vsel %vm2723, %v7411, 0
        %7908 = vmatprep.subr.bf16.mxu0 0
        %7909 = vmatpush1.bf16.msra.mxu0 0
        %7910 = vmatprep.subr.bf16.mxu0 0
        %7911 = vmatpush1.bf16.msra.mxu0 0
        %7912 = vmatprep.subr.bf16.mxu0 0
        %7913 = vmatpush1.bf16.msra.mxu0 0
        %7914 = vmatprep.subr.bf16.mxu0 0
        %7915 = vmatpush1.bf16.msra.mxu0 0
        %7916 = vmatprep.subr.bf16.mxu0 0
        %7917 = vmatpush1.bf16.msra.mxu0 %v7900
        %7918 = vmatprep.subr.bf16.mxu0 0
        %7919 = vmatpush1.bf16.msra.mxu0 %v7899
        %7920 = vmatprep.subr.bf16.mxu0 0
        %7921 = vmatpush1.bf16.msra.mxu0 %v7898
        %7922 = vmatprep.subr.bf16.mxu0 0
        %7923 = vmatpush1.bf16.msra.mxu0 %v7897
        %7924 = vmatprep.subr.bf16.mxu0 0
        %7925 = vmatpush2.bf16.msra.mxu0 0
        %7926 = vmatprep.subr.bf16.mxu0 0
        %7927 = vmatpush2.bf16.msra.mxu0 0
        %7928 = vmatprep.subr.bf16.mxu0 0
        %7929 = vmatpush2.bf16.msra.mxu0 0
        %7930 = vmatprep.subr.bf16.mxu0 0
        %7931 = vmatpush2.bf16.msra.mxu0 0
        %7932 = vmatprep.subr.bf16.mxu0 0
        %7933 = vmatpush2.bf16.msra.mxu0 0
        %7934 = vmatprep.subr.bf16.mxu0 0
        %7935 = vmatpush2.bf16.msra.mxu0 0
        %7936 = vmatprep.subr.bf16.mxu0 0
        %7937 = vmatpush2.bf16.msra.mxu0 0
        %7938 = vmatprep.subr.bf16.mxu0 0
        %7939 = vmatpush2.bf16.msra.mxu0 0
        %7940 = vmatprep.mubr.bf16.mxu0 0
        %7941 = vmatmul.mubr.bf16.gmra.mxu0 %v7906
        %v7942 = vpop.f32.mrf.mxu0
        %v7943 = vadd.f32 0.0, %v7942
        %v7944 = vpop.f32.mrf.mxu0
        %v7945 = vpop.f32.mrf.mxu0
        %v7946 = vpop.f32.mrf.mxu0
        %7947 = vdwg.mxu0
        %v7948 = vsel %vm951, %v7474, 0.0
        %v7949 = vsel %vm951, %v7541, 0.0
        %v7950 = vadd.f32 %v7948, %v7949
        %v7951 = vsel %vm951, %v7608, 0.0
        %v7952 = vadd.f32 %v7950, %v7951
        %v7953 = vsel %vm951, %v7675, 0.0
        %v7954 = vadd.f32 %v7952, %v7953
        %v7955 = vsel %vm951, %v7742, 0.0
        %v7956 = vadd.f32 %v7954, %v7955
        %v7957 = vsel %vm951, %v7809, 0.0
        %v7958 = vadd.f32 %v7956, %v7957
        %v7959 = vsel %vm951, %v7876, 0.0
        %v7960 = vadd.f32 %v7958, %v7959
        %v7961 = vsel %vm951, %v7943, 0.0
        %v7962 = vadd.f32 %v7960, %v7961
        %v7963 = vadd.f32 %v7962, %v4220
        %v7964 = vsel %vm951, %v7963, 0.0
        %7965 = vadd.xlane.f32.xlu0 %v7964
        %v7966 = vpop.xlane.xlu0 %7965
        %v7967 = vmul.f32 %v7966, %v4208
        %v7968 = vmul.f32 %v7963, %v7963
        %v7969 = vsel %vm951, %v7968, 0.0
        %7970 = vadd.xlane.f32.xlu0 %v7969
        %v7971 = vpop.xlane.xlu0 %7970
        %v7972 = vmul.f32 %v7971, %v4208
        %v7973 = vmul.f32 %v7967, %v7967
        %v7974 = vsub.f32 %v7972, %v7973
        %v7975 = vsub.f32 %v7963, %v7967
        %v7976 = vadd.f32 %v7974, 1e-05
        %v7977 = vrsqrt.pop %v7976
        %v7978 = vmul.f32 %v7975, %v7977
        %7979 = vst.msk [vmem:[%s489] sm:$0xff] %vm3076, %v6916
        %7980 = vst.msk [vmem:[%s489 + $0x8] sm:$0xff] %vm3076, %v6917
        %7981 = vst.msk [vmem:[%s489 + $0x10] sm:$0xff] %vm3076, %v6918
        %7982 = vst.msk [vmem:[%s489 + $0x18] sm:$0xff] %vm3076, %v6919
        %7983 = vst.msk [vmem:[%s489 + $0x20] sm:$0xff] %vm3076, %v6920
        %7984 = vst.msk [vmem:[%s489 + $0x28] sm:$0xff] %vm3076, %v6921
        %7985 = vst.msk [vmem:[%s489 + $0x30] sm:$0xff] %vm3076, %v6922
        %7986 = vst.msk [vmem:[%s489 + $0x38] sm:$0xff] %vm3076, %v6923
        %v7987 = vpack.c.bf16 %v7978, %v7978
        %v7988 = vld [vmem:[%s10] sm:$0xff]
        %v7989 = vld [vmem:[%s10 + $0x8] sm:$0xff]
        %v7990 = vld [vmem:[%s10 + $0x10] sm:$0xff]
        %v7991 = vld [vmem:[%s10 + $0x18] sm:$0xff]
        %v7992 = vld [vmem:[%s10 + $0x20] sm:$0xff]
        %v7993 = vld [vmem:[%s10 + $0x28] sm:$0xff]
        %v7994 = vld [vmem:[%s10 + $0x30] sm:$0xff]
        %v7995 = vld [vmem:[%s10 + $0x38] sm:$0xff]
        %v7996 = vld [vmem:[%s10 + $0x40] sm:$0xff]
        %v7997 = vld [vmem:[%s10 + $0x48] sm:$0xff]
        %v7998 = vld [vmem:[%s10 + $0x50] sm:$0xff]
        %v7999 = vld [vmem:[%s10 + $0x58] sm:$0xff]
        %v8000 = vld [vmem:[%s10 + $0x60] sm:$0xff]
        %v8001 = vld [vmem:[%s10 + $0x68] sm:$0xff]
        %v8002 = vld [vmem:[%s10 + $0x70] sm:$0xff]
        %v8003 = vld [vmem:[%s10 + $0x78] sm:$0xff]
        %v8004 = vld [vmem:[%s10 + $0x80] sm:$0xff]
        %v8005 = vld [vmem:[%s10 + $0x88] sm:$0xff]
        %v8006 = vld [vmem:[%s10 + $0x90] sm:$0xff]
        %v8007 = vld [vmem:[%s10 + $0x98] sm:$0xff]
        %v8008 = vld [vmem:[%s10 + $0xa0] sm:$0xff]
        %v8009 = vld [vmem:[%s10 + $0xa8] sm:$0xff]
        %v8010 = vld [vmem:[%s10 + $0xb0] sm:$0xff]
        %v8011 = vld [vmem:[%s10 + $0xb8] sm:$0xff]
        %v8012 = vld [vmem:[%s10 + $0xc0] sm:$0xff]
        %v8013 = vld [vmem:[%s10 + $0xc8] sm:$0xff]
        %v8014 = vld [vmem:[%s10 + $0xd0] sm:$0xff]
        %v8015 = vld [vmem:[%s10 + $0xd8] sm:$0xff]
        %v8016 = vld [vmem:[%s10 + $0xe0] sm:$0xff]
        %v8017 = vld [vmem:[%s10 + $0xe8] sm:$0xff]
        %v8018 = vld [vmem:[%s10 + $0xf0] sm:$0xff]
        %v8019 = vld [vmem:[%s10 + $0xf8] sm:$0xff]
        %v8052 = vunpack.c.l.b16 %v7988
        %v8053 = vunpack.c.h.b16 %v7988
        %v8054 = vunpack.c.l.b16 %v7989
        %v8055 = vunpack.c.h.b16 %v7989
        %v8056 = vunpack.c.l.b16 %v7990
        %v8057 = vunpack.c.h.b16 %v7990
        %v8058 = vunpack.c.l.b16 %v7991
        %v8059 = vunpack.c.h.b16 %v7991
        %v8060 = vunpack.c.l.b16 %v7992
        %v8061 = vunpack.c.h.b16 %v7992
        %v8062 = vunpack.c.l.b16 %v7993
        %v8063 = vunpack.c.h.b16 %v7993
        %v8064 = vunpack.c.l.b16 %v7994
        %v8065 = vunpack.c.h.b16 %v7994
        %v8066 = vunpack.c.l.b16 %v7995
        %v8067 = vunpack.c.h.b16 %v7995
        %v8068 = vunpack.c.l.b16 %v7996
        %v8069 = vunpack.c.h.b16 %v7996
        %v8070 = vunpack.c.l.b16 %v7997
        %v8071 = vunpack.c.h.b16 %v7997
        %v8072 = vunpack.c.l.b16 %v7998
        %v8073 = vunpack.c.h.b16 %v7998
        %v8074 = vunpack.c.l.b16 %v7999
        %v8075 = vunpack.c.h.b16 %v7999
        %v8076 = vunpack.c.l.b16 %v8000
        %v8077 = vunpack.c.h.b16 %v8000
        %v8078 = vunpack.c.l.b16 %v8001
        %v8079 = vunpack.c.h.b16 %v8001
        %v8080 = vunpack.c.l.b16 %v8002
        %v8081 = vunpack.c.h.b16 %v8002
        %v8082 = vunpack.c.l.b16 %v8003
        %v8083 = vunpack.c.h.b16 %v8003
        %v8084 = vunpack.c.l.b16 %v8004
        %v8085 = vunpack.c.h.b16 %v8004
        %v8086 = vunpack.c.l.b16 %v8005
        %v8087 = vunpack.c.h.b16 %v8005
        %v8088 = vunpack.c.l.b16 %v8006
        %v8089 = vunpack.c.h.b16 %v8006
        %v8090 = vunpack.c.l.b16 %v8007
        %v8091 = vunpack.c.h.b16 %v8007
        %v8092 = vunpack.c.l.b16 %v8008
        %v8093 = vunpack.c.h.b16 %v8008
        %v8094 = vunpack.c.l.b16 %v8009
        %v8095 = vunpack.c.h.b16 %v8009
        %v8096 = vunpack.c.l.b16 %v8010
        %v8097 = vunpack.c.h.b16 %v8010
        %v8098 = vunpack.c.l.b16 %v8011
        %v8099 = vunpack.c.h.b16 %v8011
        %v8100 = vunpack.c.l.b16 %v8012
        %v8101 = vunpack.c.h.b16 %v8012
        %v8102 = vunpack.c.l.b16 %v8013
        %v8103 = vunpack.c.h.b16 %v8013
        %v8104 = vunpack.c.l.b16 %v8014
        %v8105 = vunpack.c.h.b16 %v8014
        %v8106 = vunpack.c.l.b16 %v8015
        %v8107 = vunpack.c.h.b16 %v8015
        %v8108 = vunpack.c.l.b16 %v8016
        %v8109 = vunpack.c.h.b16 %v8016
        %v8110 = vunpack.c.l.b16 %v8017
        %v8111 = vunpack.c.h.b16 %v8017
        %v8112 = vunpack.c.l.b16 %v8018
        %v8113 = vunpack.c.h.b16 %v8018
        %v8114 = vunpack.c.l.b16 %v8019
        %v8115 = vunpack.c.h.b16 %v8019
        %v8116 = vpack.c.b16 %v8068, %v8052
        %v8117 = vpack.c.b16 %v8069, %v8053
        %v8118 = vpack.c.b16 %v8070, %v8054
        %v8119 = vpack.c.b16 %v8071, %v8055
        %v8120 = vpack.c.b16 %v8072, %v8056
        %v8121 = vpack.c.b16 %v8073, %v8057
        %v8122 = vpack.c.b16 %v8074, %v8058
        %v8123 = vpack.c.b16 %v8075, %v8059
        %v8124 = vpack.c.b16 %v8076, %v8060
        %v8125 = vpack.c.b16 %v8077, %v8061
        %v8126 = vpack.c.b16 %v8078, %v8062
        %v8127 = vpack.c.b16 %v8079, %v8063
        %v8128 = vpack.c.b16 %v8080, %v8064
        %v8129 = vpack.c.b16 %v8081, %v8065
        %v8130 = vpack.c.b16 %v8082, %v8066
        %v8131 = vpack.c.b16 %v8083, %v8067
        %v8132 = vpack.c.b16 %v8100, %v8084
        %v8133 = vpack.c.b16 %v8101, %v8085
        %v8134 = vpack.c.b16 %v8102, %v8086
        %v8135 = vpack.c.b16 %v8103, %v8087
        %v8136 = vpack.c.b16 %v8104, %v8088
        %v8137 = vpack.c.b16 %v8105, %v8089
        %v8138 = vpack.c.b16 %v8106, %v8090
        %v8139 = vpack.c.b16 %v8107, %v8091
        %v8140 = vpack.c.b16 %v8108, %v8092
        %v8141 = vpack.c.b16 %v8109, %v8093
        %v8142 = vpack.c.b16 %v8110, %v8094
        %v8143 = vpack.c.b16 %v8111, %v8095
        %v8144 = vpack.c.b16 %v8112, %v8096
        %v8145 = vpack.c.b16 %v8113, %v8097
        %v8146 = vpack.c.b16 %v8114, %v8098
        %v8147 = vpack.c.b16 %v8115, %v8099
        %v8181 = vsel %vm951, %v7987, 0
        %8183 = vmatprep.subr.bf16.mxu0 0
        %8184 = vmatpush1.bf16.msra.mxu0 0
        %8185 = vmatprep.subr.bf16.mxu0 0
        %8186 = vmatpush1.bf16.msra.mxu0 0
        %8187 = vmatprep.subr.bf16.mxu0 0
        %8188 = vmatpush1.bf16.msra.mxu0 0
        %8189 = vmatprep.subr.bf16.mxu0 0
        %8190 = vmatpush1.bf16.msra.mxu0 0
        %8191 = vmatprep.subr.bf16.mxu0 0
        %8192 = vmatpush1.bf16.msra.mxu0 0
        %8193 = vmatprep.subr.bf16.mxu0 0
        %8194 = vmatpush1.bf16.msra.mxu0 0
        %8195 = vmatprep.subr.bf16.mxu0 %v8133
        %8196 = vmatpush1.bf16.msra.mxu0 %v8132
        %8197 = vmatprep.subr.bf16.mxu0 %v8117
        %8198 = vmatpush1.bf16.msra.mxu0 %v8116
        %8199 = vmatprep.subr.bf16.mxu0 0
        %8200 = vmatpush2.bf16.msra.mxu0 0
        %8201 = vmatprep.subr.bf16.mxu0 0
        %8202 = vmatpush2.bf16.msra.mxu0 0
        %8203 = vmatprep.subr.bf16.mxu0 0
        %8204 = vmatpush2.bf16.msra.mxu0 0
        %8205 = vmatprep.subr.bf16.mxu0 0
        %8206 = vmatpush2.bf16.msra.mxu0 0
        %8207 = vmatprep.subr.bf16.mxu0 0
        %8208 = vmatpush2.bf16.msra.mxu0 0
        %8209 = vmatprep.subr.bf16.mxu0 0
        %8210 = vmatpush2.bf16.msra.mxu0 0
        %8211 = vmatprep.subr.bf16.mxu0 0
        %8212 = vmatpush2.bf16.msra.mxu0 0
        %8213 = vmatprep.subr.bf16.mxu0 0
        %8214 = vmatpush2.bf16.msra.mxu0 0
        %8215 = vmatprep.mubr.bf16.mxu0 0
        %8216 = vmatmul.mubr.bf16.gmra.mxu0 %v8181
        %v8217 = vpop.f32.mrf.mxu0
        %v8218 = vadd.f32 0.0, %v8217
        %v8219 = vpop.f32.mrf.mxu0
        %v8220 = vadd.f32 0.0, %v8219
        %v8221 = vpop.f32.mrf.mxu0
        %v8222 = vpop.f32.mrf.mxu0
        %8223 = vdwg.mxu0
        %8224 = vmatprep.subr.bf16.mxu0 0
        %8225 = vmatpush1.bf16.msra.mxu0 0
        %8226 = vmatprep.subr.bf16.mxu0 0
        %8227 = vmatpush1.bf16.msra.mxu0 0
        %8228 = vmatprep.subr.bf16.mxu0 0
        %8229 = vmatpush1.bf16.msra.mxu0 0
        %8230 = vmatprep.subr.bf16.mxu0 0
        %8231 = vmatpush1.bf16.msra.mxu0 0
        %8232 = vmatprep.subr.bf16.mxu0 0
        %8233 = vmatpush1.bf16.msra.mxu0 0
        %8234 = vmatprep.subr.bf16.mxu0 0
        %8235 = vmatpush1.bf16.msra.mxu0 0
        %8236 = vmatprep.subr.bf16.mxu0 %v8135
        %8237 = vmatpush1.bf16.msra.mxu0 %v8134
        %8238 = vmatprep.subr.bf16.mxu0 %v8119
        %8239 = vmatpush1.bf16.msra.mxu0 %v8118
        %8240 = vmatprep.subr.bf16.mxu0 0
        %8241 = vmatpush2.bf16.msra.mxu0 0
        %8242 = vmatprep.subr.bf16.mxu0 0
        %8243 = vmatpush2.bf16.msra.mxu0 0
        %8244 = vmatprep.subr.bf16.mxu0 0
        %8245 = vmatpush2.bf16.msra.mxu0 0
        %8246 = vmatprep.subr.bf16.mxu0 0
        %8247 = vmatpush2.bf16.msra.mxu0 0
        %8248 = vmatprep.subr.bf16.mxu0 0
        %8249 = vmatpush2.bf16.msra.mxu0 0
        %8250 = vmatprep.subr.bf16.mxu0 0
        %8251 = vmatpush2.bf16.msra.mxu0 0
        %8252 = vmatprep.subr.bf16.mxu0 0
        %8253 = vmatpush2.bf16.msra.mxu0 0
        %8254 = vmatprep.subr.bf16.mxu0 0
        %8255 = vmatpush2.bf16.msra.mxu0 0
        %8256 = vmatprep.mubr.bf16.mxu0 0
        %8257 = vmatmul.mubr.bf16.gmra.mxu0 %v8181
        %v8258 = vpop.f32.mrf.mxu0
        %v8259 = vadd.f32 0.0, %v8258
        %v8260 = vpop.f32.mrf.mxu0
        %v8261 = vadd.f32 0.0, %v8260
        %v8262 = vpop.f32.mrf.mxu0
        %v8263 = vpop.f32.mrf.mxu0
        %8264 = vdwg.mxu0
        %8265 = vmatprep.subr.bf16.mxu0 0
        %8266 = vmatpush1.bf16.msra.mxu0 0
        %8267 = vmatprep.subr.bf16.mxu0 0
        %8268 = vmatpush1.bf16.msra.mxu0 0
        %8269 = vmatprep.subr.bf16.mxu0 0
        %8270 = vmatpush1.bf16.msra.mxu0 0
        %8271 = vmatprep.subr.bf16.mxu0 0
        %8272 = vmatpush1.bf16.msra.mxu0 0
        %8273 = vmatprep.subr.bf16.mxu0 0
        %8274 = vmatpush1.bf16.msra.mxu0 0
        %8275 = vmatprep.subr.bf16.mxu0 0
        %8276 = vmatpush1.bf16.msra.mxu0 0
        %8277 = vmatprep.subr.bf16.mxu0 %v8137
        %8278 = vmatpush1.bf16.msra.mxu0 %v8136
        %8279 = vmatprep.subr.bf16.mxu0 %v8121
        %8280 = vmatpush1.bf16.msra.mxu0 %v8120
        %8281 = vmatprep.subr.bf16.mxu0 0
        %8282 = vmatpush2.bf16.msra.mxu0 0
        %8283 = vmatprep.subr.bf16.mxu0 0
        %8284 = vmatpush2.bf16.msra.mxu0 0
        %8285 = vmatprep.subr.bf16.mxu0 0
        %8286 = vmatpush2.bf16.msra.mxu0 0
        %8287 = vmatprep.subr.bf16.mxu0 0
        %8288 = vmatpush2.bf16.msra.mxu0 0
        %8289 = vmatprep.subr.bf16.mxu0 0
        %8290 = vmatpush2.bf16.msra.mxu0 0
        %8291 = vmatprep.subr.bf16.mxu0 0
        %8292 = vmatpush2.bf16.msra.mxu0 0
        %8293 = vmatprep.subr.bf16.mxu0 0
        %8294 = vmatpush2.bf16.msra.mxu0 0
        %8295 = vmatprep.subr.bf16.mxu0 0
        %8296 = vmatpush2.bf16.msra.mxu0 0
        %8297 = vmatprep.mubr.bf16.mxu0 0
        %8298 = vmatmul.mubr.bf16.gmra.mxu0 %v8181
        %v8299 = vpop.f32.mrf.mxu0
        %v8300 = vadd.f32 0.0, %v8299
        %v8301 = vpop.f32.mrf.mxu0
        %v8302 = vadd.f32 0.0, %v8301
        %v8303 = vpop.f32.mrf.mxu0
        %v8304 = vpop.f32.mrf.mxu0
        %8305 = vdwg.mxu0
        %8306 = vmatprep.subr.bf16.mxu0 0
        %8307 = vmatpush1.bf16.msra.mxu0 0
        %8308 = vmatprep.subr.bf16.mxu0 0
        %8309 = vmatpush1.bf16.msra.mxu0 0
        %8310 = vmatprep.subr.bf16.mxu0 0
        %8311 = vmatpush1.bf16.msra.mxu0 0
        %8312 = vmatprep.subr.bf16.mxu0 0
        %8313 = vmatpush1.bf16.msra.mxu0 0
        %8314 = vmatprep.subr.bf16.mxu0 0
        %8315 = vmatpush1.bf16.msra.mxu0 0
        %8316 = vmatprep.subr.bf16.mxu0 0
        %8317 = vmatpush1.bf16.msra.mxu0 0
        %8318 = vmatprep.subr.bf16.mxu0 %v8139
        %8319 = vmatpush1.bf16.msra.mxu0 %v8138
        %8320 = vmatprep.subr.bf16.mxu0 %v8123
        %8321 = vmatpush1.bf16.msra.mxu0 %v8122
        %8322 = vmatprep.subr.bf16.mxu0 0
        %8323 = vmatpush2.bf16.msra.mxu0 0
        %8324 = vmatprep.subr.bf16.mxu0 0
        %8325 = vmatpush2.bf16.msra.mxu0 0
        %8326 = vmatprep.subr.bf16.mxu0 0
        %8327 = vmatpush2.bf16.msra.mxu0 0
        %8328 = vmatprep.subr.bf16.mxu0 0
        %8329 = vmatpush2.bf16.msra.mxu0 0
        %8330 = vmatprep.subr.bf16.mxu0 0
        %8331 = vmatpush2.bf16.msra.mxu0 0
        %8332 = vmatprep.subr.bf16.mxu0 0
        %8333 = vmatpush2.bf16.msra.mxu0 0
        %8334 = vmatprep.subr.bf16.mxu0 0
        %8335 = vmatpush2.bf16.msra.mxu0 0
        %8336 = vmatprep.subr.bf16.mxu0 0
        %8337 = vmatpush2.bf16.msra.mxu0 0
        %8338 = vmatprep.mubr.bf16.mxu0 0
        %8339 = vmatmul.mubr.bf16.gmra.mxu0 %v8181
        %v8340 = vpop.f32.mrf.mxu0
        %v8341 = vadd.f32 0.0, %v8340
        %v8342 = vpop.f32.mrf.mxu0
        %v8343 = vadd.f32 0.0, %v8342
        %v8344 = vpop.f32.mrf.mxu0
        %v8345 = vpop.f32.mrf.mxu0
        %8346 = vdwg.mxu0
        %8347 = vmatprep.subr.bf16.mxu0 0
        %8348 = vmatpush1.bf16.msra.mxu0 0
        %8349 = vmatprep.subr.bf16.mxu0 0
        %8350 = vmatpush1.bf16.msra.mxu0 0
        %8351 = vmatprep.subr.bf16.mxu0 0
        %8352 = vmatpush1.bf16.msra.mxu0 0
        %8353 = vmatprep.subr.bf16.mxu0 0
        %8354 = vmatpush1.bf16.msra.mxu0 0
        %8355 = vmatprep.subr.bf16.mxu0 0
        %8356 = vmatpush1.bf16.msra.mxu0 0
        %8357 = vmatprep.subr.bf16.mxu0 0
        %8358 = vmatpush1.bf16.msra.mxu0 0
        %8359 = vmatprep.subr.bf16.mxu0 %v8141
        %8360 = vmatpush1.bf16.msra.mxu0 %v8140
        %8361 = vmatprep.subr.bf16.mxu0 %v8125
        %8362 = vmatpush1.bf16.msra.mxu0 %v8124
        %8363 = vmatprep.subr.bf16.mxu0 0
        %8364 = vmatpush2.bf16.msra.mxu0 0
        %8365 = vmatprep.subr.bf16.mxu0 0
        %8366 = vmatpush2.bf16.msra.mxu0 0
        %8367 = vmatprep.subr.bf16.mxu0 0
        %8368 = vmatpush2.bf16.msra.mxu0 0
        %8369 = vmatprep.subr.bf16.mxu0 0
        %8370 = vmatpush2.bf16.msra.mxu0 0
        %8371 = vmatprep.subr.bf16.mxu0 0
        %8372 = vmatpush2.bf16.msra.mxu0 0
        %8373 = vmatprep.subr.bf16.mxu0 0
        %8374 = vmatpush2.bf16.msra.mxu0 0
        %8375 = vmatprep.subr.bf16.mxu0 0
        %8376 = vmatpush2.bf16.msra.mxu0 0
        %8377 = vmatprep.subr.bf16.mxu0 0
        %8378 = vmatpush2.bf16.msra.mxu0 0
        %8379 = vmatprep.mubr.bf16.mxu0 0
        %8380 = vmatmul.mubr.bf16.gmra.mxu0 %v8181
        %v8381 = vpop.f32.mrf.mxu0
        %v8382 = vadd.f32 0.0, %v8381
        %v8383 = vpop.f32.mrf.mxu0
        %v8384 = vadd.f32 0.0, %v8383
        %v8385 = vpop.f32.mrf.mxu0
        %v8386 = vpop.f32.mrf.mxu0
        %8387 = vdwg.mxu0
        %8388 = vmatprep.subr.bf16.mxu0 0
        %8389 = vmatpush1.bf16.msra.mxu0 0
        %8390 = vmatprep.subr.bf16.mxu0 0
        %8391 = vmatpush1.bf16.msra.mxu0 0
        %8392 = vmatprep.subr.bf16.mxu0 0
        %8393 = vmatpush1.bf16.msra.mxu0 0
        %8394 = vmatprep.subr.bf16.mxu0 0
        %8395 = vmatpush1.bf16.msra.mxu0 0
        %8396 = vmatprep.subr.bf16.mxu0 0
        %8397 = vmatpush1.bf16.msra.mxu0 0
        %8398 = vmatprep.subr.bf16.mxu0 0
        %8399 = vmatpush1.bf16.msra.mxu0 0
        %8400 = vmatprep.subr.bf16.mxu0 %v8143
        %8401 = vmatpush1.bf16.msra.mxu0 %v8142
        %8402 = vmatprep.subr.bf16.mxu0 %v8127
        %8403 = vmatpush1.bf16.msra.mxu0 %v8126
        %8404 = vmatprep.subr.bf16.mxu0 0
        %8405 = vmatpush2.bf16.msra.mxu0 0
        %8406 = vmatprep.subr.bf16.mxu0 0
        %8407 = vmatpush2.bf16.msra.mxu0 0
        %8408 = vmatprep.subr.bf16.mxu0 0
        %8409 = vmatpush2.bf16.msra.mxu0 0
        %8410 = vmatprep.subr.bf16.mxu0 0
        %8411 = vmatpush2.bf16.msra.mxu0 0
        %8412 = vmatprep.subr.bf16.mxu0 0
        %8413 = vmatpush2.bf16.msra.mxu0 0
        %8414 = vmatprep.subr.bf16.mxu0 0
        %8415 = vmatpush2.bf16.msra.mxu0 0
        %8416 = vmatprep.subr.bf16.mxu0 0
        %8417 = vmatpush2.bf16.msra.mxu0 0
        %8418 = vmatprep.subr.bf16.mxu0 0
        %8419 = vmatpush2.bf16.msra.mxu0 0
        %8420 = vmatprep.mubr.bf16.mxu0 0
        %8421 = vmatmul.mubr.bf16.gmra.mxu0 %v8181
        %v8422 = vpop.f32.mrf.mxu0
        %v8423 = vadd.f32 0.0, %v8422
        %v8424 = vpop.f32.mrf.mxu0
        %v8425 = vadd.f32 0.0, %v8424
        %v8426 = vpop.f32.mrf.mxu0
        %v8427 = vpop.f32.mrf.mxu0
        %8428 = vdwg.mxu0
        %8429 = vmatprep.subr.bf16.mxu0 0
        %8430 = vmatpush1.bf16.msra.mxu0 0
        %8431 = vmatprep.subr.bf16.mxu0 0
        %8432 = vmatpush1.bf16.msra.mxu0 0
        %8433 = vmatprep.subr.bf16.mxu0 0
        %8434 = vmatpush1.bf16.msra.mxu0 0
        %8435 = vmatprep.subr.bf16.mxu0 0
        %8436 = vmatpush1.bf16.msra.mxu0 0
        %8437 = vmatprep.subr.bf16.mxu0 0
        %8438 = vmatpush1.bf16.msra.mxu0 0
        %8439 = vmatprep.subr.bf16.mxu0 0
        %8440 = vmatpush1.bf16.msra.mxu0 0
        %8441 = vmatprep.subr.bf16.mxu0 %v8145
        %8442 = vmatpush1.bf16.msra.mxu0 %v8144
        %8443 = vmatprep.subr.bf16.mxu0 %v8129
        %8444 = vmatpush1.bf16.msra.mxu0 %v8128
        %8445 = vmatprep.subr.bf16.mxu0 0
        %8446 = vmatpush2.bf16.msra.mxu0 0
        %8447 = vmatprep.subr.bf16.mxu0 0
        %8448 = vmatpush2.bf16.msra.mxu0 0
        %8449 = vmatprep.subr.bf16.mxu0 0
        %8450 = vmatpush2.bf16.msra.mxu0 0
        %8451 = vmatprep.subr.bf16.mxu0 0
        %8452 = vmatpush2.bf16.msra.mxu0 0
        %8453 = vmatprep.subr.bf16.mxu0 0
        %8454 = vmatpush2.bf16.msra.mxu0 0
        %8455 = vmatprep.subr.bf16.mxu0 0
        %8456 = vmatpush2.bf16.msra.mxu0 0
        %8457 = vmatprep.subr.bf16.mxu0 0
        %8458 = vmatpush2.bf16.msra.mxu0 0
        %8459 = vmatprep.subr.bf16.mxu0 0
        %8460 = vmatpush2.bf16.msra.mxu0 0
        %8461 = vmatprep.mubr.bf16.mxu0 0
        %8462 = vmatmul.mubr.bf16.gmra.mxu0 %v8181
        %v8463 = vpop.f32.mrf.mxu0
        %v8464 = vadd.f32 0.0, %v8463
        %v8465 = vpop.f32.mrf.mxu0
        %v8466 = vadd.f32 0.0, %v8465
        %v8467 = vpop.f32.mrf.mxu0
        %v8468 = vpop.f32.mrf.mxu0
        %8469 = vdwg.mxu0
        %8470 = vmatprep.subr.bf16.mxu0 0
        %8471 = vmatpush1.bf16.msra.mxu0 0
        %8472 = vmatprep.subr.bf16.mxu0 0
        %8473 = vmatpush1.bf16.msra.mxu0 0
        %8474 = vmatprep.subr.bf16.mxu0 0
        %8475 = vmatpush1.bf16.msra.mxu0 0
        %8476 = vmatprep.subr.bf16.mxu0 0
        %8477 = vmatpush1.bf16.msra.mxu0 0
        %8478 = vmatprep.subr.bf16.mxu0 0
        %8479 = vmatpush1.bf16.msra.mxu0 0
        %8480 = vmatprep.subr.bf16.mxu0 0
        %8481 = vmatpush1.bf16.msra.mxu0 0
        %8482 = vmatprep.subr.bf16.mxu0 %v8147
        %8483 = vmatpush1.bf16.msra.mxu0 %v8146
        %8484 = vmatprep.subr.bf16.mxu0 %v8131
        %8485 = vmatpush1.bf16.msra.mxu0 %v8130
        %8486 = vmatprep.subr.bf16.mxu0 0
        %8487 = vmatpush2.bf16.msra.mxu0 0
        %8488 = vmatprep.subr.bf16.mxu0 0
        %8489 = vmatpush2.bf16.msra.mxu0 0
        %8490 = vmatprep.subr.bf16.mxu0 0
        %8491 = vmatpush2.bf16.msra.mxu0 0
        %8492 = vmatprep.subr.bf16.mxu0 0
        %8493 = vmatpush2.bf16.msra.mxu0 0
        %8494 = vmatprep.subr.bf16.mxu0 0
        %8495 = vmatpush2.bf16.msra.mxu0 0
        %8496 = vmatprep.subr.bf16.mxu0 0
        %8497 = vmatpush2.bf16.msra.mxu0 0
        %8498 = vmatprep.subr.bf16.mxu0 0
        %8499 = vmatpush2.bf16.msra.mxu0 0
        %8500 = vmatprep.subr.bf16.mxu0 0
        %8501 = vmatpush2.bf16.msra.mxu0 0
        %8502 = vmatprep.mubr.bf16.mxu0 0
        %8503 = vmatmul.mubr.bf16.gmra.mxu0 %v8181
        %v8504 = vpop.f32.mrf.mxu0
        %v8505 = vadd.f32 0.0, %v8504
        %v8506 = vpop.f32.mrf.mxu0
        %v8507 = vadd.f32 0.0, %v8506
        %v8508 = vpop.f32.mrf.mxu0
        %v8509 = vpop.f32.mrf.mxu0
        %8510 = vdwg.mxu0
        %v8511 = vmax.f32 %v8218, 0.0
        %v8512 = vmax.f32 %v8220, 0.0
        %v8513 = vmax.f32 %v8259, 0.0
        %v8514 = vmax.f32 %v8261, 0.0
        %v8515 = vmax.f32 %v8300, 0.0
        %v8516 = vmax.f32 %v8302, 0.0
        %v8517 = vmax.f32 %v8341, 0.0
        %v8518 = vmax.f32 %v8343, 0.0
        %v8519 = vmax.f32 %v8382, 0.0
        %v8520 = vmax.f32 %v8384, 0.0
        %v8521 = vmax.f32 %v8423, 0.0
        %v8522 = vmax.f32 %v8425, 0.0
        %v8523 = vmax.f32 %v8464, 0.0
        %v8524 = vmax.f32 %v8466, 0.0
        %v8525 = vmax.f32 %v8505, 0.0
        %v8526 = vmax.f32 %v8507, 0.0
        %v8527 = vpack.c.bf16 %v8511, %v8511
        %v8528 = vpack.c.bf16 %v8512, %v8512
        %v8529 = vpack.c.bf16 %v8513, %v8513
        %v8530 = vpack.c.bf16 %v8514, %v8514
        %v8531 = vpack.c.bf16 %v8515, %v8515
        %v8532 = vpack.c.bf16 %v8516, %v8516
        %v8533 = vpack.c.bf16 %v8517, %v8517
        %v8534 = vpack.c.bf16 %v8518, %v8518
        %v8535 = vpack.c.bf16 %v8519, %v8519
        %v8536 = vpack.c.bf16 %v8520, %v8520
        %v8537 = vpack.c.bf16 %v8521, %v8521
        %v8538 = vpack.c.bf16 %v8522, %v8522
        %v8539 = vpack.c.bf16 %v8523, %v8523
        %v8540 = vpack.c.bf16 %v8524, %v8524
        %v8541 = vpack.c.bf16 %v8525, %v8525
        %v8542 = vpack.c.bf16 %v8526, %v8526
        %v8543 = vld [vmem:[%s11] sm:$0xf]
        %v8544 = vld [vmem:[%s11 + $0x4] sm:$0xf]
        %v8545 = vld [vmem:[%s11 + $0x8] sm:$0xf]
        %v8546 = vld [vmem:[%s11 + $0xc] sm:$0xf]
        %v8547 = vld [vmem:[%s11 + $0x10] sm:$0xf]
        %v8548 = vld [vmem:[%s11 + $0x14] sm:$0xf]
        %v8549 = vld [vmem:[%s11 + $0x18] sm:$0xf]
        %v8550 = vld [vmem:[%s11 + $0x1c] sm:$0xf]
        %v8551 = vld [vmem:[%s11 + $0x20] sm:$0xf]
        %v8552 = vld [vmem:[%s11 + $0x24] sm:$0xf]
        %v8553 = vld [vmem:[%s11 + $0x28] sm:$0xf]
        %v8554 = vld [vmem:[%s11 + $0x2c] sm:$0xf]
        %v8555 = vld [vmem:[%s11 + $0x30] sm:$0xf]
        %v8556 = vld [vmem:[%s11 + $0x34] sm:$0xf]
        %v8557 = vld [vmem:[%s11 + $0x38] sm:$0xf]
        %v8558 = vld [vmem:[%s11 + $0x3c] sm:$0xf]
        %v8559 = vld [vmem:[%s11 + $0x40] sm:$0xf]
        %v8560 = vld [vmem:[%s11 + $0x44] sm:$0xf]
        %v8561 = vld [vmem:[%s11 + $0x48] sm:$0xf]
        %v8562 = vld [vmem:[%s11 + $0x4c] sm:$0xf]
        %v8563 = vld [vmem:[%s11 + $0x50] sm:$0xf]
        %v8564 = vld [vmem:[%s11 + $0x54] sm:$0xf]
        %v8565 = vld [vmem:[%s11 + $0x58] sm:$0xf]
        %v8566 = vld [vmem:[%s11 + $0x5c] sm:$0xf]
        %v8567 = vld [vmem:[%s11 + $0x60] sm:$0xf]
        %v8568 = vld [vmem:[%s11 + $0x64] sm:$0xf]
        %v8569 = vld [vmem:[%s11 + $0x68] sm:$0xf]
        %v8570 = vld [vmem:[%s11 + $0x6c] sm:$0xf]
        %v8571 = vld [vmem:[%s11 + $0x70] sm:$0xf]
        %v8572 = vld [vmem:[%s11 + $0x74] sm:$0xf]
        %v8573 = vld [vmem:[%s11 + $0x78] sm:$0xf]
        %v8574 = vld [vmem:[%s11 + $0x7c] sm:$0xf]
        %v8575 = vld [vmem:[%s11 + $0x80] sm:$0xf]
        %v8576 = vld [vmem:[%s11 + $0x84] sm:$0xf]
        %v8577 = vld [vmem:[%s11 + $0x88] sm:$0xf]
        %v8578 = vld [vmem:[%s11 + $0x8c] sm:$0xf]
        %v8579 = vld [vmem:[%s11 + $0x90] sm:$0xf]
        %v8580 = vld [vmem:[%s11 + $0x94] sm:$0xf]
        %v8581 = vld [vmem:[%s11 + $0x98] sm:$0xf]
        %v8582 = vld [vmem:[%s11 + $0x9c] sm:$0xf]
        %v8583 = vld [vmem:[%s11 + $0xa0] sm:$0xf]
        %v8584 = vld [vmem:[%s11 + $0xa4] sm:$0xf]
        %v8585 = vld [vmem:[%s11 + $0xa8] sm:$0xf]
        %v8586 = vld [vmem:[%s11 + $0xac] sm:$0xf]
        %v8587 = vld [vmem:[%s11 + $0xb0] sm:$0xf]
        %v8588 = vld [vmem:[%s11 + $0xb4] sm:$0xf]
        %v8589 = vld [vmem:[%s11 + $0xb8] sm:$0xf]
        %v8590 = vld [vmem:[%s11 + $0xbc] sm:$0xf]
        %v8591 = vld [vmem:[%s11 + $0xc0] sm:$0xf]
        %v8592 = vld [vmem:[%s11 + $0xc4] sm:$0xf]
        %v8593 = vld [vmem:[%s11 + $0xc8] sm:$0xf]
        %v8594 = vld [vmem:[%s11 + $0xcc] sm:$0xf]
        %v8595 = vld [vmem:[%s11 + $0xd0] sm:$0xf]
        %v8596 = vld [vmem:[%s11 + $0xd4] sm:$0xf]
        %v8597 = vld [vmem:[%s11 + $0xd8] sm:$0xf]
        %v8598 = vld [vmem:[%s11 + $0xdc] sm:$0xf]
        %v8599 = vld [vmem:[%s11 + $0xe0] sm:$0xf]
        %v8600 = vld [vmem:[%s11 + $0xe4] sm:$0xf]
        %v8601 = vld [vmem:[%s11 + $0xe8] sm:$0xf]
        %v8602 = vld [vmem:[%s11 + $0xec] sm:$0xf]
        %v8603 = vld [vmem:[%s11 + $0xf0] sm:$0xf]
        %v8604 = vld [vmem:[%s11 + $0xf4] sm:$0xf]
        %v8605 = vld [vmem:[%s11 + $0xf8] sm:$0xf]
        %v8606 = vld [vmem:[%s11 + $0xfc] sm:$0xf]
        %v8607 = vld [vmem:[%s11 + $0x100] sm:$0xf]
        %v8608 = vld [vmem:[%s11 + $0x104] sm:$0xf]
        %v8609 = vld [vmem:[%s11 + $0x108] sm:$0xf]
        %v8610 = vld [vmem:[%s11 + $0x10c] sm:$0xf]
        %v8611 = vld [vmem:[%s11 + $0x110] sm:$0xf]
        %v8612 = vld [vmem:[%s11 + $0x114] sm:$0xf]
        %v8613 = vld [vmem:[%s11 + $0x118] sm:$0xf]
        %v8614 = vld [vmem:[%s11 + $0x11c] sm:$0xf]
        %v8615 = vld [vmem:[%s11 + $0x120] sm:$0xf]
        %v8616 = vld [vmem:[%s11 + $0x124] sm:$0xf]
        %v8617 = vld [vmem:[%s11 + $0x128] sm:$0xf]
        %v8618 = vld [vmem:[%s11 + $0x12c] sm:$0xf]
        %v8619 = vld [vmem:[%s11 + $0x130] sm:$0xf]
        %v8620 = vld [vmem:[%s11 + $0x134] sm:$0xf]
        %v8621 = vld [vmem:[%s11 + $0x138] sm:$0xf]
        %v8622 = vld [vmem:[%s11 + $0x13c] sm:$0xf]
        %v8623 = vld [vmem:[%s11 + $0x140] sm:$0xf]
        %v8624 = vld [vmem:[%s11 + $0x144] sm:$0xf]
        %v8625 = vld [vmem:[%s11 + $0x148] sm:$0xf]
        %v8626 = vld [vmem:[%s11 + $0x14c] sm:$0xf]
        %v8627 = vld [vmem:[%s11 + $0x150] sm:$0xf]
        %v8628 = vld [vmem:[%s11 + $0x154] sm:$0xf]
        %v8629 = vld [vmem:[%s11 + $0x158] sm:$0xf]
        %v8630 = vld [vmem:[%s11 + $0x15c] sm:$0xf]
        %v8631 = vld [vmem:[%s11 + $0x160] sm:$0xf]
        %v8632 = vld [vmem:[%s11 + $0x164] sm:$0xf]
        %v8633 = vld [vmem:[%s11 + $0x168] sm:$0xf]
        %v8634 = vld [vmem:[%s11 + $0x16c] sm:$0xf]
        %v8635 = vld [vmem:[%s11 + $0x170] sm:$0xf]
        %v8636 = vld [vmem:[%s11 + $0x174] sm:$0xf]
        %v8637 = vld [vmem:[%s11 + $0x178] sm:$0xf]
        %v8638 = vld [vmem:[%s11 + $0x17c] sm:$0xf]
        %v8639 = vld [vmem:[%s11 + $0x180] sm:$0xf]
        %v8640 = vld [vmem:[%s11 + $0x184] sm:$0xf]
        %v8641 = vld [vmem:[%s11 + $0x188] sm:$0xf]
        %v8642 = vld [vmem:[%s11 + $0x18c] sm:$0xf]
        %v8643 = vld [vmem:[%s11 + $0x190] sm:$0xf]
        %v8644 = vld [vmem:[%s11 + $0x194] sm:$0xf]
        %v8645 = vld [vmem:[%s11 + $0x198] sm:$0xf]
        %v8646 = vld [vmem:[%s11 + $0x19c] sm:$0xf]
        %v8647 = vld [vmem:[%s11 + $0x1a0] sm:$0xf]
        %v8648 = vld [vmem:[%s11 + $0x1a4] sm:$0xf]
        %v8649 = vld [vmem:[%s11 + $0x1a8] sm:$0xf]
        %v8650 = vld [vmem:[%s11 + $0x1ac] sm:$0xf]
        %v8651 = vld [vmem:[%s11 + $0x1b0] sm:$0xf]
        %v8652 = vld [vmem:[%s11 + $0x1b4] sm:$0xf]
        %v8653 = vld [vmem:[%s11 + $0x1b8] sm:$0xf]
        %v8654 = vld [vmem:[%s11 + $0x1bc] sm:$0xf]
        %v8655 = vld [vmem:[%s11 + $0x1c0] sm:$0xf]
        %v8656 = vld [vmem:[%s11 + $0x1c4] sm:$0xf]
        %v8657 = vld [vmem:[%s11 + $0x1c8] sm:$0xf]
        %v8658 = vld [vmem:[%s11 + $0x1cc] sm:$0xf]
        %v8659 = vld [vmem:[%s11 + $0x1d0] sm:$0xf]
        %v8660 = vld [vmem:[%s11 + $0x1d4] sm:$0xf]
        %v8661 = vld [vmem:[%s11 + $0x1d8] sm:$0xf]
        %v8662 = vld [vmem:[%s11 + $0x1dc] sm:$0xf]
        %v8663 = vld [vmem:[%s11 + $0x1e0] sm:$0xf]
        %v8664 = vld [vmem:[%s11 + $0x1e4] sm:$0xf]
        %v8665 = vld [vmem:[%s11 + $0x1e8] sm:$0xf]
        %v8666 = vld [vmem:[%s11 + $0x1ec] sm:$0xf]
        %v8667 = vld [vmem:[%s11 + $0x1f0] sm:$0xf]
        %v8668 = vld [vmem:[%s11 + $0x1f4] sm:$0xf]
        %v8669 = vld [vmem:[%s11 + $0x1f8] sm:$0xf]
        %v8670 = vld [vmem:[%s11 + $0x1fc] sm:$0xf]
        %v8671 = vld [vmem:[%s11 + $0x200] sm:$0xf]
        %v8672 = vld [vmem:[%s11 + $0x204] sm:$0xf]
        %v8673 = vld [vmem:[%s11 + $0x208] sm:$0xf]
        %v8674 = vld [vmem:[%s11 + $0x20c] sm:$0xf]
        %v8675 = vld [vmem:[%s11 + $0x210] sm:$0xf]
        %v8676 = vld [vmem:[%s11 + $0x214] sm:$0xf]
        %v8677 = vld [vmem:[%s11 + $0x218] sm:$0xf]
        %v8678 = vld [vmem:[%s11 + $0x21c] sm:$0xf]
        %v8679 = vld [vmem:[%s11 + $0x220] sm:$0xf]
        %v8680 = vld [vmem:[%s11 + $0x224] sm:$0xf]
        %v8681 = vld [vmem:[%s11 + $0x228] sm:$0xf]
        %v8682 = vld [vmem:[%s11 + $0x22c] sm:$0xf]
        %v8683 = vld [vmem:[%s11 + $0x230] sm:$0xf]
        %v8684 = vld [vmem:[%s11 + $0x234] sm:$0xf]
        %v8685 = vld [vmem:[%s11 + $0x238] sm:$0xf]
        %v8686 = vld [vmem:[%s11 + $0x23c] sm:$0xf]
        %v8687 = vld [vmem:[%s11 + $0x240] sm:$0xf]
        %v8688 = vld [vmem:[%s11 + $0x244] sm:$0xf]
        %v8689 = vld [vmem:[%s11 + $0x248] sm:$0xf]
        %v8690 = vld [vmem:[%s11 + $0x24c] sm:$0xf]
        %v8691 = vld [vmem:[%s11 + $0x250] sm:$0xf]
        %v8692 = vld [vmem:[%s11 + $0x254] sm:$0xf]
        %v8693 = vld [vmem:[%s11 + $0x258] sm:$0xf]
        %v8694 = vld [vmem:[%s11 + $0x25c] sm:$0xf]
        %v8695 = vld [vmem:[%s11 + $0x260] sm:$0xf]
        %v8696 = vld [vmem:[%s11 + $0x264] sm:$0xf]
        %v8697 = vld [vmem:[%s11 + $0x268] sm:$0xf]
        %v8698 = vld [vmem:[%s11 + $0x26c] sm:$0xf]
        %v8699 = vld [vmem:[%s11 + $0x270] sm:$0xf]
        %v8700 = vld [vmem:[%s11 + $0x274] sm:$0xf]
        %v8701 = vld [vmem:[%s11 + $0x278] sm:$0xf]
        %v8702 = vld [vmem:[%s11 + $0x27c] sm:$0xf]
        %v8703 = vld [vmem:[%s11 + $0x280] sm:$0xf]
        %v8704 = vld [vmem:[%s11 + $0x284] sm:$0xf]
        %v8705 = vld [vmem:[%s11 + $0x288] sm:$0xf]
        %v8706 = vld [vmem:[%s11 + $0x28c] sm:$0xf]
        %v8707 = vld [vmem:[%s11 + $0x290] sm:$0xf]
        %v8708 = vld [vmem:[%s11 + $0x294] sm:$0xf]
        %v8709 = vld [vmem:[%s11 + $0x298] sm:$0xf]
        %v8710 = vld [vmem:[%s11 + $0x29c] sm:$0xf]
        %v8711 = vld [vmem:[%s11 + $0x2a0] sm:$0xf]
        %v8712 = vld [vmem:[%s11 + $0x2a4] sm:$0xf]
        %v8713 = vld [vmem:[%s11 + $0x2a8] sm:$0xf]
        %v8714 = vld [vmem:[%s11 + $0x2ac] sm:$0xf]
        %v8715 = vld [vmem:[%s11 + $0x2b0] sm:$0xf]
        %v8716 = vld [vmem:[%s11 + $0x2b4] sm:$0xf]
        %v8717 = vld [vmem:[%s11 + $0x2b8] sm:$0xf]
        %v8718 = vld [vmem:[%s11 + $0x2bc] sm:$0xf]
        %v8719 = vld [vmem:[%s11 + $0x2c0] sm:$0xf]
        %v8720 = vld [vmem:[%s11 + $0x2c4] sm:$0xf]
        %v8721 = vld [vmem:[%s11 + $0x2c8] sm:$0xf]
        %v8722 = vld [vmem:[%s11 + $0x2cc] sm:$0xf]
        %v8723 = vld [vmem:[%s11 + $0x2d0] sm:$0xf]
        %v8724 = vld [vmem:[%s11 + $0x2d4] sm:$0xf]
        %v8725 = vld [vmem:[%s11 + $0x2d8] sm:$0xf]
        %v8726 = vld [vmem:[%s11 + $0x2dc] sm:$0xf]
        %v8727 = vld [vmem:[%s11 + $0x2e0] sm:$0xf]
        %v8728 = vld [vmem:[%s11 + $0x2e4] sm:$0xf]
        %v8729 = vld [vmem:[%s11 + $0x2e8] sm:$0xf]
        %v8730 = vld [vmem:[%s11 + $0x2ec] sm:$0xf]
        %v8731 = vld [vmem:[%s11 + $0x2f0] sm:$0xf]
        %v8732 = vld [vmem:[%s11 + $0x2f4] sm:$0xf]
        %v8733 = vld [vmem:[%s11 + $0x2f8] sm:$0xf]
        %v8734 = vld [vmem:[%s11 + $0x2fc] sm:$0xf]
        %v8735 = vld [vmem:[%s11 + $0x300] sm:$0xf]
        %v8736 = vld [vmem:[%s11 + $0x304] sm:$0xf]
        %v8737 = vld [vmem:[%s11 + $0x308] sm:$0xf]
        %v8738 = vld [vmem:[%s11 + $0x30c] sm:$0xf]
        %v8739 = vld [vmem:[%s11 + $0x310] sm:$0xf]
        %v8740 = vld [vmem:[%s11 + $0x314] sm:$0xf]
        %v8741 = vld [vmem:[%s11 + $0x318] sm:$0xf]
        %v8742 = vld [vmem:[%s11 + $0x31c] sm:$0xf]
        %v8743 = vld [vmem:[%s11 + $0x320] sm:$0xf]
        %v8744 = vld [vmem:[%s11 + $0x324] sm:$0xf]
        %v8745 = vld [vmem:[%s11 + $0x328] sm:$0xf]
        %v8746 = vld [vmem:[%s11 + $0x32c] sm:$0xf]
        %v8747 = vld [vmem:[%s11 + $0x330] sm:$0xf]
        %v8748 = vld [vmem:[%s11 + $0x334] sm:$0xf]
        %v8749 = vld [vmem:[%s11 + $0x338] sm:$0xf]
        %v8750 = vld [vmem:[%s11 + $0x33c] sm:$0xf]
        %v8751 = vld [vmem:[%s11 + $0x340] sm:$0xf]
        %v8752 = vld [vmem:[%s11 + $0x344] sm:$0xf]
        %v8753 = vld [vmem:[%s11 + $0x348] sm:$0xf]
        %v8754 = vld [vmem:[%s11 + $0x34c] sm:$0xf]
        %v8755 = vld [vmem:[%s11 + $0x350] sm:$0xf]
        %v8756 = vld [vmem:[%s11 + $0x354] sm:$0xf]
        %v8757 = vld [vmem:[%s11 + $0x358] sm:$0xf]
        %v8758 = vld [vmem:[%s11 + $0x35c] sm:$0xf]
        %v8759 = vld [vmem:[%s11 + $0x360] sm:$0xf]
        %v8760 = vld [vmem:[%s11 + $0x364] sm:$0xf]
        %v8761 = vld [vmem:[%s11 + $0x368] sm:$0xf]
        %v8762 = vld [vmem:[%s11 + $0x36c] sm:$0xf]
        %v8763 = vld [vmem:[%s11 + $0x370] sm:$0xf]
        %v8764 = vld [vmem:[%s11 + $0x374] sm:$0xf]
        %v8765 = vld [vmem:[%s11 + $0x378] sm:$0xf]
        %v8766 = vld [vmem:[%s11 + $0x37c] sm:$0xf]
        %v8767 = vld [vmem:[%s11 + $0x380] sm:$0xf]
        %v8768 = vld [vmem:[%s11 + $0x384] sm:$0xf]
        %v8769 = vld [vmem:[%s11 + $0x388] sm:$0xf]
        %v8770 = vld [vmem:[%s11 + $0x38c] sm:$0xf]
        %v8771 = vld [vmem:[%s11 + $0x390] sm:$0xf]
        %v8772 = vld [vmem:[%s11 + $0x394] sm:$0xf]
        %v8773 = vld [vmem:[%s11 + $0x398] sm:$0xf]
        %v8774 = vld [vmem:[%s11 + $0x39c] sm:$0xf]
        %v8775 = vld [vmem:[%s11 + $0x3a0] sm:$0xf]
        %v8776 = vld [vmem:[%s11 + $0x3a4] sm:$0xf]
        %v8777 = vld [vmem:[%s11 + $0x3a8] sm:$0xf]
        %v8778 = vld [vmem:[%s11 + $0x3ac] sm:$0xf]
        %v8779 = vld [vmem:[%s11 + $0x3b0] sm:$0xf]
        %v8780 = vld [vmem:[%s11 + $0x3b4] sm:$0xf]
        %v8781 = vld [vmem:[%s11 + $0x3b8] sm:$0xf]
        %v8782 = vld [vmem:[%s11 + $0x3bc] sm:$0xf]
        %v8783 = vld [vmem:[%s11 + $0x3c0] sm:$0xf]
        %v8784 = vld [vmem:[%s11 + $0x3c4] sm:$0xf]
        %v8785 = vld [vmem:[%s11 + $0x3c8] sm:$0xf]
        %v8786 = vld [vmem:[%s11 + $0x3cc] sm:$0xf]
        %v8787 = vld [vmem:[%s11 + $0x3d0] sm:$0xf]
        %v8788 = vld [vmem:[%s11 + $0x3d4] sm:$0xf]
        %v8789 = vld [vmem:[%s11 + $0x3d8] sm:$0xf]
        %v8790 = vld [vmem:[%s11 + $0x3dc] sm:$0xf]
        %v8791 = vld [vmem:[%s11 + $0x3e0] sm:$0xf]
        %v8792 = vld [vmem:[%s11 + $0x3e4] sm:$0xf]
        %v8793 = vld [vmem:[%s11 + $0x3e8] sm:$0xf]
        %v8794 = vld [vmem:[%s11 + $0x3ec] sm:$0xf]
        %v8795 = vld [vmem:[%s11 + $0x3f0] sm:$0xf]
        %v8796 = vld [vmem:[%s11 + $0x3f4] sm:$0xf]
        %v8797 = vld [vmem:[%s11 + $0x3f8] sm:$0xf]
        %v8798 = vld [vmem:[%s11 + $0x3fc] sm:$0xf]
        %v9055 = vunpack.c.l.b16 %v8543
        %v9056 = vunpack.c.l.b16 %v8544
        %v9057 = vunpack.c.l.b16 %v8545
        %v9058 = vunpack.c.l.b16 %v8546
        %v9059 = vunpack.c.l.b16 %v8547
        %v9060 = vunpack.c.l.b16 %v8548
        %v9061 = vunpack.c.l.b16 %v8549
        %v9062 = vunpack.c.l.b16 %v8550
        %v9063 = vunpack.c.l.b16 %v8551
        %v9064 = vunpack.c.l.b16 %v8552
        %v9065 = vunpack.c.l.b16 %v8553
        %v9066 = vunpack.c.l.b16 %v8554
        %v9067 = vunpack.c.l.b16 %v8555
        %v9068 = vunpack.c.l.b16 %v8556
        %v9069 = vunpack.c.l.b16 %v8557
        %v9070 = vunpack.c.l.b16 %v8558
        %v9071 = vunpack.c.l.b16 %v8559
        %v9072 = vunpack.c.l.b16 %v8560
        %v9073 = vunpack.c.l.b16 %v8561
        %v9074 = vunpack.c.l.b16 %v8562
        %v9075 = vunpack.c.l.b16 %v8563
        %v9076 = vunpack.c.l.b16 %v8564
        %v9077 = vunpack.c.l.b16 %v8565
        %v9078 = vunpack.c.l.b16 %v8566
        %v9079 = vunpack.c.l.b16 %v8567
        %v9080 = vunpack.c.l.b16 %v8568
        %v9081 = vunpack.c.l.b16 %v8569
        %v9082 = vunpack.c.l.b16 %v8570
        %v9083 = vunpack.c.l.b16 %v8571
        %v9084 = vunpack.c.l.b16 %v8572
        %v9085 = vunpack.c.l.b16 %v8573
        %v9086 = vunpack.c.l.b16 %v8574
        %v9087 = vunpack.c.l.b16 %v8575
        %v9088 = vunpack.c.l.b16 %v8576
        %v9089 = vunpack.c.l.b16 %v8577
        %v9090 = vunpack.c.l.b16 %v8578
        %v9091 = vunpack.c.l.b16 %v8579
        %v9092 = vunpack.c.l.b16 %v8580
        %v9093 = vunpack.c.l.b16 %v8581
        %v9094 = vunpack.c.l.b16 %v8582
        %v9095 = vunpack.c.l.b16 %v8583
        %v9096 = vunpack.c.l.b16 %v8584
        %v9097 = vunpack.c.l.b16 %v8585
        %v9098 = vunpack.c.l.b16 %v8586
        %v9099 = vunpack.c.l.b16 %v8587
        %v9100 = vunpack.c.l.b16 %v8588
        %v9101 = vunpack.c.l.b16 %v8589
        %v9102 = vunpack.c.l.b16 %v8590
        %v9103 = vunpack.c.l.b16 %v8591
        %v9104 = vunpack.c.l.b16 %v8592
        %v9105 = vunpack.c.l.b16 %v8593
        %v9106 = vunpack.c.l.b16 %v8594
        %v9107 = vunpack.c.l.b16 %v8595
        %v9108 = vunpack.c.l.b16 %v8596
        %v9109 = vunpack.c.l.b16 %v8597
        %v9110 = vunpack.c.l.b16 %v8598
        %v9111 = vunpack.c.l.b16 %v8599
        %v9112 = vunpack.c.l.b16 %v8600
        %v9113 = vunpack.c.l.b16 %v8601
        %v9114 = vunpack.c.l.b16 %v8602
        %v9115 = vunpack.c.l.b16 %v8603
        %v9116 = vunpack.c.l.b16 %v8604
        %v9117 = vunpack.c.l.b16 %v8605
        %v9118 = vunpack.c.l.b16 %v8606
        %v9119 = vunpack.c.l.b16 %v8607
        %v9120 = vunpack.c.l.b16 %v8608
        %v9121 = vunpack.c.l.b16 %v8609
        %v9122 = vunpack.c.l.b16 %v8610
        %v9123 = vunpack.c.l.b16 %v8611
        %v9124 = vunpack.c.l.b16 %v8612
        %v9125 = vunpack.c.l.b16 %v8613
        %v9126 = vunpack.c.l.b16 %v8614
        %v9127 = vunpack.c.l.b16 %v8615
        %v9128 = vunpack.c.l.b16 %v8616
        %v9129 = vunpack.c.l.b16 %v8617
        %v9130 = vunpack.c.l.b16 %v8618
        %v9131 = vunpack.c.l.b16 %v8619
        %v9132 = vunpack.c.l.b16 %v8620
        %v9133 = vunpack.c.l.b16 %v8621
        %v9134 = vunpack.c.l.b16 %v8622
        %v9135 = vunpack.c.l.b16 %v8623
        %v9136 = vunpack.c.l.b16 %v8624
        %v9137 = vunpack.c.l.b16 %v8625
        %v9138 = vunpack.c.l.b16 %v8626
        %v9139 = vunpack.c.l.b16 %v8627
        %v9140 = vunpack.c.l.b16 %v8628
        %v9141 = vunpack.c.l.b16 %v8629
        %v9142 = vunpack.c.l.b16 %v8630
        %v9143 = vunpack.c.l.b16 %v8631
        %v9144 = vunpack.c.l.b16 %v8632
        %v9145 = vunpack.c.l.b16 %v8633
        %v9146 = vunpack.c.l.b16 %v8634
        %v9147 = vunpack.c.l.b16 %v8635
        %v9148 = vunpack.c.l.b16 %v8636
        %v9149 = vunpack.c.l.b16 %v8637
        %v9150 = vunpack.c.l.b16 %v8638
        %v9151 = vunpack.c.l.b16 %v8639
        %v9152 = vunpack.c.l.b16 %v8640
        %v9153 = vunpack.c.l.b16 %v8641
        %v9154 = vunpack.c.l.b16 %v8642
        %v9155 = vunpack.c.l.b16 %v8643
        %v9156 = vunpack.c.l.b16 %v8644
        %v9157 = vunpack.c.l.b16 %v8645
        %v9158 = vunpack.c.l.b16 %v8646
        %v9159 = vunpack.c.l.b16 %v8647
        %v9160 = vunpack.c.l.b16 %v8648
        %v9161 = vunpack.c.l.b16 %v8649
        %v9162 = vunpack.c.l.b16 %v8650
        %v9163 = vunpack.c.l.b16 %v8651
        %v9164 = vunpack.c.l.b16 %v8652
        %v9165 = vunpack.c.l.b16 %v8653
        %v9166 = vunpack.c.l.b16 %v8654
        %v9167 = vunpack.c.l.b16 %v8655
        %v9168 = vunpack.c.l.b16 %v8656
        %v9169 = vunpack.c.l.b16 %v8657
        %v9170 = vunpack.c.l.b16 %v8658
        %v9171 = vunpack.c.l.b16 %v8659
        %v9172 = vunpack.c.l.b16 %v8660
        %v9173 = vunpack.c.l.b16 %v8661
        %v9174 = vunpack.c.l.b16 %v8662
        %v9175 = vunpack.c.l.b16 %v8663
        %v9176 = vunpack.c.l.b16 %v8664
        %v9177 = vunpack.c.l.b16 %v8665
        %v9178 = vunpack.c.l.b16 %v8666
        %v9179 = vunpack.c.l.b16 %v8667
        %v9180 = vunpack.c.l.b16 %v8668
        %v9181 = vunpack.c.l.b16 %v8669
        %v9182 = vunpack.c.l.b16 %v8670
        %v9183 = vunpack.c.l.b16 %v8671
        %v9184 = vunpack.c.l.b16 %v8672
        %v9185 = vunpack.c.l.b16 %v8673
        %v9186 = vunpack.c.l.b16 %v8674
        %v9187 = vunpack.c.l.b16 %v8675
        %v9188 = vunpack.c.l.b16 %v8676
        %v9189 = vunpack.c.l.b16 %v8677
        %v9190 = vunpack.c.l.b16 %v8678
        %v9191 = vunpack.c.l.b16 %v8679
        %v9192 = vunpack.c.l.b16 %v8680
        %v9193 = vunpack.c.l.b16 %v8681
        %v9194 = vunpack.c.l.b16 %v8682
        %v9195 = vunpack.c.l.b16 %v8683
        %v9196 = vunpack.c.l.b16 %v8684
        %v9197 = vunpack.c.l.b16 %v8685
        %v9198 = vunpack.c.l.b16 %v8686
        %v9199 = vunpack.c.l.b16 %v8687
        %v9200 = vunpack.c.l.b16 %v8688
        %v9201 = vunpack.c.l.b16 %v8689
        %v9202 = vunpack.c.l.b16 %v8690
        %v9203 = vunpack.c.l.b16 %v8691
        %v9204 = vunpack.c.l.b16 %v8692
        %v9205 = vunpack.c.l.b16 %v8693
        %v9206 = vunpack.c.l.b16 %v8694
        %v9207 = vunpack.c.l.b16 %v8695
        %v9208 = vunpack.c.l.b16 %v8696
        %v9209 = vunpack.c.l.b16 %v8697
        %v9210 = vunpack.c.l.b16 %v8698
        %v9211 = vunpack.c.l.b16 %v8699
        %v9212 = vunpack.c.l.b16 %v8700
        %v9213 = vunpack.c.l.b16 %v8701
        %v9214 = vunpack.c.l.b16 %v8702
        %v9215 = vunpack.c.l.b16 %v8703
        %v9216 = vunpack.c.l.b16 %v8704
        %v9217 = vunpack.c.l.b16 %v8705
        %v9218 = vunpack.c.l.b16 %v8706
        %v9219 = vunpack.c.l.b16 %v8707
        %v9220 = vunpack.c.l.b16 %v8708
        %v9221 = vunpack.c.l.b16 %v8709
        %v9222 = vunpack.c.l.b16 %v8710
        %v9223 = vunpack.c.l.b16 %v8711
        %v9224 = vunpack.c.l.b16 %v8712
        %v9225 = vunpack.c.l.b16 %v8713
        %v9226 = vunpack.c.l.b16 %v8714
        %v9227 = vunpack.c.l.b16 %v8715
        %v9228 = vunpack.c.l.b16 %v8716
        %v9229 = vunpack.c.l.b16 %v8717
        %v9230 = vunpack.c.l.b16 %v8718
        %v9231 = vunpack.c.l.b16 %v8719
        %v9232 = vunpack.c.l.b16 %v8720
        %v9233 = vunpack.c.l.b16 %v8721
        %v9234 = vunpack.c.l.b16 %v8722
        %v9235 = vunpack.c.l.b16 %v8723
        %v9236 = vunpack.c.l.b16 %v8724
        %v9237 = vunpack.c.l.b16 %v8725
        %v9238 = vunpack.c.l.b16 %v8726
        %v9239 = vunpack.c.l.b16 %v8727
        %v9240 = vunpack.c.l.b16 %v8728
        %v9241 = vunpack.c.l.b16 %v8729
        %v9242 = vunpack.c.l.b16 %v8730
        %v9243 = vunpack.c.l.b16 %v8731
        %v9244 = vunpack.c.l.b16 %v8732
        %v9245 = vunpack.c.l.b16 %v8733
        %v9246 = vunpack.c.l.b16 %v8734
        %v9247 = vunpack.c.l.b16 %v8735
        %v9248 = vunpack.c.l.b16 %v8736
        %v9249 = vunpack.c.l.b16 %v8737
        %v9250 = vunpack.c.l.b16 %v8738
        %v9251 = vunpack.c.l.b16 %v8739
        %v9252 = vunpack.c.l.b16 %v8740
        %v9253 = vunpack.c.l.b16 %v8741
        %v9254 = vunpack.c.l.b16 %v8742
        %v9255 = vunpack.c.l.b16 %v8743
        %v9256 = vunpack.c.l.b16 %v8744
        %v9257 = vunpack.c.l.b16 %v8745
        %v9258 = vunpack.c.l.b16 %v8746
        %v9259 = vunpack.c.l.b16 %v8747
        %v9260 = vunpack.c.l.b16 %v8748
        %v9261 = vunpack.c.l.b16 %v8749
        %v9262 = vunpack.c.l.b16 %v8750
        %v9263 = vunpack.c.l.b16 %v8751
        %v9264 = vunpack.c.l.b16 %v8752
        %v9265 = vunpack.c.l.b16 %v8753
        %v9266 = vunpack.c.l.b16 %v8754
        %v9267 = vunpack.c.l.b16 %v8755
        %v9268 = vunpack.c.l.b16 %v8756
        %v9269 = vunpack.c.l.b16 %v8757
        %v9270 = vunpack.c.l.b16 %v8758
        %v9271 = vunpack.c.l.b16 %v8759
        %v9272 = vunpack.c.l.b16 %v8760
        %v9273 = vunpack.c.l.b16 %v8761
        %v9274 = vunpack.c.l.b16 %v8762
        %v9275 = vunpack.c.l.b16 %v8763
        %v9276 = vunpack.c.l.b16 %v8764
        %v9277 = vunpack.c.l.b16 %v8765
        %v9278 = vunpack.c.l.b16 %v8766
        %v9279 = vunpack.c.l.b16 %v8767
        %v9280 = vunpack.c.l.b16 %v8768
        %v9281 = vunpack.c.l.b16 %v8769
        %v9282 = vunpack.c.l.b16 %v8770
        %v9283 = vunpack.c.l.b16 %v8771
        %v9284 = vunpack.c.l.b16 %v8772
        %v9285 = vunpack.c.l.b16 %v8773
        %v9286 = vunpack.c.l.b16 %v8774
        %v9287 = vunpack.c.l.b16 %v8775
        %v9288 = vunpack.c.l.b16 %v8776
        %v9289 = vunpack.c.l.b16 %v8777
        %v9290 = vunpack.c.l.b16 %v8778
        %v9291 = vunpack.c.l.b16 %v8779
        %v9292 = vunpack.c.l.b16 %v8780
        %v9293 = vunpack.c.l.b16 %v8781
        %v9294 = vunpack.c.l.b16 %v8782
        %v9295 = vunpack.c.l.b16 %v8783
        %v9296 = vunpack.c.l.b16 %v8784
        %v9297 = vunpack.c.l.b16 %v8785
        %v9298 = vunpack.c.l.b16 %v8786
        %v9299 = vunpack.c.l.b16 %v8787
        %v9300 = vunpack.c.l.b16 %v8788
        %v9301 = vunpack.c.l.b16 %v8789
        %v9302 = vunpack.c.l.b16 %v8790
        %v9303 = vunpack.c.l.b16 %v8791
        %v9304 = vunpack.c.l.b16 %v8792
        %v9305 = vunpack.c.l.b16 %v8793
        %v9306 = vunpack.c.l.b16 %v8794
        %v9307 = vunpack.c.l.b16 %v8795
        %v9308 = vunpack.c.l.b16 %v8796
        %v9309 = vunpack.c.l.b16 %v8797
        %v9310 = vunpack.c.l.b16 %v8798
        %v9311 = vpack.c.b16 %v9056, %v9055
        %v9312 = vpack.c.b16 %v9058, %v9057
        %v9313 = vpack.c.b16 %v9060, %v9059
        %v9314 = vpack.c.b16 %v9062, %v9061
        %v9315 = vpack.c.b16 %v9064, %v9063
        %v9316 = vpack.c.b16 %v9066, %v9065
        %v9317 = vpack.c.b16 %v9068, %v9067
        %v9318 = vpack.c.b16 %v9070, %v9069
        %v9319 = vpack.c.b16 %v9072, %v9071
        %v9320 = vpack.c.b16 %v9074, %v9073
        %v9321 = vpack.c.b16 %v9076, %v9075
        %v9322 = vpack.c.b16 %v9078, %v9077
        %v9323 = vpack.c.b16 %v9080, %v9079
        %v9324 = vpack.c.b16 %v9082, %v9081
        %v9325 = vpack.c.b16 %v9084, %v9083
        %v9326 = vpack.c.b16 %v9086, %v9085
        %v9327 = vpack.c.b16 %v9088, %v9087
        %v9328 = vpack.c.b16 %v9090, %v9089
        %v9329 = vpack.c.b16 %v9092, %v9091
        %v9330 = vpack.c.b16 %v9094, %v9093
        %v9331 = vpack.c.b16 %v9096, %v9095
        %v9332 = vpack.c.b16 %v9098, %v9097
        %v9333 = vpack.c.b16 %v9100, %v9099
        %v9334 = vpack.c.b16 %v9102, %v9101
        %v9335 = vpack.c.b16 %v9104, %v9103
        %v9336 = vpack.c.b16 %v9106, %v9105
        %v9337 = vpack.c.b16 %v9108, %v9107
        %v9338 = vpack.c.b16 %v9110, %v9109
        %v9339 = vpack.c.b16 %v9112, %v9111
        %v9340 = vpack.c.b16 %v9114, %v9113
        %v9341 = vpack.c.b16 %v9116, %v9115
        %v9342 = vpack.c.b16 %v9118, %v9117
        %v9343 = vpack.c.b16 %v9120, %v9119
        %v9344 = vpack.c.b16 %v9122, %v9121
        %v9345 = vpack.c.b16 %v9124, %v9123
        %v9346 = vpack.c.b16 %v9126, %v9125
        %v9347 = vpack.c.b16 %v9128, %v9127
        %v9348 = vpack.c.b16 %v9130, %v9129
        %v9349 = vpack.c.b16 %v9132, %v9131
        %v9350 = vpack.c.b16 %v9134, %v9133
        %v9351 = vpack.c.b16 %v9136, %v9135
        %v9352 = vpack.c.b16 %v9138, %v9137
        %v9353 = vpack.c.b16 %v9140, %v9139
        %v9354 = vpack.c.b16 %v9142, %v9141
        %v9355 = vpack.c.b16 %v9144, %v9143
        %v9356 = vpack.c.b16 %v9146, %v9145
        %v9357 = vpack.c.b16 %v9148, %v9147
        %v9358 = vpack.c.b16 %v9150, %v9149
        %v9359 = vpack.c.b16 %v9152, %v9151
        %v9360 = vpack.c.b16 %v9154, %v9153
        %v9361 = vpack.c.b16 %v9156, %v9155
        %v9362 = vpack.c.b16 %v9158, %v9157
        %v9363 = vpack.c.b16 %v9160, %v9159
        %v9364 = vpack.c.b16 %v9162, %v9161
        %v9365 = vpack.c.b16 %v9164, %v9163
        %v9366 = vpack.c.b16 %v9166, %v9165
        %v9367 = vpack.c.b16 %v9168, %v9167
        %v9368 = vpack.c.b16 %v9170, %v9169
        %v9369 = vpack.c.b16 %v9172, %v9171
        %v9370 = vpack.c.b16 %v9174, %v9173
        %v9371 = vpack.c.b16 %v9176, %v9175
        %v9372 = vpack.c.b16 %v9178, %v9177
        %v9373 = vpack.c.b16 %v9180, %v9179
        %v9374 = vpack.c.b16 %v9182, %v9181
        %v9375 = vpack.c.b16 %v9184, %v9183
        %v9376 = vpack.c.b16 %v9186, %v9185
        %v9377 = vpack.c.b16 %v9188, %v9187
        %v9378 = vpack.c.b16 %v9190, %v9189
        %v9379 = vpack.c.b16 %v9192, %v9191
        %v9380 = vpack.c.b16 %v9194, %v9193
        %v9381 = vpack.c.b16 %v9196, %v9195
        %v9382 = vpack.c.b16 %v9198, %v9197
        %v9383 = vpack.c.b16 %v9200, %v9199
        %v9384 = vpack.c.b16 %v9202, %v9201
        %v9385 = vpack.c.b16 %v9204, %v9203
        %v9386 = vpack.c.b16 %v9206, %v9205
        %v9387 = vpack.c.b16 %v9208, %v9207
        %v9388 = vpack.c.b16 %v9210, %v9209
        %v9389 = vpack.c.b16 %v9212, %v9211
        %v9390 = vpack.c.b16 %v9214, %v9213
        %v9391 = vpack.c.b16 %v9216, %v9215
        %v9392 = vpack.c.b16 %v9218, %v9217
        %v9393 = vpack.c.b16 %v9220, %v9219
        %v9394 = vpack.c.b16 %v9222, %v9221
        %v9395 = vpack.c.b16 %v9224, %v9223
        %v9396 = vpack.c.b16 %v9226, %v9225
        %v9397 = vpack.c.b16 %v9228, %v9227
        %v9398 = vpack.c.b16 %v9230, %v9229
        %v9399 = vpack.c.b16 %v9232, %v9231
        %v9400 = vpack.c.b16 %v9234, %v9233
        %v9401 = vpack.c.b16 %v9236, %v9235
        %v9402 = vpack.c.b16 %v9238, %v9237
        %v9403 = vpack.c.b16 %v9240, %v9239
        %v9404 = vpack.c.b16 %v9242, %v9241
        %v9405 = vpack.c.b16 %v9244, %v9243
        %v9406 = vpack.c.b16 %v9246, %v9245
        %v9407 = vpack.c.b16 %v9248, %v9247
        %v9408 = vpack.c.b16 %v9250, %v9249
        %v9409 = vpack.c.b16 %v9252, %v9251
        %v9410 = vpack.c.b16 %v9254, %v9253
        %v9411 = vpack.c.b16 %v9256, %v9255
        %v9412 = vpack.c.b16 %v9258, %v9257
        %v9413 = vpack.c.b16 %v9260, %v9259
        %v9414 = vpack.c.b16 %v9262, %v9261
        %v9415 = vpack.c.b16 %v9264, %v9263
        %v9416 = vpack.c.b16 %v9266, %v9265
        %v9417 = vpack.c.b16 %v9268, %v9267
        %v9418 = vpack.c.b16 %v9270, %v9269
        %v9419 = vpack.c.b16 %v9272, %v9271
        %v9420 = vpack.c.b16 %v9274, %v9273
        %v9421 = vpack.c.b16 %v9276, %v9275
        %v9422 = vpack.c.b16 %v9278, %v9277
        %v9423 = vpack.c.b16 %v9280, %v9279
        %v9424 = vpack.c.b16 %v9282, %v9281
        %v9425 = vpack.c.b16 %v9284, %v9283
        %v9426 = vpack.c.b16 %v9286, %v9285
        %v9427 = vpack.c.b16 %v9288, %v9287
        %v9428 = vpack.c.b16 %v9290, %v9289
        %v9429 = vpack.c.b16 %v9292, %v9291
        %v9430 = vpack.c.b16 %v9294, %v9293
        %v9431 = vpack.c.b16 %v9296, %v9295
        %v9432 = vpack.c.b16 %v9298, %v9297
        %v9433 = vpack.c.b16 %v9300, %v9299
        %v9434 = vpack.c.b16 %v9302, %v9301
        %v9435 = vpack.c.b16 %v9304, %v9303
        %v9436 = vpack.c.b16 %v9306, %v9305
        %v9437 = vpack.c.b16 %v9308, %v9307
        %v9438 = vpack.c.b16 %v9310, %v9309
        %9567 = vmatprep.subr.bf16.mxu0 0
        %9568 = vmatpush1.bf16.msra.mxu0 %v9318
        %9569 = vmatprep.subr.bf16.mxu0 0
        %9570 = vmatpush1.bf16.msra.mxu0 %v9317
        %9571 = vmatprep.subr.bf16.mxu0 0
        %9572 = vmatpush1.bf16.msra.mxu0 %v9316
        %9573 = vmatprep.subr.bf16.mxu0 0
        %9574 = vmatpush1.bf16.msra.mxu0 %v9315
        %9575 = vmatprep.subr.bf16.mxu0 0
        %9576 = vmatpush1.bf16.msra.mxu0 %v9314
        %9577 = vmatprep.subr.bf16.mxu0 0
        %9578 = vmatpush1.bf16.msra.mxu0 %v9313
        %9579 = vmatprep.subr.bf16.mxu0 0
        %9580 = vmatpush1.bf16.msra.mxu0 %v9312
        %9581 = vmatprep.subr.bf16.mxu0 0
        %9582 = vmatpush1.bf16.msra.mxu0 %v9311
        %9583 = vmatprep.subr.bf16.mxu0 0
        %9584 = vmatpush2.bf16.msra.mxu0 %v9326
        %9585 = vmatprep.subr.bf16.mxu0 0
        %9586 = vmatpush2.bf16.msra.mxu0 %v9325
        %9587 = vmatprep.subr.bf16.mxu0 0
        %9588 = vmatpush2.bf16.msra.mxu0 %v9324
        %9589 = vmatprep.subr.bf16.mxu0 0
        %9590 = vmatpush2.bf16.msra.mxu0 %v9323
        %9591 = vmatprep.subr.bf16.mxu0 0
        %9592 = vmatpush2.bf16.msra.mxu0 %v9322
        %9593 = vmatprep.subr.bf16.mxu0 0
        %9594 = vmatpush2.bf16.msra.mxu0 %v9321
        %9595 = vmatprep.subr.bf16.mxu0 0
        %9596 = vmatpush2.bf16.msra.mxu0 %v9320
        %9597 = vmatprep.subr.bf16.mxu0 0
        %9598 = vmatpush2.bf16.msra.mxu0 %v9319
        %9599 = vmatprep.mubr.bf16.mxu0 %v8528
        %9600 = vmatmul.mubr.bf16.gmra.mxu0 %v8527
        %v9601 = vpop.f32.mrf.mxu0
        %v9602 = vadd.f32 %v7978, %v9601
        %v9603 = vpop.f32.mrf.mxu0
        %v9604 = vpop.f32.mrf.mxu0
        %v9605 = vpop.f32.mrf.mxu0
        %9606 = vdwg.mxu0
        %9607 = vmatprep.subr.bf16.mxu0 0
        %9608 = vmatpush1.bf16.msra.mxu0 %v9334
        %9609 = vmatprep.subr.bf16.mxu0 0
        %9610 = vmatpush1.bf16.msra.mxu0 %v9333
        %9611 = vmatprep.subr.bf16.mxu0 0
        %9612 = vmatpush1.bf16.msra.mxu0 %v9332
        %9613 = vmatprep.subr.bf16.mxu0 0
        %9614 = vmatpush1.bf16.msra.mxu0 %v9331
        %9615 = vmatprep.subr.bf16.mxu0 0
        %9616 = vmatpush1.bf16.msra.mxu0 %v9330
        %9617 = vmatprep.subr.bf16.mxu0 0
        %9618 = vmatpush1.bf16.msra.mxu0 %v9329
        %9619 = vmatprep.subr.bf16.mxu0 0
        %9620 = vmatpush1.bf16.msra.mxu0 %v9328
        %9621 = vmatprep.subr.bf16.mxu0 0
        %9622 = vmatpush1.bf16.msra.mxu0 %v9327
        %9623 = vmatprep.subr.bf16.mxu0 0
        %9624 = vmatpush2.bf16.msra.mxu0 %v9342
        %9625 = vmatprep.subr.bf16.mxu0 0
        %9626 = vmatpush2.bf16.msra.mxu0 %v9341
        %9627 = vmatprep.subr.bf16.mxu0 0
        %9628 = vmatpush2.bf16.msra.mxu0 %v9340
        %9629 = vmatprep.subr.bf16.mxu0 0
        %9630 = vmatpush2.bf16.msra.mxu0 %v9339
        %9631 = vmatprep.subr.bf16.mxu0 0
        %9632 = vmatpush2.bf16.msra.mxu0 %v9338
        %9633 = vmatprep.subr.bf16.mxu0 0
        %9634 = vmatpush2.bf16.msra.mxu0 %v9337
        %9635 = vmatprep.subr.bf16.mxu0 0
        %9636 = vmatpush2.bf16.msra.mxu0 %v9336
        %9637 = vmatprep.subr.bf16.mxu0 0
        %9638 = vmatpush2.bf16.msra.mxu0 %v9335
        %9639 = vmatprep.mubr.bf16.mxu0 %v8530
        %9640 = vmatmul.mubr.bf16.gmra.mxu0 %v8529
        %v9641 = vpop.f32.mrf.mxu0
        %v9642 = vadd.f32 %v9602, %v9641
        %v9643 = vpop.f32.mrf.mxu0
        %v9644 = vpop.f32.mrf.mxu0
        %v9645 = vpop.f32.mrf.mxu0
        %9646 = vdwg.mxu0
        %9647 = vmatprep.subr.bf16.mxu0 0
        %9648 = vmatpush1.bf16.msra.mxu0 %v9350
        %9649 = vmatprep.subr.bf16.mxu0 0
        %9650 = vmatpush1.bf16.msra.mxu0 %v9349
        %9651 = vmatprep.subr.bf16.mxu0 0
        %9652 = vmatpush1.bf16.msra.mxu0 %v9348
        %9653 = vmatprep.subr.bf16.mxu0 0
        %9654 = vmatpush1.bf16.msra.mxu0 %v9347
        %9655 = vmatprep.subr.bf16.mxu0 0
        %9656 = vmatpush1.bf16.msra.mxu0 %v9346
        %9657 = vmatprep.subr.bf16.mxu0 0
        %9658 = vmatpush1.bf16.msra.mxu0 %v9345
        %9659 = vmatprep.subr.bf16.mxu0 0
        %9660 = vmatpush1.bf16.msra.mxu0 %v9344
        %9661 = vmatprep.subr.bf16.mxu0 0
        %9662 = vmatpush1.bf16.msra.mxu0 %v9343
        %9663 = vmatprep.subr.bf16.mxu0 0
        %9664 = vmatpush2.bf16.msra.mxu0 %v9358
        %9665 = vmatprep.subr.bf16.mxu0 0
        %9666 = vmatpush2.bf16.msra.mxu0 %v9357
        %9667 = vmatprep.subr.bf16.mxu0 0
        %9668 = vmatpush2.bf16.msra.mxu0 %v9356
        %9669 = vmatprep.subr.bf16.mxu0 0
        %9670 = vmatpush2.bf16.msra.mxu0 %v9355
        %9671 = vmatprep.subr.bf16.mxu0 0
        %9672 = vmatpush2.bf16.msra.mxu0 %v9354
        %9673 = vmatprep.subr.bf16.mxu0 0
        %9674 = vmatpush2.bf16.msra.mxu0 %v9353
        %9675 = vmatprep.subr.bf16.mxu0 0
        %9676 = vmatpush2.bf16.msra.mxu0 %v9352
        %9677 = vmatprep.subr.bf16.mxu0 0
        %9678 = vmatpush2.bf16.msra.mxu0 %v9351
        %9679 = vmatprep.mubr.bf16.mxu0 %v8532
        %9680 = vmatmul.mubr.bf16.gmra.mxu0 %v8531
        %v9681 = vpop.f32.mrf.mxu0
        %v9682 = vadd.f32 %v9642, %v9681
        %v9683 = vpop.f32.mrf.mxu0
        %v9684 = vpop.f32.mrf.mxu0
        %v9685 = vpop.f32.mrf.mxu0
        %9686 = vdwg.mxu0
        %9687 = vmatprep.subr.bf16.mxu0 0
        %9688 = vmatpush1.bf16.msra.mxu0 %v9366
        %9689 = vmatprep.subr.bf16.mxu0 0
        %9690 = vmatpush1.bf16.msra.mxu0 %v9365
        %9691 = vmatprep.subr.bf16.mxu0 0
        %9692 = vmatpush1.bf16.msra.mxu0 %v9364
        %9693 = vmatprep.subr.bf16.mxu0 0
        %9694 = vmatpush1.bf16.msra.mxu0 %v9363
        %9695 = vmatprep.subr.bf16.mxu0 0
        %9696 = vmatpush1.bf16.msra.mxu0 %v9362
        %9697 = vmatprep.subr.bf16.mxu0 0
        %9698 = vmatpush1.bf16.msra.mxu0 %v9361
        %9699 = vmatprep.subr.bf16.mxu0 0
        %9700 = vmatpush1.bf16.msra.mxu0 %v9360
        %9701 = vmatprep.subr.bf16.mxu0 0
        %9702 = vmatpush1.bf16.msra.mxu0 %v9359
        %9703 = vmatprep.subr.bf16.mxu0 0
        %9704 = vmatpush2.bf16.msra.mxu0 %v9374
        %9705 = vmatprep.subr.bf16.mxu0 0
        %9706 = vmatpush2.bf16.msra.mxu0 %v9373
        %9707 = vmatprep.subr.bf16.mxu0 0
        %9708 = vmatpush2.bf16.msra.mxu0 %v9372
        %9709 = vmatprep.subr.bf16.mxu0 0
        %9710 = vmatpush2.bf16.msra.mxu0 %v9371
        %9711 = vmatprep.subr.bf16.mxu0 0
        %9712 = vmatpush2.bf16.msra.mxu0 %v9370
        %9713 = vmatprep.subr.bf16.mxu0 0
        %9714 = vmatpush2.bf16.msra.mxu0 %v9369
        %9715 = vmatprep.subr.bf16.mxu0 0
        %9716 = vmatpush2.bf16.msra.mxu0 %v9368
        %9717 = vmatprep.subr.bf16.mxu0 0
        %9718 = vmatpush2.bf16.msra.mxu0 %v9367
        %9719 = vmatprep.mubr.bf16.mxu0 %v8534
        %9720 = vmatmul.mubr.bf16.gmra.mxu0 %v8533
        %v9721 = vpop.f32.mrf.mxu0
        %v9722 = vadd.f32 %v9682, %v9721
        %v9723 = vpop.f32.mrf.mxu0
        %v9724 = vpop.f32.mrf.mxu0
        %v9725 = vpop.f32.mrf.mxu0
        %9726 = vdwg.mxu0
        %9727 = vmatprep.subr.bf16.mxu0 0
        %9728 = vmatpush1.bf16.msra.mxu0 %v9382
        %9729 = vmatprep.subr.bf16.mxu0 0
        %9730 = vmatpush1.bf16.msra.mxu0 %v9381
        %9731 = vmatprep.subr.bf16.mxu0 0
        %9732 = vmatpush1.bf16.msra.mxu0 %v9380
        %9733 = vmatprep.subr.bf16.mxu0 0
        %9734 = vmatpush1.bf16.msra.mxu0 %v9379
        %9735 = vmatprep.subr.bf16.mxu0 0
        %9736 = vmatpush1.bf16.msra.mxu0 %v9378
        %9737 = vmatprep.subr.bf16.mxu0 0
        %9738 = vmatpush1.bf16.msra.mxu0 %v9377
        %9739 = vmatprep.subr.bf16.mxu0 0
        %9740 = vmatpush1.bf16.msra.mxu0 %v9376
        %9741 = vmatprep.subr.bf16.mxu0 0
        %9742 = vmatpush1.bf16.msra.mxu0 %v9375
        %9743 = vmatprep.subr.bf16.mxu0 0
        %9744 = vmatpush2.bf16.msra.mxu0 %v9390
        %9745 = vmatprep.subr.bf16.mxu0 0
        %9746 = vmatpush2.bf16.msra.mxu0 %v9389
        %9747 = vmatprep.subr.bf16.mxu0 0
        %9748 = vmatpush2.bf16.msra.mxu0 %v9388
        %9749 = vmatprep.subr.bf16.mxu0 0
        %9750 = vmatpush2.bf16.msra.mxu0 %v9387
        %9751 = vmatprep.subr.bf16.mxu0 0
        %9752 = vmatpush2.bf16.msra.mxu0 %v9386
        %9753 = vmatprep.subr.bf16.mxu0 0
        %9754 = vmatpush2.bf16.msra.mxu0 %v9385
        %9755 = vmatprep.subr.bf16.mxu0 0
        %9756 = vmatpush2.bf16.msra.mxu0 %v9384
        %9757 = vmatprep.subr.bf16.mxu0 0
        %9758 = vmatpush2.bf16.msra.mxu0 %v9383
        %9759 = vmatprep.mubr.bf16.mxu0 %v8536
        %9760 = vmatmul.mubr.bf16.gmra.mxu0 %v8535
        %v9761 = vpop.f32.mrf.mxu0
        %v9762 = vadd.f32 %v9722, %v9761
        %v9763 = vpop.f32.mrf.mxu0
        %v9764 = vpop.f32.mrf.mxu0
        %v9765 = vpop.f32.mrf.mxu0
        %9766 = vdwg.mxu0
        %9767 = vmatprep.subr.bf16.mxu0 0
        %9768 = vmatpush1.bf16.msra.mxu0 %v9398
        %9769 = vmatprep.subr.bf16.mxu0 0
        %9770 = vmatpush1.bf16.msra.mxu0 %v9397
        %9771 = vmatprep.subr.bf16.mxu0 0
        %9772 = vmatpush1.bf16.msra.mxu0 %v9396
        %9773 = vmatprep.subr.bf16.mxu0 0
        %9774 = vmatpush1.bf16.msra.mxu0 %v9395
        %9775 = vmatprep.subr.bf16.mxu0 0
        %9776 = vmatpush1.bf16.msra.mxu0 %v9394
        %9777 = vmatprep.subr.bf16.mxu0 0
        %9778 = vmatpush1.bf16.msra.mxu0 %v9393
        %9779 = vmatprep.subr.bf16.mxu0 0
        %9780 = vmatpush1.bf16.msra.mxu0 %v9392
        %9781 = vmatprep.subr.bf16.mxu0 0
        %9782 = vmatpush1.bf16.msra.mxu0 %v9391
        %9783 = vmatprep.subr.bf16.mxu0 0
        %9784 = vmatpush2.bf16.msra.mxu0 %v9406
        %9785 = vmatprep.subr.bf16.mxu0 0
        %9786 = vmatpush2.bf16.msra.mxu0 %v9405
        %9787 = vmatprep.subr.bf16.mxu0 0
        %9788 = vmatpush2.bf16.msra.mxu0 %v9404
        %9789 = vmatprep.subr.bf16.mxu0 0
        %9790 = vmatpush2.bf16.msra.mxu0 %v9403
        %9791 = vmatprep.subr.bf16.mxu0 0
        %9792 = vmatpush2.bf16.msra.mxu0 %v9402
        %9793 = vmatprep.subr.bf16.mxu0 0
        %9794 = vmatpush2.bf16.msra.mxu0 %v9401
        %9795 = vmatprep.subr.bf16.mxu0 0
        %9796 = vmatpush2.bf16.msra.mxu0 %v9400
        %9797 = vmatprep.subr.bf16.mxu0 0
        %9798 = vmatpush2.bf16.msra.mxu0 %v9399
        %9799 = vmatprep.mubr.bf16.mxu0 %v8538
        %9800 = vmatmul.mubr.bf16.gmra.mxu0 %v8537
        %v9801 = vpop.f32.mrf.mxu0
        %v9802 = vadd.f32 %v9762, %v9801
        %v9803 = vpop.f32.mrf.mxu0
        %v9804 = vpop.f32.mrf.mxu0
        %v9805 = vpop.f32.mrf.mxu0
        %9806 = vdwg.mxu0
        %9807 = vmatprep.subr.bf16.mxu0 0
        %9808 = vmatpush1.bf16.msra.mxu0 %v9414
        %9809 = vmatprep.subr.bf16.mxu0 0
        %9810 = vmatpush1.bf16.msra.mxu0 %v9413
        %9811 = vmatprep.subr.bf16.mxu0 0
        %9812 = vmatpush1.bf16.msra.mxu0 %v9412
        %9813 = vmatprep.subr.bf16.mxu0 0
        %9814 = vmatpush1.bf16.msra.mxu0 %v9411
        %9815 = vmatprep.subr.bf16.mxu0 0
        %9816 = vmatpush1.bf16.msra.mxu0 %v9410
        %9817 = vmatprep.subr.bf16.mxu0 0
        %9818 = vmatpush1.bf16.msra.mxu0 %v9409
        %9819 = vmatprep.subr.bf16.mxu0 0
        %9820 = vmatpush1.bf16.msra.mxu0 %v9408
        %9821 = vmatprep.subr.bf16.mxu0 0
        %9822 = vmatpush1.bf16.msra.mxu0 %v9407
        %9823 = vmatprep.subr.bf16.mxu0 0
        %9824 = vmatpush2.bf16.msra.mxu0 %v9422
        %9825 = vmatprep.subr.bf16.mxu0 0
        %9826 = vmatpush2.bf16.msra.mxu0 %v9421
        %9827 = vmatprep.subr.bf16.mxu0 0
        %9828 = vmatpush2.bf16.msra.mxu0 %v9420
        %9829 = vmatprep.subr.bf16.mxu0 0
        %9830 = vmatpush2.bf16.msra.mxu0 %v9419
        %9831 = vmatprep.subr.bf16.mxu0 0
        %9832 = vmatpush2.bf16.msra.mxu0 %v9418
        %9833 = vmatprep.subr.bf16.mxu0 0
        %9834 = vmatpush2.bf16.msra.mxu0 %v9417
        %9835 = vmatprep.subr.bf16.mxu0 0
        %9836 = vmatpush2.bf16.msra.mxu0 %v9416
        %9837 = vmatprep.subr.bf16.mxu0 0
        %9838 = vmatpush2.bf16.msra.mxu0 %v9415
        %9839 = vmatprep.mubr.bf16.mxu0 %v8540
        %9840 = vmatmul.mubr.bf16.gmra.mxu0 %v8539
        %v9841 = vpop.f32.mrf.mxu0
        %v9842 = vadd.f32 %v9802, %v9841
        %v9843 = vpop.f32.mrf.mxu0
        %v9844 = vpop.f32.mrf.mxu0
        %v9845 = vpop.f32.mrf.mxu0
        %9846 = vdwg.mxu0
        %9847 = vmatprep.subr.bf16.mxu0 0
        %9848 = vmatpush1.bf16.msra.mxu0 %v9430
        %9849 = vmatprep.subr.bf16.mxu0 0
        %9850 = vmatpush1.bf16.msra.mxu0 %v9429
        %9851 = vmatprep.subr.bf16.mxu0 0
        %9852 = vmatpush1.bf16.msra.mxu0 %v9428
        %9853 = vmatprep.subr.bf16.mxu0 0
        %9854 = vmatpush1.bf16.msra.mxu0 %v9427
        %9855 = vmatprep.subr.bf16.mxu0 0
        %9856 = vmatpush1.bf16.msra.mxu0 %v9426
        %9857 = vmatprep.subr.bf16.mxu0 0
        %9858 = vmatpush1.bf16.msra.mxu0 %v9425
        %9859 = vmatprep.subr.bf16.mxu0 0
        %9860 = vmatpush1.bf16.msra.mxu0 %v9424
        %9861 = vmatprep.subr.bf16.mxu0 0
        %9862 = vmatpush1.bf16.msra.mxu0 %v9423
        %9863 = vmatprep.subr.bf16.mxu0 0
        %9864 = vmatpush2.bf16.msra.mxu0 %v9438
        %9865 = vmatprep.subr.bf16.mxu0 0
        %9866 = vmatpush2.bf16.msra.mxu0 %v9437
        %9867 = vmatprep.subr.bf16.mxu0 0
        %9868 = vmatpush2.bf16.msra.mxu0 %v9436
        %9869 = vmatprep.subr.bf16.mxu0 0
        %9870 = vmatpush2.bf16.msra.mxu0 %v9435
        %9871 = vmatprep.subr.bf16.mxu0 0
        %9872 = vmatpush2.bf16.msra.mxu0 %v9434
        %9873 = vmatprep.subr.bf16.mxu0 0
        %9874 = vmatpush2.bf16.msra.mxu0 %v9433
        %9875 = vmatprep.subr.bf16.mxu0 0
        %9876 = vmatpush2.bf16.msra.mxu0 %v9432
        %9877 = vmatprep.subr.bf16.mxu0 0
        %9878 = vmatpush2.bf16.msra.mxu0 %v9431
        %9879 = vmatprep.mubr.bf16.mxu0 %v8542
        %9880 = vmatmul.mubr.bf16.gmra.mxu0 %v8541
        %v9881 = vpop.f32.mrf.mxu0
        %v9882 = vadd.f32 %v9842, %v9881
        %v9883 = vpop.f32.mrf.mxu0
        %v9884 = vpop.f32.mrf.mxu0
        %v9885 = vpop.f32.mrf.mxu0
        %9886 = vdwg.mxu0
        %v9887 = vsel %vm951, %v9882, 0.0
        %9888 = vadd.xlane.f32.xlu0 %v9887
        %v9889 = vpop.xlane.xlu0 %9888
        %v9890 = vmul.f32 %v9889, %v4208
        %v9891 = vmul.f32 %v9882, %v9882
        %v9892 = vsel %vm951, %v9891, 0.0
        %9893 = vadd.xlane.f32.xlu0 %v9892
        %v9894 = vpop.xlane.xlu0 %9893
        %v9895 = vmul.f32 %v9894, %v4208
        %v9896 = vmul.f32 %v9890, %v9890
        %v9897 = vsub.f32 %v9895, %v9896
        %v9898 = vsub.f32 %v9882, %v9890
        %v9899 = vadd.f32 %v9897, 1e-05
        %v9900 = vrsqrt.pop %v9899
        %v9901 = vmul.f32 %v9898, %v9900
        %9902 = vst.msk [vmem:[%s475] sm:$0xff] %vm951, %v9901
        %s9903 = sand.u32 %s302, 1
        %s9904 = scalar_lea.sflag [#allocation3], %s9903
        %s9905 = sand.u32 %s302, 1
        %s9906 = smul.addr %s9905, 8
        %s9907 = scalar_lea.vmem [#allocation2], %s9906
        %s9908 = sand.u32 %s32, 1
        %s9909 = scalar_lea.sflag [#allocation5], %s9908
        %s9910 = sand.u32 %s328, 1
        %s9911 = smul.addr %s9910, 64
        %s9912 = scalar_lea.vmem [#allocation4], %s9911
        %s9913 = sand.u32 %s32, 1
        %s9914 = scalar_lea.sflag [#allocation5], %s9913
        %s9915 = sand.u32 %s354, 1
        %s9916 = smul.addr %s9915, 64
        %s9917 = scalar_lea.vmem [#allocation6], %s9916
        // Predicated region
        $region69: #{decoder_layer_pallas.1} parent=67 // pred_check
          %p9918 = pneg %p312
        $region70: #{decoder_layer_pallas.1} parent=67 // pred_check_branch
          %9920 = sbr.rel (%p9918) target = $region72
        $region71: #{decoder_layer_pallas.1} parent=67 // pred_region
          %s9922 = ssub.s32 128, 128
          %9923 = vsyncadd %s9904, %s9922
          %s9924 = smul.addr %s32, 128
          %s9925 = scalar_lea.hbm %s12, %s9924
          %s9927 = sshll.u32 %s9907, 4
          %s9928 = int_to_ptr.vmem [resolvable:$true] %s9927
          %9930 = dma.vmem_to_hbm [thread:$0]  %s9928, 128, %s9925, %s9904
        $region72: #{decoder_layer_pallas.1} parent=67 // pred_fallthru
          _
        // Predicated region
        $region73: #{decoder_layer_pallas.1} parent=67 // pred_check
          %p9931 = pneg %p338
        $region74: #{decoder_layer_pallas.1} parent=67 // pred_check_branch
          %9933 = sbr.rel (%p9931) target = $region76
        $region75: #{decoder_layer_pallas.1} parent=67 // pred_region
          %s9935 = ssub.s32 1024, 1024
          %9936 = vsyncadd %s9909, %s9935
          %s9937 = smul.addr %s32, 8
          %s9938 = smul.addr %s9937, 128
          %s9939 = scalar_lea.hbm %s13, %s9938
          %s9940 = sshll.u32 %s9912, 4
          %s9941 = int_to_ptr.vmem [resolvable:$true] %s9940
          %9946 = dma.vmem_to_hbm [thread:$0]  %s9941, 1024, %s9939, %s9909, 128, 128, 8
        $region76: #{decoder_layer_pallas.1} parent=67 // pred_fallthru
          _
        // Predicated region
        $region77: #{decoder_layer_pallas.1} parent=67 // pred_check
          %p9947 = pneg %p364
        $region78: #{decoder_layer_pallas.1} parent=67 // pred_check_branch
          %9949 = sbr.rel (%p9947) target = $region80
        $region79: #{decoder_layer_pallas.1} parent=67 // pred_region
          %s9951 = ssub.s32 1024, 1024
          %9952 = vsyncadd %s9914, %s9951
          %s9953 = smul.addr %s32, 8
          %s9954 = smul.addr %s9953, 128
          %s9955 = scalar_lea.hbm %s14, %s9954
          %s9956 = sshll.u32 %s9917, 4
          %s9957 = int_to_ptr.vmem [resolvable:$true] %s9956
          %9962 = dma.vmem_to_hbm [thread:$0]  %s9957, 1024, %s9955, %s9914, 128, 128, 8
        $region80: #{decoder_layer_pallas.1} parent=67 // pred_fallthru
          _
      $region68: #{decoder_layer_pallas.1} parent=5 // pred_fallthru
        _
      %p9963 = scmp.le.s32.totalorder 2, %s27
      // Predicated region
      $region81: #{decoder_layer_pallas.1} parent=5 // pred_check
        %p9964 = pneg %p9963
      $region82: #{decoder_layer_pallas.1} parent=5 // pred_check_branch
        %9966 = sbr.rel (%p9964) target = $region84
      $region83: #{decoder_layer_pallas.1} parent=5 // pred_region
        %s9967 = ssub.s32 %s27, 2
        // Predicated region
        $region85: #{decoder_layer_pallas.1} parent=83 // pred_check
          %p9968 = pneg %p318
        $region86: #{decoder_layer_pallas.1} parent=83 // pred_check_branch
          %9970 = sbr.rel (%p9968) target = $region88
        $region87: #{decoder_layer_pallas.1} parent=83 // pred_region
          %s9971 = sand.u32 %s303, 1
          %s9972 = scalar_lea.sflag [#allocation3], %s9971
          %s9973 = sand.u32 %s303, 1
          %s9974 = smul.addr %s9973, 8
          %s9975 = scalar_lea.vmem [#allocation2], %s9974
          %9976 = dma.done %s9972, 128
        $region88: #{decoder_layer_pallas.1} parent=83 // pred_fallthru
          _
        // Predicated region
        $region89: #{decoder_layer_pallas.1} parent=83 // pred_check
          %p9977 = pneg %p344
        $region90: #{decoder_layer_pallas.1} parent=83 // pred_check_branch
          %9979 = sbr.rel (%p9977) target = $region92
        $region91: #{decoder_layer_pallas.1} parent=83 // pred_region
          %s9980 = sand.u32 %s33, 1
          %s9981 = scalar_lea.sflag [#allocation5], %s9980
          %s9982 = sand.u32 %s329, 1
          %s9983 = smul.addr %s9982, 64
          %s9984 = scalar_lea.vmem [#allocation4], %s9983
          %9985 = dma.done %s9981, 1024
        $region92: #{decoder_layer_pallas.1} parent=83 // pred_fallthru
          _
        // Predicated region
        $region93: #{decoder_layer_pallas.1} parent=83 // pred_check
          %p9986 = pneg %p370
        $region94: #{decoder_layer_pallas.1} parent=83 // pred_check_branch
          %9988 = sbr.rel (%p9986) target = $region96
        $region95: #{decoder_layer_pallas.1} parent=83 // pred_region
          %s9989 = sand.u32 %s33, 1
          %s9990 = scalar_lea.sflag [#allocation5], %s9989
          %s9991 = sand.u32 %s355, 1
          %s9992 = smul.addr %s9991, 64
          %s9993 = scalar_lea.vmem [#allocation6], %s9992
          %9994 = dma.done %s9990, 1024
        $region96: #{decoder_layer_pallas.1} parent=83 // pred_fallthru
          _
      $region84: #{decoder_layer_pallas.1} parent=5 // pred_fallthru
        _
    $region6: #{decoder_layer_pallas.1} parent=1 // loop_footer
      %s31 = sadd.s32 1, %s27
    $region7: #{decoder_layer_pallas.1} parent=1 // loop_footer_branch
      %26 = sbr.rel target = $region3
    $region8: #{decoder_layer_pallas.1} parent=1 // loop_exit
      _
    %9995 = vsyncpa [#allocation3], 1
    %s9996 = scalar_lea.sflag [#allocation3], 1
    %9997 = vsyncpa %s9996, 1
    %9998 = vsyncpa [#allocation5], 1
    %s9999 = scalar_lea.sflag [#allocation5], 1
    %10000 = vsyncpa %s9999, 1

</llo_original>
